<compile_context>
chip_gen: v5e
topology: v5e:2x2
jax: 0.10.0
libtpu: 0.0.40
codegen_flags: <defaults>
</compile_context>

<pallas_src>
import functools

import numpy as np
import jax
import jax.numpy as jnp
from jax.experimental import pallas as pl
from jax.experimental.pallas import tpu as pltpu

# ----------------------------- small Swin config -----------------------------
IMG = 16          # input spatial size
IN_CH = 3         # input channels
PATCH = 4         # patch size -> 4x4 token grid
EMBED = 32        # stage-0 embed dim
DEPTHS = (2, 2)   # blocks per stage
HEADS = (2, 4)    # heads per stage
WINDOW = 2        # window size
MLP_RATIO = 4
LN_EPS = 1e-5
NEG_INF = -1e9    # cross-window mask (underflows to exactly 0 after softmax)


# ------------------------------ in-kernel helpers ------------------------------
def _ln(x, g, b, eps=LN_EPS):
    mu = jnp.mean(x, axis=-1, keepdims=True)
    xc = x - mu
    var = jnp.mean(xc * xc, axis=-1, keepdims=True)
    return xc * jax.lax.rsqrt(var + eps) * g + b


def _bf(x):
    return x.astype(jnp.bfloat16)


def _attn_mlp_block(x, heads, n1g, n1b, qw, kw, vw, qb, kb, vb, bias,
                    pw, pjb, n2g, n2b, f1w, f1b, f2w, f2b):
    """One Swin block on the per-image (L, C) token slab.  Window partition,
    cyclic shift, rel-pos bias and the shift mask are all baked into `bias`
    (original token order), so attention is a plain biased softmax-attention."""
    D = qw.shape[-1]
    scale = float(D) ** -0.5

    # ---------------- attention branch ----------------
    y = _ln(x, n1g[...], n1b[...])
    yb = _bf(y)
    attn = None
    for h in range(heads):                       # static unroll (2 or 4 heads)
        q = jnp.dot(yb, qw[h], preferred_element_type=jnp.float32) + qb[h]
        k = jnp.dot(yb, kw[h], preferred_element_type=jnp.float32) + kb[h]
        v = jnp.dot(yb, vw[h], preferred_element_type=jnp.float32) + vb[h]
        s = jax.lax.dot_general(_bf(q), _bf(k), (((1,), (1,)), ((), ())),
                                preferred_element_type=jnp.float32) * scale
        s = s + bias[h]
        s = s - jnp.max(s, axis=-1, keepdims=True)
        p = jnp.exp(s)
        p = p / jnp.sum(p, axis=-1, keepdims=True)          # exact normalisation
        o_h = jnp.dot(_bf(p), _bf(v), preferred_element_type=jnp.float32)
        contrib = jnp.dot(_bf(o_h), pw[h], preferred_element_type=jnp.float32)
        attn = contrib if attn is None else attn + contrib
    x1 = x + attn + pjb[...]

    # ------------------- MLP branch -------------------
    z = _ln(x1, n2g[...], n2b[...])
    h1 = jnp.dot(_bf(z), f1w[...], preferred_element_type=jnp.float32) + f1b[...]
    # TODO(synk): PyTorch nn.GELU() defaults to the exact erf form; the tanh
    # approximation is used here for a Mosaic-safe in-kernel lowering.
    h1 = jax.nn.gelu(h1, approximate=True)
    h2 = jnp.dot(_bf(h1), f2w[...], preferred_element_type=jnp.float32) + f2b[...]
    return x1 + h2


def _patch_merge(x, C, gsel, mg, mb, rw):
    """PatchMerging: 2x2 quadrant gather via tiny selection matmuls, LayerNorm(4C)
    with statistics accumulated over the 4 quadrants (no (L/4, 4C) concat is ever
    materialised), and the bias-free Linear(4C -> 2C) via per-quadrant slices."""
    parts = [jnp.dot(gsel[k], x, preferred_element_type=jnp.float32) for k in range(4)]
    ssum = sum(jnp.sum(p, axis=-1, keepdims=True) for p in parts)
    ssq = sum(jnp.sum(p * p, axis=-1, keepdims=True) for p in parts)
    mean = ssum * (1.0 / (4.0 * C))
    var = ssq * (1.0 / (4.0 * C)) - mean * mean
    inv = jax.lax.rsqrt(var + LN_EPS)
    out = None
    for k in range(4):
        nk = (parts[k] - mean) * inv * mg[k] + mb[k]
        t = jnp.dot(_bf(nk), rw[k], preferred_element_type=jnp.float32)
        out = t if out is None else out + t
    return out


# ------------------------------- fused network kernel -------------------------------
def _swin_net_kernel(*refs):
    """Entire forward_features for ONE image (one grid step == one image)."""
    o_ref = refs[-1]
    it = iter(refs[:-1])
    x_ref = next(it)

    # ----- patch embed: im2col'd 4x4/stride-4 conv (matmul) + LayerNorm -----
    pw = next(it); pb = next(it); pg = next(it); pbeta = next(it)
    x = jnp.dot(_bf(x_ref[0]), pw[...], preferred_element_type=jnp.float32) + pb[...]
    x = _ln(x, pg[...], pbeta[...])

    # ----- stages -----
    for s, (depth, heads) in enumerate(zip(DEPTHS, HEADS)):
        C = EMBED * (2 ** s)
        for _blk in range(depth):
            blk_refs = [next(it) for _ in range(17)]
            x = _attn_mlp_block(x, heads, *blk_refs)
        if s < len(DEPTHS) - 1:
            gsel = next(it); mg = next(it); mb = next(it); rw = next(it)
            x = _patch_merge(x, C, gsel, mg, mb, rw)

    # ----- final LayerNorm + AdaptiveAvgPool1d(1) over tokens -----
    fg = next(it); fb = next(it)
    y = _ln(x, fg[...], fb[...])
    pooled = jnp.mean(y, axis=0, keepdims=True)              # (1, C_final)
    o_ref[0] = jnp.broadcast_to(pooled, o_ref.shape[1:]).astype(o_ref.dtype)


# --------------------------- host-side constant tables ---------------------------
@functools.lru_cache(maxsize=None)
def _rel_pos_index_np(ws):
    coords = np.stack(np.meshgrid(np.arange(ws), np.arange(ws), indexing="ij"))
    cf = coords.reshape(2, -1)
    rel = (cf[:, :, None] - cf[:, None, :]).transpose(1, 2, 0).astype(np.int64)
    rel[:, :, 0] += ws - 1
    rel[:, :, 1] += ws - 1
    rel[:, :, 0] *= 2 * ws - 1
    return rel.sum(-1)                                        # (N, N)


@functools.lru_cache(maxsize=None)
def _shift_mask_np(H, W, ws, shift):
    img = np.zeros((H, W), np.float32)
    cnt = 0
    for hs in (slice(0, -ws), slice(-ws, -shift), slice(-shift, None)):
        for wsl in (slice(0, -ws), slice(-ws, -shift), slice(-shift, None)):
            img[hs, wsl] = float(cnt)
            cnt += 1
    mw = img.reshape(H // ws, ws, W // ws, ws).transpose(0, 2, 1, 3).reshape(-1, ws * ws)
    m = mw[:, None, :] - mw[:, :, None]
    return np.where(m != 0, -100.0, 0.0).astype(np.float32)  # (nW, N, N)


@functools.lru_cache(maxsize=None)
def _window_perm_np(H, W, ws, shift):
    """window-ordered index q -> original token index (roll by -shift + partition)."""
    perm = np.empty((H * W,), np.int64)
    q = 0
    for wh in range(H // ws):
        for ww in range(W // ws):
            for ih in range(ws):
                for iw in range(ws):
                    perm[q] = ((wh * ws + ih + shift) % H) * W + ((ww * ws + iw + shift) % W)
                    q += 1
    return perm


def _attn_bias_np(rpb_table, heads, ws, H, W, shift):
    """(heads, L, L) attention bias in ORIGINAL token order: rel-pos bias + shift
    mask on intra-window pairs, NEG_INF on cross-window pairs.  The window
    partition / cyclic shift permutation is conjugated into the bias, so the
    kernel needs no permutation matmuls."""
    N = ws * ws
    nW = (H // ws) * (W // ws)
    L = H * W
    rpi = _rel_pos_index_np(ws).reshape(-1)
    rpb = rpb_table[rpi].reshape(N, N, heads).transpose(2, 0, 1)      # (heads, N, N)
    sm = _shift_mask_np(H, W, ws, shift) if shift > 0 else np.zeros((nW, N, N), np.float32)
    bw = np.full((heads, L, L), NEG_INF, np.float32)                  # window order
    for w in range(nW):
        sl = slice(w * N, (w + 1) * N)
        bw[:, sl, sl] = rpb + sm[w][None]
    perm = _window_perm_np(H, W, ws, shift)
    borig = np.full((heads, L, L), NEG_INF, np.float32)
    borig[:, perm[:, None], perm[None, :]] = bw                       # conjugate by perm
    return borig


@functools.lru_cache(maxsize=None)
def _merge_select_np(H, W):
    """(4, L/4, L) 0/1 selection matrices picking the four 2x2 quadrants
    (x[0::2,0::2], x[1::2,0::2], x[0::2,1::2], x[1::2,1::2]) in Swin concat order."""
    Lq = (H // 2) * (W // 2)
    G = np.zeros((4, Lq, H * W), np.float32)
    for h2 in range(H // 2):
        for w2 in range(W // 2):
            t = h2 * (W // 2) + w2
            G[0, t, (2 * h2) * W + (2 * w2)] = 1.0
            G[1, t, (2 * h2 + 1) * W + (2 * w2)] = 1.0
            G[2, t, (2 * h2) * W + (2 * w2 + 1)] = 1.0
            G[3, t, (2 * h2 + 1) * W + (2 * w2 + 1)] = 1.0
    return G


# --------------------------- operand preparation (host, once) ---------------------------
def build_kernel_operands(params):
    """Flatten params into the kernel operand list.  Run ONCE outside the jitted
    forward: per-head weight slicing, bf16 casts and all bias / selection
    constants are prepared here, never per forward pass."""
    def row(a):
        return jnp.asarray(np.asarray(a, np.float32).reshape(1, -1))

    def f32(a):
        return jnp.asarray(np.asarray(a, np.float32))

    def bf16(a):
        return jnp.asarray(np.asarray(a, np.float32), jnp.bfloat16)

    ops = []
    pe = params["patch_embed"]
    ops += [bf16(pe["proj_w"]), row(pe["proj_b"]), row(pe["norm_g"]), row(pe["norm_b"])]

    H = W = IMG // PATCH
    for s, (depth, heads) in enumerate(zip(DEPTHS, HEADS)):
        C = EMBED * (2 ** s)
        D = C // heads
        ws = min(WINDOW, H, W)
        for blk in range(depth):
            p = params["stages"][s]["blocks"][blk]
            shift = 0 if (blk % 2 == 0 or min(H, W) <= WINDOW) else ws // 2
            qkv_w = np.asarray(p["qkv_w"], np.float32)       # (C, 3C), x @ W layout
            qkv_b = np.asarray(p["qkv_b"], np.float32)       # (3C,)
            qw, kw, vw = (qkv_w[:, i * C:(i + 1) * C].reshape(C, heads, D).transpose(1, 0, 2)
                          for i in range(3))                 # (heads, C, D) each
            qb, kb, vb = (qkv_b[i * C:(i + 1) * C].reshape(heads, 1, D) for i in range(3))
            bias = _attn_bias_np(np.asarray(p["rpb_table"], np.float32),
                                 heads, ws, H, W, shift)     # (heads, L, L)
            pw = np.asarray(p["proj_w"], np.float32).reshape(heads, D, C)
            ops += [row(p["norm1_g"]), row(p["norm1_b"]),
                    bf16(qw), bf16(kw), bf16(vw), f32(qb), f32(kb), f32(vb),
                    f32(bias),
                    bf16(pw), row(p["proj_b"]),
                    row(p["norm2_g"]), row(p["norm2_b"]),
                    bf16(p["fc1_w"]), row(p["fc1_b"]),
                    bf16(p["fc2_w"]), row(p["fc2_b"])]       # 17 operands / block
        if s < len(DEPTHS) - 1:
            mp = params["stages"][s]["merge"]
            ops += [f32(_merge_select_np(H, W)),
                    f32(np.asarray(mp["norm_g"], np.float32).reshape(4, 1, C)),
                    f32(np.asarray(mp["norm_b"], np.float32).reshape(4, 1, C)),
                    bf16(np.asarray(mp["red_w"], np.float32).reshape(4, C, 2 * C))]
            H //= 2
            W //= 2
    ops += [row(params["norm_g"]), row(params["norm_b"])]
    return ops


# ------------------------------- forward wrapper -------------------------------
def forward_features(x_nchw, operands):
    """Full CustomSwin.forward_features as a single pallas_call (grid over batch)."""
    B = x_nchw.shape[0]
    Hp = Wp = IMG // PATCH
    L0 = Hp * Wp
    F = IN_CH * PATCH * PATCH
    C_final = EMBED * (2 ** (len(DEPTHS) - 1))

    # im2col for the 4x4/stride-4 patch conv (feature order (Cin, kh, kw) = torch
    # Conv2d weight flatten order); one cheap XLA transpose, the rest is in-kernel.
    xp = x_nchw.reshape(B, IN_CH, Hp, PATCH, Wp, PATCH)
    xp = xp.transpose(0, 2, 4, 1, 3, 5).reshape(B, L0, F)

    def _const_map(ndim):
        zeros = (0,) * ndim
        return lambda b: zeros

    in_specs = [pl.BlockSpec((1, L0, F), lambda b: (b, 0, 0))]
    in_specs += [pl.BlockSpec(op.shape, _const_map(op.ndim)) for op in operands]

    out = pl.pallas_call(
        _swin_net_kernel,
        grid=(B,),
        in_specs=in_specs,
        out_specs=pl.BlockSpec((1, 8, C_final), lambda b: (b, 0, 0)),
        out_shape=jax.ShapeDtypeStruct((B, 8, C_final), jnp.float32),
        compiler_params=pltpu.CompilerParams(
            dimension_semantics=("parallel",)),   # shards images over v7x's 2 TCs
    )(xp, *operands)
    # pooled feature vector was broadcast over the 8 padding rows; take row 0.
    return out[:, 0, :]


# ------------------------------ parameter init ------------------------------
def init_params(key):
    keys = iter(jax.random.split(key, 256))

    def nrm(shape, std=0.02):
        return (std * jax.random.normal(next(keys), shape)).astype(jnp.float32)

    params = {
        "patch_embed": dict(
            proj_w=nrm((IN_CH * PATCH * PATCH, EMBED)),
            proj_b=jnp.zeros((EMBED,), jnp.float32),
            norm_g=jnp.ones((EMBED,), jnp.float32),
            norm_b=jnp.zeros((EMBED,), jnp.float32),
        )
    }
    dims = [EMBED * (2 ** i) for i in range(len(DEPTHS))]
    stages = []
    for s, (depth, heads) in enumerate(zip(DEPTHS, HEADS)):
        C = dims[s]
        blocks = []
        for _ in range(depth):
            blocks.append(dict(
                norm1_g=jnp.ones((C,), jnp.float32), norm1_b=jnp.zeros((C,), jnp.float32),
                qkv_w=nrm((C, 3 * C)), qkv_b=jnp.zeros((3 * C,), jnp.float32),
                rpb_table=nrm(((2 * WINDOW - 1) ** 2, heads)),
                proj_w=nrm((C, C)), proj_b=jnp.zeros((C,), jnp.float32),
                norm2_g=jnp.ones((C,), jnp.float32), norm2_b=jnp.zeros((C,), jnp.float32),
                fc1_w=nrm((C, MLP_RATIO * C)), fc1_b=jnp.zeros((MLP_RATIO * C,), jnp.float32),
                fc2_w=nrm((MLP_RATIO * C, C)), fc2_b=jnp.zeros((C,), jnp.float32),
            ))
        stage = dict(blocks=blocks)
        if s < len(DEPTHS) - 1:
            stage["merge"] = dict(
                norm_g=jnp.ones((4 * C,), jnp.float32),
                norm_b=jnp.zeros((4 * C,), jnp.float32),
                red_w=nrm((4 * C, 2 * C)),
            )
        stages.append(stage)
    params["stages"] = stages
    C_last = dims[-1]
    params["norm_g"] = jnp.ones((C_last,), jnp.float32)
    params["norm_b"] = jnp.zeros((C_last,), jnp.float32)
    return params


# ----------------------------------- main -----------------------------------
if __name__ == "__main__":
    key = jax.random.PRNGKey(0)
    kp, kx = jax.random.split(key)
    params = init_params(kp)
    operands = build_kernel_operands(params)               # host-side, once
    x = jax.random.normal(kx, (2, IN_CH, IMG, IMG), jnp.float32)   # NCHW like PyTorch

    fwd = jax.jit(forward_features)
    out = jax.block_until_ready(fwd(x, operands))

    expected_c = EMBED * (2 ** (len(DEPTHS) - 1))          # analogue of hidden_dim
    assert out.shape == (2, expected_c), out.shape
    assert bool(jnp.all(jnp.isfinite(out)))
    print("KERNEL_OK")
</pallas_src>

<mosaic_0001>
module attributes {stable_mosaic.version = 11 : i64} {
  func.func @_swin_net_kernel(%arg0: i32, %arg1: memref<1x16x48xf32, #tpu.memory_space<vmem>>, %arg2: memref<48x32xbf16, #tpu.memory_space<vmem>>, %arg3: memref<1x32xf32, #tpu.memory_space<vmem>>, %arg4: memref<1x32xf32, #tpu.memory_space<vmem>>, %arg5: memref<1x32xf32, #tpu.memory_space<vmem>>, %arg6: memref<1x32xf32, #tpu.memory_space<vmem>>, %arg7: memref<1x32xf32, #tpu.memory_space<vmem>>, %arg8: memref<2x32x16xbf16, #tpu.memory_space<vmem>>, %arg9: memref<2x32x16xbf16, #tpu.memory_space<vmem>>, %arg10: memref<2x32x16xbf16, #tpu.memory_space<vmem>>, %arg11: memref<2x1x16xf32, #tpu.memory_space<vmem>>, %arg12: memref<2x1x16xf32, #tpu.memory_space<vmem>>, %arg13: memref<2x1x16xf32, #tpu.memory_space<vmem>>, %arg14: memref<2x16x16xf32, #tpu.memory_space<vmem>>, %arg15: memref<2x16x32xbf16, #tpu.memory_space<vmem>>, %arg16: memref<1x32xf32, #tpu.memory_space<vmem>>, %arg17: memref<1x32xf32, #tpu.memory_space<vmem>>, %arg18: memref<1x32xf32, #tpu.memory_space<vmem>>, %arg19: memref<32x128xbf16, #tpu.memory_space<vmem>>, %arg20: memref<1x128xf32, #tpu.memory_space<vmem>>, %arg21: memref<128x32xbf16, #tpu.memory_space<vmem>>, %arg22: memref<1x32xf32, #tpu.memory_space<vmem>>, %arg23: memref<1x32xf32, #tpu.memory_space<vmem>>, %arg24: memref<1x32xf32, #tpu.memory_space<vmem>>, %arg25: memref<2x32x16xbf16, #tpu.memory_space<vmem>>, %arg26: memref<2x32x16xbf16, #tpu.memory_space<vmem>>, %arg27: memref<2x32x16xbf16, #tpu.memory_space<vmem>>, %arg28: memref<2x1x16xf32, #tpu.memory_space<vmem>>, %arg29: memref<2x1x16xf32, #tpu.memory_space<vmem>>, %arg30: memref<2x1x16xf32, #tpu.memory_space<vmem>>, %arg31: memref<2x16x16xf32, #tpu.memory_space<vmem>>, %arg32: memref<2x16x32xbf16, #tpu.memory_space<vmem>>, %arg33: memref<1x32xf32, #tpu.memory_space<vmem>>, %arg34: memref<1x32xf32, #tpu.memory_space<vmem>>, %arg35: memref<1x32xf32, #tpu.memory_space<vmem>>, %arg36: memref<32x128xbf16, #tpu.memory_space<vmem>>, %arg37: memref<1x128xf32, #tpu.memory_space<vmem>>, %arg38: memref<128x32xbf16, #tpu.memory_space<vmem>>, %arg39: memref<1x32xf32, #tpu.memory_space<vmem>>, %arg40: memref<4x4x16xf32, #tpu.memory_space<vmem>>, %arg41: memref<4x1x32xf32, #tpu.memory_space<vmem>>, %arg42: memref<4x1x32xf32, #tpu.memory_space<vmem>>, %arg43: memref<4x32x64xbf16, #tpu.memory_space<vmem>>, %arg44: memref<1x64xf32, #tpu.memory_space<vmem>>, %arg45: memref<1x64xf32, #tpu.memory_space<vmem>>, %arg46: memref<4x64x16xbf16, #tpu.memory_space<vmem>>, %arg47: memref<4x64x16xbf16, #tpu.memory_space<vmem>>, %arg48: memref<4x64x16xbf16, #tpu.memory_space<vmem>>, %arg49: memref<4x1x16xf32, #tpu.memory_space<vmem>>, %arg50: memref<4x1x16xf32, #tpu.memory_space<vmem>>, %arg51: memref<4x1x16xf32, #tpu.memory_space<vmem>>, %arg52: memref<4x4x4xf32, #tpu.memory_space<vmem>>, %arg53: memref<4x16x64xbf16, #tpu.memory_space<vmem>>, %arg54: memref<1x64xf32, #tpu.memory_space<vmem>>, %arg55: memref<1x64xf32, #tpu.memory_space<vmem>>, %arg56: memref<1x64xf32, #tpu.memory_space<vmem>>, %arg57: memref<64x256xbf16, #tpu.memory_space<vmem>>, %arg58: memref<1x256xf32, #tpu.memory_space<vmem>>, %arg59: memref<256x64xbf16, #tpu.memory_space<vmem>>, %arg60: memref<1x64xf32, #tpu.memory_space<vmem>>, %arg61: memref<1x64xf32, #tpu.memory_space<vmem>>, %arg62: memref<1x64xf32, #tpu.memory_space<vmem>>, %arg63: memref<4x64x16xbf16, #tpu.memory_space<vmem>>, %arg64: memref<4x64x16xbf16, #tpu.memory_space<vmem>>, %arg65: memref<4x64x16xbf16, #tpu.memory_space<vmem>>, %arg66: memref<4x1x16xf32, #tpu.memory_space<vmem>>, %arg67: memref<4x1x16xf32, #tpu.memory_space<vmem>>, %arg68: memref<4x1x16xf32, #tpu.memory_space<vmem>>, %arg69: memref<4x4x4xf32, #tpu.memory_space<vmem>>, %arg70: memref<4x16x64xbf16, #tpu.memory_space<vmem>>, %arg71: memref<1x64xf32, #tpu.memory_space<vmem>>, %arg72: memref<1x64xf32, #tpu.memory_space<vmem>>, %arg73: memref<1x64xf32, #tpu.memory_space<vmem>>, %arg74: memref<64x256xbf16, #tpu.memory_space<vmem>>, %arg75: memref<1x256xf32, #tpu.memory_space<vmem>>, %arg76: memref<256x64xbf16, #tpu.memory_space<vmem>>, %arg77: memref<1x64xf32, #tpu.memory_space<vmem>>, %arg78: memref<1x64xf32, #tpu.memory_space<vmem>>, %arg79: memref<1x64xf32, #tpu.memory_space<vmem>>, %arg80: memref<1x8x64xf32, #tpu.memory_space<vmem>>) attributes {dimension_semantics = [#tpu.dimension_semantics<parallel>], iteration_bounds = array<i64: 2>, scalar_prefetch = 0 : i64, scratch_operands = 0 : i64, tpu.core_type = #tpu.core_type<tc>, window_params = [{transform_indices = @transform_0, window_bounds = array<i64: 1, 16, 48>}, {pipeline_mode = #tpu.pipeline_mode<synchronous>, transform_indices = @transform_1, window_bounds = array<i64: 48, 32>}, {pipeline_mode = #tpu.pipeline_mode<synchronous>, transform_indices = @transform_2, window_bounds = array<i64: 1, 32>}, {pipeline_mode = #tpu.pipeline_mode<synchronous>, transform_indices = @transform_3, window_bounds = array<i64: 1, 32>}, {pipeline_mode = #tpu.pipeline_mode<synchronous>, transform_indices = @transform_4, window_bounds = array<i64: 1, 32>}, {pipeline_mode = #tpu.pipeline_mode<synchronous>, transform_indices = @transform_5, window_bounds = array<i64: 1, 32>}, {pipeline_mode = #tpu.pipeline_mode<synchronous>, transform_indices = @transform_6, window_bounds = array<i64: 1, 32>}, {pipeline_mode = #tpu.pipeline_mode<synchronous>, transform_indices = @transform_7, window_bounds = array<i64: 2, 32, 16>}, {pipeline_mode = #tpu.pipeline_mode<synchronous>, transform_indices = @transform_8, window_bounds = array<i64: 2, 32, 16>}, {pipeline_mode = #tpu.pipeline_mode<synchronous>, transform_indices = @transform_9, window_bounds = array<i64: 2, 32, 16>}, {pipeline_mode = #tpu.pipeline_mode<synchronous>, transform_indices = @transform_10, window_bounds = array<i64: 2, 1, 16>}, {pipeline_mode = #tpu.pipeline_mode<synchronous>, transform_indices = @transform_11, window_bounds = array<i64: 2, 1, 16>}, {pipeline_mode = #tpu.pipeline_mode<synchronous>, transform_indices = @transform_12, window_bounds = array<i64: 2, 1, 16>}, {pipeline_mode = #tpu.pipeline_mode<synchronous>, transform_indices = @transform_13, window_bounds = array<i64: 2, 16, 16>}, {pipeline_mode = #tpu.pipeline_mode<synchronous>, transform_indices = @transform_14, window_bounds = array<i64: 2, 16, 32>}, {pipeline_mode = #tpu.pipeline_mode<synchronous>, transform_indices = @transform_15, window_bounds = array<i64: 1, 32>}, {pipeline_mode = #tpu.pipeline_mode<synchronous>, transform_indices = @transform_16, window_bounds = array<i64: 1, 32>}, {pipeline_mode = #tpu.pipeline_mode<synchronous>, transform_indices = @transform_17, window_bounds = array<i64: 1, 32>}, {pipeline_mode = #tpu.pipeline_mode<synchronous>, transform_indices = @transform_18, window_bounds = array<i64: 32, 128>}, {pipeline_mode = #tpu.pipeline_mode<synchronous>, transform_indices = @transform_19, window_bounds = array<i64: 1, 128>}, {pipeline_mode = #tpu.pipeline_mode<synchronous>, transform_indices = @transform_20, window_bounds = array<i64: 128, 32>}, {pipeline_mode = #tpu.pipeline_mode<synchronous>, transform_indices = @transform_21, window_bounds = array<i64: 1, 32>}, {pipeline_mode = #tpu.pipeline_mode<synchronous>, transform_indices = @transform_22, window_bounds = array<i64: 1, 32>}, {pipeline_mode = #tpu.pipeline_mode<synchronous>, transform_indices = @transform_23, window_bounds = array<i64: 1, 32>}, {pipeline_mode = #tpu.pipeline_mode<synchronous>, transform_indices = @transform_24, window_bounds = array<i64: 2, 32, 16>}, {pipeline_mode = #tpu.pipeline_mode<synchronous>, transform_indices = @transform_25, window_bounds = array<i64: 2, 32, 16>}, {pipeline_mode = #tpu.pipeline_mode<synchronous>, transform_indices = @transform_26, window_bounds = array<i64: 2, 32, 16>}, {pipeline_mode = #tpu.pipeline_mode<synchronous>, transform_indices = @transform_27, window_bounds = array<i64: 2, 1, 16>}, {pipeline_mode = #tpu.pipeline_mode<synchronous>, transform_indices = @transform_28, window_bounds = array<i64: 2, 1, 16>}, {pipeline_mode = #tpu.pipeline_mode<synchronous>, transform_indices = @transform_29, window_bounds = array<i64: 2, 1, 16>}, {pipeline_mode = #tpu.pipeline_mode<synchronous>, transform_indices = @transform_30, window_bounds = array<i64: 2, 16, 16>}, {pipeline_mode = #tpu.pipeline_mode<synchronous>, transform_indices = @transform_31, window_bounds = array<i64: 2, 16, 32>}, {pipeline_mode = #tpu.pipeline_mode<synchronous>, transform_indices = @transform_32, window_bounds = array<i64: 1, 32>}, {pipeline_mode = #tpu.pipeline_mode<synchronous>, transform_indices = @transform_33, window_bounds = array<i64: 1, 32>}, {pipeline_mode = #tpu.pipeline_mode<synchronous>, transform_indices = @transform_34, window_bounds = array<i64: 1, 32>}, {pipeline_mode = #tpu.pipeline_mode<synchronous>, transform_indices = @transform_35, window_bounds = array<i64: 32, 128>}, {pipeline_mode = #tpu.pipeline_mode<synchronous>, transform_indices = @transform_36, window_bounds = array<i64: 1, 128>}, {pipeline_mode = #tpu.pipeline_mode<synchronous>, transform_indices = @transform_37, window_bounds = array<i64: 128, 32>}, {pipeline_mode = #tpu.pipeline_mode<synchronous>, transform_indices = @transform_38, window_bounds = array<i64: 1, 32>}, {pipeline_mode = #tpu.pipeline_mode<synchronous>, transform_indices = @transform_39, window_bounds = array<i64: 4, 4, 16>}, {pipeline_mode = #tpu.pipeline_mode<synchronous>, transform_indices = @transform_40, window_bounds = array<i64: 4, 1, 32>}, {pipeline_mode = #tpu.pipeline_mode<synchronous>, transform_indices = @transform_41, window_bounds = array<i64: 4, 1, 32>}, {pipeline_mode = #tpu.pipeline_mode<synchronous>, transform_indices = @transform_42, window_bounds = array<i64: 4, 32, 64>}, {pipeline_mode = #tpu.pipeline_mode<synchronous>, transform_indices = @transform_43, window_bounds = array<i64: 1, 64>}, {pipeline_mode = #tpu.pipeline_mode<synchronous>, transform_indices = @transform_44, window_bounds = array<i64: 1, 64>}, {pipeline_mode = #tpu.pipeline_mode<synchronous>, transform_indices = @transform_45, window_bounds = array<i64: 4, 64, 16>}, {pipeline_mode = #tpu.pipeline_mode<synchronous>, transform_indices = @transform_46, window_bounds = array<i64: 4, 64, 16>}, {pipeline_mode = #tpu.pipeline_mode<synchronous>, transform_indices = @transform_47, window_bounds = array<i64: 4, 64, 16>}, {pipeline_mode = #tpu.pipeline_mode<synchronous>, transform_indices = @transform_48, window_bounds = array<i64: 4, 1, 16>}, {pipeline_mode = #tpu.pipeline_mode<synchronous>, transform_indices = @transform_49, window_bounds = array<i64: 4, 1, 16>}, {pipeline_mode = #tpu.pipeline_mode<synchronous>, transform_indices = @transform_50, window_bounds = array<i64: 4, 1, 16>}, {pipeline_mode = #tpu.pipeline_mode<synchronous>, transform_indices = @transform_51, window_bounds = array<i64: 4, 4, 4>}, {pipeline_mode = #tpu.pipeline_mode<synchronous>, transform_indices = @transform_52, window_bounds = array<i64: 4, 16, 64>}, {pipeline_mode = #tpu.pipeline_mode<synchronous>, transform_indices = @transform_53, window_bounds = array<i64: 1, 64>}, {pipeline_mode = #tpu.pipeline_mode<synchronous>, transform_indices = @transform_54, window_bounds = array<i64: 1, 64>}, {pipeline_mode = #tpu.pipeline_mode<synchronous>, transform_indices = @transform_55, window_bounds = array<i64: 1, 64>}, {pipeline_mode = #tpu.pipeline_mode<synchronous>, transform_indices = @transform_56, window_bounds = array<i64: 64, 256>}, {pipeline_mode = #tpu.pipeline_mode<synchronous>, transform_indices = @transform_57, window_bounds = array<i64: 1, 256>}, {pipeline_mode = #tpu.pipeline_mode<synchronous>, transform_indices = @transform_58, window_bounds = array<i64: 256, 64>}, {pipeline_mode = #tpu.pipeline_mode<synchronous>, transform_indices = @transform_59, window_bounds = array<i64: 1, 64>}, {pipeline_mode = #tpu.pipeline_mode<synchronous>, transform_indices = @transform_60, window_bounds = array<i64: 1, 64>}, {pipeline_mode = #tpu.pipeline_mode<synchronous>, transform_indices = @transform_61, window_bounds = array<i64: 1, 64>}, {pipeline_mode = #tpu.pipeline_mode<synchronous>, transform_indices = @transform_62, window_bounds = array<i64: 4, 64, 16>}, {pipeline_mode = #tpu.pipeline_mode<synchronous>, transform_indices = @transform_63, window_bounds = array<i64: 4, 64, 16>}, {pipeline_mode = #tpu.pipeline_mode<synchronous>, transform_indices = @transform_64, window_bounds = array<i64: 4, 64, 16>}, {pipeline_mode = #tpu.pipeline_mode<synchronous>, transform_indices = @transform_65, window_bounds = array<i64: 4, 1, 16>}, {pipeline_mode = #tpu.pipeline_mode<synchronous>, transform_indices = @transform_66, window_bounds = array<i64: 4, 1, 16>}, {pipeline_mode = #tpu.pipeline_mode<synchronous>, transform_indices = @transform_67, window_bounds = array<i64: 4, 1, 16>}, {pipeline_mode = #tpu.pipeline_mode<synchronous>, transform_indices = @transform_68, window_bounds = array<i64: 4, 4, 4>}, {pipeline_mode = #tpu.pipeline_mode<synchronous>, transform_indices = @transform_69, window_bounds = array<i64: 4, 16, 64>}, {pipeline_mode = #tpu.pipeline_mode<synchronous>, transform_indices = @transform_70, window_bounds = array<i64: 1, 64>}, {pipeline_mode = #tpu.pipeline_mode<synchronous>, transform_indices = @transform_71, window_bounds = array<i64: 1, 64>}, {pipeline_mode = #tpu.pipeline_mode<synchronous>, transform_indices = @transform_72, window_bounds = array<i64: 1, 64>}, {pipeline_mode = #tpu.pipeline_mode<synchronous>, transform_indices = @transform_73, window_bounds = array<i64: 64, 256>}, {pipeline_mode = #tpu.pipeline_mode<synchronous>, transform_indices = @transform_74, window_bounds = array<i64: 1, 256>}, {pipeline_mode = #tpu.pipeline_mode<synchronous>, transform_indices = @transform_75, window_bounds = array<i64: 256, 64>}, {pipeline_mode = #tpu.pipeline_mode<synchronous>, transform_indices = @transform_76, window_bounds = array<i64: 1, 64>}, {pipeline_mode = #tpu.pipeline_mode<synchronous>, transform_indices = @transform_77, window_bounds = array<i64: 1, 64>}, {pipeline_mode = #tpu.pipeline_mode<synchronous>, transform_indices = @transform_78, window_bounds = array<i64: 1, 64>}, {transform_indices = @transform_79, window_bounds = array<i64: 1, 8, 64>}]} {
    %c0 = arith.constant 0 : index
    %c0_0 = arith.constant 0 : index
    %c0_1 = arith.constant 0 : index
    %0 = vector.load %arg1[%c0, %c0_0, %c0_1] : memref<1x16x48xf32, #tpu.memory_space<vmem>>, vector<1x16x48xf32>
    %1 = vector.shape_cast %0 : vector<1x16x48xf32> to vector<16x48xf32>
    %2 = arith.truncf %1 : vector<16x48xf32> to vector<16x48xbf16>
    %c0_2 = arith.constant 0 : index
    %c0_3 = arith.constant 0 : index
    %3 = vector.load %arg2[%c0_2, %c0_3] : memref<48x32xbf16, #tpu.memory_space<vmem>>, vector<48x32xbf16>
    %cst = arith.constant dense<0.000000e+00> : vector<16x32xf32>
    %4 = tpu.matmul %2, %3, %cst {dimension_numbers = #tpu.dot_dimension_numbers<[1], [0], [0], [1], [0, 0, 1, 1], [], []>} : vector<16x48xbf16>, vector<48x32xbf16>, vector<16x32xf32> -> vector<16x32xf32>
    %c0_4 = arith.constant 0 : index
    %c0_5 = arith.constant 0 : index
    %5 = vector.load %arg3[%c0_4, %c0_5] : memref<1x32xf32, #tpu.memory_space<vmem>>, vector<1x32xf32>
    %6 = vector.broadcast %5 : vector<1x32xf32> to vector<16x32xf32>
    %7 = arith.addf %4, %6 : vector<16x32xf32>
    %c0_6 = arith.constant 0 : index
    %c0_7 = arith.constant 0 : index
    %8 = vector.load %arg4[%c0_6, %c0_7] : memref<1x32xf32, #tpu.memory_space<vmem>>, vector<1x32xf32>
    %c0_8 = arith.constant 0 : index
    %c0_9 = arith.constant 0 : index
    %9 = vector.load %arg5[%c0_8, %c0_9] : memref<1x32xf32, #tpu.memory_space<vmem>>, vector<1x32xf32>
    %cst_10 = arith.constant dense<0.000000e+00> : vector<16xf32>
    %10 = vector.multi_reduction <add>, %7, %cst_10 [1] : vector<16x32xf32> to vector<16xf32>
    %11 = vector.shape_cast %10 : vector<16xf32> to vector<16x1xf32>
    %cst_11 = arith.constant 3.200000e+01 : f32
    %12 = vector.broadcast %cst_11 : f32 to vector<16x1xf32>
    %13 = arith.divf %11, %12 : vector<16x1xf32>
    %14 = vector.broadcast %13 : vector<16x1xf32> to vector<16x32xf32>
    %15 = arith.subf %7, %14 : vector<16x32xf32>
    %16 = arith.mulf %15, %15 : vector<16x32xf32>
    %cst_12 = arith.constant dense<0.000000e+00> : vector<16xf32>
    %17 = vector.multi_reduction <add>, %16, %cst_12 [1] : vector<16x32xf32> to vector<16xf32>
    %18 = vector.shape_cast %17 : vector<16xf32> to vector<16x1xf32>
    %cst_13 = arith.constant 3.200000e+01 : f32
    %19 = vector.broadcast %cst_13 : f32 to vector<16x1xf32>
    %20 = arith.divf %18, %19 : vector<16x1xf32>
    %cst_14 = arith.constant 9.99999974E-6 : f32
    %21 = vector.broadcast %cst_14 : f32 to vector<16x1xf32>
    %22 = arith.addf %20, %21 : vector<16x1xf32>
    %23 = math.rsqrt %22 : vector<16x1xf32>
    %24 = vector.broadcast %23 : vector<16x1xf32> to vector<16x32xf32>
    %25 = arith.mulf %15, %24 : vector<16x32xf32>
    %26 = vector.broadcast %8 : vector<1x32xf32> to vector<16x32xf32>
    %27 = arith.mulf %25, %26 : vector<16x32xf32>
    %28 = vector.broadcast %9 : vector<1x32xf32> to vector<16x32xf32>
    %29 = arith.addf %27, %28 : vector<16x32xf32>
    %c0_15 = arith.constant 0 : index
    %c0_16 = arith.constant 0 : index
    %30 = vector.load %arg6[%c0_15, %c0_16] : memref<1x32xf32, #tpu.memory_space<vmem>>, vector<1x32xf32>
    %c0_17 = arith.constant 0 : index
    %c0_18 = arith.constant 0 : index
    %31 = vector.load %arg7[%c0_17, %c0_18] : memref<1x32xf32, #tpu.memory_space<vmem>>, vector<1x32xf32>
    %cst_19 = arith.constant dense<0.000000e+00> : vector<16xf32>
    %32 = vector.multi_reduction <add>, %29, %cst_19 [1] : vector<16x32xf32> to vector<16xf32>
    %33 = vector.shape_cast %32 : vector<16xf32> to vector<16x1xf32>
    %cst_20 = arith.constant 3.200000e+01 : f32
    %34 = vector.broadcast %cst_20 : f32 to vector<16x1xf32>
    %35 = arith.divf %33, %34 : vector<16x1xf32>
    %36 = vector.broadcast %35 : vector<16x1xf32> to vector<16x32xf32>
    %37 = arith.subf %29, %36 : vector<16x32xf32>
    %38 = arith.mulf %37, %37 : vector<16x32xf32>
    %cst_21 = arith.constant dense<0.000000e+00> : vector<16xf32>
    %39 = vector.multi_reduction <add>, %38, %cst_21 [1] : vector<16x32xf32> to vector<16xf32>
    %40 = vector.shape_cast %39 : vector<16xf32> to vector<16x1xf32>
    %cst_22 = arith.constant 3.200000e+01 : f32
    %41 = vector.broadcast %cst_22 : f32 to vector<16x1xf32>
    %42 = arith.divf %40, %41 : vector<16x1xf32>
    %cst_23 = arith.constant 9.99999974E-6 : f32
    %43 = vector.broadcast %cst_23 : f32 to vector<16x1xf32>
    %44 = arith.addf %42, %43 : vector<16x1xf32>
    %45 = math.rsqrt %44 : vector<16x1xf32>
    %46 = vector.broadcast %45 : vector<16x1xf32> to vector<16x32xf32>
    %47 = arith.mulf %37, %46 : vector<16x32xf32>
    %48 = vector.broadcast %30 : vector<1x32xf32> to vector<16x32xf32>
    %49 = arith.mulf %47, %48 : vector<16x32xf32>
    %50 = vector.broadcast %31 : vector<1x32xf32> to vector<16x32xf32>
    %51 = arith.addf %49, %50 : vector<16x32xf32>
    %52 = arith.truncf %51 : vector<16x32xf32> to vector<16x32xbf16>
    %c0_24 = arith.constant 0 : index
    %c0_25 = arith.constant 0 : index
    %c0_26 = arith.constant 0 : index
    %53 = vector.load %arg8[%c0_24, %c0_25, %c0_26] : memref<2x32x16xbf16, #tpu.memory_space<vmem>>, vector<1x32x16xbf16>
    %54 = vector.shape_cast %53 : vector<1x32x16xbf16> to vector<32x16xbf16>
    %cst_27 = arith.constant dense<0.000000e+00> : vector<16x16xf32>
    %55 = tpu.matmul %52, %54, %cst_27 {dimension_numbers = #tpu.dot_dimension_numbers<[1], [0], [0], [1], [0, 0, 1, 1], [], []>} : vector<16x32xbf16>, vector<32x16xbf16>, vector<16x16xf32> -> vector<16x16xf32>
    %c0_28 = arith.constant 0 : index
    %c0_29 = arith.constant 0 : index
    %c0_30 = arith.constant 0 : index
    %56 = vector.load %arg11[%c0_28, %c0_29, %c0_30] : memref<2x1x16xf32, #tpu.memory_space<vmem>>, vector<1x1x16xf32>
    %57 = vector.shape_cast %56 : vector<1x1x16xf32> to vector<1x16xf32>
    %58 = vector.broadcast %57 : vector<1x16xf32> to vector<16x16xf32>
    %59 = arith.addf %55, %58 : vector<16x16xf32>
    %c0_31 = arith.constant 0 : index
    %c0_32 = arith.constant 0 : index
    %c0_33 = arith.constant 0 : index
    %60 = vector.load %arg9[%c0_31, %c0_32, %c0_33] : memref<2x32x16xbf16, #tpu.memory_space<vmem>>, vector<1x32x16xbf16>
    %61 = vector.shape_cast %60 : vector<1x32x16xbf16> to vector<32x16xbf16>
    %cst_34 = arith.constant dense<0.000000e+00> : vector<16x16xf32>
    %62 = tpu.matmul %52, %61, %cst_34 {dimension_numbers = #tpu.dot_dimension_numbers<[1], [0], [0], [1], [0, 0, 1, 1], [], []>} : vector<16x32xbf16>, vector<32x16xbf16>, vector<16x16xf32> -> vector<16x16xf32>
    %c0_35 = arith.constant 0 : index
    %c0_36 = arith.constant 0 : index
    %c0_37 = arith.constant 0 : index
    %63 = vector.load %arg12[%c0_35, %c0_36, %c0_37] : memref<2x1x16xf32, #tpu.memory_space<vmem>>, vector<1x1x16xf32>
    %64 = vector.shape_cast %63 : vector<1x1x16xf32> to vector<1x16xf32>
    %65 = vector.broadcast %64 : vector<1x16xf32> to vector<16x16xf32>
    %66 = arith.addf %62, %65 : vector<16x16xf32>
    %c0_38 = arith.constant 0 : index
    %c0_39 = arith.constant 0 : index
    %c0_40 = arith.constant 0 : index
    %67 = vector.load %arg10[%c0_38, %c0_39, %c0_40] : memref<2x32x16xbf16, #tpu.memory_space<vmem>>, vector<1x32x16xbf16>
    %68 = vector.shape_cast %67 : vector<1x32x16xbf16> to vector<32x16xbf16>
    %cst_41 = arith.constant dense<0.000000e+00> : vector<16x16xf32>
    %69 = tpu.matmul %52, %68, %cst_41 {dimension_numbers = #tpu.dot_dimension_numbers<[1], [0], [0], [1], [0, 0, 1, 1], [], []>} : vector<16x32xbf16>, vector<32x16xbf16>, vector<16x16xf32> -> vector<16x16xf32>
    %c0_42 = arith.constant 0 : index
    %c0_43 = arith.constant 0 : index
    %c0_44 = arith.constant 0 : index
    %70 = vector.load %arg13[%c0_42, %c0_43, %c0_44] : memref<2x1x16xf32, #tpu.memory_space<vmem>>, vector<1x1x16xf32>
    %71 = vector.shape_cast %70 : vector<1x1x16xf32> to vector<1x16xf32>
    %72 = vector.broadcast %71 : vector<1x16xf32> to vector<16x16xf32>
    %73 = arith.addf %69, %72 : vector<16x16xf32>
    %74 = arith.truncf %59 : vector<16x16xf32> to vector<16x16xbf16>
    %75 = arith.truncf %66 : vector<16x16xf32> to vector<16x16xbf16>
    %cst_45 = arith.constant dense<0.000000e+00> : vector<16x16xf32>
    %76 = tpu.matmul %74, %75, %cst_45 {dimension_numbers = #tpu.dot_dimension_numbers<[1], [1], [0], [0], [0, 0, 1, 0], [], []>} : vector<16x16xbf16>, vector<16x16xbf16>, vector<16x16xf32> -> vector<16x16xf32>
    %cst_46 = arith.constant 2.500000e-01 : f32
    %77 = vector.broadcast %cst_46 : f32 to vector<16x16xf32>
    %78 = arith.mulf %76, %77 : vector<16x16xf32>
    %c0_47 = arith.constant 0 : index
    %c0_48 = arith.constant 0 : index
    %c0_49 = arith.constant 0 : index
    %79 = vector.load %arg14[%c0_47, %c0_48, %c0_49] : memref<2x16x16xf32, #tpu.memory_space<vmem>>, vector<1x16x16xf32>
    %80 = vector.shape_cast %79 : vector<1x16x16xf32> to vector<16x16xf32>
    %81 = arith.addf %78, %80 : vector<16x16xf32>
    %cst_50 = arith.constant dense<0xFF800000> : vector<16xf32>
    %82 = vector.multi_reduction <maximumf>, %81, %cst_50 [1] : vector<16x16xf32> to vector<16xf32>
    %83 = vector.shape_cast %82 : vector<16xf32> to vector<16x1xf32>
    %84 = vector.broadcast %83 : vector<16x1xf32> to vector<16x16xf32>
    %85 = arith.subf %81, %84 : vector<16x16xf32>
    %86 = math.exp %85 : vector<16x16xf32>
    %cst_51 = arith.constant dense<0.000000e+00> : vector<16xf32>
    %87 = vector.multi_reduction <add>, %86, %cst_51 [1] : vector<16x16xf32> to vector<16xf32>
    %88 = vector.shape_cast %87 : vector<16xf32> to vector<16x1xf32>
    %89 = vector.broadcast %88 : vector<16x1xf32> to vector<16x16xf32>
    %90 = arith.divf %86, %89 : vector<16x16xf32>
    %91 = arith.truncf %90 : vector<16x16xf32> to vector<16x16xbf16>
    %92 = arith.truncf %73 : vector<16x16xf32> to vector<16x16xbf16>
    %cst_52 = arith.constant dense<0.000000e+00> : vector<16x16xf32>
    %93 = tpu.matmul %91, %92, %cst_52 {dimension_numbers = #tpu.dot_dimension_numbers<[1], [0], [0], [1], [0, 0, 1, 1], [], []>} : vector<16x16xbf16>, vector<16x16xbf16>, vector<16x16xf32> -> vector<16x16xf32>
    %94 = arith.truncf %93 : vector<16x16xf32> to vector<16x16xbf16>
    %c0_53 = arith.constant 0 : index
    %c0_54 = arith.constant 0 : index
    %c0_55 = arith.constant 0 : index
    %95 = vector.load %arg15[%c0_53, %c0_54, %c0_55] : memref<2x16x32xbf16, #tpu.memory_space<vmem>>, vector<1x16x32xbf16>
    %96 = vector.shape_cast %95 : vector<1x16x32xbf16> to vector<16x32xbf16>
    %cst_56 = arith.constant dense<0.000000e+00> : vector<16x32xf32>
    %97 = tpu.matmul %94, %96, %cst_56 {dimension_numbers = #tpu.dot_dimension_numbers<[1], [0], [0], [1], [0, 0, 1, 1], [], []>} : vector<16x16xbf16>, vector<16x32xbf16>, vector<16x32xf32> -> vector<16x32xf32>
    %c1 = arith.constant 1 : index
    %c0_57 = arith.constant 0 : index
    %c0_58 = arith.constant 0 : index
    %98 = vector.load %arg8[%c1, %c0_57, %c0_58] : memref<2x32x16xbf16, #tpu.memory_space<vmem>>, vector<1x32x16xbf16>
    %99 = vector.shape_cast %98 : vector<1x32x16xbf16> to vector<32x16xbf16>
    %cst_59 = arith.constant dense<0.000000e+00> : vector<16x16xf32>
    %100 = tpu.matmul %52, %99, %cst_59 {dimension_numbers = #tpu.dot_dimension_numbers<[1], [0], [0], [1], [0, 0, 1, 1], [], []>} : vector<16x32xbf16>, vector<32x16xbf16>, vector<16x16xf32> -> vector<16x16xf32>
    %c1_60 = arith.constant 1 : index
    %c0_61 = arith.constant 0 : index
    %c0_62 = arith.constant 0 : index
    %101 = vector.load %arg11[%c1_60, %c0_61, %c0_62] : memref<2x1x16xf32, #tpu.memory_space<vmem>>, vector<1x1x16xf32>
    %102 = vector.shape_cast %101 : vector<1x1x16xf32> to vector<1x16xf32>
    %103 = vector.broadcast %102 : vector<1x16xf32> to vector<16x16xf32>
    %104 = arith.addf %100, %103 : vector<16x16xf32>
    %c1_63 = arith.constant 1 : index
    %c0_64 = arith.constant 0 : index
    %c0_65 = arith.constant 0 : index
    %105 = vector.load %arg9[%c1_63, %c0_64, %c0_65] : memref<2x32x16xbf16, #tpu.memory_space<vmem>>, vector<1x32x16xbf16>
    %106 = vector.shape_cast %105 : vector<1x32x16xbf16> to vector<32x16xbf16>
    %cst_66 = arith.constant dense<0.000000e+00> : vector<16x16xf32>
    %107 = tpu.matmul %52, %106, %cst_66 {dimension_numbers = #tpu.dot_dimension_numbers<[1], [0], [0], [1], [0, 0, 1, 1], [], []>} : vector<16x32xbf16>, vector<32x16xbf16>, vector<16x16xf32> -> vector<16x16xf32>
    %c1_67 = arith.constant 1 : index
    %c0_68 = arith.constant 0 : index
    %c0_69 = arith.constant 0 : index
    %108 = vector.load %arg12[%c1_67, %c0_68, %c0_69] : memref<2x1x16xf32, #tpu.memory_space<vmem>>, vector<1x1x16xf32>
    %109 = vector.shape_cast %108 : vector<1x1x16xf32> to vector<1x16xf32>
    %110 = vector.broadcast %109 : vector<1x16xf32> to vector<16x16xf32>
    %111 = arith.addf %107, %110 : vector<16x16xf32>
    %c1_70 = arith.constant 1 : index
    %c0_71 = arith.constant 0 : index
    %c0_72 = arith.constant 0 : index
    %112 = vector.load %arg10[%c1_70, %c0_71, %c0_72] : memref<2x32x16xbf16, #tpu.memory_space<vmem>>, vector<1x32x16xbf16>
    %113 = vector.shape_cast %112 : vector<1x32x16xbf16> to vector<32x16xbf16>
    %cst_73 = arith.constant dense<0.000000e+00> : vector<16x16xf32>
    %114 = tpu.matmul %52, %113, %cst_73 {dimension_numbers = #tpu.dot_dimension_numbers<[1], [0], [0], [1], [0, 0, 1, 1], [], []>} : vector<16x32xbf16>, vector<32x16xbf16>, vector<16x16xf32> -> vector<16x16xf32>
    %c1_74 = arith.constant 1 : index
    %c0_75 = arith.constant 0 : index
    %c0_76 = arith.constant 0 : index
    %115 = vector.load %arg13[%c1_74, %c0_75, %c0_76] : memref<2x1x16xf32, #tpu.memory_space<vmem>>, vector<1x1x16xf32>
    %116 = vector.shape_cast %115 : vector<1x1x16xf32> to vector<1x16xf32>
    %117 = vector.broadcast %116 : vector<1x16xf32> to vector<16x16xf32>
    %118 = arith.addf %114, %117 : vector<16x16xf32>
    %119 = arith.truncf %104 : vector<16x16xf32> to vector<16x16xbf16>
    %120 = arith.truncf %111 : vector<16x16xf32> to vector<16x16xbf16>
    %cst_77 = arith.constant dense<0.000000e+00> : vector<16x16xf32>
    %121 = tpu.matmul %119, %120, %cst_77 {dimension_numbers = #tpu.dot_dimension_numbers<[1], [1], [0], [0], [0, 0, 1, 0], [], []>} : vector<16x16xbf16>, vector<16x16xbf16>, vector<16x16xf32> -> vector<16x16xf32>
    %cst_78 = arith.constant 2.500000e-01 : f32
    %122 = vector.broadcast %cst_78 : f32 to vector<16x16xf32>
    %123 = arith.mulf %121, %122 : vector<16x16xf32>
    %c1_79 = arith.constant 1 : index
    %c0_80 = arith.constant 0 : index
    %c0_81 = arith.constant 0 : index
    %124 = vector.load %arg14[%c1_79, %c0_80, %c0_81] : memref<2x16x16xf32, #tpu.memory_space<vmem>>, vector<1x16x16xf32>
    %125 = vector.shape_cast %124 : vector<1x16x16xf32> to vector<16x16xf32>
    %126 = arith.addf %123, %125 : vector<16x16xf32>
    %cst_82 = arith.constant dense<0xFF800000> : vector<16xf32>
    %127 = vector.multi_reduction <maximumf>, %126, %cst_82 [1] : vector<16x16xf32> to vector<16xf32>
    %128 = vector.shape_cast %127 : vector<16xf32> to vector<16x1xf32>
    %129 = vector.broadcast %128 : vector<16x1xf32> to vector<16x16xf32>
    %130 = arith.subf %126, %129 : vector<16x16xf32>
    %131 = math.exp %130 : vector<16x16xf32>
    %cst_83 = arith.constant dense<0.000000e+00> : vector<16xf32>
    %132 = vector.multi_reduction <add>, %131, %cst_83 [1] : vector<16x16xf32> to vector<16xf32>
    %133 = vector.shape_cast %132 : vector<16xf32> to vector<16x1xf32>
    %134 = vector.broadcast %133 : vector<16x1xf32> to vector<16x16xf32>
    %135 = arith.divf %131, %134 : vector<16x16xf32>
    %136 = arith.truncf %135 : vector<16x16xf32> to vector<16x16xbf16>
    %137 = arith.truncf %118 : vector<16x16xf32> to vector<16x16xbf16>
    %cst_84 = arith.constant dense<0.000000e+00> : vector<16x16xf32>
    %138 = tpu.matmul %136, %137, %cst_84 {dimension_numbers = #tpu.dot_dimension_numbers<[1], [0], [0], [1], [0, 0, 1, 1], [], []>} : vector<16x16xbf16>, vector<16x16xbf16>, vector<16x16xf32> -> vector<16x16xf32>
    %139 = arith.truncf %138 : vector<16x16xf32> to vector<16x16xbf16>
    %c1_85 = arith.constant 1 : index
    %c0_86 = arith.constant 0 : index
    %c0_87 = arith.constant 0 : index
    %140 = vector.load %arg15[%c1_85, %c0_86, %c0_87] : memref<2x16x32xbf16, #tpu.memory_space<vmem>>, vector<1x16x32xbf16>
    %141 = vector.shape_cast %140 : vector<1x16x32xbf16> to vector<16x32xbf16>
    %cst_88 = arith.constant dense<0.000000e+00> : vector<16x32xf32>
    %142 = tpu.matmul %139, %141, %cst_88 {dimension_numbers = #tpu.dot_dimension_numbers<[1], [0], [0], [1], [0, 0, 1, 1], [], []>} : vector<16x16xbf16>, vector<16x32xbf16>, vector<16x32xf32> -> vector<16x32xf32>
    %143 = arith.addf %97, %142 : vector<16x32xf32>
    %144 = arith.addf %29, %143 : vector<16x32xf32>
    %c0_89 = arith.constant 0 : index
    %c0_90 = arith.constant 0 : index
    %145 = vector.load %arg16[%c0_89, %c0_90] : memref<1x32xf32, #tpu.memory_space<vmem>>, vector<1x32xf32>
    %146 = vector.broadcast %145 : vector<1x32xf32> to vector<16x32xf32>
    %147 = arith.addf %144, %146 : vector<16x32xf32>
    %c0_91 = arith.constant 0 : index
    %c0_92 = arith.constant 0 : index
    %148 = vector.load %arg17[%c0_91, %c0_92] : memref<1x32xf32, #tpu.memory_space<vmem>>, vector<1x32xf32>
    %c0_93 = arith.constant 0 : index
    %c0_94 = arith.constant 0 : index
    %149 = vector.load %arg18[%c0_93, %c0_94] : memref<1x32xf32, #tpu.memory_space<vmem>>, vector<1x32xf32>
    %cst_95 = arith.constant dense<0.000000e+00> : vector<16xf32>
    %150 = vector.multi_reduction <add>, %147, %cst_95 [1] : vector<16x32xf32> to vector<16xf32>
    %151 = vector.shape_cast %150 : vector<16xf32> to vector<16x1xf32>
    %cst_96 = arith.constant 3.200000e+01 : f32
    %152 = vector.broadcast %cst_96 : f32 to vector<16x1xf32>
    %153 = arith.divf %151, %152 : vector<16x1xf32>
    %154 = vector.broadcast %153 : vector<16x1xf32> to vector<16x32xf32>
    %155 = arith.subf %147, %154 : vector<16x32xf32>
    %156 = arith.mulf %155, %155 : vector<16x32xf32>
    %cst_97 = arith.constant dense<0.000000e+00> : vector<16xf32>
    %157 = vector.multi_reduction <add>, %156, %cst_97 [1] : vector<16x32xf32> to vector<16xf32>
    %158 = vector.shape_cast %157 : vector<16xf32> to vector<16x1xf32>
    %cst_98 = arith.constant 3.200000e+01 : f32
    %159 = vector.broadcast %cst_98 : f32 to vector<16x1xf32>
    %160 = arith.divf %158, %159 : vector<16x1xf32>
    %cst_99 = arith.constant 9.99999974E-6 : f32
    %161 = vector.broadcast %cst_99 : f32 to vector<16x1xf32>
    %162 = arith.addf %160, %161 : vector<16x1xf32>
    %163 = math.rsqrt %162 : vector<16x1xf32>
    %164 = vector.broadcast %163 : vector<16x1xf32> to vector<16x32xf32>
    %165 = arith.mulf %155, %164 : vector<16x32xf32>
    %166 = vector.broadcast %148 : vector<1x32xf32> to vector<16x32xf32>
    %167 = arith.mulf %165, %166 : vector<16x32xf32>
    %168 = vector.broadcast %149 : vector<1x32xf32> to vector<16x32xf32>
    %169 = arith.addf %167, %168 : vector<16x32xf32>
    %170 = arith.truncf %169 : vector<16x32xf32> to vector<16x32xbf16>
    %c0_100 = arith.constant 0 : index
    %c0_101 = arith.constant 0 : index
    %171 = vector.load %arg19[%c0_100, %c0_101] : memref<32x128xbf16, #tpu.memory_space<vmem>>, vector<32x128xbf16>
    %cst_102 = arith.constant dense<0.000000e+00> : vector<16x128xf32>
    %172 = tpu.matmul %170, %171, %cst_102 {dimension_numbers = #tpu.dot_dimension_numbers<[1], [0], [0], [1], [0, 0, 1, 1], [], []>} : vector<16x32xbf16>, vector<32x128xbf16>, vector<16x128xf32> -> vector<16x128xf32>
    %c0_103 = arith.constant 0 : index
    %c0_104 = arith.constant 0 : index
    %173 = vector.load %arg20[%c0_103, %c0_104] : memref<1x128xf32, #tpu.memory_space<vmem>>, vector<1x128xf32>
    %174 = vector.broadcast %173 : vector<1x128xf32> to vector<16x128xf32>
    %175 = arith.addf %172, %174 : vector<16x128xf32>
    %176 = arith.mulf %175, %175 : vector<16x128xf32>
    %177 = arith.mulf %175, %176 : vector<16x128xf32>
    %cst_105 = arith.constant 4.471500e-02 : f32
    %178 = vector.broadcast %cst_105 : f32 to vector<16x128xf32>
    %179 = arith.mulf %178, %177 : vector<16x128xf32>
    %180 = arith.addf %175, %179 : vector<16x128xf32>
    %cst_106 = arith.constant 0.797884583 : f32
    %181 = vector.broadcast %cst_106 : f32 to vector<16x128xf32>
    %182 = arith.mulf %181, %180 : vector<16x128xf32>
    %183 = math.tanh %182 : vector<16x128xf32>
    %cst_107 = arith.constant 1.000000e+00 : f32
    %184 = vector.broadcast %cst_107 : f32 to vector<16x128xf32>
    %185 = arith.addf %184, %183 : vector<16x128xf32>
    %cst_108 = arith.constant 5.000000e-01 : f32
    %186 = vector.broadcast %cst_108 : f32 to vector<16x128xf32>
    %187 = arith.mulf %186, %185 : vector<16x128xf32>
    %188 = arith.mulf %175, %187 : vector<16x128xf32>
    %189 = arith.truncf %188 : vector<16x128xf32> to vector<16x128xbf16>
    %c0_109 = arith.constant 0 : index
    %c0_110 = arith.constant 0 : index
    %190 = vector.load %arg21[%c0_109, %c0_110] : memref<128x32xbf16, #tpu.memory_space<vmem>>, vector<128x32xbf16>
    %cst_111 = arith.constant dense<0.000000e+00> : vector<16x32xf32>
    %191 = tpu.matmul %189, %190, %cst_111 {dimension_numbers = #tpu.dot_dimension_numbers<[1], [0], [0], [1], [0, 0, 1, 1], [], []>} : vector<16x128xbf16>, vector<128x32xbf16>, vector<16x32xf32> -> vector<16x32xf32>
    %c0_112 = arith.constant 0 : index
    %c0_113 = arith.constant 0 : index
    %192 = vector.load %arg22[%c0_112, %c0_113] : memref<1x32xf32, #tpu.memory_space<vmem>>, vector<1x32xf32>
    %193 = vector.broadcast %192 : vector<1x32xf32> to vector<16x32xf32>
    %194 = arith.addf %191, %193 : vector<16x32xf32>
    %195 = arith.addf %147, %194 : vector<16x32xf32>
    %c0_114 = arith.constant 0 : index
    %c0_115 = arith.constant 0 : index
    %196 = vector.load %arg23[%c0_114, %c0_115] : memref<1x32xf32, #tpu.memory_space<vmem>>, vector<1x32xf32>
    %c0_116 = arith.constant 0 : index
    %c0_117 = arith.constant 0 : index
    %197 = vector.load %arg24[%c0_116, %c0_117] : memref<1x32xf32, #tpu.memory_space<vmem>>, vector<1x32xf32>
    %cst_118 = arith.constant dense<0.000000e+00> : vector<16xf32>
    %198 = vector.multi_reduction <add>, %195, %cst_118 [1] : vector<16x32xf32> to vector<16xf32>
    %199 = vector.shape_cast %198 : vector<16xf32> to vector<16x1xf32>
    %cst_119 = arith.constant 3.200000e+01 : f32
    %200 = vector.broadcast %cst_119 : f32 to vector<16x1xf32>
    %201 = arith.divf %199, %200 : vector<16x1xf32>
    %202 = vector.broadcast %201 : vector<16x1xf32> to vector<16x32xf32>
    %203 = arith.subf %195, %202 : vector<16x32xf32>
    %204 = arith.mulf %203, %203 : vector<16x32xf32>
    %cst_120 = arith.constant dense<0.000000e+00> : vector<16xf32>
    %205 = vector.multi_reduction <add>, %204, %cst_120 [1] : vector<16x32xf32> to vector<16xf32>
    %206 = vector.shape_cast %205 : vector<16xf32> to vector<16x1xf32>
    %cst_121 = arith.constant 3.200000e+01 : f32
    %207 = vector.broadcast %cst_121 : f32 to vector<16x1xf32>
    %208 = arith.divf %206, %207 : vector<16x1xf32>
    %cst_122 = arith.constant 9.99999974E-6 : f32
    %209 = vector.broadcast %cst_122 : f32 to vector<16x1xf32>
    %210 = arith.addf %208, %209 : vector<16x1xf32>
    %211 = math.rsqrt %210 : vector<16x1xf32>
    %212 = vector.broadcast %211 : vector<16x1xf32> to vector<16x32xf32>
    %213 = arith.mulf %203, %212 : vector<16x32xf32>
    %214 = vector.broadcast %196 : vector<1x32xf32> to vector<16x32xf32>
    %215 = arith.mulf %213, %214 : vector<16x32xf32>
    %216 = vector.broadcast %197 : vector<1x32xf32> to vector<16x32xf32>
    %217 = arith.addf %215, %216 : vector<16x32xf32>
    %218 = arith.truncf %217 : vector<16x32xf32> to vector<16x32xbf16>
    %c0_123 = arith.constant 0 : index
    %c0_124 = arith.constant 0 : index
    %c0_125 = arith.constant 0 : index
    %219 = vector.load %arg25[%c0_123, %c0_124, %c0_125] : memref<2x32x16xbf16, #tpu.memory_space<vmem>>, vector<1x32x16xbf16>
    %220 = vector.shape_cast %219 : vector<1x32x16xbf16> to vector<32x16xbf16>
    %cst_126 = arith.constant dense<0.000000e+00> : vector<16x16xf32>
    %221 = tpu.matmul %218, %220, %cst_126 {dimension_numbers = #tpu.dot_dimension_numbers<[1], [0], [0], [1], [0, 0, 1, 1], [], []>} : vector<16x32xbf16>, vector<32x16xbf16>, vector<16x16xf32> -> vector<16x16xf32>
    %c0_127 = arith.constant 0 : index
    %c0_128 = arith.constant 0 : index
    %c0_129 = arith.constant 0 : index
    %222 = vector.load %arg28[%c0_127, %c0_128, %c0_129] : memref<2x1x16xf32, #tpu.memory_space<vmem>>, vector<1x1x16xf32>
    %223 = vector.shape_cast %222 : vector<1x1x16xf32> to vector<1x16xf32>
    %224 = vector.broadcast %223 : vector<1x16xf32> to vector<16x16xf32>
    %225 = arith.addf %221, %224 : vector<16x16xf32>
    %c0_130 = arith.constant 0 : index
    %c0_131 = arith.constant 0 : index
    %c0_132 = arith.constant 0 : index
    %226 = vector.load %arg26[%c0_130, %c0_131, %c0_132] : memref<2x32x16xbf16, #tpu.memory_space<vmem>>, vector<1x32x16xbf16>
    %227 = vector.shape_cast %226 : vector<1x32x16xbf16> to vector<32x16xbf16>
    %cst_133 = arith.constant dense<0.000000e+00> : vector<16x16xf32>
    %228 = tpu.matmul %218, %227, %cst_133 {dimension_numbers = #tpu.dot_dimension_numbers<[1], [0], [0], [1], [0, 0, 1, 1], [], []>} : vector<16x32xbf16>, vector<32x16xbf16>, vector<16x16xf32> -> vector<16x16xf32>
    %c0_134 = arith.constant 0 : index
    %c0_135 = arith.constant 0 : index
    %c0_136 = arith.constant 0 : index
    %229 = vector.load %arg29[%c0_134, %c0_135, %c0_136] : memref<2x1x16xf32, #tpu.memory_space<vmem>>, vector<1x1x16xf32>
    %230 = vector.shape_cast %229 : vector<1x1x16xf32> to vector<1x16xf32>
    %231 = vector.broadcast %230 : vector<1x16xf32> to vector<16x16xf32>
    %232 = arith.addf %228, %231 : vector<16x16xf32>
    %c0_137 = arith.constant 0 : index
    %c0_138 = arith.constant 0 : index
    %c0_139 = arith.constant 0 : index
    %233 = vector.load %arg27[%c0_137, %c0_138, %c0_139] : memref<2x32x16xbf16, #tpu.memory_space<vmem>>, vector<1x32x16xbf16>
    %234 = vector.shape_cast %233 : vector<1x32x16xbf16> to vector<32x16xbf16>
    %cst_140 = arith.constant dense<0.000000e+00> : vector<16x16xf32>
    %235 = tpu.matmul %218, %234, %cst_140 {dimension_numbers = #tpu.dot_dimension_numbers<[1], [0], [0], [1], [0, 0, 1, 1], [], []>} : vector<16x32xbf16>, vector<32x16xbf16>, vector<16x16xf32> -> vector<16x16xf32>
    %c0_141 = arith.constant 0 : index
    %c0_142 = arith.constant 0 : index
    %c0_143 = arith.constant 0 : index
    %236 = vector.load %arg30[%c0_141, %c0_142, %c0_143] : memref<2x1x16xf32, #tpu.memory_space<vmem>>, vector<1x1x16xf32>
    %237 = vector.shape_cast %236 : vector<1x1x16xf32> to vector<1x16xf32>
    %238 = vector.broadcast %237 : vector<1x16xf32> to vector<16x16xf32>
    %239 = arith.addf %235, %238 : vector<16x16xf32>
    %240 = arith.truncf %225 : vector<16x16xf32> to vector<16x16xbf16>
    %241 = arith.truncf %232 : vector<16x16xf32> to vector<16x16xbf16>
    %cst_144 = arith.constant dense<0.000000e+00> : vector<16x16xf32>
    %242 = tpu.matmul %240, %241, %cst_144 {dimension_numbers = #tpu.dot_dimension_numbers<[1], [1], [0], [0], [0, 0, 1, 0], [], []>} : vector<16x16xbf16>, vector<16x16xbf16>, vector<16x16xf32> -> vector<16x16xf32>
    %cst_145 = arith.constant 2.500000e-01 : f32
    %243 = vector.broadcast %cst_145 : f32 to vector<16x16xf32>
    %244 = arith.mulf %242, %243 : vector<16x16xf32>
    %c0_146 = arith.constant 0 : index
    %c0_147 = arith.constant 0 : index
    %c0_148 = arith.constant 0 : index
    %245 = vector.load %arg31[%c0_146, %c0_147, %c0_148] : memref<2x16x16xf32, #tpu.memory_space<vmem>>, vector<1x16x16xf32>
    %246 = vector.shape_cast %245 : vector<1x16x16xf32> to vector<16x16xf32>
    %247 = arith.addf %244, %246 : vector<16x16xf32>
    %cst_149 = arith.constant dense<0xFF800000> : vector<16xf32>
    %248 = vector.multi_reduction <maximumf>, %247, %cst_149 [1] : vector<16x16xf32> to vector<16xf32>
    %249 = vector.shape_cast %248 : vector<16xf32> to vector<16x1xf32>
    %250 = vector.broadcast %249 : vector<16x1xf32> to vector<16x16xf32>
    %251 = arith.subf %247, %250 : vector<16x16xf32>
    %252 = math.exp %251 : vector<16x16xf32>
    %cst_150 = arith.constant dense<0.000000e+00> : vector<16xf32>
    %253 = vector.multi_reduction <add>, %252, %cst_150 [1] : vector<16x16xf32> to vector<16xf32>
    %254 = vector.shape_cast %253 : vector<16xf32> to vector<16x1xf32>
    %255 = vector.broadcast %254 : vector<16x1xf32> to vector<16x16xf32>
    %256 = arith.divf %252, %255 : vector<16x16xf32>
    %257 = arith.truncf %256 : vector<16x16xf32> to vector<16x16xbf16>
    %258 = arith.truncf %239 : vector<16x16xf32> to vector<16x16xbf16>
    %cst_151 = arith.constant dense<0.000000e+00> : vector<16x16xf32>
    %259 = tpu.matmul %257, %258, %cst_151 {dimension_numbers = #tpu.dot_dimension_numbers<[1], [0], [0], [1], [0, 0, 1, 1], [], []>} : vector<16x16xbf16>, vector<16x16xbf16>, vector<16x16xf32> -> vector<16x16xf32>
    %260 = arith.truncf %259 : vector<16x16xf32> to vector<16x16xbf16>
    %c0_152 = arith.constant 0 : index
    %c0_153 = arith.constant 0 : index
    %c0_154 = arith.constant 0 : index
    %261 = vector.load %arg32[%c0_152, %c0_153, %c0_154] : memref<2x16x32xbf16, #tpu.memory_space<vmem>>, vector<1x16x32xbf16>
    %262 = vector.shape_cast %261 : vector<1x16x32xbf16> to vector<16x32xbf16>
    %cst_155 = arith.constant dense<0.000000e+00> : vector<16x32xf32>
    %263 = tpu.matmul %260, %262, %cst_155 {dimension_numbers = #tpu.dot_dimension_numbers<[1], [0], [0], [1], [0, 0, 1, 1], [], []>} : vector<16x16xbf16>, vector<16x32xbf16>, vector<16x32xf32> -> vector<16x32xf32>
    %c1_156 = arith.constant 1 : index
    %c0_157 = arith.constant 0 : index
    %c0_158 = arith.constant 0 : index
    %264 = vector.load %arg25[%c1_156, %c0_157, %c0_158] : memref<2x32x16xbf16, #tpu.memory_space<vmem>>, vector<1x32x16xbf16>
    %265 = vector.shape_cast %264 : vector<1x32x16xbf16> to vector<32x16xbf16>
    %cst_159 = arith.constant dense<0.000000e+00> : vector<16x16xf32>
    %266 = tpu.matmul %218, %265, %cst_159 {dimension_numbers = #tpu.dot_dimension_numbers<[1], [0], [0], [1], [0, 0, 1, 1], [], []>} : vector<16x32xbf16>, vector<32x16xbf16>, vector<16x16xf32> -> vector<16x16xf32>
    %c1_160 = arith.constant 1 : index
    %c0_161 = arith.constant 0 : index
    %c0_162 = arith.constant 0 : index
    %267 = vector.load %arg28[%c1_160, %c0_161, %c0_162] : memref<2x1x16xf32, #tpu.memory_space<vmem>>, vector<1x1x16xf32>
    %268 = vector.shape_cast %267 : vector<1x1x16xf32> to vector<1x16xf32>
    %269 = vector.broadcast %268 : vector<1x16xf32> to vector<16x16xf32>
    %270 = arith.addf %266, %269 : vector<16x16xf32>
    %c1_163 = arith.constant 1 : index
    %c0_164 = arith.constant 0 : index
    %c0_165 = arith.constant 0 : index
    %271 = vector.load %arg26[%c1_163, %c0_164, %c0_165] : memref<2x32x16xbf16, #tpu.memory_space<vmem>>, vector<1x32x16xbf16>
    %272 = vector.shape_cast %271 : vector<1x32x16xbf16> to vector<32x16xbf16>
    %cst_166 = arith.constant dense<0.000000e+00> : vector<16x16xf32>
    %273 = tpu.matmul %218, %272, %cst_166 {dimension_numbers = #tpu.dot_dimension_numbers<[1], [0], [0], [1], [0, 0, 1, 1], [], []>} : vector<16x32xbf16>, vector<32x16xbf16>, vector<16x16xf32> -> vector<16x16xf32>
    %c1_167 = arith.constant 1 : index
    %c0_168 = arith.constant 0 : index
    %c0_169 = arith.constant 0 : index
    %274 = vector.load %arg29[%c1_167, %c0_168, %c0_169] : memref<2x1x16xf32, #tpu.memory_space<vmem>>, vector<1x1x16xf32>
    %275 = vector.shape_cast %274 : vector<1x1x16xf32> to vector<1x16xf32>
    %276 = vector.broadcast %275 : vector<1x16xf32> to vector<16x16xf32>
    %277 = arith.addf %273, %276 : vector<16x16xf32>
    %c1_170 = arith.constant 1 : index
    %c0_171 = arith.constant 0 : index
    %c0_172 = arith.constant 0 : index
    %278 = vector.load %arg27[%c1_170, %c0_171, %c0_172] : memref<2x32x16xbf16, #tpu.memory_space<vmem>>, vector<1x32x16xbf16>
    %279 = vector.shape_cast %278 : vector<1x32x16xbf16> to vector<32x16xbf16>
    %cst_173 = arith.constant dense<0.000000e+00> : vector<16x16xf32>
    %280 = tpu.matmul %218, %279, %cst_173 {dimension_numbers = #tpu.dot_dimension_numbers<[1], [0], [0], [1], [0, 0, 1, 1], [], []>} : vector<16x32xbf16>, vector<32x16xbf16>, vector<16x16xf32> -> vector<16x16xf32>
    %c1_174 = arith.constant 1 : index
    %c0_175 = arith.constant 0 : index
    %c0_176 = arith.constant 0 : index
    %281 = vector.load %arg30[%c1_174, %c0_175, %c0_176] : memref<2x1x16xf32, #tpu.memory_space<vmem>>, vector<1x1x16xf32>
    %282 = vector.shape_cast %281 : vector<1x1x16xf32> to vector<1x16xf32>
    %283 = vector.broadcast %282 : vector<1x16xf32> to vector<16x16xf32>
    %284 = arith.addf %280, %283 : vector<16x16xf32>
    %285 = arith.truncf %270 : vector<16x16xf32> to vector<16x16xbf16>
    %286 = arith.truncf %277 : vector<16x16xf32> to vector<16x16xbf16>
    %cst_177 = arith.constant dense<0.000000e+00> : vector<16x16xf32>
    %287 = tpu.matmul %285, %286, %cst_177 {dimension_numbers = #tpu.dot_dimension_numbers<[1], [1], [0], [0], [0, 0, 1, 0], [], []>} : vector<16x16xbf16>, vector<16x16xbf16>, vector<16x16xf32> -> vector<16x16xf32>
    %cst_178 = arith.constant 2.500000e-01 : f32
    %288 = vector.broadcast %cst_178 : f32 to vector<16x16xf32>
    %289 = arith.mulf %287, %288 : vector<16x16xf32>
    %c1_179 = arith.constant 1 : index
    %c0_180 = arith.constant 0 : index
    %c0_181 = arith.constant 0 : index
    %290 = vector.load %arg31[%c1_179, %c0_180, %c0_181] : memref<2x16x16xf32, #tpu.memory_space<vmem>>, vector<1x16x16xf32>
    %291 = vector.shape_cast %290 : vector<1x16x16xf32> to vector<16x16xf32>
    %292 = arith.addf %289, %291 : vector<16x16xf32>
    %cst_182 = arith.constant dense<0xFF800000> : vector<16xf32>
    %293 = vector.multi_reduction <maximumf>, %292, %cst_182 [1] : vector<16x16xf32> to vector<16xf32>
    %294 = vector.shape_cast %293 : vector<16xf32> to vector<16x1xf32>
    %295 = vector.broadcast %294 : vector<16x1xf32> to vector<16x16xf32>
    %296 = arith.subf %292, %295 : vector<16x16xf32>
    %297 = math.exp %296 : vector<16x16xf32>
    %cst_183 = arith.constant dense<0.000000e+00> : vector<16xf32>
    %298 = vector.multi_reduction <add>, %297, %cst_183 [1] : vector<16x16xf32> to vector<16xf32>
    %299 = vector.shape_cast %298 : vector<16xf32> to vector<16x1xf32>
    %300 = vector.broadcast %299 : vector<16x1xf32> to vector<16x16xf32>
    %301 = arith.divf %297, %300 : vector<16x16xf32>
    %302 = arith.truncf %301 : vector<16x16xf32> to vector<16x16xbf16>
    %303 = arith.truncf %284 : vector<16x16xf32> to vector<16x16xbf16>
    %cst_184 = arith.constant dense<0.000000e+00> : vector<16x16xf32>
    %304 = tpu.matmul %302, %303, %cst_184 {dimension_numbers = #tpu.dot_dimension_numbers<[1], [0], [0], [1], [0, 0, 1, 1], [], []>} : vector<16x16xbf16>, vector<16x16xbf16>, vector<16x16xf32> -> vector<16x16xf32>
    %305 = arith.truncf %304 : vector<16x16xf32> to vector<16x16xbf16>
    %c1_185 = arith.constant 1 : index
    %c0_186 = arith.constant 0 : index
    %c0_187 = arith.constant 0 : index
    %306 = vector.load %arg32[%c1_185, %c0_186, %c0_187] : memref<2x16x32xbf16, #tpu.memory_space<vmem>>, vector<1x16x32xbf16>
    %307 = vector.shape_cast %306 : vector<1x16x32xbf16> to vector<16x32xbf16>
    %cst_188 = arith.constant dense<0.000000e+00> : vector<16x32xf32>
    %308 = tpu.matmul %305, %307, %cst_188 {dimension_numbers = #tpu.dot_dimension_numbers<[1], [0], [0], [1], [0, 0, 1, 1], [], []>} : vector<16x16xbf16>, vector<16x32xbf16>, vector<16x32xf32> -> vector<16x32xf32>
    %309 = arith.addf %263, %308 : vector<16x32xf32>
    %310 = arith.addf %195, %309 : vector<16x32xf32>
    %c0_189 = arith.constant 0 : index
    %c0_190 = arith.constant 0 : index
    %311 = vector.load %arg33[%c0_189, %c0_190] : memref<1x32xf32, #tpu.memory_space<vmem>>, vector<1x32xf32>
    %312 = vector.broadcast %311 : vector<1x32xf32> to vector<16x32xf32>
    %313 = arith.addf %310, %312 : vector<16x32xf32>
    %c0_191 = arith.constant 0 : index
    %c0_192 = arith.constant 0 : index
    %314 = vector.load %arg34[%c0_191, %c0_192] : memref<1x32xf32, #tpu.memory_space<vmem>>, vector<1x32xf32>
    %c0_193 = arith.constant 0 : index
    %c0_194 = arith.constant 0 : index
    %315 = vector.load %arg35[%c0_193, %c0_194] : memref<1x32xf32, #tpu.memory_space<vmem>>, vector<1x32xf32>
    %cst_195 = arith.constant dense<0.000000e+00> : vector<16xf32>
    %316 = vector.multi_reduction <add>, %313, %cst_195 [1] : vector<16x32xf32> to vector<16xf32>
    %317 = vector.shape_cast %316 : vector<16xf32> to vector<16x1xf32>
    %cst_196 = arith.constant 3.200000e+01 : f32
    %318 = vector.broadcast %cst_196 : f32 to vector<16x1xf32>
    %319 = arith.divf %317, %318 : vector<16x1xf32>
    %320 = vector.broadcast %319 : vector<16x1xf32> to vector<16x32xf32>
    %321 = arith.subf %313, %320 : vector<16x32xf32>
    %322 = arith.mulf %321, %321 : vector<16x32xf32>
    %cst_197 = arith.constant dense<0.000000e+00> : vector<16xf32>
    %323 = vector.multi_reduction <add>, %322, %cst_197 [1] : vector<16x32xf32> to vector<16xf32>
    %324 = vector.shape_cast %323 : vector<16xf32> to vector<16x1xf32>
    %cst_198 = arith.constant 3.200000e+01 : f32
    %325 = vector.broadcast %cst_198 : f32 to vector<16x1xf32>
    %326 = arith.divf %324, %325 : vector<16x1xf32>
    %cst_199 = arith.constant 9.99999974E-6 : f32
    %327 = vector.broadcast %cst_199 : f32 to vector<16x1xf32>
    %328 = arith.addf %326, %327 : vector<16x1xf32>
    %329 = math.rsqrt %328 : vector<16x1xf32>
    %330 = vector.broadcast %329 : vector<16x1xf32> to vector<16x32xf32>
    %331 = arith.mulf %321, %330 : vector<16x32xf32>
    %332 = vector.broadcast %314 : vector<1x32xf32> to vector<16x32xf32>
    %333 = arith.mulf %331, %332 : vector<16x32xf32>
    %334 = vector.broadcast %315 : vector<1x32xf32> to vector<16x32xf32>
    %335 = arith.addf %333, %334 : vector<16x32xf32>
    %336 = arith.truncf %335 : vector<16x32xf32> to vector<16x32xbf16>
    %c0_200 = arith.constant 0 : index
    %c0_201 = arith.constant 0 : index
    %337 = vector.load %arg36[%c0_200, %c0_201] : memref<32x128xbf16, #tpu.memory_space<vmem>>, vector<32x128xbf16>
    %cst_202 = arith.constant dense<0.000000e+00> : vector<16x128xf32>
    %338 = tpu.matmul %336, %337, %cst_202 {dimension_numbers = #tpu.dot_dimension_numbers<[1], [0], [0], [1], [0, 0, 1, 1], [], []>} : vector<16x32xbf16>, vector<32x128xbf16>, vector<16x128xf32> -> vector<16x128xf32>
    %c0_203 = arith.constant 0 : index
    %c0_204 = arith.constant 0 : index
    %339 = vector.load %arg37[%c0_203, %c0_204] : memref<1x128xf32, #tpu.memory_space<vmem>>, vector<1x128xf32>
    %340 = vector.broadcast %339 : vector<1x128xf32> to vector<16x128xf32>
    %341 = arith.addf %338, %340 : vector<16x128xf32>
    %342 = arith.mulf %341, %341 : vector<16x128xf32>
    %343 = arith.mulf %341, %342 : vector<16x128xf32>
    %cst_205 = arith.constant 4.471500e-02 : f32
    %344 = vector.broadcast %cst_205 : f32 to vector<16x128xf32>
    %345 = arith.mulf %344, %343 : vector<16x128xf32>
    %346 = arith.addf %341, %345 : vector<16x128xf32>
    %cst_206 = arith.constant 0.797884583 : f32
    %347 = vector.broadcast %cst_206 : f32 to vector<16x128xf32>
    %348 = arith.mulf %347, %346 : vector<16x128xf32>
    %349 = math.tanh %348 : vector<16x128xf32>
    %cst_207 = arith.constant 1.000000e+00 : f32
    %350 = vector.broadcast %cst_207 : f32 to vector<16x128xf32>
    %351 = arith.addf %350, %349 : vector<16x128xf32>
    %cst_208 = arith.constant 5.000000e-01 : f32
    %352 = vector.broadcast %cst_208 : f32 to vector<16x128xf32>
    %353 = arith.mulf %352, %351 : vector<16x128xf32>
    %354 = arith.mulf %341, %353 : vector<16x128xf32>
    %355 = arith.truncf %354 : vector<16x128xf32> to vector<16x128xbf16>
    %c0_209 = arith.constant 0 : index
    %c0_210 = arith.constant 0 : index
    %356 = vector.load %arg38[%c0_209, %c0_210] : memref<128x32xbf16, #tpu.memory_space<vmem>>, vector<128x32xbf16>
    %cst_211 = arith.constant dense<0.000000e+00> : vector<16x32xf32>
    %357 = tpu.matmul %355, %356, %cst_211 {dimension_numbers = #tpu.dot_dimension_numbers<[1], [0], [0], [1], [0, 0, 1, 1], [], []>} : vector<16x128xbf16>, vector<128x32xbf16>, vector<16x32xf32> -> vector<16x32xf32>
    %c0_212 = arith.constant 0 : index
    %c0_213 = arith.constant 0 : index
    %358 = vector.load %arg39[%c0_212, %c0_213] : memref<1x32xf32, #tpu.memory_space<vmem>>, vector<1x32xf32>
    %359 = vector.broadcast %358 : vector<1x32xf32> to vector<16x32xf32>
    %360 = arith.addf %357, %359 : vector<16x32xf32>
    %361 = arith.addf %313, %360 : vector<16x32xf32>
    %c0_214 = arith.constant 0 : index
    %c0_215 = arith.constant 0 : index
    %c0_216 = arith.constant 0 : index
    %362 = vector.load %arg40[%c0_214, %c0_215, %c0_216] : memref<4x4x16xf32, #tpu.memory_space<vmem>>, vector<1x4x16xf32>
    %363 = vector.shape_cast %362 : vector<1x4x16xf32> to vector<4x16xf32>
    %cst_217 = arith.constant dense<0.000000e+00> : vector<4x32xf32>
    %364 = tpu.matmul %363, %361, %cst_217 {dimension_numbers = #tpu.dot_dimension_numbers<[1], [0], [0], [1], [0, 0, 1, 1], [], []>} : vector<4x16xf32>, vector<16x32xf32>, vector<4x32xf32> -> vector<4x32xf32>
    %c1_218 = arith.constant 1 : index
    %c0_219 = arith.constant 0 : index
    %c0_220 = arith.constant 0 : index
    %365 = vector.load %arg40[%c1_218, %c0_219, %c0_220] : memref<4x4x16xf32, #tpu.memory_space<vmem>>, vector<1x4x16xf32>
    %366 = vector.shape_cast %365 : vector<1x4x16xf32> to vector<4x16xf32>
    %cst_221 = arith.constant dense<0.000000e+00> : vector<4x32xf32>
    %367 = tpu.matmul %366, %361, %cst_221 {dimension_numbers = #tpu.dot_dimension_numbers<[1], [0], [0], [1], [0, 0, 1, 1], [], []>} : vector<4x16xf32>, vector<16x32xf32>, vector<4x32xf32> -> vector<4x32xf32>
    %c2 = arith.constant 2 : index
    %c0_222 = arith.constant 0 : index
    %c0_223 = arith.constant 0 : index
    %368 = vector.load %arg40[%c2, %c0_222, %c0_223] : memref<4x4x16xf32, #tpu.memory_space<vmem>>, vector<1x4x16xf32>
    %369 = vector.shape_cast %368 : vector<1x4x16xf32> to vector<4x16xf32>
    %cst_224 = arith.constant dense<0.000000e+00> : vector<4x32xf32>
    %370 = tpu.matmul %369, %361, %cst_224 {dimension_numbers = #tpu.dot_dimension_numbers<[1], [0], [0], [1], [0, 0, 1, 1], [], []>} : vector<4x16xf32>, vector<16x32xf32>, vector<4x32xf32> -> vector<4x32xf32>
    %c3 = arith.constant 3 : index
    %c0_225 = arith.constant 0 : index
    %c0_226 = arith.constant 0 : index
    %371 = vector.load %arg40[%c3, %c0_225, %c0_226] : memref<4x4x16xf32, #tpu.memory_space<vmem>>, vector<1x4x16xf32>
    %372 = vector.shape_cast %371 : vector<1x4x16xf32> to vector<4x16xf32>
    %cst_227 = arith.constant dense<0.000000e+00> : vector<4x32xf32>
    %373 = tpu.matmul %372, %361, %cst_227 {dimension_numbers = #tpu.dot_dimension_numbers<[1], [0], [0], [1], [0, 0, 1, 1], [], []>} : vector<4x16xf32>, vector<16x32xf32>, vector<4x32xf32> -> vector<4x32xf32>
    %cst_228 = arith.constant dense<0.000000e+00> : vector<4xf32>
    %374 = vector.multi_reduction <add>, %364, %cst_228 [1] : vector<4x32xf32> to vector<4xf32>
    %375 = vector.shape_cast %374 : vector<4xf32> to vector<4x1xf32>
    %cst_229 = arith.constant 0.000000e+00 : f32
    %376 = vector.broadcast %cst_229 : f32 to vector<4x1xf32>
    %377 = arith.addf %376, %375 : vector<4x1xf32>
    %cst_230 = arith.constant dense<0.000000e+00> : vector<4xf32>
    %378 = vector.multi_reduction <add>, %367, %cst_230 [1] : vector<4x32xf32> to vector<4xf32>
    %379 = vector.shape_cast %378 : vector<4xf32> to vector<4x1xf32>
    %380 = arith.addf %377, %379 : vector<4x1xf32>
    %cst_231 = arith.constant dense<0.000000e+00> : vector<4xf32>
    %381 = vector.multi_reduction <add>, %370, %cst_231 [1] : vector<4x32xf32> to vector<4xf32>
    %382 = vector.shape_cast %381 : vector<4xf32> to vector<4x1xf32>
    %383 = arith.addf %380, %382 : vector<4x1xf32>
    %cst_232 = arith.constant dense<0.000000e+00> : vector<4xf32>
    %384 = vector.multi_reduction <add>, %373, %cst_232 [1] : vector<4x32xf32> to vector<4xf32>
    %385 = vector.shape_cast %384 : vector<4xf32> to vector<4x1xf32>
    %386 = arith.addf %383, %385 : vector<4x1xf32>
    %387 = arith.mulf %364, %364 : vector<4x32xf32>
    %cst_233 = arith.constant dense<0.000000e+00> : vector<4xf32>
    %388 = vector.multi_reduction <add>, %387, %cst_233 [1] : vector<4x32xf32> to vector<4xf32>
    %389 = vector.shape_cast %388 : vector<4xf32> to vector<4x1xf32>
    %cst_234 = arith.constant 0.000000e+00 : f32
    %390 = vector.broadcast %cst_234 : f32 to vector<4x1xf32>
    %391 = arith.addf %390, %389 : vector<4x1xf32>
    %392 = arith.mulf %367, %367 : vector<4x32xf32>
    %cst_235 = arith.constant dense<0.000000e+00> : vector<4xf32>
    %393 = vector.multi_reduction <add>, %392, %cst_235 [1] : vector<4x32xf32> to vector<4xf32>
    %394 = vector.shape_cast %393 : vector<4xf32> to vector<4x1xf32>
    %395 = arith.addf %391, %394 : vector<4x1xf32>
    %396 = arith.mulf %370, %370 : vector<4x32xf32>
    %cst_236 = arith.constant dense<0.000000e+00> : vector<4xf32>
    %397 = vector.multi_reduction <add>, %396, %cst_236 [1] : vector<4x32xf32> to vector<4xf32>
    %398 = vector.shape_cast %397 : vector<4xf32> to vector<4x1xf32>
    %399 = arith.addf %395, %398 : vector<4x1xf32>
    %400 = arith.mulf %373, %373 : vector<4x32xf32>
    %cst_237 = arith.constant dense<0.000000e+00> : vector<4xf32>
    %401 = vector.multi_reduction <add>, %400, %cst_237 [1] : vector<4x32xf32> to vector<4xf32>
    %402 = vector.shape_cast %401 : vector<4xf32> to vector<4x1xf32>
    %403 = arith.addf %399, %402 : vector<4x1xf32>
    %cst_238 = arith.constant 7.812500e-03 : f32
    %404 = vector.broadcast %cst_238 : f32 to vector<4x1xf32>
    %405 = arith.mulf %386, %404 : vector<4x1xf32>
    %cst_239 = arith.constant 7.812500e-03 : f32
    %406 = vector.broadcast %cst_239 : f32 to vector<4x1xf32>
    %407 = arith.mulf %403, %406 : vector<4x1xf32>
    %408 = arith.mulf %405, %405 : vector<4x1xf32>
    %409 = arith.subf %407, %408 : vector<4x1xf32>
    %cst_240 = arith.constant 9.99999974E-6 : f32
    %410 = vector.broadcast %cst_240 : f32 to vector<4x1xf32>
    %411 = arith.addf %409, %410 : vector<4x1xf32>
    %412 = math.rsqrt %411 : vector<4x1xf32>
    %413 = vector.broadcast %405 : vector<4x1xf32> to vector<4x32xf32>
    %414 = arith.subf %364, %413 : vector<4x32xf32>
    %415 = vector.broadcast %412 : vector<4x1xf32> to vector<4x32xf32>
    %416 = arith.mulf %414, %415 : vector<4x32xf32>
    %c0_241 = arith.constant 0 : index
    %c0_242 = arith.constant 0 : index
    %c0_243 = arith.constant 0 : index
    %417 = vector.load %arg41[%c0_241, %c0_242, %c0_243] : memref<4x1x32xf32, #tpu.memory_space<vmem>>, vector<1x1x32xf32>
    %418 = vector.shape_cast %417 : vector<1x1x32xf32> to vector<1x32xf32>
    %419 = vector.broadcast %418 : vector<1x32xf32> to vector<4x32xf32>
    %420 = arith.mulf %416, %419 : vector<4x32xf32>
    %c0_244 = arith.constant 0 : index
    %c0_245 = arith.constant 0 : index
    %c0_246 = arith.constant 0 : index
    %421 = vector.load %arg42[%c0_244, %c0_245, %c0_246] : memref<4x1x32xf32, #tpu.memory_space<vmem>>, vector<1x1x32xf32>
    %422 = vector.shape_cast %421 : vector<1x1x32xf32> to vector<1x32xf32>
    %423 = vector.broadcast %422 : vector<1x32xf32> to vector<4x32xf32>
    %424 = arith.addf %420, %423 : vector<4x32xf32>
    %425 = arith.truncf %424 : vector<4x32xf32> to vector<4x32xbf16>
    %c0_247 = arith.constant 0 : index
    %c0_248 = arith.constant 0 : index
    %c0_249 = arith.constant 0 : index
    %426 = vector.load %arg43[%c0_247, %c0_248, %c0_249] : memref<4x32x64xbf16, #tpu.memory_space<vmem>>, vector<1x32x64xbf16>
    %427 = vector.shape_cast %426 : vector<1x32x64xbf16> to vector<32x64xbf16>
    %cst_250 = arith.constant dense<0.000000e+00> : vector<4x64xf32>
    %428 = tpu.matmul %425, %427, %cst_250 {dimension_numbers = #tpu.dot_dimension_numbers<[1], [0], [0], [1], [0, 0, 1, 1], [], []>} : vector<4x32xbf16>, vector<32x64xbf16>, vector<4x64xf32> -> vector<4x64xf32>
    %429 = vector.broadcast %405 : vector<4x1xf32> to vector<4x32xf32>
    %430 = arith.subf %367, %429 : vector<4x32xf32>
    %431 = vector.broadcast %412 : vector<4x1xf32> to vector<4x32xf32>
    %432 = arith.mulf %430, %431 : vector<4x32xf32>
    %c1_251 = arith.constant 1 : index
    %c0_252 = arith.constant 0 : index
    %c0_253 = arith.constant 0 : index
    %433 = vector.load %arg41[%c1_251, %c0_252, %c0_253] : memref<4x1x32xf32, #tpu.memory_space<vmem>>, vector<1x1x32xf32>
    %434 = vector.shape_cast %433 : vector<1x1x32xf32> to vector<1x32xf32>
    %435 = vector.broadcast %434 : vector<1x32xf32> to vector<4x32xf32>
    %436 = arith.mulf %432, %435 : vector<4x32xf32>
    %c1_254 = arith.constant 1 : index
    %c0_255 = arith.constant 0 : index
    %c0_256 = arith.constant 0 : index
    %437 = vector.load %arg42[%c1_254, %c0_255, %c0_256] : memref<4x1x32xf32, #tpu.memory_space<vmem>>, vector<1x1x32xf32>
    %438 = vector.shape_cast %437 : vector<1x1x32xf32> to vector<1x32xf32>
    %439 = vector.broadcast %438 : vector<1x32xf32> to vector<4x32xf32>
    %440 = arith.addf %436, %439 : vector<4x32xf32>
    %441 = arith.truncf %440 : vector<4x32xf32> to vector<4x32xbf16>
    %c1_257 = arith.constant 1 : index
    %c0_258 = arith.constant 0 : index
    %c0_259 = arith.constant 0 : index
    %442 = vector.load %arg43[%c1_257, %c0_258, %c0_259] : memref<4x32x64xbf16, #tpu.memory_space<vmem>>, vector<1x32x64xbf16>
    %443 = vector.shape_cast %442 : vector<1x32x64xbf16> to vector<32x64xbf16>
    %cst_260 = arith.constant dense<0.000000e+00> : vector<4x64xf32>
    %444 = tpu.matmul %441, %443, %cst_260 {dimension_numbers = #tpu.dot_dimension_numbers<[1], [0], [0], [1], [0, 0, 1, 1], [], []>} : vector<4x32xbf16>, vector<32x64xbf16>, vector<4x64xf32> -> vector<4x64xf32>
    %445 = arith.addf %428, %444 : vector<4x64xf32>
    %446 = vector.broadcast %405 : vector<4x1xf32> to vector<4x32xf32>
    %447 = arith.subf %370, %446 : vector<4x32xf32>
    %448 = vector.broadcast %412 : vector<4x1xf32> to vector<4x32xf32>
    %449 = arith.mulf %447, %448 : vector<4x32xf32>
    %c2_261 = arith.constant 2 : index
    %c0_262 = arith.constant 0 : index
    %c0_263 = arith.constant 0 : index
    %450 = vector.load %arg41[%c2_261, %c0_262, %c0_263] : memref<4x1x32xf32, #tpu.memory_space<vmem>>, vector<1x1x32xf32>
    %451 = vector.shape_cast %450 : vector<1x1x32xf32> to vector<1x32xf32>
    %452 = vector.broadcast %451 : vector<1x32xf32> to vector<4x32xf32>
    %453 = arith.mulf %449, %452 : vector<4x32xf32>
    %c2_264 = arith.constant 2 : index
    %c0_265 = arith.constant 0 : index
    %c0_266 = arith.constant 0 : index
    %454 = vector.load %arg42[%c2_264, %c0_265, %c0_266] : memref<4x1x32xf32, #tpu.memory_space<vmem>>, vector<1x1x32xf32>
    %455 = vector.shape_cast %454 : vector<1x1x32xf32> to vector<1x32xf32>
    %456 = vector.broadcast %455 : vector<1x32xf32> to vector<4x32xf32>
    %457 = arith.addf %453, %456 : vector<4x32xf32>
    %458 = arith.truncf %457 : vector<4x32xf32> to vector<4x32xbf16>
    %c2_267 = arith.constant 2 : index
    %c0_268 = arith.constant 0 : index
    %c0_269 = arith.constant 0 : index
    %459 = vector.load %arg43[%c2_267, %c0_268, %c0_269] : memref<4x32x64xbf16, #tpu.memory_space<vmem>>, vector<1x32x64xbf16>
    %460 = vector.shape_cast %459 : vector<1x32x64xbf16> to vector<32x64xbf16>
    %cst_270 = arith.constant dense<0.000000e+00> : vector<4x64xf32>
    %461 = tpu.matmul %458, %460, %cst_270 {dimension_numbers = #tpu.dot_dimension_numbers<[1], [0], [0], [1], [0, 0, 1, 1], [], []>} : vector<4x32xbf16>, vector<32x64xbf16>, vector<4x64xf32> -> vector<4x64xf32>
    %462 = arith.addf %445, %461 : vector<4x64xf32>
    %463 = vector.broadcast %405 : vector<4x1xf32> to vector<4x32xf32>
    %464 = arith.subf %373, %463 : vector<4x32xf32>
    %465 = vector.broadcast %412 : vector<4x1xf32> to vector<4x32xf32>
    %466 = arith.mulf %464, %465 : vector<4x32xf32>
    %c3_271 = arith.constant 3 : index
    %c0_272 = arith.constant 0 : index
    %c0_273 = arith.constant 0 : index
    %467 = vector.load %arg41[%c3_271, %c0_272, %c0_273] : memref<4x1x32xf32, #tpu.memory_space<vmem>>, vector<1x1x32xf32>
    %468 = vector.shape_cast %467 : vector<1x1x32xf32> to vector<1x32xf32>
    %469 = vector.broadcast %468 : vector<1x32xf32> to vector<4x32xf32>
    %470 = arith.mulf %466, %469 : vector<4x32xf32>
    %c3_274 = arith.constant 3 : index
    %c0_275 = arith.constant 0 : index
    %c0_276 = arith.constant 0 : index
    %471 = vector.load %arg42[%c3_274, %c0_275, %c0_276] : memref<4x1x32xf32, #tpu.memory_space<vmem>>, vector<1x1x32xf32>
    %472 = vector.shape_cast %471 : vector<1x1x32xf32> to vector<1x32xf32>
    %473 = vector.broadcast %472 : vector<1x32xf32> to vector<4x32xf32>
    %474 = arith.addf %470, %473 : vector<4x32xf32>
    %475 = arith.truncf %474 : vector<4x32xf32> to vector<4x32xbf16>
    %c3_277 = arith.constant 3 : index
    %c0_278 = arith.constant 0 : index
    %c0_279 = arith.constant 0 : index
    %476 = vector.load %arg43[%c3_277, %c0_278, %c0_279] : memref<4x32x64xbf16, #tpu.memory_space<vmem>>, vector<1x32x64xbf16>
    %477 = vector.shape_cast %476 : vector<1x32x64xbf16> to vector<32x64xbf16>
    %cst_280 = arith.constant dense<0.000000e+00> : vector<4x64xf32>
    %478 = tpu.matmul %475, %477, %cst_280 {dimension_numbers = #tpu.dot_dimension_numbers<[1], [0], [0], [1], [0, 0, 1, 1], [], []>} : vector<4x32xbf16>, vector<32x64xbf16>, vector<4x64xf32> -> vector<4x64xf32>
    %479 = arith.addf %462, %478 : vector<4x64xf32>
    %c0_281 = arith.constant 0 : index
    %c0_282 = arith.constant 0 : index
    %480 = vector.load %arg44[%c0_281, %c0_282] : memref<1x64xf32, #tpu.memory_space<vmem>>, vector<1x64xf32>
    %c0_283 = arith.constant 0 : index
    %c0_284 = arith.constant 0 : index
    %481 = vector.load %arg45[%c0_283, %c0_284] : memref<1x64xf32, #tpu.memory_space<vmem>>, vector<1x64xf32>
    %cst_285 = arith.constant dense<0.000000e+00> : vector<4xf32>
    %482 = vector.multi_reduction <add>, %479, %cst_285 [1] : vector<4x64xf32> to vector<4xf32>
    %483 = vector.shape_cast %482 : vector<4xf32> to vector<4x1xf32>
    %cst_286 = arith.constant 6.400000e+01 : f32
    %484 = vector.broadcast %cst_286 : f32 to vector<4x1xf32>
    %485 = arith.divf %483, %484 : vector<4x1xf32>
    %486 = vector.broadcast %485 : vector<4x1xf32> to vector<4x64xf32>
    %487 = arith.subf %479, %486 : vector<4x64xf32>
    %488 = arith.mulf %487, %487 : vector<4x64xf32>
    %cst_287 = arith.constant dense<0.000000e+00> : vector<4xf32>
    %489 = vector.multi_reduction <add>, %488, %cst_287 [1] : vector<4x64xf32> to vector<4xf32>
    %490 = vector.shape_cast %489 : vector<4xf32> to vector<4x1xf32>
    %cst_288 = arith.constant 6.400000e+01 : f32
    %491 = vector.broadcast %cst_288 : f32 to vector<4x1xf32>
    %492 = arith.divf %490, %491 : vector<4x1xf32>
    %cst_289 = arith.constant 9.99999974E-6 : f32
    %493 = vector.broadcast %cst_289 : f32 to vector<4x1xf32>
    %494 = arith.addf %492, %493 : vector<4x1xf32>
    %495 = math.rsqrt %494 : vector<4x1xf32>
    %496 = vector.broadcast %495 : vector<4x1xf32> to vector<4x64xf32>
    %497 = arith.mulf %487, %496 : vector<4x64xf32>
    %498 = vector.broadcast %480 : vector<1x64xf32> to vector<4x64xf32>
    %499 = arith.mulf %497, %498 : vector<4x64xf32>
    %500 = vector.broadcast %481 : vector<1x64xf32> to vector<4x64xf32>
    %501 = arith.addf %499, %500 : vector<4x64xf32>
    %502 = arith.truncf %501 : vector<4x64xf32> to vector<4x64xbf16>
    %c0_290 = arith.constant 0 : index
    %c0_291 = arith.constant 0 : index
    %c0_292 = arith.constant 0 : index
    %503 = vector.load %arg46[%c0_290, %c0_291, %c0_292] : memref<4x64x16xbf16, #tpu.memory_space<vmem>>, vector<1x64x16xbf16>
    %504 = vector.shape_cast %503 : vector<1x64x16xbf16> to vector<64x16xbf16>
    %cst_293 = arith.constant dense<0.000000e+00> : vector<4x16xf32>
    %505 = tpu.matmul %502, %504, %cst_293 {dimension_numbers = #tpu.dot_dimension_numbers<[1], [0], [0], [1], [0, 0, 1, 1], [], []>} : vector<4x64xbf16>, vector<64x16xbf16>, vector<4x16xf32> -> vector<4x16xf32>
    %c0_294 = arith.constant 0 : index
    %c0_295 = arith.constant 0 : index
    %c0_296 = arith.constant 0 : index
    %506 = vector.load %arg49[%c0_294, %c0_295, %c0_296] : memref<4x1x16xf32, #tpu.memory_space<vmem>>, vector<1x1x16xf32>
    %507 = vector.shape_cast %506 : vector<1x1x16xf32> to vector<1x16xf32>
    %508 = vector.broadcast %507 : vector<1x16xf32> to vector<4x16xf32>
    %509 = arith.addf %505, %508 : vector<4x16xf32>
    %c0_297 = arith.constant 0 : index
    %c0_298 = arith.constant 0 : index
    %c0_299 = arith.constant 0 : index
    %510 = vector.load %arg47[%c0_297, %c0_298, %c0_299] : memref<4x64x16xbf16, #tpu.memory_space<vmem>>, vector<1x64x16xbf16>
    %511 = vector.shape_cast %510 : vector<1x64x16xbf16> to vector<64x16xbf16>
    %cst_300 = arith.constant dense<0.000000e+00> : vector<4x16xf32>
    %512 = tpu.matmul %502, %511, %cst_300 {dimension_numbers = #tpu.dot_dimension_numbers<[1], [0], [0], [1], [0, 0, 1, 1], [], []>} : vector<4x64xbf16>, vector<64x16xbf16>, vector<4x16xf32> -> vector<4x16xf32>
    %c0_301 = arith.constant 0 : index
    %c0_302 = arith.constant 0 : index
    %c0_303 = arith.constant 0 : index
    %513 = vector.load %arg50[%c0_301, %c0_302, %c0_303] : memref<4x1x16xf32, #tpu.memory_space<vmem>>, vector<1x1x16xf32>
    %514 = vector.shape_cast %513 : vector<1x1x16xf32> to vector<1x16xf32>
    %515 = vector.broadcast %514 : vector<1x16xf32> to vector<4x16xf32>
    %516 = arith.addf %512, %515 : vector<4x16xf32>
    %c0_304 = arith.constant 0 : index
    %c0_305 = arith.constant 0 : index
    %c0_306 = arith.constant 0 : index
    %517 = vector.load %arg48[%c0_304, %c0_305, %c0_306] : memref<4x64x16xbf16, #tpu.memory_space<vmem>>, vector<1x64x16xbf16>
    %518 = vector.shape_cast %517 : vector<1x64x16xbf16> to vector<64x16xbf16>
    %cst_307 = arith.constant dense<0.000000e+00> : vector<4x16xf32>
    %519 = tpu.matmul %502, %518, %cst_307 {dimension_numbers = #tpu.dot_dimension_numbers<[1], [0], [0], [1], [0, 0, 1, 1], [], []>} : vector<4x64xbf16>, vector<64x16xbf16>, vector<4x16xf32> -> vector<4x16xf32>
    %c0_308 = arith.constant 0 : index
    %c0_309 = arith.constant 0 : index
    %c0_310 = arith.constant 0 : index
    %520 = vector.load %arg51[%c0_308, %c0_309, %c0_310] : memref<4x1x16xf32, #tpu.memory_space<vmem>>, vector<1x1x16xf32>
    %521 = vector.shape_cast %520 : vector<1x1x16xf32> to vector<1x16xf32>
    %522 = vector.broadcast %521 : vector<1x16xf32> to vector<4x16xf32>
    %523 = arith.addf %519, %522 : vector<4x16xf32>
    %524 = arith.truncf %509 : vector<4x16xf32> to vector<4x16xbf16>
    %525 = arith.truncf %516 : vector<4x16xf32> to vector<4x16xbf16>
    %cst_311 = arith.constant dense<0.000000e+00> : vector<4x4xf32>
    %526 = tpu.matmul %524, %525, %cst_311 {dimension_numbers = #tpu.dot_dimension_numbers<[1], [1], [0], [0], [0, 0, 1, 0], [], []>} : vector<4x16xbf16>, vector<4x16xbf16>, vector<4x4xf32> -> vector<4x4xf32>
    %cst_312 = arith.constant 2.500000e-01 : f32
    %527 = vector.broadcast %cst_312 : f32 to vector<4x4xf32>
    %528 = arith.mulf %526, %527 : vector<4x4xf32>
    %c0_313 = arith.constant 0 : index
    %c0_314 = arith.constant 0 : index
    %c0_315 = arith.constant 0 : index
    %529 = vector.load %arg52[%c0_313, %c0_314, %c0_315] : memref<4x4x4xf32, #tpu.memory_space<vmem>>, vector<1x4x4xf32>
    %530 = vector.shape_cast %529 : vector<1x4x4xf32> to vector<4x4xf32>
    %531 = arith.addf %528, %530 : vector<4x4xf32>
    %cst_316 = arith.constant dense<0xFF800000> : vector<4xf32>
    %532 = vector.multi_reduction <maximumf>, %531, %cst_316 [1] : vector<4x4xf32> to vector<4xf32>
    %533 = vector.shape_cast %532 : vector<4xf32> to vector<4x1xf32>
    %534 = vector.broadcast %533 : vector<4x1xf32> to vector<4x4xf32>
    %535 = arith.subf %531, %534 : vector<4x4xf32>
    %536 = math.exp %535 : vector<4x4xf32>
    %cst_317 = arith.constant dense<0.000000e+00> : vector<4xf32>
    %537 = vector.multi_reduction <add>, %536, %cst_317 [1] : vector<4x4xf32> to vector<4xf32>
    %538 = vector.shape_cast %537 : vector<4xf32> to vector<4x1xf32>
    %539 = vector.broadcast %538 : vector<4x1xf32> to vector<4x4xf32>
    %540 = arith.divf %536, %539 : vector<4x4xf32>
    %541 = arith.truncf %540 : vector<4x4xf32> to vector<4x4xbf16>
    %542 = arith.truncf %523 : vector<4x16xf32> to vector<4x16xbf16>
    %cst_318 = arith.constant dense<0.000000e+00> : vector<4x16xf32>
    %543 = tpu.matmul %541, %542, %cst_318 {dimension_numbers = #tpu.dot_dimension_numbers<[1], [0], [0], [1], [0, 0, 1, 1], [], []>} : vector<4x4xbf16>, vector<4x16xbf16>, vector<4x16xf32> -> vector<4x16xf32>
    %544 = arith.truncf %543 : vector<4x16xf32> to vector<4x16xbf16>
    %c0_319 = arith.constant 0 : index
    %c0_320 = arith.constant 0 : index
    %c0_321 = arith.constant 0 : index
    %545 = vector.load %arg53[%c0_319, %c0_320, %c0_321] : memref<4x16x64xbf16, #tpu.memory_space<vmem>>, vector<1x16x64xbf16>
    %546 = vector.shape_cast %545 : vector<1x16x64xbf16> to vector<16x64xbf16>
    %cst_322 = arith.constant dense<0.000000e+00> : vector<4x64xf32>
    %547 = tpu.matmul %544, %546, %cst_322 {dimension_numbers = #tpu.dot_dimension_numbers<[1], [0], [0], [1], [0, 0, 1, 1], [], []>} : vector<4x16xbf16>, vector<16x64xbf16>, vector<4x64xf32> -> vector<4x64xf32>
    %c1_323 = arith.constant 1 : index
    %c0_324 = arith.constant 0 : index
    %c0_325 = arith.constant 0 : index
    %548 = vector.load %arg46[%c1_323, %c0_324, %c0_325] : memref<4x64x16xbf16, #tpu.memory_space<vmem>>, vector<1x64x16xbf16>
    %549 = vector.shape_cast %548 : vector<1x64x16xbf16> to vector<64x16xbf16>
    %cst_326 = arith.constant dense<0.000000e+00> : vector<4x16xf32>
    %550 = tpu.matmul %502, %549, %cst_326 {dimension_numbers = #tpu.dot_dimension_numbers<[1], [0], [0], [1], [0, 0, 1, 1], [], []>} : vector<4x64xbf16>, vector<64x16xbf16>, vector<4x16xf32> -> vector<4x16xf32>
    %c1_327 = arith.constant 1 : index
    %c0_328 = arith.constant 0 : index
    %c0_329 = arith.constant 0 : index
    %551 = vector.load %arg49[%c1_327, %c0_328, %c0_329] : memref<4x1x16xf32, #tpu.memory_space<vmem>>, vector<1x1x16xf32>
    %552 = vector.shape_cast %551 : vector<1x1x16xf32> to vector<1x16xf32>
    %553 = vector.broadcast %552 : vector<1x16xf32> to vector<4x16xf32>
    %554 = arith.addf %550, %553 : vector<4x16xf32>
    %c1_330 = arith.constant 1 : index
    %c0_331 = arith.constant 0 : index
    %c0_332 = arith.constant 0 : index
    %555 = vector.load %arg47[%c1_330, %c0_331, %c0_332] : memref<4x64x16xbf16, #tpu.memory_space<vmem>>, vector<1x64x16xbf16>
    %556 = vector.shape_cast %555 : vector<1x64x16xbf16> to vector<64x16xbf16>
    %cst_333 = arith.constant dense<0.000000e+00> : vector<4x16xf32>
    %557 = tpu.matmul %502, %556, %cst_333 {dimension_numbers = #tpu.dot_dimension_numbers<[1], [0], [0], [1], [0, 0, 1, 1], [], []>} : vector<4x64xbf16>, vector<64x16xbf16>, vector<4x16xf32> -> vector<4x16xf32>
    %c1_334 = arith.constant 1 : index
    %c0_335 = arith.constant 0 : index
    %c0_336 = arith.constant 0 : index
    %558 = vector.load %arg50[%c1_334, %c0_335, %c0_336] : memref<4x1x16xf32, #tpu.memory_space<vmem>>, vector<1x1x16xf32>
    %559 = vector.shape_cast %558 : vector<1x1x16xf32> to vector<1x16xf32>
    %560 = vector.broadcast %559 : vector<1x16xf32> to vector<4x16xf32>
    %561 = arith.addf %557, %560 : vector<4x16xf32>
    %c1_337 = arith.constant 1 : index
    %c0_338 = arith.constant 0 : index
    %c0_339 = arith.constant 0 : index
    %562 = vector.load %arg48[%c1_337, %c0_338, %c0_339] : memref<4x64x16xbf16, #tpu.memory_space<vmem>>, vector<1x64x16xbf16>
    %563 = vector.shape_cast %562 : vector<1x64x16xbf16> to vector<64x16xbf16>
    %cst_340 = arith.constant dense<0.000000e+00> : vector<4x16xf32>
    %564 = tpu.matmul %502, %563, %cst_340 {dimension_numbers = #tpu.dot_dimension_numbers<[1], [0], [0], [1], [0, 0, 1, 1], [], []>} : vector<4x64xbf16>, vector<64x16xbf16>, vector<4x16xf32> -> vector<4x16xf32>
    %c1_341 = arith.constant 1 : index
    %c0_342 = arith.constant 0 : index
    %c0_343 = arith.constant 0 : index
    %565 = vector.load %arg51[%c1_341, %c0_342, %c0_343] : memref<4x1x16xf32, #tpu.memory_space<vmem>>, vector<1x1x16xf32>
    %566 = vector.shape_cast %565 : vector<1x1x16xf32> to vector<1x16xf32>
    %567 = vector.broadcast %566 : vector<1x16xf32> to vector<4x16xf32>
    %568 = arith.addf %564, %567 : vector<4x16xf32>
    %569 = arith.truncf %554 : vector<4x16xf32> to vector<4x16xbf16>
    %570 = arith.truncf %561 : vector<4x16xf32> to vector<4x16xbf16>
    %cst_344 = arith.constant dense<0.000000e+00> : vector<4x4xf32>
    %571 = tpu.matmul %569, %570, %cst_344 {dimension_numbers = #tpu.dot_dimension_numbers<[1], [1], [0], [0], [0, 0, 1, 0], [], []>} : vector<4x16xbf16>, vector<4x16xbf16>, vector<4x4xf32> -> vector<4x4xf32>
    %cst_345 = arith.constant 2.500000e-01 : f32
    %572 = vector.broadcast %cst_345 : f32 to vector<4x4xf32>
    %573 = arith.mulf %571, %572 : vector<4x4xf32>
    %c1_346 = arith.constant 1 : index
    %c0_347 = arith.constant 0 : index
    %c0_348 = arith.constant 0 : index
    %574 = vector.load %arg52[%c1_346, %c0_347, %c0_348] : memref<4x4x4xf32, #tpu.memory_space<vmem>>, vector<1x4x4xf32>
    %575 = vector.shape_cast %574 : vector<1x4x4xf32> to vector<4x4xf32>
    %576 = arith.addf %573, %575 : vector<4x4xf32>
    %cst_349 = arith.constant dense<0xFF800000> : vector<4xf32>
    %577 = vector.multi_reduction <maximumf>, %576, %cst_349 [1] : vector<4x4xf32> to vector<4xf32>
    %578 = vector.shape_cast %577 : vector<4xf32> to vector<4x1xf32>
    %579 = vector.broadcast %578 : vector<4x1xf32> to vector<4x4xf32>
    %580 = arith.subf %576, %579 : vector<4x4xf32>
    %581 = math.exp %580 : vector<4x4xf32>
    %cst_350 = arith.constant dense<0.000000e+00> : vector<4xf32>
    %582 = vector.multi_reduction <add>, %581, %cst_350 [1] : vector<4x4xf32> to vector<4xf32>
    %583 = vector.shape_cast %582 : vector<4xf32> to vector<4x1xf32>
    %584 = vector.broadcast %583 : vector<4x1xf32> to vector<4x4xf32>
    %585 = arith.divf %581, %584 : vector<4x4xf32>
    %586 = arith.truncf %585 : vector<4x4xf32> to vector<4x4xbf16>
    %587 = arith.truncf %568 : vector<4x16xf32> to vector<4x16xbf16>
    %cst_351 = arith.constant dense<0.000000e+00> : vector<4x16xf32>
    %588 = tpu.matmul %586, %587, %cst_351 {dimension_numbers = #tpu.dot_dimension_numbers<[1], [0], [0], [1], [0, 0, 1, 1], [], []>} : vector<4x4xbf16>, vector<4x16xbf16>, vector<4x16xf32> -> vector<4x16xf32>
    %589 = arith.truncf %588 : vector<4x16xf32> to vector<4x16xbf16>
    %c1_352 = arith.constant 1 : index
    %c0_353 = arith.constant 0 : index
    %c0_354 = arith.constant 0 : index
    %590 = vector.load %arg53[%c1_352, %c0_353, %c0_354] : memref<4x16x64xbf16, #tpu.memory_space<vmem>>, vector<1x16x64xbf16>
    %591 = vector.shape_cast %590 : vector<1x16x64xbf16> to vector<16x64xbf16>
    %cst_355 = arith.constant dense<0.000000e+00> : vector<4x64xf32>
    %592 = tpu.matmul %589, %591, %cst_355 {dimension_numbers = #tpu.dot_dimension_numbers<[1], [0], [0], [1], [0, 0, 1, 1], [], []>} : vector<4x16xbf16>, vector<16x64xbf16>, vector<4x64xf32> -> vector<4x64xf32>
    %593 = arith.addf %547, %592 : vector<4x64xf32>
    %c2_356 = arith.constant 2 : index
    %c0_357 = arith.constant 0 : index
    %c0_358 = arith.constant 0 : index
    %594 = vector.load %arg46[%c2_356, %c0_357, %c0_358] : memref<4x64x16xbf16, #tpu.memory_space<vmem>>, vector<1x64x16xbf16>
    %595 = vector.shape_cast %594 : vector<1x64x16xbf16> to vector<64x16xbf16>
    %cst_359 = arith.constant dense<0.000000e+00> : vector<4x16xf32>
    %596 = tpu.matmul %502, %595, %cst_359 {dimension_numbers = #tpu.dot_dimension_numbers<[1], [0], [0], [1], [0, 0, 1, 1], [], []>} : vector<4x64xbf16>, vector<64x16xbf16>, vector<4x16xf32> -> vector<4x16xf32>
    %c2_360 = arith.constant 2 : index
    %c0_361 = arith.constant 0 : index
    %c0_362 = arith.constant 0 : index
    %597 = vector.load %arg49[%c2_360, %c0_361, %c0_362] : memref<4x1x16xf32, #tpu.memory_space<vmem>>, vector<1x1x16xf32>
    %598 = vector.shape_cast %597 : vector<1x1x16xf32> to vector<1x16xf32>
    %599 = vector.broadcast %598 : vector<1x16xf32> to vector<4x16xf32>
    %600 = arith.addf %596, %599 : vector<4x16xf32>
    %c2_363 = arith.constant 2 : index
    %c0_364 = arith.constant 0 : index
    %c0_365 = arith.constant 0 : index
    %601 = vector.load %arg47[%c2_363, %c0_364, %c0_365] : memref<4x64x16xbf16, #tpu.memory_space<vmem>>, vector<1x64x16xbf16>
    %602 = vector.shape_cast %601 : vector<1x64x16xbf16> to vector<64x16xbf16>
    %cst_366 = arith.constant dense<0.000000e+00> : vector<4x16xf32>
    %603 = tpu.matmul %502, %602, %cst_366 {dimension_numbers = #tpu.dot_dimension_numbers<[1], [0], [0], [1], [0, 0, 1, 1], [], []>} : vector<4x64xbf16>, vector<64x16xbf16>, vector<4x16xf32> -> vector<4x16xf32>
    %c2_367 = arith.constant 2 : index
    %c0_368 = arith.constant 0 : index
    %c0_369 = arith.constant 0 : index
    %604 = vector.load %arg50[%c2_367, %c0_368, %c0_369] : memref<4x1x16xf32, #tpu.memory_space<vmem>>, vector<1x1x16xf32>
    %605 = vector.shape_cast %604 : vector<1x1x16xf32> to vector<1x16xf32>
    %606 = vector.broadcast %605 : vector<1x16xf32> to vector<4x16xf32>
    %607 = arith.addf %603, %606 : vector<4x16xf32>
    %c2_370 = arith.constant 2 : index
    %c0_371 = arith.constant 0 : index
    %c0_372 = arith.constant 0 : index
    %608 = vector.load %arg48[%c2_370, %c0_371, %c0_372] : memref<4x64x16xbf16, #tpu.memory_space<vmem>>, vector<1x64x16xbf16>
    %609 = vector.shape_cast %608 : vector<1x64x16xbf16> to vector<64x16xbf16>
    %cst_373 = arith.constant dense<0.000000e+00> : vector<4x16xf32>
    %610 = tpu.matmul %502, %609, %cst_373 {dimension_numbers = #tpu.dot_dimension_numbers<[1], [0], [0], [1], [0, 0, 1, 1], [], []>} : vector<4x64xbf16>, vector<64x16xbf16>, vector<4x16xf32> -> vector<4x16xf32>
    %c2_374 = arith.constant 2 : index
    %c0_375 = arith.constant 0 : index
    %c0_376 = arith.constant 0 : index
    %611 = vector.load %arg51[%c2_374, %c0_375, %c0_376] : memref<4x1x16xf32, #tpu.memory_space<vmem>>, vector<1x1x16xf32>
    %612 = vector.shape_cast %611 : vector<1x1x16xf32> to vector<1x16xf32>
    %613 = vector.broadcast %612 : vector<1x16xf32> to vector<4x16xf32>
    %614 = arith.addf %610, %613 : vector<4x16xf32>
    %615 = arith.truncf %600 : vector<4x16xf32> to vector<4x16xbf16>
    %616 = arith.truncf %607 : vector<4x16xf32> to vector<4x16xbf16>
    %cst_377 = arith.constant dense<0.000000e+00> : vector<4x4xf32>
    %617 = tpu.matmul %615, %616, %cst_377 {dimension_numbers = #tpu.dot_dimension_numbers<[1], [1], [0], [0], [0, 0, 1, 0], [], []>} : vector<4x16xbf16>, vector<4x16xbf16>, vector<4x4xf32> -> vector<4x4xf32>
    %cst_378 = arith.constant 2.500000e-01 : f32
    %618 = vector.broadcast %cst_378 : f32 to vector<4x4xf32>
    %619 = arith.mulf %617, %618 : vector<4x4xf32>
    %c2_379 = arith.constant 2 : index
    %c0_380 = arith.constant 0 : index
    %c0_381 = arith.constant 0 : index
    %620 = vector.load %arg52[%c2_379, %c0_380, %c0_381] : memref<4x4x4xf32, #tpu.memory_space<vmem>>, vector<1x4x4xf32>
    %621 = vector.shape_cast %620 : vector<1x4x4xf32> to vector<4x4xf32>
    %622 = arith.addf %619, %621 : vector<4x4xf32>
    %cst_382 = arith.constant dense<0xFF800000> : vector<4xf32>
    %623 = vector.multi_reduction <maximumf>, %622, %cst_382 [1] : vector<4x4xf32> to vector<4xf32>
    %624 = vector.shape_cast %623 : vector<4xf32> to vector<4x1xf32>
    %625 = vector.broadcast %624 : vector<4x1xf32> to vector<4x4xf32>
    %626 = arith.subf %622, %625 : vector<4x4xf32>
    %627 = math.exp %626 : vector<4x4xf32>
    %cst_383 = arith.constant dense<0.000000e+00> : vector<4xf32>
    %628 = vector.multi_reduction <add>, %627, %cst_383 [1] : vector<4x4xf32> to vector<4xf32>
    %629 = vector.shape_cast %628 : vector<4xf32> to vector<4x1xf32>
    %630 = vector.broadcast %629 : vector<4x1xf32> to vector<4x4xf32>
    %631 = arith.divf %627, %630 : vector<4x4xf32>
    %632 = arith.truncf %631 : vector<4x4xf32> to vector<4x4xbf16>
    %633 = arith.truncf %614 : vector<4x16xf32> to vector<4x16xbf16>
    %cst_384 = arith.constant dense<0.000000e+00> : vector<4x16xf32>
    %634 = tpu.matmul %632, %633, %cst_384 {dimension_numbers = #tpu.dot_dimension_numbers<[1], [0], [0], [1], [0, 0, 1, 1], [], []>} : vector<4x4xbf16>, vector<4x16xbf16>, vector<4x16xf32> -> vector<4x16xf32>
    %635 = arith.truncf %634 : vector<4x16xf32> to vector<4x16xbf16>
    %c2_385 = arith.constant 2 : index
    %c0_386 = arith.constant 0 : index
    %c0_387 = arith.constant 0 : index
    %636 = vector.load %arg53[%c2_385, %c0_386, %c0_387] : memref<4x16x64xbf16, #tpu.memory_space<vmem>>, vector<1x16x64xbf16>
    %637 = vector.shape_cast %636 : vector<1x16x64xbf16> to vector<16x64xbf16>
    %cst_388 = arith.constant dense<0.000000e+00> : vector<4x64xf32>
    %638 = tpu.matmul %635, %637, %cst_388 {dimension_numbers = #tpu.dot_dimension_numbers<[1], [0], [0], [1], [0, 0, 1, 1], [], []>} : vector<4x16xbf16>, vector<16x64xbf16>, vector<4x64xf32> -> vector<4x64xf32>
    %639 = arith.addf %593, %638 : vector<4x64xf32>
    %c3_389 = arith.constant 3 : index
    %c0_390 = arith.constant 0 : index
    %c0_391 = arith.constant 0 : index
    %640 = vector.load %arg46[%c3_389, %c0_390, %c0_391] : memref<4x64x16xbf16, #tpu.memory_space<vmem>>, vector<1x64x16xbf16>
    %641 = vector.shape_cast %640 : vector<1x64x16xbf16> to vector<64x16xbf16>
    %cst_392 = arith.constant dense<0.000000e+00> : vector<4x16xf32>
    %642 = tpu.matmul %502, %641, %cst_392 {dimension_numbers = #tpu.dot_dimension_numbers<[1], [0], [0], [1], [0, 0, 1, 1], [], []>} : vector<4x64xbf16>, vector<64x16xbf16>, vector<4x16xf32> -> vector<4x16xf32>
    %c3_393 = arith.constant 3 : index
    %c0_394 = arith.constant 0 : index
    %c0_395 = arith.constant 0 : index
    %643 = vector.load %arg49[%c3_393, %c0_394, %c0_395] : memref<4x1x16xf32, #tpu.memory_space<vmem>>, vector<1x1x16xf32>
    %644 = vector.shape_cast %643 : vector<1x1x16xf32> to vector<1x16xf32>
    %645 = vector.broadcast %644 : vector<1x16xf32> to vector<4x16xf32>
    %646 = arith.addf %642, %645 : vector<4x16xf32>
    %c3_396 = arith.constant 3 : index
    %c0_397 = arith.constant 0 : index
    %c0_398 = arith.constant 0 : index
    %647 = vector.load %arg47[%c3_396, %c0_397, %c0_398] : memref<4x64x16xbf16, #tpu.memory_space<vmem>>, vector<1x64x16xbf16>
    %648 = vector.shape_cast %647 : vector<1x64x16xbf16> to vector<64x16xbf16>
    %cst_399 = arith.constant dense<0.000000e+00> : vector<4x16xf32>
    %649 = tpu.matmul %502, %648, %cst_399 {dimension_numbers = #tpu.dot_dimension_numbers<[1], [0], [0], [1], [0, 0, 1, 1], [], []>} : vector<4x64xbf16>, vector<64x16xbf16>, vector<4x16xf32> -> vector<4x16xf32>
    %c3_400 = arith.constant 3 : index
    %c0_401 = arith.constant 0 : index
    %c0_402 = arith.constant 0 : index
    %650 = vector.load %arg50[%c3_400, %c0_401, %c0_402] : memref<4x1x16xf32, #tpu.memory_space<vmem>>, vector<1x1x16xf32>
    %651 = vector.shape_cast %650 : vector<1x1x16xf32> to vector<1x16xf32>
    %652 = vector.broadcast %651 : vector<1x16xf32> to vector<4x16xf32>
    %653 = arith.addf %649, %652 : vector<4x16xf32>
    %c3_403 = arith.constant 3 : index
    %c0_404 = arith.constant 0 : index
    %c0_405 = arith.constant 0 : index
    %654 = vector.load %arg48[%c3_403, %c0_404, %c0_405] : memref<4x64x16xbf16, #tpu.memory_space<vmem>>, vector<1x64x16xbf16>
    %655 = vector.shape_cast %654 : vector<1x64x16xbf16> to vector<64x16xbf16>
    %cst_406 = arith.constant dense<0.000000e+00> : vector<4x16xf32>
    %656 = tpu.matmul %502, %655, %cst_406 {dimension_numbers = #tpu.dot_dimension_numbers<[1], [0], [0], [1], [0, 0, 1, 1], [], []>} : vector<4x64xbf16>, vector<64x16xbf16>, vector<4x16xf32> -> vector<4x16xf32>
    %c3_407 = arith.constant 3 : index
    %c0_408 = arith.constant 0 : index
    %c0_409 = arith.constant 0 : index
    %657 = vector.load %arg51[%c3_407, %c0_408, %c0_409] : memref<4x1x16xf32, #tpu.memory_space<vmem>>, vector<1x1x16xf32>
    %658 = vector.shape_cast %657 : vector<1x1x16xf32> to vector<1x16xf32>
    %659 = vector.broadcast %658 : vector<1x16xf32> to vector<4x16xf32>
    %660 = arith.addf %656, %659 : vector<4x16xf32>
    %661 = arith.truncf %646 : vector<4x16xf32> to vector<4x16xbf16>
    %662 = arith.truncf %653 : vector<4x16xf32> to vector<4x16xbf16>
    %cst_410 = arith.constant dense<0.000000e+00> : vector<4x4xf32>
    %663 = tpu.matmul %661, %662, %cst_410 {dimension_numbers = #tpu.dot_dimension_numbers<[1], [1], [0], [0], [0, 0, 1, 0], [], []>} : vector<4x16xbf16>, vector<4x16xbf16>, vector<4x4xf32> -> vector<4x4xf32>
    %cst_411 = arith.constant 2.500000e-01 : f32
    %664 = vector.broadcast %cst_411 : f32 to vector<4x4xf32>
    %665 = arith.mulf %663, %664 : vector<4x4xf32>
    %c3_412 = arith.constant 3 : index
    %c0_413 = arith.constant 0 : index
    %c0_414 = arith.constant 0 : index
    %666 = vector.load %arg52[%c3_412, %c0_413, %c0_414] : memref<4x4x4xf32, #tpu.memory_space<vmem>>, vector<1x4x4xf32>
    %667 = vector.shape_cast %666 : vector<1x4x4xf32> to vector<4x4xf32>
    %668 = arith.addf %665, %667 : vector<4x4xf32>
    %cst_415 = arith.constant dense<0xFF800000> : vector<4xf32>
    %669 = vector.multi_reduction <maximumf>, %668, %cst_415 [1] : vector<4x4xf32> to vector<4xf32>
    %670 = vector.shape_cast %669 : vector<4xf32> to vector<4x1xf32>
    %671 = vector.broadcast %670 : vector<4x1xf32> to vector<4x4xf32>
    %672 = arith.subf %668, %671 : vector<4x4xf32>
    %673 = math.exp %672 : vector<4x4xf32>
    %cst_416 = arith.constant dense<0.000000e+00> : vector<4xf32>
    %674 = vector.multi_reduction <add>, %673, %cst_416 [1] : vector<4x4xf32> to vector<4xf32>
    %675 = vector.shape_cast %674 : vector<4xf32> to vector<4x1xf32>
    %676 = vector.broadcast %675 : vector<4x1xf32> to vector<4x4xf32>
    %677 = arith.divf %673, %676 : vector<4x4xf32>
    %678 = arith.truncf %677 : vector<4x4xf32> to vector<4x4xbf16>
    %679 = arith.truncf %660 : vector<4x16xf32> to vector<4x16xbf16>
    %cst_417 = arith.constant dense<0.000000e+00> : vector<4x16xf32>
    %680 = tpu.matmul %678, %679, %cst_417 {dimension_numbers = #tpu.dot_dimension_numbers<[1], [0], [0], [1], [0, 0, 1, 1], [], []>} : vector<4x4xbf16>, vector<4x16xbf16>, vector<4x16xf32> -> vector<4x16xf32>
    %681 = arith.truncf %680 : vector<4x16xf32> to vector<4x16xbf16>
    %c3_418 = arith.constant 3 : index
    %c0_419 = arith.constant 0 : index
    %c0_420 = arith.constant 0 : index
    %682 = vector.load %arg53[%c3_418, %c0_419, %c0_420] : memref<4x16x64xbf16, #tpu.memory_space<vmem>>, vector<1x16x64xbf16>
    %683 = vector.shape_cast %682 : vector<1x16x64xbf16> to vector<16x64xbf16>
    %cst_421 = arith.constant dense<0.000000e+00> : vector<4x64xf32>
    %684 = tpu.matmul %681, %683, %cst_421 {dimension_numbers = #tpu.dot_dimension_numbers<[1], [0], [0], [1], [0, 0, 1, 1], [], []>} : vector<4x16xbf16>, vector<16x64xbf16>, vector<4x64xf32> -> vector<4x64xf32>
    %685 = arith.addf %639, %684 : vector<4x64xf32>
    %686 = arith.addf %479, %685 : vector<4x64xf32>
    %c0_422 = arith.constant 0 : index
    %c0_423 = arith.constant 0 : index
    %687 = vector.load %arg54[%c0_422, %c0_423] : memref<1x64xf32, #tpu.memory_space<vmem>>, vector<1x64xf32>
    %688 = vector.broadcast %687 : vector<1x64xf32> to vector<4x64xf32>
    %689 = arith.addf %686, %688 : vector<4x64xf32>
    %c0_424 = arith.constant 0 : index
    %c0_425 = arith.constant 0 : index
    %690 = vector.load %arg55[%c0_424, %c0_425] : memref<1x64xf32, #tpu.memory_space<vmem>>, vector<1x64xf32>
    %c0_426 = arith.constant 0 : index
    %c0_427 = arith.constant 0 : index
    %691 = vector.load %arg56[%c0_426, %c0_427] : memref<1x64xf32, #tpu.memory_space<vmem>>, vector<1x64xf32>
    %cst_428 = arith.constant dense<0.000000e+00> : vector<4xf32>
    %692 = vector.multi_reduction <add>, %689, %cst_428 [1] : vector<4x64xf32> to vector<4xf32>
    %693 = vector.shape_cast %692 : vector<4xf32> to vector<4x1xf32>
    %cst_429 = arith.constant 6.400000e+01 : f32
    %694 = vector.broadcast %cst_429 : f32 to vector<4x1xf32>
    %695 = arith.divf %693, %694 : vector<4x1xf32>
    %696 = vector.broadcast %695 : vector<4x1xf32> to vector<4x64xf32>
    %697 = arith.subf %689, %696 : vector<4x64xf32>
    %698 = arith.mulf %697, %697 : vector<4x64xf32>
    %cst_430 = arith.constant dense<0.000000e+00> : vector<4xf32>
    %699 = vector.multi_reduction <add>, %698, %cst_430 [1] : vector<4x64xf32> to vector<4xf32>
    %700 = vector.shape_cast %699 : vector<4xf32> to vector<4x1xf32>
    %cst_431 = arith.constant 6.400000e+01 : f32
    %701 = vector.broadcast %cst_431 : f32 to vector<4x1xf32>
    %702 = arith.divf %700, %701 : vector<4x1xf32>
    %cst_432 = arith.constant 9.99999974E-6 : f32
    %703 = vector.broadcast %cst_432 : f32 to vector<4x1xf32>
    %704 = arith.addf %702, %703 : vector<4x1xf32>
    %705 = math.rsqrt %704 : vector<4x1xf32>
    %706 = vector.broadcast %705 : vector<4x1xf32> to vector<4x64xf32>
    %707 = arith.mulf %697, %706 : vector<4x64xf32>
    %708 = vector.broadcast %690 : vector<1x64xf32> to vector<4x64xf32>
    %709 = arith.mulf %707, %708 : vector<4x64xf32>
    %710 = vector.broadcast %691 : vector<1x64xf32> to vector<4x64xf32>
    %711 = arith.addf %709, %710 : vector<4x64xf32>
    %712 = arith.truncf %711 : vector<4x64xf32> to vector<4x64xbf16>
    %c0_433 = arith.constant 0 : index
    %c0_434 = arith.constant 0 : index
    %713 = vector.load %arg57[%c0_433, %c0_434] : memref<64x256xbf16, #tpu.memory_space<vmem>>, vector<64x256xbf16>
    %cst_435 = arith.constant dense<0.000000e+00> : vector<4x256xf32>
    %714 = tpu.matmul %712, %713, %cst_435 {dimension_numbers = #tpu.dot_dimension_numbers<[1], [0], [0], [1], [0, 0, 1, 1], [], []>} : vector<4x64xbf16>, vector<64x256xbf16>, vector<4x256xf32> -> vector<4x256xf32>
    %c0_436 = arith.constant 0 : index
    %c0_437 = arith.constant 0 : index
    %715 = vector.load %arg58[%c0_436, %c0_437] : memref<1x256xf32, #tpu.memory_space<vmem>>, vector<1x256xf32>
    %716 = vector.broadcast %715 : vector<1x256xf32> to vector<4x256xf32>
    %717 = arith.addf %714, %716 : vector<4x256xf32>
    %718 = arith.mulf %717, %717 : vector<4x256xf32>
    %719 = arith.mulf %717, %718 : vector<4x256xf32>
    %cst_438 = arith.constant 4.471500e-02 : f32
    %720 = vector.broadcast %cst_438 : f32 to vector<4x256xf32>
    %721 = arith.mulf %720, %719 : vector<4x256xf32>
    %722 = arith.addf %717, %721 : vector<4x256xf32>
    %cst_439 = arith.constant 0.797884583 : f32
    %723 = vector.broadcast %cst_439 : f32 to vector<4x256xf32>
    %724 = arith.mulf %723, %722 : vector<4x256xf32>
    %725 = math.tanh %724 : vector<4x256xf32>
    %cst_440 = arith.constant 1.000000e+00 : f32
    %726 = vector.broadcast %cst_440 : f32 to vector<4x256xf32>
    %727 = arith.addf %726, %725 : vector<4x256xf32>
    %cst_441 = arith.constant 5.000000e-01 : f32
    %728 = vector.broadcast %cst_441 : f32 to vector<4x256xf32>
    %729 = arith.mulf %728, %727 : vector<4x256xf32>
    %730 = arith.mulf %717, %729 : vector<4x256xf32>
    %731 = arith.truncf %730 : vector<4x256xf32> to vector<4x256xbf16>
    %c0_442 = arith.constant 0 : index
    %c0_443 = arith.constant 0 : index
    %732 = vector.load %arg59[%c0_442, %c0_443] : memref<256x64xbf16, #tpu.memory_space<vmem>>, vector<256x64xbf16>
    %cst_444 = arith.constant dense<0.000000e+00> : vector<4x64xf32>
    %733 = tpu.matmul %731, %732, %cst_444 {dimension_numbers = #tpu.dot_dimension_numbers<[1], [0], [0], [1], [0, 0, 1, 1], [], []>} : vector<4x256xbf16>, vector<256x64xbf16>, vector<4x64xf32> -> vector<4x64xf32>
    %c0_445 = arith.constant 0 : index
    %c0_446 = arith.constant 0 : index
    %734 = vector.load %arg60[%c0_445, %c0_446] : memref<1x64xf32, #tpu.memory_space<vmem>>, vector<1x64xf32>
    %735 = vector.broadcast %734 : vector<1x64xf32> to vector<4x64xf32>
    %736 = arith.addf %733, %735 : vector<4x64xf32>
    %737 = arith.addf %689, %736 : vector<4x64xf32>
    %c0_447 = arith.constant 0 : index
    %c0_448 = arith.constant 0 : index
    %738 = vector.load %arg61[%c0_447, %c0_448] : memref<1x64xf32, #tpu.memory_space<vmem>>, vector<1x64xf32>
    %c0_449 = arith.constant 0 : index
    %c0_450 = arith.constant 0 : index
    %739 = vector.load %arg62[%c0_449, %c0_450] : memref<1x64xf32, #tpu.memory_space<vmem>>, vector<1x64xf32>
    %cst_451 = arith.constant dense<0.000000e+00> : vector<4xf32>
    %740 = vector.multi_reduction <add>, %737, %cst_451 [1] : vector<4x64xf32> to vector<4xf32>
    %741 = vector.shape_cast %740 : vector<4xf32> to vector<4x1xf32>
    %cst_452 = arith.constant 6.400000e+01 : f32
    %742 = vector.broadcast %cst_452 : f32 to vector<4x1xf32>
    %743 = arith.divf %741, %742 : vector<4x1xf32>
    %744 = vector.broadcast %743 : vector<4x1xf32> to vector<4x64xf32>
    %745 = arith.subf %737, %744 : vector<4x64xf32>
    %746 = arith.mulf %745, %745 : vector<4x64xf32>
    %cst_453 = arith.constant dense<0.000000e+00> : vector<4xf32>
    %747 = vector.multi_reduction <add>, %746, %cst_453 [1] : vector<4x64xf32> to vector<4xf32>
    %748 = vector.shape_cast %747 : vector<4xf32> to vector<4x1xf32>
    %cst_454 = arith.constant 6.400000e+01 : f32
    %749 = vector.broadcast %cst_454 : f32 to vector<4x1xf32>
    %750 = arith.divf %748, %749 : vector<4x1xf32>
    %cst_455 = arith.constant 9.99999974E-6 : f32
    %751 = vector.broadcast %cst_455 : f32 to vector<4x1xf32>
    %752 = arith.addf %750, %751 : vector<4x1xf32>
    %753 = math.rsqrt %752 : vector<4x1xf32>
    %754 = vector.broadcast %753 : vector<4x1xf32> to vector<4x64xf32>
    %755 = arith.mulf %745, %754 : vector<4x64xf32>
    %756 = vector.broadcast %738 : vector<1x64xf32> to vector<4x64xf32>
    %757 = arith.mulf %755, %756 : vector<4x64xf32>
    %758 = vector.broadcast %739 : vector<1x64xf32> to vector<4x64xf32>
    %759 = arith.addf %757, %758 : vector<4x64xf32>
    %760 = arith.truncf %759 : vector<4x64xf32> to vector<4x64xbf16>
    %c0_456 = arith.constant 0 : index
    %c0_457 = arith.constant 0 : index
    %c0_458 = arith.constant 0 : index
    %761 = vector.load %arg63[%c0_456, %c0_457, %c0_458] : memref<4x64x16xbf16, #tpu.memory_space<vmem>>, vector<1x64x16xbf16>
    %762 = vector.shape_cast %761 : vector<1x64x16xbf16> to vector<64x16xbf16>
    %cst_459 = arith.constant dense<0.000000e+00> : vector<4x16xf32>
    %763 = tpu.matmul %760, %762, %cst_459 {dimension_numbers = #tpu.dot_dimension_numbers<[1], [0], [0], [1], [0, 0, 1, 1], [], []>} : vector<4x64xbf16>, vector<64x16xbf16>, vector<4x16xf32> -> vector<4x16xf32>
    %c0_460 = arith.constant 0 : index
    %c0_461 = arith.constant 0 : index
    %c0_462 = arith.constant 0 : index
    %764 = vector.load %arg66[%c0_460, %c0_461, %c0_462] : memref<4x1x16xf32, #tpu.memory_space<vmem>>, vector<1x1x16xf32>
    %765 = vector.shape_cast %764 : vector<1x1x16xf32> to vector<1x16xf32>
    %766 = vector.broadcast %765 : vector<1x16xf32> to vector<4x16xf32>
    %767 = arith.addf %763, %766 : vector<4x16xf32>
    %c0_463 = arith.constant 0 : index
    %c0_464 = arith.constant 0 : index
    %c0_465 = arith.constant 0 : index
    %768 = vector.load %arg64[%c0_463, %c0_464, %c0_465] : memref<4x64x16xbf16, #tpu.memory_space<vmem>>, vector<1x64x16xbf16>
    %769 = vector.shape_cast %768 : vector<1x64x16xbf16> to vector<64x16xbf16>
    %cst_466 = arith.constant dense<0.000000e+00> : vector<4x16xf32>
    %770 = tpu.matmul %760, %769, %cst_466 {dimension_numbers = #tpu.dot_dimension_numbers<[1], [0], [0], [1], [0, 0, 1, 1], [], []>} : vector<4x64xbf16>, vector<64x16xbf16>, vector<4x16xf32> -> vector<4x16xf32>
    %c0_467 = arith.constant 0 : index
    %c0_468 = arith.constant 0 : index
    %c0_469 = arith.constant 0 : index
    %771 = vector.load %arg67[%c0_467, %c0_468, %c0_469] : memref<4x1x16xf32, #tpu.memory_space<vmem>>, vector<1x1x16xf32>
    %772 = vector.shape_cast %771 : vector<1x1x16xf32> to vector<1x16xf32>
    %773 = vector.broadcast %772 : vector<1x16xf32> to vector<4x16xf32>
    %774 = arith.addf %770, %773 : vector<4x16xf32>
    %c0_470 = arith.constant 0 : index
    %c0_471 = arith.constant 0 : index
    %c0_472 = arith.constant 0 : index
    %775 = vector.load %arg65[%c0_470, %c0_471, %c0_472] : memref<4x64x16xbf16, #tpu.memory_space<vmem>>, vector<1x64x16xbf16>
    %776 = vector.shape_cast %775 : vector<1x64x16xbf16> to vector<64x16xbf16>
    %cst_473 = arith.constant dense<0.000000e+00> : vector<4x16xf32>
    %777 = tpu.matmul %760, %776, %cst_473 {dimension_numbers = #tpu.dot_dimension_numbers<[1], [0], [0], [1], [0, 0, 1, 1], [], []>} : vector<4x64xbf16>, vector<64x16xbf16>, vector<4x16xf32> -> vector<4x16xf32>
    %c0_474 = arith.constant 0 : index
    %c0_475 = arith.constant 0 : index
    %c0_476 = arith.constant 0 : index
    %778 = vector.load %arg68[%c0_474, %c0_475, %c0_476] : memref<4x1x16xf32, #tpu.memory_space<vmem>>, vector<1x1x16xf32>
    %779 = vector.shape_cast %778 : vector<1x1x16xf32> to vector<1x16xf32>
    %780 = vector.broadcast %779 : vector<1x16xf32> to vector<4x16xf32>
    %781 = arith.addf %777, %780 : vector<4x16xf32>
    %782 = arith.truncf %767 : vector<4x16xf32> to vector<4x16xbf16>
    %783 = arith.truncf %774 : vector<4x16xf32> to vector<4x16xbf16>
    %cst_477 = arith.constant dense<0.000000e+00> : vector<4x4xf32>
    %784 = tpu.matmul %782, %783, %cst_477 {dimension_numbers = #tpu.dot_dimension_numbers<[1], [1], [0], [0], [0, 0, 1, 0], [], []>} : vector<4x16xbf16>, vector<4x16xbf16>, vector<4x4xf32> -> vector<4x4xf32>
    %cst_478 = arith.constant 2.500000e-01 : f32
    %785 = vector.broadcast %cst_478 : f32 to vector<4x4xf32>
    %786 = arith.mulf %784, %785 : vector<4x4xf32>
    %c0_479 = arith.constant 0 : index
    %c0_480 = arith.constant 0 : index
    %c0_481 = arith.constant 0 : index
    %787 = vector.load %arg69[%c0_479, %c0_480, %c0_481] : memref<4x4x4xf32, #tpu.memory_space<vmem>>, vector<1x4x4xf32>
    %788 = vector.shape_cast %787 : vector<1x4x4xf32> to vector<4x4xf32>
    %789 = arith.addf %786, %788 : vector<4x4xf32>
    %cst_482 = arith.constant dense<0xFF800000> : vector<4xf32>
    %790 = vector.multi_reduction <maximumf>, %789, %cst_482 [1] : vector<4x4xf32> to vector<4xf32>
    %791 = vector.shape_cast %790 : vector<4xf32> to vector<4x1xf32>
    %792 = vector.broadcast %791 : vector<4x1xf32> to vector<4x4xf32>
    %793 = arith.subf %789, %792 : vector<4x4xf32>
    %794 = math.exp %793 : vector<4x4xf32>
    %cst_483 = arith.constant dense<0.000000e+00> : vector<4xf32>
    %795 = vector.multi_reduction <add>, %794, %cst_483 [1] : vector<4x4xf32> to vector<4xf32>
    %796 = vector.shape_cast %795 : vector<4xf32> to vector<4x1xf32>
    %797 = vector.broadcast %796 : vector<4x1xf32> to vector<4x4xf32>
    %798 = arith.divf %794, %797 : vector<4x4xf32>
    %799 = arith.truncf %798 : vector<4x4xf32> to vector<4x4xbf16>
    %800 = arith.truncf %781 : vector<4x16xf32> to vector<4x16xbf16>
    %cst_484 = arith.constant dense<0.000000e+00> : vector<4x16xf32>
    %801 = tpu.matmul %799, %800, %cst_484 {dimension_numbers = #tpu.dot_dimension_numbers<[1], [0], [0], [1], [0, 0, 1, 1], [], []>} : vector<4x4xbf16>, vector<4x16xbf16>, vector<4x16xf32> -> vector<4x16xf32>
    %802 = arith.truncf %801 : vector<4x16xf32> to vector<4x16xbf16>
    %c0_485 = arith.constant 0 : index
    %c0_486 = arith.constant 0 : index
    %c0_487 = arith.constant 0 : index
    %803 = vector.load %arg70[%c0_485, %c0_486, %c0_487] : memref<4x16x64xbf16, #tpu.memory_space<vmem>>, vector<1x16x64xbf16>
    %804 = vector.shape_cast %803 : vector<1x16x64xbf16> to vector<16x64xbf16>
    %cst_488 = arith.constant dense<0.000000e+00> : vector<4x64xf32>
    %805 = tpu.matmul %802, %804, %cst_488 {dimension_numbers = #tpu.dot_dimension_numbers<[1], [0], [0], [1], [0, 0, 1, 1], [], []>} : vector<4x16xbf16>, vector<16x64xbf16>, vector<4x64xf32> -> vector<4x64xf32>
    %c1_489 = arith.constant 1 : index
    %c0_490 = arith.constant 0 : index
    %c0_491 = arith.constant 0 : index
    %806 = vector.load %arg63[%c1_489, %c0_490, %c0_491] : memref<4x64x16xbf16, #tpu.memory_space<vmem>>, vector<1x64x16xbf16>
    %807 = vector.shape_cast %806 : vector<1x64x16xbf16> to vector<64x16xbf16>
    %cst_492 = arith.constant dense<0.000000e+00> : vector<4x16xf32>
    %808 = tpu.matmul %760, %807, %cst_492 {dimension_numbers = #tpu.dot_dimension_numbers<[1], [0], [0], [1], [0, 0, 1, 1], [], []>} : vector<4x64xbf16>, vector<64x16xbf16>, vector<4x16xf32> -> vector<4x16xf32>
    %c1_493 = arith.constant 1 : index
    %c0_494 = arith.constant 0 : index
    %c0_495 = arith.constant 0 : index
    %809 = vector.load %arg66[%c1_493, %c0_494, %c0_495] : memref<4x1x16xf32, #tpu.memory_space<vmem>>, vector<1x1x16xf32>
    %810 = vector.shape_cast %809 : vector<1x1x16xf32> to vector<1x16xf32>
    %811 = vector.broadcast %810 : vector<1x16xf32> to vector<4x16xf32>
    %812 = arith.addf %808, %811 : vector<4x16xf32>
    %c1_496 = arith.constant 1 : index
    %c0_497 = arith.constant 0 : index
    %c0_498 = arith.constant 0 : index
    %813 = vector.load %arg64[%c1_496, %c0_497, %c0_498] : memref<4x64x16xbf16, #tpu.memory_space<vmem>>, vector<1x64x16xbf16>
    %814 = vector.shape_cast %813 : vector<1x64x16xbf16> to vector<64x16xbf16>
    %cst_499 = arith.constant dense<0.000000e+00> : vector<4x16xf32>
    %815 = tpu.matmul %760, %814, %cst_499 {dimension_numbers = #tpu.dot_dimension_numbers<[1], [0], [0], [1], [0, 0, 1, 1], [], []>} : vector<4x64xbf16>, vector<64x16xbf16>, vector<4x16xf32> -> vector<4x16xf32>
    %c1_500 = arith.constant 1 : index
    %c0_501 = arith.constant 0 : index
    %c0_502 = arith.constant 0 : index
    %816 = vector.load %arg67[%c1_500, %c0_501, %c0_502] : memref<4x1x16xf32, #tpu.memory_space<vmem>>, vector<1x1x16xf32>
    %817 = vector.shape_cast %816 : vector<1x1x16xf32> to vector<1x16xf32>
    %818 = vector.broadcast %817 : vector<1x16xf32> to vector<4x16xf32>
    %819 = arith.addf %815, %818 : vector<4x16xf32>
    %c1_503 = arith.constant 1 : index
    %c0_504 = arith.constant 0 : index
    %c0_505 = arith.constant 0 : index
    %820 = vector.load %arg65[%c1_503, %c0_504, %c0_505] : memref<4x64x16xbf16, #tpu.memory_space<vmem>>, vector<1x64x16xbf16>
    %821 = vector.shape_cast %820 : vector<1x64x16xbf16> to vector<64x16xbf16>
    %cst_506 = arith.constant dense<0.000000e+00> : vector<4x16xf32>
    %822 = tpu.matmul %760, %821, %cst_506 {dimension_numbers = #tpu.dot_dimension_numbers<[1], [0], [0], [1], [0, 0, 1, 1], [], []>} : vector<4x64xbf16>, vector<64x16xbf16>, vector<4x16xf32> -> vector<4x16xf32>
    %c1_507 = arith.constant 1 : index
    %c0_508 = arith.constant 0 : index
    %c0_509 = arith.constant 0 : index
    %823 = vector.load %arg68[%c1_507, %c0_508, %c0_509] : memref<4x1x16xf32, #tpu.memory_space<vmem>>, vector<1x1x16xf32>
    %824 = vector.shape_cast %823 : vector<1x1x16xf32> to vector<1x16xf32>
    %825 = vector.broadcast %824 : vector<1x16xf32> to vector<4x16xf32>
    %826 = arith.addf %822, %825 : vector<4x16xf32>
    %827 = arith.truncf %812 : vector<4x16xf32> to vector<4x16xbf16>
    %828 = arith.truncf %819 : vector<4x16xf32> to vector<4x16xbf16>
    %cst_510 = arith.constant dense<0.000000e+00> : vector<4x4xf32>
    %829 = tpu.matmul %827, %828, %cst_510 {dimension_numbers = #tpu.dot_dimension_numbers<[1], [1], [0], [0], [0, 0, 1, 0], [], []>} : vector<4x16xbf16>, vector<4x16xbf16>, vector<4x4xf32> -> vector<4x4xf32>
    %cst_511 = arith.constant 2.500000e-01 : f32
    %830 = vector.broadcast %cst_511 : f32 to vector<4x4xf32>
    %831 = arith.mulf %829, %830 : vector<4x4xf32>
    %c1_512 = arith.constant 1 : index
    %c0_513 = arith.constant 0 : index
    %c0_514 = arith.constant 0 : index
    %832 = vector.load %arg69[%c1_512, %c0_513, %c0_514] : memref<4x4x4xf32, #tpu.memory_space<vmem>>, vector<1x4x4xf32>
    %833 = vector.shape_cast %832 : vector<1x4x4xf32> to vector<4x4xf32>
    %834 = arith.addf %831, %833 : vector<4x4xf32>
    %cst_515 = arith.constant dense<0xFF800000> : vector<4xf32>
    %835 = vector.multi_reduction <maximumf>, %834, %cst_515 [1] : vector<4x4xf32> to vector<4xf32>
    %836 = vector.shape_cast %835 : vector<4xf32> to vector<4x1xf32>
    %837 = vector.broadcast %836 : vector<4x1xf32> to vector<4x4xf32>
    %838 = arith.subf %834, %837 : vector<4x4xf32>
    %839 = math.exp %838 : vector<4x4xf32>
    %cst_516 = arith.constant dense<0.000000e+00> : vector<4xf32>
    %840 = vector.multi_reduction <add>, %839, %cst_516 [1] : vector<4x4xf32> to vector<4xf32>
    %841 = vector.shape_cast %840 : vector<4xf32> to vector<4x1xf32>
    %842 = vector.broadcast %841 : vector<4x1xf32> to vector<4x4xf32>
    %843 = arith.divf %839, %842 : vector<4x4xf32>
    %844 = arith.truncf %843 : vector<4x4xf32> to vector<4x4xbf16>
    %845 = arith.truncf %826 : vector<4x16xf32> to vector<4x16xbf16>
    %cst_517 = arith.constant dense<0.000000e+00> : vector<4x16xf32>
    %846 = tpu.matmul %844, %845, %cst_517 {dimension_numbers = #tpu.dot_dimension_numbers<[1], [0], [0], [1], [0, 0, 1, 1], [], []>} : vector<4x4xbf16>, vector<4x16xbf16>, vector<4x16xf32> -> vector<4x16xf32>
    %847 = arith.truncf %846 : vector<4x16xf32> to vector<4x16xbf16>
    %c1_518 = arith.constant 1 : index
    %c0_519 = arith.constant 0 : index
    %c0_520 = arith.constant 0 : index
    %848 = vector.load %arg70[%c1_518, %c0_519, %c0_520] : memref<4x16x64xbf16, #tpu.memory_space<vmem>>, vector<1x16x64xbf16>
    %849 = vector.shape_cast %848 : vector<1x16x64xbf16> to vector<16x64xbf16>
    %cst_521 = arith.constant dense<0.000000e+00> : vector<4x64xf32>
    %850 = tpu.matmul %847, %849, %cst_521 {dimension_numbers = #tpu.dot_dimension_numbers<[1], [0], [0], [1], [0, 0, 1, 1], [], []>} : vector<4x16xbf16>, vector<16x64xbf16>, vector<4x64xf32> -> vector<4x64xf32>
    %851 = arith.addf %805, %850 : vector<4x64xf32>
    %c2_522 = arith.constant 2 : index
    %c0_523 = arith.constant 0 : index
    %c0_524 = arith.constant 0 : index
    %852 = vector.load %arg63[%c2_522, %c0_523, %c0_524] : memref<4x64x16xbf16, #tpu.memory_space<vmem>>, vector<1x64x16xbf16>
    %853 = vector.shape_cast %852 : vector<1x64x16xbf16> to vector<64x16xbf16>
    %cst_525 = arith.constant dense<0.000000e+00> : vector<4x16xf32>
    %854 = tpu.matmul %760, %853, %cst_525 {dimension_numbers = #tpu.dot_dimension_numbers<[1], [0], [0], [1], [0, 0, 1, 1], [], []>} : vector<4x64xbf16>, vector<64x16xbf16>, vector<4x16xf32> -> vector<4x16xf32>
    %c2_526 = arith.constant 2 : index
    %c0_527 = arith.constant 0 : index
    %c0_528 = arith.constant 0 : index
    %855 = vector.load %arg66[%c2_526, %c0_527, %c0_528] : memref<4x1x16xf32, #tpu.memory_space<vmem>>, vector<1x1x16xf32>
    %856 = vector.shape_cast %855 : vector<1x1x16xf32> to vector<1x16xf32>
    %857 = vector.broadcast %856 : vector<1x16xf32> to vector<4x16xf32>
    %858 = arith.addf %854, %857 : vector<4x16xf32>
    %c2_529 = arith.constant 2 : index
    %c0_530 = arith.constant 0 : index
    %c0_531 = arith.constant 0 : index
    %859 = vector.load %arg64[%c2_529, %c0_530, %c0_531] : memref<4x64x16xbf16, #tpu.memory_space<vmem>>, vector<1x64x16xbf16>
    %860 = vector.shape_cast %859 : vector<1x64x16xbf16> to vector<64x16xbf16>
    %cst_532 = arith.constant dense<0.000000e+00> : vector<4x16xf32>
    %861 = tpu.matmul %760, %860, %cst_532 {dimension_numbers = #tpu.dot_dimension_numbers<[1], [0], [0], [1], [0, 0, 1, 1], [], []>} : vector<4x64xbf16>, vector<64x16xbf16>, vector<4x16xf32> -> vector<4x16xf32>
    %c2_533 = arith.constant 2 : index
    %c0_534 = arith.constant 0 : index
    %c0_535 = arith.constant 0 : index
    %862 = vector.load %arg67[%c2_533, %c0_534, %c0_535] : memref<4x1x16xf32, #tpu.memory_space<vmem>>, vector<1x1x16xf32>
    %863 = vector.shape_cast %862 : vector<1x1x16xf32> to vector<1x16xf32>
    %864 = vector.broadcast %863 : vector<1x16xf32> to vector<4x16xf32>
    %865 = arith.addf %861, %864 : vector<4x16xf32>
    %c2_536 = arith.constant 2 : index
    %c0_537 = arith.constant 0 : index
    %c0_538 = arith.constant 0 : index
    %866 = vector.load %arg65[%c2_536, %c0_537, %c0_538] : memref<4x64x16xbf16, #tpu.memory_space<vmem>>, vector<1x64x16xbf16>
    %867 = vector.shape_cast %866 : vector<1x64x16xbf16> to vector<64x16xbf16>
    %cst_539 = arith.constant dense<0.000000e+00> : vector<4x16xf32>
    %868 = tpu.matmul %760, %867, %cst_539 {dimension_numbers = #tpu.dot_dimension_numbers<[1], [0], [0], [1], [0, 0, 1, 1], [], []>} : vector<4x64xbf16>, vector<64x16xbf16>, vector<4x16xf32> -> vector<4x16xf32>
    %c2_540 = arith.constant 2 : index
    %c0_541 = arith.constant 0 : index
    %c0_542 = arith.constant 0 : index
    %869 = vector.load %arg68[%c2_540, %c0_541, %c0_542] : memref<4x1x16xf32, #tpu.memory_space<vmem>>, vector<1x1x16xf32>
    %870 = vector.shape_cast %869 : vector<1x1x16xf32> to vector<1x16xf32>
    %871 = vector.broadcast %870 : vector<1x16xf32> to vector<4x16xf32>
    %872 = arith.addf %868, %871 : vector<4x16xf32>
    %873 = arith.truncf %858 : vector<4x16xf32> to vector<4x16xbf16>
    %874 = arith.truncf %865 : vector<4x16xf32> to vector<4x16xbf16>
    %cst_543 = arith.constant dense<0.000000e+00> : vector<4x4xf32>
    %875 = tpu.matmul %873, %874, %cst_543 {dimension_numbers = #tpu.dot_dimension_numbers<[1], [1], [0], [0], [0, 0, 1, 0], [], []>} : vector<4x16xbf16>, vector<4x16xbf16>, vector<4x4xf32> -> vector<4x4xf32>
    %cst_544 = arith.constant 2.500000e-01 : f32
    %876 = vector.broadcast %cst_544 : f32 to vector<4x4xf32>
    %877 = arith.mulf %875, %876 : vector<4x4xf32>
    %c2_545 = arith.constant 2 : index
    %c0_546 = arith.constant 0 : index
    %c0_547 = arith.constant 0 : index
    %878 = vector.load %arg69[%c2_545, %c0_546, %c0_547] : memref<4x4x4xf32, #tpu.memory_space<vmem>>, vector<1x4x4xf32>
    %879 = vector.shape_cast %878 : vector<1x4x4xf32> to vector<4x4xf32>
    %880 = arith.addf %877, %879 : vector<4x4xf32>
    %cst_548 = arith.constant dense<0xFF800000> : vector<4xf32>
    %881 = vector.multi_reduction <maximumf>, %880, %cst_548 [1] : vector<4x4xf32> to vector<4xf32>
    %882 = vector.shape_cast %881 : vector<4xf32> to vector<4x1xf32>
    %883 = vector.broadcast %882 : vector<4x1xf32> to vector<4x4xf32>
    %884 = arith.subf %880, %883 : vector<4x4xf32>
    %885 = math.exp %884 : vector<4x4xf32>
    %cst_549 = arith.constant dense<0.000000e+00> : vector<4xf32>
    %886 = vector.multi_reduction <add>, %885, %cst_549 [1] : vector<4x4xf32> to vector<4xf32>
    %887 = vector.shape_cast %886 : vector<4xf32> to vector<4x1xf32>
    %888 = vector.broadcast %887 : vector<4x1xf32> to vector<4x4xf32>
    %889 = arith.divf %885, %888 : vector<4x4xf32>
    %890 = arith.truncf %889 : vector<4x4xf32> to vector<4x4xbf16>
    %891 = arith.truncf %872 : vector<4x16xf32> to vector<4x16xbf16>
    %cst_550 = arith.constant dense<0.000000e+00> : vector<4x16xf32>
    %892 = tpu.matmul %890, %891, %cst_550 {dimension_numbers = #tpu.dot_dimension_numbers<[1], [0], [0], [1], [0, 0, 1, 1], [], []>} : vector<4x4xbf16>, vector<4x16xbf16>, vector<4x16xf32> -> vector<4x16xf32>
    %893 = arith.truncf %892 : vector<4x16xf32> to vector<4x16xbf16>
    %c2_551 = arith.constant 2 : index
    %c0_552 = arith.constant 0 : index
    %c0_553 = arith.constant 0 : index
    %894 = vector.load %arg70[%c2_551, %c0_552, %c0_553] : memref<4x16x64xbf16, #tpu.memory_space<vmem>>, vector<1x16x64xbf16>
    %895 = vector.shape_cast %894 : vector<1x16x64xbf16> to vector<16x64xbf16>
    %cst_554 = arith.constant dense<0.000000e+00> : vector<4x64xf32>
    %896 = tpu.matmul %893, %895, %cst_554 {dimension_numbers = #tpu.dot_dimension_numbers<[1], [0], [0], [1], [0, 0, 1, 1], [], []>} : vector<4x16xbf16>, vector<16x64xbf16>, vector<4x64xf32> -> vector<4x64xf32>
    %897 = arith.addf %851, %896 : vector<4x64xf32>
    %c3_555 = arith.constant 3 : index
    %c0_556 = arith.constant 0 : index
    %c0_557 = arith.constant 0 : index
    %898 = vector.load %arg63[%c3_555, %c0_556, %c0_557] : memref<4x64x16xbf16, #tpu.memory_space<vmem>>, vector<1x64x16xbf16>
    %899 = vector.shape_cast %898 : vector<1x64x16xbf16> to vector<64x16xbf16>
    %cst_558 = arith.constant dense<0.000000e+00> : vector<4x16xf32>
    %900 = tpu.matmul %760, %899, %cst_558 {dimension_numbers = #tpu.dot_dimension_numbers<[1], [0], [0], [1], [0, 0, 1, 1], [], []>} : vector<4x64xbf16>, vector<64x16xbf16>, vector<4x16xf32> -> vector<4x16xf32>
    %c3_559 = arith.constant 3 : index
    %c0_560 = arith.constant 0 : index
    %c0_561 = arith.constant 0 : index
    %901 = vector.load %arg66[%c3_559, %c0_560, %c0_561] : memref<4x1x16xf32, #tpu.memory_space<vmem>>, vector<1x1x16xf32>
    %902 = vector.shape_cast %901 : vector<1x1x16xf32> to vector<1x16xf32>
    %903 = vector.broadcast %902 : vector<1x16xf32> to vector<4x16xf32>
    %904 = arith.addf %900, %903 : vector<4x16xf32>
    %c3_562 = arith.constant 3 : index
    %c0_563 = arith.constant 0 : index
    %c0_564 = arith.constant 0 : index
    %905 = vector.load %arg64[%c3_562, %c0_563, %c0_564] : memref<4x64x16xbf16, #tpu.memory_space<vmem>>, vector<1x64x16xbf16>
    %906 = vector.shape_cast %905 : vector<1x64x16xbf16> to vector<64x16xbf16>
    %cst_565 = arith.constant dense<0.000000e+00> : vector<4x16xf32>
    %907 = tpu.matmul %760, %906, %cst_565 {dimension_numbers = #tpu.dot_dimension_numbers<[1], [0], [0], [1], [0, 0, 1, 1], [], []>} : vector<4x64xbf16>, vector<64x16xbf16>, vector<4x16xf32> -> vector<4x16xf32>
    %c3_566 = arith.constant 3 : index
    %c0_567 = arith.constant 0 : index
    %c0_568 = arith.constant 0 : index
    %908 = vector.load %arg67[%c3_566, %c0_567, %c0_568] : memref<4x1x16xf32, #tpu.memory_space<vmem>>, vector<1x1x16xf32>
    %909 = vector.shape_cast %908 : vector<1x1x16xf32> to vector<1x16xf32>
    %910 = vector.broadcast %909 : vector<1x16xf32> to vector<4x16xf32>
    %911 = arith.addf %907, %910 : vector<4x16xf32>
    %c3_569 = arith.constant 3 : index
    %c0_570 = arith.constant 0 : index
    %c0_571 = arith.constant 0 : index
    %912 = vector.load %arg65[%c3_569, %c0_570, %c0_571] : memref<4x64x16xbf16, #tpu.memory_space<vmem>>, vector<1x64x16xbf16>
    %913 = vector.shape_cast %912 : vector<1x64x16xbf16> to vector<64x16xbf16>
    %cst_572 = arith.constant dense<0.000000e+00> : vector<4x16xf32>
    %914 = tpu.matmul %760, %913, %cst_572 {dimension_numbers = #tpu.dot_dimension_numbers<[1], [0], [0], [1], [0, 0, 1, 1], [], []>} : vector<4x64xbf16>, vector<64x16xbf16>, vector<4x16xf32> -> vector<4x16xf32>
    %c3_573 = arith.constant 3 : index
    %c0_574 = arith.constant 0 : index
    %c0_575 = arith.constant 0 : index
    %915 = vector.load %arg68[%c3_573, %c0_574, %c0_575] : memref<4x1x16xf32, #tpu.memory_space<vmem>>, vector<1x1x16xf32>
    %916 = vector.shape_cast %915 : vector<1x1x16xf32> to vector<1x16xf32>
    %917 = vector.broadcast %916 : vector<1x16xf32> to vector<4x16xf32>
    %918 = arith.addf %914, %917 : vector<4x16xf32>
    %919 = arith.truncf %904 : vector<4x16xf32> to vector<4x16xbf16>
    %920 = arith.truncf %911 : vector<4x16xf32> to vector<4x16xbf16>
    %cst_576 = arith.constant dense<0.000000e+00> : vector<4x4xf32>
    %921 = tpu.matmul %919, %920, %cst_576 {dimension_numbers = #tpu.dot_dimension_numbers<[1], [1], [0], [0], [0, 0, 1, 0], [], []>} : vector<4x16xbf16>, vector<4x16xbf16>, vector<4x4xf32> -> vector<4x4xf32>
    %cst_577 = arith.constant 2.500000e-01 : f32
    %922 = vector.broadcast %cst_577 : f32 to vector<4x4xf32>
    %923 = arith.mulf %921, %922 : vector<4x4xf32>
    %c3_578 = arith.constant 3 : index
    %c0_579 = arith.constant 0 : index
    %c0_580 = arith.constant 0 : index
    %924 = vector.load %arg69[%c3_578, %c0_579, %c0_580] : memref<4x4x4xf32, #tpu.memory_space<vmem>>, vector<1x4x4xf32>
    %925 = vector.shape_cast %924 : vector<1x4x4xf32> to vector<4x4xf32>
    %926 = arith.addf %923, %925 : vector<4x4xf32>
    %cst_581 = arith.constant dense<0xFF800000> : vector<4xf32>
    %927 = vector.multi_reduction <maximumf>, %926, %cst_581 [1] : vector<4x4xf32> to vector<4xf32>
    %928 = vector.shape_cast %927 : vector<4xf32> to vector<4x1xf32>
    %929 = vector.broadcast %928 : vector<4x1xf32> to vector<4x4xf32>
    %930 = arith.subf %926, %929 : vector<4x4xf32>
    %931 = math.exp %930 : vector<4x4xf32>
    %cst_582 = arith.constant dense<0.000000e+00> : vector<4xf32>
    %932 = vector.multi_reduction <add>, %931, %cst_582 [1] : vector<4x4xf32> to vector<4xf32>
    %933 = vector.shape_cast %932 : vector<4xf32> to vector<4x1xf32>
    %934 = vector.broadcast %933 : vector<4x1xf32> to vector<4x4xf32>
    %935 = arith.divf %931, %934 : vector<4x4xf32>
    %936 = arith.truncf %935 : vector<4x4xf32> to vector<4x4xbf16>
    %937 = arith.truncf %918 : vector<4x16xf32> to vector<4x16xbf16>
    %cst_583 = arith.constant dense<0.000000e+00> : vector<4x16xf32>
    %938 = tpu.matmul %936, %937, %cst_583 {dimension_numbers = #tpu.dot_dimension_numbers<[1], [0], [0], [1], [0, 0, 1, 1], [], []>} : vector<4x4xbf16>, vector<4x16xbf16>, vector<4x16xf32> -> vector<4x16xf32>
    %939 = arith.truncf %938 : vector<4x16xf32> to vector<4x16xbf16>
    %c3_584 = arith.constant 3 : index
    %c0_585 = arith.constant 0 : index
    %c0_586 = arith.constant 0 : index
    %940 = vector.load %arg70[%c3_584, %c0_585, %c0_586] : memref<4x16x64xbf16, #tpu.memory_space<vmem>>, vector<1x16x64xbf16>
    %941 = vector.shape_cast %940 : vector<1x16x64xbf16> to vector<16x64xbf16>
    %cst_587 = arith.constant dense<0.000000e+00> : vector<4x64xf32>
    %942 = tpu.matmul %939, %941, %cst_587 {dimension_numbers = #tpu.dot_dimension_numbers<[1], [0], [0], [1], [0, 0, 1, 1], [], []>} : vector<4x16xbf16>, vector<16x64xbf16>, vector<4x64xf32> -> vector<4x64xf32>
    %943 = arith.addf %897, %942 : vector<4x64xf32>
    %944 = arith.addf %737, %943 : vector<4x64xf32>
    %c0_588 = arith.constant 0 : index
    %c0_589 = arith.constant 0 : index
    %945 = vector.load %arg71[%c0_588, %c0_589] : memref<1x64xf32, #tpu.memory_space<vmem>>, vector<1x64xf32>
    %946 = vector.broadcast %945 : vector<1x64xf32> to vector<4x64xf32>
    %947 = arith.addf %944, %946 : vector<4x64xf32>
    %c0_590 = arith.constant 0 : index
    %c0_591 = arith.constant 0 : index
    %948 = vector.load %arg72[%c0_590, %c0_591] : memref<1x64xf32, #tpu.memory_space<vmem>>, vector<1x64xf32>
    %c0_592 = arith.constant 0 : index
    %c0_593 = arith.constant 0 : index
    %949 = vector.load %arg73[%c0_592, %c0_593] : memref<1x64xf32, #tpu.memory_space<vmem>>, vector<1x64xf32>
    %cst_594 = arith.constant dense<0.000000e+00> : vector<4xf32>
    %950 = vector.multi_reduction <add>, %947, %cst_594 [1] : vector<4x64xf32> to vector<4xf32>
    %951 = vector.shape_cast %950 : vector<4xf32> to vector<4x1xf32>
    %cst_595 = arith.constant 6.400000e+01 : f32
    %952 = vector.broadcast %cst_595 : f32 to vector<4x1xf32>
    %953 = arith.divf %951, %952 : vector<4x1xf32>
    %954 = vector.broadcast %953 : vector<4x1xf32> to vector<4x64xf32>
    %955 = arith.subf %947, %954 : vector<4x64xf32>
    %956 = arith.mulf %955, %955 : vector<4x64xf32>
    %cst_596 = arith.constant dense<0.000000e+00> : vector<4xf32>
    %957 = vector.multi_reduction <add>, %956, %cst_596 [1] : vector<4x64xf32> to vector<4xf32>
    %958 = vector.shape_cast %957 : vector<4xf32> to vector<4x1xf32>
    %cst_597 = arith.constant 6.400000e+01 : f32
    %959 = vector.broadcast %cst_597 : f32 to vector<4x1xf32>
    %960 = arith.divf %958, %959 : vector<4x1xf32>
    %cst_598 = arith.constant 9.99999974E-6 : f32
    %961 = vector.broadcast %cst_598 : f32 to vector<4x1xf32>
    %962 = arith.addf %960, %961 : vector<4x1xf32>
    %963 = math.rsqrt %962 : vector<4x1xf32>
    %964 = vector.broadcast %963 : vector<4x1xf32> to vector<4x64xf32>
    %965 = arith.mulf %955, %964 : vector<4x64xf32>
    %966 = vector.broadcast %948 : vector<1x64xf32> to vector<4x64xf32>
    %967 = arith.mulf %965, %966 : vector<4x64xf32>
    %968 = vector.broadcast %949 : vector<1x64xf32> to vector<4x64xf32>
    %969 = arith.addf %967, %968 : vector<4x64xf32>
    %970 = arith.truncf %969 : vector<4x64xf32> to vector<4x64xbf16>
    %c0_599 = arith.constant 0 : index
    %c0_600 = arith.constant 0 : index
    %971 = vector.load %arg74[%c0_599, %c0_600] : memref<64x256xbf16, #tpu.memory_space<vmem>>, vector<64x256xbf16>
    %cst_601 = arith.constant dense<0.000000e+00> : vector<4x256xf32>
    %972 = tpu.matmul %970, %971, %cst_601 {dimension_numbers = #tpu.dot_dimension_numbers<[1], [0], [0], [1], [0, 0, 1, 1], [], []>} : vector<4x64xbf16>, vector<64x256xbf16>, vector<4x256xf32> -> vector<4x256xf32>
    %c0_602 = arith.constant 0 : index
    %c0_603 = arith.constant 0 : index
    %973 = vector.load %arg75[%c0_602, %c0_603] : memref<1x256xf32, #tpu.memory_space<vmem>>, vector<1x256xf32>
    %974 = vector.broadcast %973 : vector<1x256xf32> to vector<4x256xf32>
    %975 = arith.addf %972, %974 : vector<4x256xf32>
    %976 = arith.mulf %975, %975 : vector<4x256xf32>
    %977 = arith.mulf %975, %976 : vector<4x256xf32>
    %cst_604 = arith.constant 4.471500e-02 : f32
    %978 = vector.broadcast %cst_604 : f32 to vector<4x256xf32>
    %979 = arith.mulf %978, %977 : vector<4x256xf32>
    %980 = arith.addf %975, %979 : vector<4x256xf32>
    %cst_605 = arith.constant 0.797884583 : f32
    %981 = vector.broadcast %cst_605 : f32 to vector<4x256xf32>
    %982 = arith.mulf %981, %980 : vector<4x256xf32>
    %983 = math.tanh %982 : vector<4x256xf32>
    %cst_606 = arith.constant 1.000000e+00 : f32
    %984 = vector.broadcast %cst_606 : f32 to vector<4x256xf32>
    %985 = arith.addf %984, %983 : vector<4x256xf32>
    %cst_607 = arith.constant 5.000000e-01 : f32
    %986 = vector.broadcast %cst_607 : f32 to vector<4x256xf32>
    %987 = arith.mulf %986, %985 : vector<4x256xf32>
    %988 = arith.mulf %975, %987 : vector<4x256xf32>
    %989 = arith.truncf %988 : vector<4x256xf32> to vector<4x256xbf16>
    %c0_608 = arith.constant 0 : index
    %c0_609 = arith.constant 0 : index
    %990 = vector.load %arg76[%c0_608, %c0_609] : memref<256x64xbf16, #tpu.memory_space<vmem>>, vector<256x64xbf16>
    %cst_610 = arith.constant dense<0.000000e+00> : vector<4x64xf32>
    %991 = tpu.matmul %989, %990, %cst_610 {dimension_numbers = #tpu.dot_dimension_numbers<[1], [0], [0], [1], [0, 0, 1, 1], [], []>} : vector<4x256xbf16>, vector<256x64xbf16>, vector<4x64xf32> -> vector<4x64xf32>
    %c0_611 = arith.constant 0 : index
    %c0_612 = arith.constant 0 : index
    %992 = vector.load %arg77[%c0_611, %c0_612] : memref<1x64xf32, #tpu.memory_space<vmem>>, vector<1x64xf32>
    %993 = vector.broadcast %992 : vector<1x64xf32> to vector<4x64xf32>
    %994 = arith.addf %991, %993 : vector<4x64xf32>
    %995 = arith.addf %947, %994 : vector<4x64xf32>
    %c0_613 = arith.constant 0 : index
    %c0_614 = arith.constant 0 : index
    %996 = vector.load %arg78[%c0_613, %c0_614] : memref<1x64xf32, #tpu.memory_space<vmem>>, vector<1x64xf32>
    %c0_615 = arith.constant 0 : index
    %c0_616 = arith.constant 0 : index
    %997 = vector.load %arg79[%c0_615, %c0_616] : memref<1x64xf32, #tpu.memory_space<vmem>>, vector<1x64xf32>
    %cst_617 = arith.constant dense<0.000000e+00> : vector<4xf32>
    %998 = vector.multi_reduction <add>, %995, %cst_617 [1] : vector<4x64xf32> to vector<4xf32>
    %999 = vector.shape_cast %998 : vector<4xf32> to vector<4x1xf32>
    %cst_618 = arith.constant 6.400000e+01 : f32
    %1000 = vector.broadcast %cst_618 : f32 to vector<4x1xf32>
    %1001 = arith.divf %999, %1000 : vector<4x1xf32>
    %1002 = vector.broadcast %1001 : vector<4x1xf32> to vector<4x64xf32>
    %1003 = arith.subf %995, %1002 : vector<4x64xf32>
    %1004 = arith.mulf %1003, %1003 : vector<4x64xf32>
    %cst_619 = arith.constant dense<0.000000e+00> : vector<4xf32>
    %1005 = vector.multi_reduction <add>, %1004, %cst_619 [1] : vector<4x64xf32> to vector<4xf32>
    %1006 = vector.shape_cast %1005 : vector<4xf32> to vector<4x1xf32>
    %cst_620 = arith.constant 6.400000e+01 : f32
    %1007 = vector.broadcast %cst_620 : f32 to vector<4x1xf32>
    %1008 = arith.divf %1006, %1007 : vector<4x1xf32>
    %cst_621 = arith.constant 9.99999974E-6 : f32
    %1009 = vector.broadcast %cst_621 : f32 to vector<4x1xf32>
    %1010 = arith.addf %1008, %1009 : vector<4x1xf32>
    %1011 = math.rsqrt %1010 : vector<4x1xf32>
    %1012 = vector.broadcast %1011 : vector<4x1xf32> to vector<4x64xf32>
    %1013 = arith.mulf %1003, %1012 : vector<4x64xf32>
    %1014 = vector.broadcast %996 : vector<1x64xf32> to vector<4x64xf32>
    %1015 = arith.mulf %1013, %1014 : vector<4x64xf32>
    %1016 = vector.broadcast %997 : vector<1x64xf32> to vector<4x64xf32>
    %1017 = arith.addf %1015, %1016 : vector<4x64xf32>
    %cst_622 = arith.constant dense<0.000000e+00> : vector<64xf32>
    %1018 = vector.multi_reduction <add>, %1017, %cst_622 [0] : vector<4x64xf32> to vector<64xf32>
    %1019 = vector.shape_cast %1018 : vector<64xf32> to vector<1x64xf32>
    %cst_623 = arith.constant 4.000000e+00 : f32
    %1020 = vector.broadcast %cst_623 : f32 to vector<1x64xf32>
    %1021 = arith.divf %1019, %1020 : vector<1x64xf32>
    %1022 = vector.shape_cast %1021 : vector<1x64xf32> to vector<1x64xf32>
    %1023 = vector.broadcast %1022 : vector<1x64xf32> to vector<8x64xf32>
    %c0_624 = arith.constant 0 : index
    %c0_625 = arith.constant 0 : index
    %c0_626 = arith.constant 0 : index
    %1024 = vector.load %arg80[%c0_624, %c0_625, %c0_626] : memref<1x8x64xf32, #tpu.memory_space<vmem>>, vector<1x8x64xf32>
    %1025 = vector.shape_cast %1024 : vector<1x8x64xf32> to vector<8x64xf32>
    %1026 = vector.shape_cast %1023 : vector<8x64xf32> to vector<1x8x64xf32>
    tpu.vector_store %arg80[%c0_624, %c0_625, %c0_626], %1026 {strides = array<i32>} : memref<1x8x64xf32, #tpu.memory_space<vmem>>, vector<1x8x64xf32>,
    return
  }
  func.func @transform_0(%arg0: i32) -> (i32, i32, i32) {
    %c0_i32 = arith.constant 0 : i32
    %c0_i32_0 = arith.constant 0 : i32
    %c0_i32_1 = arith.constant 0 : i32
    return %arg0, %c0_i32, %c0_i32_0 : i32, i32, i32
  }
  func.func @transform_1(%arg0: i32) -> (i32, i32) {
    %c0_i32 = arith.constant 0 : i32
    %c0_i32_0 = arith.constant 0 : i32
    %c0_i32_1 = arith.constant 0 : i32
    return %c0_i32, %c0_i32_0 : i32, i32
  }
  func.func @transform_2(%arg0: i32) -> (i32, i32) {
    %c0_i32 = arith.constant 0 : i32
    %c0_i32_0 = arith.constant 0 : i32
    %c0_i32_1 = arith.constant 0 : i32
    return %c0_i32, %c0_i32_0 : i32, i32
  }
  func.func @transform_3(%arg0: i32) -> (i32, i32) {
    %c0_i32 = arith.constant 0 : i32
    %c0_i32_0 = arith.constant 0 : i32
    %c0_i32_1 = arith.constant 0 : i32
    return %c0_i32, %c0_i32_0 : i32, i32
  }
  func.func @transform_4(%arg0: i32) -> (i32, i32) {
    %c0_i32 = arith.constant 0 : i32
    %c0_i32_0 = arith.constant 0 : i32
    %c0_i32_1 = arith.constant 0 : i32
    return %c0_i32, %c0_i32_0 : i32, i32
  }
  func.func @transform_5(%arg0: i32) -> (i32, i32) {
    %c0_i32 = arith.constant 0 : i32
    %c0_i32_0 = arith.constant 0 : i32
    %c0_i32_1 = arith.constant 0 : i32
    return %c0_i32, %c0_i32_0 : i32, i32
  }
  func.func @transform_6(%arg0: i32) -> (i32, i32) {
    %c0_i32 = arith.constant 0 : i32
    %c0_i32_0 = arith.constant 0 : i32
    %c0_i32_1 = arith.constant 0 : i32
    return %c0_i32, %c0_i32_0 : i32, i32
  }
  func.func @transform_7(%arg0: i32) -> (i32, i32, i32) {
    %c0_i32 = arith.constant 0 : i32
    %c0_i32_0 = arith.constant 0 : i32
    %c0_i32_1 = arith.constant 0 : i32
    %c0_i32_2 = arith.constant 0 : i32
    return %c0_i32, %c0_i32_0, %c0_i32_1 : i32, i32, i32
  }
  func.func @transform_8(%arg0: i32) -> (i32, i32, i32) {
    %c0_i32 = arith.constant 0 : i32
    %c0_i32_0 = arith.constant 0 : i32
    %c0_i32_1 = arith.constant 0 : i32
    %c0_i32_2 = arith.constant 0 : i32
    return %c0_i32, %c0_i32_0, %c0_i32_1 : i32, i32, i32
  }
  func.func @transform_9(%arg0: i32) -> (i32, i32, i32) {
    %c0_i32 = arith.constant 0 : i32
    %c0_i32_0 = arith.constant 0 : i32
    %c0_i32_1 = arith.constant 0 : i32
    %c0_i32_2 = arith.constant 0 : i32
    return %c0_i32, %c0_i32_0, %c0_i32_1 : i32, i32, i32
  }
  func.func @transform_10(%arg0: i32) -> (i32, i32, i32) {
    %c0_i32 = arith.constant 0 : i32
    %c0_i32_0 = arith.constant 0 : i32
    %c0_i32_1 = arith.constant 0 : i32
    %c0_i32_2 = arith.constant 0 : i32
    return %c0_i32, %c0_i32_0, %c0_i32_1 : i32, i32, i32
  }
  func.func @transform_11(%arg0: i32) -> (i32, i32, i32) {
    %c0_i32 = arith.constant 0 : i32
    %c0_i32_0 = arith.constant 0 : i32
    %c0_i32_1 = arith.constant 0 : i32
    %c0_i32_2 = arith.constant 0 : i32
    return %c0_i32, %c0_i32_0, %c0_i32_1 : i32, i32, i32
  }
  func.func @transform_12(%arg0: i32) -> (i32, i32, i32) {
    %c0_i32 = arith.constant 0 : i32
    %c0_i32_0 = arith.constant 0 : i32
    %c0_i32_1 = arith.constant 0 : i32
    %c0_i32_2 = arith.constant 0 : i32
    return %c0_i32, %c0_i32_0, %c0_i32_1 : i32, i32, i32
  }
  func.func @transform_13(%arg0: i32) -> (i32, i32, i32) {
    %c0_i32 = arith.constant 0 : i32
    %c0_i32_0 = arith.constant 0 : i32
    %c0_i32_1 = arith.constant 0 : i32
    %c0_i32_2 = arith.constant 0 : i32
    return %c0_i32, %c0_i32_0, %c0_i32_1 : i32, i32, i32
  }
  func.func @transform_14(%arg0: i32) -> (i32, i32, i32) {
    %c0_i32 = arith.constant 0 : i32
    %c0_i32_0 = arith.constant 0 : i32
    %c0_i32_1 = arith.constant 0 : i32
    %c0_i32_2 = arith.constant 0 : i32
    return %c0_i32, %c0_i32_0, %c0_i32_1 : i32, i32, i32
  }
  func.func @transform_15(%arg0: i32) -> (i32, i32) {
    %c0_i32 = arith.constant 0 : i32
    %c0_i32_0 = arith.constant 0 : i32
    %c0_i32_1 = arith.constant 0 : i32
    return %c0_i32, %c0_i32_0 : i32, i32
  }
  func.func @transform_16(%arg0: i32) -> (i32, i32) {
    %c0_i32 = arith.constant 0 : i32
    %c0_i32_0 = arith.constant 0 : i32
    %c0_i32_1 = arith.constant 0 : i32
    return %c0_i32, %c0_i32_0 : i32, i32
  }
  func.func @transform_17(%arg0: i32) -> (i32, i32) {
    %c0_i32 = arith.constant 0 : i32
    %c0_i32_0 = arith.constant 0 : i32
    %c0_i32_1 = arith.constant 0 : i32
    return %c0_i32, %c0_i32_0 : i32, i32
  }
  func.func @transform_18(%arg0: i32) -> (i32, i32) {
    %c0_i32 = arith.constant 0 : i32
    %c0_i32_0 = arith.constant 0 : i32
    %c0_i32_1 = arith.constant 0 : i32
    return %c0_i32, %c0_i32_0 : i32, i32
  }
  func.func @transform_19(%arg0: i32) -> (i32, i32) {
    %c0_i32 = arith.constant 0 : i32
    %c0_i32_0 = arith.constant 0 : i32
    %c0_i32_1 = arith.constant 0 : i32
    return %c0_i32, %c0_i32_0 : i32, i32
  }
  func.func @transform_20(%arg0: i32) -> (i32, i32) {
    %c0_i32 = arith.constant 0 : i32
    %c0_i32_0 = arith.constant 0 : i32
    %c0_i32_1 = arith.constant 0 : i32
    return %c0_i32, %c0_i32_0 : i32, i32
  }
  func.func @transform_21(%arg0: i32) -> (i32, i32) {
    %c0_i32 = arith.constant 0 : i32
    %c0_i32_0 = arith.constant 0 : i32
    %c0_i32_1 = arith.constant 0 : i32
    return %c0_i32, %c0_i32_0 : i32, i32
  }
  func.func @transform_22(%arg0: i32) -> (i32, i32) {
    %c0_i32 = arith.constant 0 : i32
    %c0_i32_0 = arith.constant 0 : i32
    %c0_i32_1 = arith.constant 0 : i32
    return %c0_i32, %c0_i32_0 : i32, i32
  }
  func.func @transform_23(%arg0: i32) -> (i32, i32) {
    %c0_i32 = arith.constant 0 : i32
    %c0_i32_0 = arith.constant 0 : i32
    %c0_i32_1 = arith.constant 0 : i32
    return %c0_i32, %c0_i32_0 : i32, i32
  }
  func.func @transform_24(%arg0: i32) -> (i32, i32, i32) {
    %c0_i32 = arith.constant 0 : i32
    %c0_i32_0 = arith.constant 0 : i32
    %c0_i32_1 = arith.constant 0 : i32
    %c0_i32_2 = arith.constant 0 : i32
    return %c0_i32, %c0_i32_0, %c0_i32_1 : i32, i32, i32
  }
  func.func @transform_25(%arg0: i32) -> (i32, i32, i32) {
    %c0_i32 = arith.constant 0 : i32
    %c0_i32_0 = arith.constant 0 : i32
    %c0_i32_1 = arith.constant 0 : i32
    %c0_i32_2 = arith.constant 0 : i32
    return %c0_i32, %c0_i32_0, %c0_i32_1 : i32, i32, i32
  }
  func.func @transform_26(%arg0: i32) -> (i32, i32, i32) {
    %c0_i32 = arith.constant 0 : i32
    %c0_i32_0 = arith.constant 0 : i32
    %c0_i32_1 = arith.constant 0 : i32
    %c0_i32_2 = arith.constant 0 : i32
    return %c0_i32, %c0_i32_0, %c0_i32_1 : i32, i32, i32
  }
  func.func @transform_27(%arg0: i32) -> (i32, i32, i32) {
    %c0_i32 = arith.constant 0 : i32
    %c0_i32_0 = arith.constant 0 : i32
    %c0_i32_1 = arith.constant 0 : i32
    %c0_i32_2 = arith.constant 0 : i32
    return %c0_i32, %c0_i32_0, %c0_i32_1 : i32, i32, i32
  }
  func.func @transform_28(%arg0: i32) -> (i32, i32, i32) {
    %c0_i32 = arith.constant 0 : i32
    %c0_i32_0 = arith.constant 0 : i32
    %c0_i32_1 = arith.constant 0 : i32
    %c0_i32_2 = arith.constant 0 : i32
    return %c0_i32, %c0_i32_0, %c0_i32_1 : i32, i32, i32
  }
  func.func @transform_29(%arg0: i32) -> (i32, i32, i32) {
    %c0_i32 = arith.constant 0 : i32
    %c0_i32_0 = arith.constant 0 : i32
    %c0_i32_1 = arith.constant 0 : i32
    %c0_i32_2 = arith.constant 0 : i32
    return %c0_i32, %c0_i32_0, %c0_i32_1 : i32, i32, i32
  }
  func.func @transform_30(%arg0: i32) -> (i32, i32, i32) {
    %c0_i32 = arith.constant 0 : i32
    %c0_i32_0 = arith.constant 0 : i32
    %c0_i32_1 = arith.constant 0 : i32
    %c0_i32_2 = arith.constant 0 : i32
    return %c0_i32, %c0_i32_0, %c0_i32_1 : i32, i32, i32
  }
  func.func @transform_31(%arg0: i32) -> (i32, i32, i32) {
    %c0_i32 = arith.constant 0 : i32
    %c0_i32_0 = arith.constant 0 : i32
    %c0_i32_1 = arith.constant 0 : i32
    %c0_i32_2 = arith.constant 0 : i32
    return %c0_i32, %c0_i32_0, %c0_i32_1 : i32, i32, i32
  }
  func.func @transform_32(%arg0: i32) -> (i32, i32) {
    %c0_i32 = arith.constant 0 : i32
    %c0_i32_0 = arith.constant 0 : i32
    %c0_i32_1 = arith.constant 0 : i32
    return %c0_i32, %c0_i32_0 : i32, i32
  }
  func.func @transform_33(%arg0: i32) -> (i32, i32) {
    %c0_i32 = arith.constant 0 : i32
    %c0_i32_0 = arith.constant 0 : i32
    %c0_i32_1 = arith.constant 0 : i32
    return %c0_i32, %c0_i32_0 : i32, i32
  }
  func.func @transform_34(%arg0: i32) -> (i32, i32) {
    %c0_i32 = arith.constant 0 : i32
    %c0_i32_0 = arith.constant 0 : i32
    %c0_i32_1 = arith.constant 0 : i32
    return %c0_i32, %c0_i32_0 : i32, i32
  }
  func.func @transform_35(%arg0: i32) -> (i32, i32) {
    %c0_i32 = arith.constant 0 : i32
    %c0_i32_0 = arith.constant 0 : i32
    %c0_i32_1 = arith.constant 0 : i32
    return %c0_i32, %c0_i32_0 : i32, i32
  }
  func.func @transform_36(%arg0: i32) -> (i32, i32) {
    %c0_i32 = arith.constant 0 : i32
    %c0_i32_0 = arith.constant 0 : i32
    %c0_i32_1 = arith.constant 0 : i32
    return %c0_i32, %c0_i32_0 : i32, i32
  }
  func.func @transform_37(%arg0: i32) -> (i32, i32) {
    %c0_i32 = arith.constant 0 : i32
    %c0_i32_0 = arith.constant 0 : i32
    %c0_i32_1 = arith.constant 0 : i32
    return %c0_i32, %c0_i32_0 : i32, i32
  }
  func.func @transform_38(%arg0: i32) -> (i32, i32) {
    %c0_i32 = arith.constant 0 : i32
    %c0_i32_0 = arith.constant 0 : i32
    %c0_i32_1 = arith.constant 0 : i32
    return %c0_i32, %c0_i32_0 : i32, i32
  }
  func.func @transform_39(%arg0: i32) -> (i32, i32, i32) {
    %c0_i32 = arith.constant 0 : i32
    %c0_i32_0 = arith.constant 0 : i32
    %c0_i32_1 = arith.constant 0 : i32
    %c0_i32_2 = arith.constant 0 : i32
    return %c0_i32, %c0_i32_0, %c0_i32_1 : i32, i32, i32
  }
  func.func @transform_40(%arg0: i32) -> (i32, i32, i32) {
    %c0_i32 = arith.constant 0 : i32
    %c0_i32_0 = arith.constant 0 : i32
    %c0_i32_1 = arith.constant 0 : i32
    %c0_i32_2 = arith.constant 0 : i32
    return %c0_i32, %c0_i32_0, %c0_i32_1 : i32, i32, i32
  }
  func.func @transform_41(%arg0: i32) -> (i32, i32, i32) {
    %c0_i32 = arith.constant 0 : i32
    %c0_i32_0 = arith.constant 0 : i32
    %c0_i32_1 = arith.constant 0 : i32
    %c0_i32_2 = arith.constant 0 : i32
    return %c0_i32, %c0_i32_0, %c0_i32_1 : i32, i32, i32
  }
  func.func @transform_42(%arg0: i32) -> (i32, i32, i32) {
    %c0_i32 = arith.constant 0 : i32
    %c0_i32_0 = arith.constant 0 : i32
    %c0_i32_1 = arith.constant 0 : i32
    %c0_i32_2 = arith.constant 0 : i32
    return %c0_i32, %c0_i32_0, %c0_i32_1 : i32, i32, i32
  }
  func.func @transform_43(%arg0: i32) -> (i32, i32) {
    %c0_i32 = arith.constant 0 : i32
    %c0_i32_0 = arith.constant 0 : i32
    %c0_i32_1 = arith.constant 0 : i32
    return %c0_i32, %c0_i32_0 : i32, i32
  }
  func.func @transform_44(%arg0: i32) -> (i32, i32) {
    %c0_i32 = arith.constant 0 : i32
    %c0_i32_0 = arith.constant 0 : i32
    %c0_i32_1 = arith.constant 0 : i32
    return %c0_i32, %c0_i32_0 : i32, i32
  }
  func.func @transform_45(%arg0: i32) -> (i32, i32, i32) {
    %c0_i32 = arith.constant 0 : i32
    %c0_i32_0 = arith.constant 0 : i32
    %c0_i32_1 = arith.constant 0 : i32
    %c0_i32_2 = arith.constant 0 : i32
    return %c0_i32, %c0_i32_0, %c0_i32_1 : i32, i32, i32
  }
  func.func @transform_46(%arg0: i32) -> (i32, i32, i32) {
    %c0_i32 = arith.constant 0 : i32
    %c0_i32_0 = arith.constant 0 : i32
    %c0_i32_1 = arith.constant 0 : i32
    %c0_i32_2 = arith.constant 0 : i32
    return %c0_i32, %c0_i32_0, %c0_i32_1 : i32, i32, i32
  }
  func.func @transform_47(%arg0: i32) -> (i32, i32, i32) {
    %c0_i32 = arith.constant 0 : i32
    %c0_i32_0 = arith.constant 0 : i32
    %c0_i32_1 = arith.constant 0 : i32
    %c0_i32_2 = arith.constant 0 : i32
    return %c0_i32, %c0_i32_0, %c0_i32_1 : i32, i32, i32
  }
  func.func @transform_48(%arg0: i32) -> (i32, i32, i32) {
    %c0_i32 = arith.constant 0 : i32
    %c0_i32_0 = arith.constant 0 : i32
    %c0_i32_1 = arith.constant 0 : i32
    %c0_i32_2 = arith.constant 0 : i32
    return %c0_i32, %c0_i32_0, %c0_i32_1 : i32, i32, i32
  }
  func.func @transform_49(%arg0: i32) -> (i32, i32, i32) {
    %c0_i32 = arith.constant 0 : i32
    %c0_i32_0 = arith.constant 0 : i32
    %c0_i32_1 = arith.constant 0 : i32
    %c0_i32_2 = arith.constant 0 : i32
    return %c0_i32, %c0_i32_0, %c0_i32_1 : i32, i32, i32
  }
  func.func @transform_50(%arg0: i32) -> (i32, i32, i32) {
    %c0_i32 = arith.constant 0 : i32
    %c0_i32_0 = arith.constant 0 : i32
    %c0_i32_1 = arith.constant 0 : i32
    %c0_i32_2 = arith.constant 0 : i32
    return %c0_i32, %c0_i32_0, %c0_i32_1 : i32, i32, i32
  }
  func.func @transform_51(%arg0: i32) -> (i32, i32, i32) {
    %c0_i32 = arith.constant 0 : i32
    %c0_i32_0 = arith.constant 0 : i32
    %c0_i32_1 = arith.constant 0 : i32
    %c0_i32_2 = arith.constant 0 : i32
    return %c0_i32, %c0_i32_0, %c0_i32_1 : i32, i32, i32
  }
  func.func @transform_52(%arg0: i32) -> (i32, i32, i32) {
    %c0_i32 = arith.constant 0 : i32
    %c0_i32_0 = arith.constant 0 : i32
    %c0_i32_1 = arith.constant 0 : i32
    %c0_i32_2 = arith.constant 0 : i32
    return %c0_i32, %c0_i32_0, %c0_i32_1 : i32, i32, i32
  }
  func.func @transform_53(%arg0: i32) -> (i32, i32) {
    %c0_i32 = arith.constant 0 : i32
    %c0_i32_0 = arith.constant 0 : i32
    %c0_i32_1 = arith.constant 0 : i32
    return %c0_i32, %c0_i32_0 : i32, i32
  }
  func.func @transform_54(%arg0: i32) -> (i32, i32) {
    %c0_i32 = arith.constant 0 : i32
    %c0_i32_0 = arith.constant 0 : i32
    %c0_i32_1 = arith.constant 0 : i32
    return %c0_i32, %c0_i32_0 : i32, i32
  }
  func.func @transform_55(%arg0: i32) -> (i32, i32) {
    %c0_i32 = arith.constant 0 : i32
    %c0_i32_0 = arith.constant 0 : i32
    %c0_i32_1 = arith.constant 0 : i32
    return %c0_i32, %c0_i32_0 : i32, i32
  }
  func.func @transform_56(%arg0: i32) -> (i32, i32) {
    %c0_i32 = arith.constant 0 : i32
    %c0_i32_0 = arith.constant 0 : i32
    %c0_i32_1 = arith.constant 0 : i32
    return %c0_i32, %c0_i32_0 : i32, i32
  }
  func.func @transform_57(%arg0: i32) -> (i32, i32) {
    %c0_i32 = arith.constant 0 : i32
    %c0_i32_0 = arith.constant 0 : i32
    %c0_i32_1 = arith.constant 0 : i32
    return %c0_i32, %c0_i32_0 : i32, i32
  }
  func.func @transform_58(%arg0: i32) -> (i32, i32) {
    %c0_i32 = arith.constant 0 : i32
    %c0_i32_0 = arith.constant 0 : i32
    %c0_i32_1 = arith.constant 0 : i32
    return %c0_i32, %c0_i32_0 : i32, i32
  }
  func.func @transform_59(%arg0: i32) -> (i32, i32) {
    %c0_i32 = arith.constant 0 : i32
    %c0_i32_0 = arith.constant 0 : i32
    %c0_i32_1 = arith.constant 0 : i32
    return %c0_i32, %c0_i32_0 : i32, i32
  }
  func.func @transform_60(%arg0: i32) -> (i32, i32) {
    %c0_i32 = arith.constant 0 : i32
    %c0_i32_0 = arith.constant 0 : i32
    %c0_i32_1 = arith.constant 0 : i32
    return %c0_i32, %c0_i32_0 : i32, i32
  }
  func.func @transform_61(%arg0: i32) -> (i32, i32) {
    %c0_i32 = arith.constant 0 : i32
    %c0_i32_0 = arith.constant 0 : i32
    %c0_i32_1 = arith.constant 0 : i32
    return %c0_i32, %c0_i32_0 : i32, i32
  }
  func.func @transform_62(%arg0: i32) -> (i32, i32, i32) {
    %c0_i32 = arith.constant 0 : i32
    %c0_i32_0 = arith.constant 0 : i32
    %c0_i32_1 = arith.constant 0 : i32
    %c0_i32_2 = arith.constant 0 : i32
    return %c0_i32, %c0_i32_0, %c0_i32_1 : i32, i32, i32
  }
  func.func @transform_63(%arg0: i32) -> (i32, i32, i32) {
    %c0_i32 = arith.constant 0 : i32
    %c0_i32_0 = arith.constant 0 : i32
    %c0_i32_1 = arith.constant 0 : i32
    %c0_i32_2 = arith.constant 0 : i32
    return %c0_i32, %c0_i32_0, %c0_i32_1 : i32, i32, i32
  }
  func.func @transform_64(%arg0: i32) -> (i32, i32, i32) {
    %c0_i32 = arith.constant 0 : i32
    %c0_i32_0 = arith.constant 0 : i32
    %c0_i32_1 = arith.constant 0 : i32
    %c0_i32_2 = arith.constant 0 : i32
    return %c0_i32, %c0_i32_0, %c0_i32_1 : i32, i32, i32
  }
  func.func @transform_65(%arg0: i32) -> (i32, i32, i32) {
    %c0_i32 = arith.constant 0 : i32
    %c0_i32_0 = arith.constant 0 : i32
    %c0_i32_1 = arith.constant 0 : i32
    %c0_i32_2 = arith.constant 0 : i32
    return %c0_i32, %c0_i32_0, %c0_i32_1 : i32, i32, i32
  }
  func.func @transform_66(%arg0: i32) -> (i32, i32, i32) {
    %c0_i32 = arith.constant 0 : i32
    %c0_i32_0 = arith.constant 0 : i32
    %c0_i32_1 = arith.constant 0 : i32
    %c0_i32_2 = arith.constant 0 : i32
    return %c0_i32, %c0_i32_0, %c0_i32_1 : i32, i32, i32
  }
  func.func @transform_67(%arg0: i32) -> (i32, i32, i32) {
    %c0_i32 = arith.constant 0 : i32
    %c0_i32_0 = arith.constant 0 : i32
    %c0_i32_1 = arith.constant 0 : i32
    %c0_i32_2 = arith.constant 0 : i32
    return %c0_i32, %c0_i32_0, %c0_i32_1 : i32, i32, i32
  }
  func.func @transform_68(%arg0: i32) -> (i32, i32, i32) {
    %c0_i32 = arith.constant 0 : i32
    %c0_i32_0 = arith.constant 0 : i32
    %c0_i32_1 = arith.constant 0 : i32
    %c0_i32_2 = arith.constant 0 : i32
    return %c0_i32, %c0_i32_0, %c0_i32_1 : i32, i32, i32
  }
  func.func @transform_69(%arg0: i32) -> (i32, i32, i32) {
    %c0_i32 = arith.constant 0 : i32
    %c0_i32_0 = arith.constant 0 : i32
    %c0_i32_1 = arith.constant 0 : i32
    %c0_i32_2 = arith.constant 0 : i32
    return %c0_i32, %c0_i32_0, %c0_i32_1 : i32, i32, i32
  }
  func.func @transform_70(%arg0: i32) -> (i32, i32) {
    %c0_i32 = arith.constant 0 : i32
    %c0_i32_0 = arith.constant 0 : i32
    %c0_i32_1 = arith.constant 0 : i32
    return %c0_i32, %c0_i32_0 : i32, i32
  }
  func.func @transform_71(%arg0: i32) -> (i32, i32) {
    %c0_i32 = arith.constant 0 : i32
    %c0_i32_0 = arith.constant 0 : i32
    %c0_i32_1 = arith.constant 0 : i32
    return %c0_i32, %c0_i32_0 : i32, i32
  }
  func.func @transform_72(%arg0: i32) -> (i32, i32) {
    %c0_i32 = arith.constant 0 : i32
    %c0_i32_0 = arith.constant 0 : i32
    %c0_i32_1 = arith.constant 0 : i32
    return %c0_i32, %c0_i32_0 : i32, i32
  }
  func.func @transform_73(%arg0: i32) -> (i32, i32) {
    %c0_i32 = arith.constant 0 : i32
    %c0_i32_0 = arith.constant 0 : i32
    %c0_i32_1 = arith.constant 0 : i32
    return %c0_i32, %c0_i32_0 : i32, i32
  }
  func.func @transform_74(%arg0: i32) -> (i32, i32) {
    %c0_i32 = arith.constant 0 : i32
    %c0_i32_0 = arith.constant 0 : i32
    %c0_i32_1 = arith.constant 0 : i32
    return %c0_i32, %c0_i32_0 : i32, i32
  }
  func.func @transform_75(%arg0: i32) -> (i32, i32) {
    %c0_i32 = arith.constant 0 : i32
    %c0_i32_0 = arith.constant 0 : i32
    %c0_i32_1 = arith.constant 0 : i32
    return %c0_i32, %c0_i32_0 : i32, i32
  }
  func.func @transform_76(%arg0: i32) -> (i32, i32) {
    %c0_i32 = arith.constant 0 : i32
    %c0_i32_0 = arith.constant 0 : i32
    %c0_i32_1 = arith.constant 0 : i32
    return %c0_i32, %c0_i32_0 : i32, i32
  }
  func.func @transform_77(%arg0: i32) -> (i32, i32) {
    %c0_i32 = arith.constant 0 : i32
    %c0_i32_0 = arith.constant 0 : i32
    %c0_i32_1 = arith.constant 0 : i32
    return %c0_i32, %c0_i32_0 : i32, i32
  }
  func.func @transform_78(%arg0: i32) -> (i32, i32) {
    %c0_i32 = arith.constant 0 : i32
    %c0_i32_0 = arith.constant 0 : i32
    %c0_i32_1 = arith.constant 0 : i32
    return %c0_i32, %c0_i32_0 : i32, i32
  }
  func.func @transform_79(%arg0: i32) -> (i32, i32, i32) {
    %c0_i32 = arith.constant 0 : i32
    %c0_i32_0 = arith.constant 0 : i32
    %c0_i32_1 = arith.constant 0 : i32
    return %arg0, %c0_i32, %c0_i32_0 : i32, i32, i32
  }
}

</mosaic_0001>

<llo_original>
// kernel: forward_features.1
$region0: #{forward_features.1}
  #allocation0 [shape = 'u32[]', space=smem, size = 0x4, offset = 0x4, fixed_abs, tag = 'smem constant byte address 0x4 - core index']
  #allocation1 [shape = 'u32[72,128]{1,0:T(1,128)}', space=vmem, size = 0x9000, scoped, tag = 'internal scratch']
  %s0 = inlined_call_operand.smem [shape: u32[80], index: -1, kind: input, shape index: {}]
  %s1 = sld [smem:[%s0]]
  %s2 = scalar_lea.smem %s0, 1
  %s3 = sld [smem:[%s2]]
  %s4 = scalar_lea.smem %s0, 2
  %s5 = sld [smem:[%s4]]
  %s6 = scalar_lea.smem %s0, 3
  %s7 = sld [smem:[%s6]]
  %s8 = scalar_lea.smem %s0, 4
  %s9 = sld [smem:[%s8]]
  %s10 = scalar_lea.smem %s0, 5
  %s11 = sld [smem:[%s10]]
  %s12 = scalar_lea.smem %s0, 6
  %s13 = sld [smem:[%s12]]
  %s14 = scalar_lea.smem %s0, 7
  %s15 = sld [smem:[%s14]]
  %s16 = scalar_lea.smem %s0, 8
  %s17 = sld [smem:[%s16]]
  %s18 = scalar_lea.smem %s0, 9
  %s19 = sld [smem:[%s18]]
  %s20 = scalar_lea.smem %s0, 10
  %s21 = sld [smem:[%s20]]
  %s22 = scalar_lea.smem %s0, 11
  %s23 = sld [smem:[%s22]]
  %s24 = scalar_lea.smem %s0, 12
  %s25 = sld [smem:[%s24]]
  %s26 = scalar_lea.smem %s0, 13
  %s27 = sld [smem:[%s26]]
  %s28 = scalar_lea.smem %s0, 14
  %s29 = sld [smem:[%s28]]
  %s30 = scalar_lea.smem %s0, 15
  %s31 = sld [smem:[%s30]]
  %s32 = scalar_lea.smem %s0, 16
  %s33 = sld [smem:[%s32]]
  %s34 = scalar_lea.smem %s0, 17
  %s35 = sld [smem:[%s34]]
  %s36 = scalar_lea.smem %s0, 18
  %s37 = sld [smem:[%s36]]
  %s38 = scalar_lea.smem %s0, 19
  %s39 = sld [smem:[%s38]]
  %s40 = scalar_lea.smem %s0, 20
  %s41 = sld [smem:[%s40]]
  %s42 = scalar_lea.smem %s0, 21
  %s43 = sld [smem:[%s42]]
  %s44 = scalar_lea.smem %s0, 22
  %s45 = sld [smem:[%s44]]
  %s46 = scalar_lea.smem %s0, 23
  %s47 = sld [smem:[%s46]]
  %s48 = scalar_lea.smem %s0, 24
  %s49 = sld [smem:[%s48]]
  %s50 = scalar_lea.smem %s0, 25
  %s51 = sld [smem:[%s50]]
  %s52 = scalar_lea.smem %s0, 26
  %s53 = sld [smem:[%s52]]
  %s54 = scalar_lea.smem %s0, 27
  %s55 = sld [smem:[%s54]]
  %s56 = scalar_lea.smem %s0, 28
  %s57 = sld [smem:[%s56]]
  %s58 = scalar_lea.smem %s0, 29
  %s59 = sld [smem:[%s58]]
  %s60 = scalar_lea.smem %s0, 30
  %s61 = sld [smem:[%s60]]
  %s62 = scalar_lea.smem %s0, 31
  %s63 = sld [smem:[%s62]]
  %s64 = scalar_lea.smem %s0, 32
  %s65 = sld [smem:[%s64]]
  %s66 = scalar_lea.smem %s0, 33
  %s67 = sld [smem:[%s66]]
  %s68 = scalar_lea.smem %s0, 34
  %s69 = sld [smem:[%s68]]
  %s70 = scalar_lea.smem %s0, 35
  %s71 = sld [smem:[%s70]]
  %s72 = scalar_lea.smem %s0, 36
  %s73 = sld [smem:[%s72]]
  %s74 = scalar_lea.smem %s0, 37
  %s75 = sld [smem:[%s74]]
  %s76 = scalar_lea.smem %s0, 38
  %s77 = sld [smem:[%s76]]
  %s78 = scalar_lea.smem %s0, 39
  %s79 = sld [smem:[%s78]]
  %s80 = scalar_lea.smem %s0, 40
  %s81 = sld [smem:[%s80]]
  %s82 = scalar_lea.smem %s0, 41
  %s83 = sld [smem:[%s82]]
  %s84 = scalar_lea.smem %s0, 42
  %s85 = sld [smem:[%s84]]
  %s86 = scalar_lea.smem %s0, 43
  %s87 = sld [smem:[%s86]]
  %s88 = scalar_lea.smem %s0, 44
  %s89 = sld [smem:[%s88]]
  %s90 = scalar_lea.smem %s0, 45
  %s91 = sld [smem:[%s90]]
  %s92 = scalar_lea.smem %s0, 46
  %s93 = sld [smem:[%s92]]
  %s94 = scalar_lea.smem %s0, 47
  %s95 = sld [smem:[%s94]]
  %s96 = scalar_lea.smem %s0, 48
  %s97 = sld [smem:[%s96]]
  %s98 = scalar_lea.smem %s0, 49
  %s99 = sld [smem:[%s98]]
  %s100 = scalar_lea.smem %s0, 50
  %s101 = sld [smem:[%s100]]
  %s102 = scalar_lea.smem %s0, 51
  %s103 = sld [smem:[%s102]]
  %s104 = scalar_lea.smem %s0, 52
  %s105 = sld [smem:[%s104]]
  %s106 = scalar_lea.smem %s0, 53
  %s107 = sld [smem:[%s106]]
  %s108 = scalar_lea.smem %s0, 54
  %s109 = sld [smem:[%s108]]
  %s110 = scalar_lea.smem %s0, 55
  %s111 = sld [smem:[%s110]]
  %s112 = scalar_lea.smem %s0, 56
  %s113 = sld [smem:[%s112]]
  %s114 = scalar_lea.smem %s0, 57
  %s115 = sld [smem:[%s114]]
  %s116 = scalar_lea.smem %s0, 58
  %s117 = sld [smem:[%s116]]
  %s118 = scalar_lea.smem %s0, 59
  %s119 = sld [smem:[%s118]]
  %s120 = scalar_lea.smem %s0, 60
  %s121 = sld [smem:[%s120]]
  %s122 = scalar_lea.smem %s0, 61
  %s123 = sld [smem:[%s122]]
  %s124 = scalar_lea.smem %s0, 62
  %s125 = sld [smem:[%s124]]
  %s126 = scalar_lea.smem %s0, 63
  %s127 = sld [smem:[%s126]]
  %s128 = scalar_lea.smem %s0, 64
  %s129 = sld [smem:[%s128]]
  %s130 = scalar_lea.smem %s0, 65
  %s131 = sld [smem:[%s130]]
  %s132 = scalar_lea.smem %s0, 66
  %s133 = sld [smem:[%s132]]
  %s134 = scalar_lea.smem %s0, 67
  %s135 = sld [smem:[%s134]]
  %s136 = scalar_lea.smem %s0, 68
  %s137 = sld [smem:[%s136]]
  %s138 = scalar_lea.smem %s0, 69
  %s139 = sld [smem:[%s138]]
  %s140 = scalar_lea.smem %s0, 70
  %s141 = sld [smem:[%s140]]
  %s142 = scalar_lea.smem %s0, 71
  %s143 = sld [smem:[%s142]]
  %s144 = scalar_lea.smem %s0, 72
  %s145 = sld [smem:[%s144]]
  %s146 = scalar_lea.smem %s0, 73
  %s147 = sld [smem:[%s146]]
  %s148 = scalar_lea.smem %s0, 74
  %s149 = sld [smem:[%s148]]
  %s150 = scalar_lea.smem %s0, 75
  %s151 = sld [smem:[%s150]]
  %s152 = scalar_lea.smem %s0, 76
  %s153 = sld [smem:[%s152]]
  %s154 = scalar_lea.smem %s0, 77
  %s155 = sld [smem:[%s154]]
  %s156 = scalar_lea.smem %s0, 78
  %s157 = sld [smem:[%s156]]
  %s158 = scalar_lea.smem %s0, 79
  %s159 = sld [smem:[%s158]]
  %s160 = sld [smem:[#allocation0]]
  $region477: #{forward_features.1} parent=0
    _
  %s162 = ssub.s32 1, %s160
  %s163 = scalar_select 0, %s162, %s160
  $region1: #{forward_features.1} parent=0
    #allocation2 [shape = 'u8[512]{0}', space=vmem, size = 0x400, scoped, tag = 'input window, operand 2, single buffered']
    #allocation3 [shape = 's32[2]{0}', space=sflag, size = 0x8, scoped, tag = 'scoped memory for forward_features.1']
    #allocation4 [shape = 'u8[512]{0}', space=vmem, size = 0x400, scoped, tag = 'input window, operand 3, single buffered']
    #allocation5 [shape = 's32[1]{0}', space=sflag, size = 0x4, scoped, tag = 'scoped memory for forward_features.1']
    #allocation6 [shape = 'u8[512]{0}', space=vmem, size = 0x400, scoped, tag = 'input window, operand 4, single buffered']
    #allocation7 [shape = 'u8[512]{0}', space=vmem, size = 0x400, scoped, tag = 'input window, operand 5, single buffered']
    #allocation8 [shape = 's32[1]{0}', space=sflag, size = 0x4, scoped, tag = 'scoped memory for forward_features.1']
    #allocation9 [shape = 'u8[512]{0}', space=vmem, size = 0x400, scoped, tag = 'input window, operand 6, single buffered']
    #allocation10 [shape = 'u8[512]{0}', space=vmem, size = 0x400, scoped, tag = 'input window, operand 15, single buffered']
    #allocation11 [shape = 's32[1]{0}', space=sflag, size = 0x4, scoped, tag = 'scoped memory for forward_features.1']
    #allocation12 [shape = 'u8[512]{0}', space=vmem, size = 0x400, scoped, tag = 'input window, operand 16, single buffered']
    #allocation13 [shape = 'u8[512]{0}', space=vmem, size = 0x400, scoped, tag = 'input window, operand 17, single buffered']
    #allocation14 [shape = 's32[1]{0}', space=sflag, size = 0x4, scoped, tag = 'scoped memory for forward_features.1']
    #allocation15 [shape = 'u8[512]{0}', space=vmem, size = 0x400, scoped, tag = 'input window, operand 19, single buffered']
    #allocation16 [shape = 'u8[512]{0}', space=vmem, size = 0x400, scoped, tag = 'input window, operand 21, single buffered']
    #allocation17 [shape = 's32[1]{0}', space=sflag, size = 0x4, scoped, tag = 'scoped memory for forward_features.1']
    #allocation18 [shape = 'u8[512]{0}', space=vmem, size = 0x400, scoped, tag = 'input window, operand 22, single buffered']
    #allocation19 [shape = 'u8[512]{0}', space=vmem, size = 0x400, scoped, tag = 'input window, operand 23, single buffered']
    #allocation20 [shape = 's32[1]{0}', space=sflag, size = 0x4, scoped, tag = 'scoped memory for forward_features.1']
    #allocation21 [shape = 'u8[512]{0}', space=vmem, size = 0x400, scoped, tag = 'input window, operand 32, single buffered']
    #allocation22 [shape = 'u8[512]{0}', space=vmem, size = 0x400, scoped, tag = 'input window, operand 33, single buffered']
    #allocation23 [shape = 's32[1]{0}', space=sflag, size = 0x4, scoped, tag = 'scoped memory for forward_features.1']
    #allocation24 [shape = 'u8[512]{0}', space=vmem, size = 0x400, scoped, tag = 'input window, operand 34, single buffered']
    #allocation25 [shape = 'u8[512]{0}', space=vmem, size = 0x400, scoped, tag = 'input window, operand 36, single buffered']
    #allocation26 [shape = 's32[1]{0}', space=sflag, size = 0x4, scoped, tag = 'scoped memory for forward_features.1']
    #allocation27 [shape = 'u8[512]{0}', space=vmem, size = 0x400, scoped, tag = 'input window, operand 38, single buffered']
    #allocation28 [shape = 'u8[512]{0}', space=vmem, size = 0x400, scoped, tag = 'input window, operand 43, single buffered']
    #allocation29 [shape = 's32[1]{0}', space=sflag, size = 0x4, scoped, tag = 'scoped memory for forward_features.1']
    #allocation30 [shape = 'u8[512]{0}', space=vmem, size = 0x400, scoped, tag = 'input window, operand 44, single buffered']
    #allocation31 [shape = 'u8[512]{0}', space=vmem, size = 0x400, scoped, tag = 'input window, operand 53, single buffered']
    #allocation32 [shape = 's32[1]{0}', space=sflag, size = 0x4, scoped, tag = 'scoped memory for forward_features.1']
    #allocation33 [shape = 'u8[512]{0}', space=vmem, size = 0x400, scoped, tag = 'input window, operand 54, single buffered']
    #allocation34 [shape = 'u8[512]{0}', space=vmem, size = 0x400, scoped, tag = 'input window, operand 55, single buffered']
    #allocation35 [shape = 's32[1]{0}', space=sflag, size = 0x4, scoped, tag = 'scoped memory for forward_features.1']
    #allocation36 [shape = 'u8[512]{0}', space=vmem, size = 0x400, scoped, tag = 'input window, operand 59, single buffered']
    #allocation37 [shape = 'u8[512]{0}', space=vmem, size = 0x400, scoped, tag = 'input window, operand 60, single buffered']
    #allocation38 [shape = 's32[1]{0}', space=sflag, size = 0x4, scoped, tag = 'scoped memory for forward_features.1']
    #allocation39 [shape = 'u8[512]{0}', space=vmem, size = 0x400, scoped, tag = 'input window, operand 61, single buffered']
    #allocation40 [shape = 'u8[512]{0}', space=vmem, size = 0x400, scoped, tag = 'input window, operand 70, single buffered']
    #allocation41 [shape = 's32[1]{0}', space=sflag, size = 0x4, scoped, tag = 'scoped memory for forward_features.1']
    #allocation42 [shape = 'u8[512]{0}', space=vmem, size = 0x400, scoped, tag = 'input window, operand 71, single buffered']
    #allocation43 [shape = 'u8[512]{0}', space=vmem, size = 0x400, scoped, tag = 'input window, operand 72, single buffered']
    #allocation44 [shape = 's32[1]{0}', space=sflag, size = 0x4, scoped, tag = 'scoped memory for forward_features.1']
    #allocation45 [shape = 'u8[1024]{0}', space=vmem, size = 0x400, scoped, tag = 'input window, operand 74, single buffered']
    #allocation46 [shape = 'u8[512]{0}', space=vmem, size = 0x400, scoped, tag = 'input window, operand 76, single buffered']
    #allocation47 [shape = 's32[1]{0}', space=sflag, size = 0x4, scoped, tag = 'scoped memory for forward_features.1']
    #allocation48 [shape = 'u8[512]{0}', space=vmem, size = 0x400, scoped, tag = 'input window, operand 77, single buffered']
    #allocation49 [shape = 'u8[512]{0}', space=vmem, size = 0x400, scoped, tag = 'input window, operand 78, single buffered']
    #allocation50 [shape = 's32[1]{0}', space=sflag, size = 0x4, scoped, tag = 'scoped memory for forward_features.1']
    %164 = vsyncpa [#allocation3], 0
    %165 = vsyncpa [#allocation5], 0
    %166 = vsyncpa [#allocation8], 0
    %167 = vsyncpa [#allocation11], 0
    %168 = vsyncpa [#allocation14], 0
    %169 = vsyncpa [#allocation17], 0
    %170 = vsyncpa [#allocation20], 0
    %171 = vsyncpa [#allocation23], 0
    %172 = vsyncpa [#allocation26], 0
    %173 = vsyncpa [#allocation29], 0
    %174 = vsyncpa [#allocation32], 0
    %175 = vsyncpa [#allocation35], 0
    %176 = vsyncpa [#allocation38], 0
    %177 = vsyncpa [#allocation41], 0
    %178 = vsyncpa [#allocation44], 0
    %179 = vsyncpa [#allocation47], 0
    %180 = vsyncpa [#allocation50], 0
    loop: start=0, step=1, limit=4
    $region2: #{forward_features.1} parent=1 // loop_pre_header
      _
    $region3: #{forward_features.1} parent=1 // loop_header
      %s182 = sphi 0, %s186
      %p183 = scmp.ge.s32.totalorder %s182, 4
      %s192 = sphi 0, %s194
      %s195 = sphi 0, %s192
      %s196 = sphi 0, %s195
      %s212 = sphi 0, %s196
      %s216 = sphi 0, %s216
      %s218 = sphi 0, %s216
      %s219 = sphi 0, %s218
      %s233 = sphi 0, %s219
      %s237 = sphi 0, %s237
      %s239 = sphi 0, %s237
      %s240 = sphi 0, %s239
      %s254 = sphi 0, %s240
      %s258 = sphi 0, %s258
      %s260 = sphi 0, %s258
      %s261 = sphi 0, %s260
      %s275 = sphi 0, %s261
      %s279 = sphi 0, %s279
      %s281 = sphi 0, %s279
      %s282 = sphi 0, %s281
      %s296 = sphi 0, %s282
      %s300 = sphi 0, %s300
      %s302 = sphi 0, %s300
      %s303 = sphi 0, %s302
      %s317 = sphi 0, %s303
      %s321 = sphi 0, %s321
      %s323 = sphi 0, %s321
      %s324 = sphi 0, %s323
      %s338 = sphi 0, %s324
      %s342 = sphi 0, %s342
      %s344 = sphi 0, %s342
      %s345 = sphi 0, %s344
      %s359 = sphi 0, %s345
      %s363 = sphi 0, %s363
      %s365 = sphi 0, %s363
      %s366 = sphi 0, %s365
      %s380 = sphi 0, %s366
      %s384 = sphi 0, %s384
      %s386 = sphi 0, %s384
      %s387 = sphi 0, %s386
      %s401 = sphi 0, %s387
      %s405 = sphi 0, %s405
      %s407 = sphi 0, %s405
      %s408 = sphi 0, %s407
      %s422 = sphi 0, %s408
      %s426 = sphi 0, %s426
      %s428 = sphi 0, %s426
      %s429 = sphi 0, %s428
      %s443 = sphi 0, %s429
      %s447 = sphi 0, %s447
      %s449 = sphi 0, %s447
      %s450 = sphi 0, %s449
      %s464 = sphi 0, %s450
      %s468 = sphi 0, %s468
      %s470 = sphi 0, %s468
      %s471 = sphi 0, %s470
      %s485 = sphi 0, %s471
      %s489 = sphi 0, %s489
      %s491 = sphi 0, %s489
      %s492 = sphi 0, %s491
      %s506 = sphi 0, %s492
      %s510 = sphi 0, %s510
      %s512 = sphi 0, %s510
      %s513 = sphi 0, %s512
      %s527 = sphi 0, %s513
      %s531 = sphi 0, %s531
      %s533 = sphi 0, %s531
      %s534 = sphi 0, %s533
      %s548 = sphi 0, %s534
      %s552 = sphi 0, %s552
      %s554 = sphi 0, %s552
      %s555 = sphi 0, %s554
      %s569 = sphi 0, %s555
      %s573 = sphi 0, %s573
      %s575 = sphi 0, %s573
      %s576 = sphi 0, %s575
      %s590 = sphi 0, %s576
      %s594 = sphi 0, %s594
      %s596 = sphi 0, %s594
      %s597 = sphi 0, %s596
      %s611 = sphi 0, %s597
      %s615 = sphi 0, %s615
      %s617 = sphi 0, %s615
      %s618 = sphi 0, %s617
      %s632 = sphi 0, %s618
      %s636 = sphi 0, %s636
      %s638 = sphi 0, %s636
      %s639 = sphi 0, %s638
      %s653 = sphi 0, %s639
      %s657 = sphi 0, %s657
      %s659 = sphi 0, %s657
      %s660 = sphi 0, %s659
      %s674 = sphi 0, %s660
      %s678 = sphi 0, %s678
      %s680 = sphi 0, %s678
      %s681 = sphi 0, %s680
      %s695 = sphi 0, %s681
      %s699 = sphi 0, %s699
      %s701 = sphi 0, %s699
      %s702 = sphi 0, %s701
      %s716 = sphi 0, %s702
      %s720 = sphi 0, %s720
      %s722 = sphi 0, %s720
      %s723 = sphi 0, %s722
      %s737 = sphi 0, %s723
      %s741 = sphi 0, %s741
      %s743 = sphi 0, %s741
      %s744 = sphi 0, %s743
      %s758 = sphi 0, %s744
      %s762 = sphi 0, %s762
      %s764 = sphi 0, %s762
      %s765 = sphi 0, %s764
      %s779 = sphi 0, %s765
      %s783 = sphi 0, %s783
      %s785 = sphi 0, %s783
      %s786 = sphi 0, %s785
      %s800 = sphi 0, %s786
      %s804 = sphi 0, %s804
      %s806 = sphi 0, %s804
      %s807 = sphi 0, %s806
      %s821 = sphi 0, %s807
      %s825 = sphi 0, %s825
      %s827 = sphi 0, %s825
      %s828 = sphi 0, %s827
      %s842 = sphi 0, %s828
      %s846 = sphi 0, %s846
      %s848 = sphi 0, %s846
      %s849 = sphi 0, %s848
      %s863 = sphi 0, %s849
      %s867 = sphi 0, %s867
      %s869 = sphi 0, %s867
      %s870 = sphi 0, %s869
      %s884 = sphi 0, %s870
      %s888 = sphi 0, %s888
      %s890 = sphi 0, %s888
      %s891 = sphi 0, %s890
      %s905 = sphi 0, %s891
      %s909 = sphi 0, %s909
      %s911 = sphi 0, %s909
      %s912 = sphi 0, %s911
      %s926 = sphi 0, %s912
      %s930 = sphi 0, %s930
      %s932 = sphi 0, %s930
      %s933 = sphi 0, %s932
      %s947 = sphi 0, %s933
      %s951 = sphi 0, %s951
      %s953 = sphi 0, %s951
      %s954 = sphi 0, %s953
      %s968 = sphi 0, %s954
      %s972 = sphi 0, %s972
      %s974 = sphi 0, %s972
      %s975 = sphi 0, %s974
      %s989 = sphi 0, %s975
      %s993 = sphi 0, %s993
      %s995 = sphi 0, %s993
      %s996 = sphi 0, %s995
      %s1010 = sphi 0, %s996
      %s1014 = sphi 0, %s1014
      %s1016 = sphi 0, %s1014
      %s1017 = sphi 0, %s1016
      %s1031 = sphi 0, %s1017
      %s1035 = sphi 0, %s1035
      %s1037 = sphi 0, %s1035
      %s1038 = sphi 0, %s1037
      %s1052 = sphi 0, %s1038
      %s1056 = sphi 0, %s1056
      %s1058 = sphi 0, %s1056
      %s1059 = sphi 0, %s1058
      %s1073 = sphi 0, %s1059
      %s1077 = sphi 0, %s1077
      %s1079 = sphi 0, %s1077
      %s1080 = sphi 0, %s1079
      %s1094 = sphi 0, %s1080
      %s1098 = sphi 0, %s1098
      %s1100 = sphi 0, %s1098
      %s1101 = sphi 0, %s1100
      %s1115 = sphi 0, %s1101
      %s1119 = sphi 0, %s1119
      %s1121 = sphi 0, %s1119
      %s1122 = sphi 0, %s1121
      %s1136 = sphi 0, %s1122
      %s1140 = sphi 0, %s1140
      %s1142 = sphi 0, %s1140
      %s1143 = sphi 0, %s1142
      %s1157 = sphi 0, %s1143
      %s1161 = sphi 0, %s1161
      %s1163 = sphi 0, %s1161
      %s1164 = sphi 0, %s1163
      %s1178 = sphi 0, %s1164
      %s1182 = sphi 0, %s1182
      %s1184 = sphi 0, %s1182
      %s1185 = sphi 0, %s1184
      %s1199 = sphi 0, %s1185
      %s1203 = sphi 0, %s1203
      %s1205 = sphi 0, %s1203
      %s1206 = sphi 0, %s1205
      %s1220 = sphi 0, %s1206
      %s1224 = sphi 0, %s1224
      %s1226 = sphi 0, %s1224
      %s1227 = sphi 0, %s1226
      %s1241 = sphi 0, %s1227
      %s1245 = sphi 0, %s1245
      %s1247 = sphi 0, %s1245
      %s1248 = sphi 0, %s1247
      %s1262 = sphi 0, %s1248
      %s1266 = sphi 0, %s1266
      %s1268 = sphi 0, %s1266
      %s1269 = sphi 0, %s1268
      %s1283 = sphi 0, %s1269
      %s1287 = sphi 0, %s1287
      %s1289 = sphi 0, %s1287
      %s1290 = sphi 0, %s1289
      %s1304 = sphi 0, %s1290
      %s1308 = sphi 0, %s1308
      %s1310 = sphi 0, %s1308
      %s1311 = sphi 0, %s1310
      %s1325 = sphi 0, %s1311
      %s1329 = sphi 0, %s1329
      %s1331 = sphi 0, %s1329
      %s1332 = sphi 0, %s1331
      %s1346 = sphi 0, %s1332
      %s1350 = sphi 0, %s1350
      %s1352 = sphi 0, %s1350
      %s1353 = sphi 0, %s1352
      %s1367 = sphi 0, %s1353
      %s1371 = sphi 0, %s1371
      %s1373 = sphi 0, %s1371
      %s1374 = sphi 0, %s1373
      %s1388 = sphi 0, %s1374
      %s1392 = sphi 0, %s1392
      %s1394 = sphi 0, %s1392
      %s1395 = sphi 0, %s1394
      %s1409 = sphi 0, %s1395
      %s1413 = sphi 0, %s1413
      %s1415 = sphi 0, %s1413
      %s1416 = sphi 0, %s1415
      %s1430 = sphi 0, %s1416
      %s1434 = sphi 0, %s1434
      %s1436 = sphi 0, %s1434
      %s1437 = sphi 0, %s1436
      %s1451 = sphi 0, %s1437
      %s1455 = sphi 0, %s1455
      %s1457 = sphi 0, %s1455
      %s1458 = sphi 0, %s1457
      %s1472 = sphi 0, %s1458
      %s1476 = sphi 0, %s1476
      %s1478 = sphi 0, %s1476
      %s1479 = sphi 0, %s1478
      %s1493 = sphi 0, %s1479
      %s1497 = sphi 0, %s1497
      %s1499 = sphi 0, %s1497
      %s1500 = sphi 0, %s1499
      %s1514 = sphi 0, %s1500
      %s1518 = sphi 0, %s1518
      %s1520 = sphi 0, %s1518
      %s1521 = sphi 0, %s1520
      %s1535 = sphi 0, %s1521
      %s1539 = sphi 0, %s1539
      %s1541 = sphi 0, %s1539
      %s1542 = sphi 0, %s1541
      %s1556 = sphi 0, %s1542
      %s1560 = sphi 0, %s1560
      %s1562 = sphi 0, %s1560
      %s1563 = sphi 0, %s1562
      %s1577 = sphi 0, %s1563
      %s1581 = sphi 0, %s1581
      %s1583 = sphi 0, %s1581
      %s1584 = sphi 0, %s1583
      %s1598 = sphi 0, %s1584
      %s1602 = sphi 0, %s1602
      %s1604 = sphi 0, %s1602
      %s1605 = sphi 0, %s1604
      %s1619 = sphi 0, %s1605
      %s1623 = sphi 0, %s1623
      %s1625 = sphi 0, %s1623
      %s1626 = sphi 0, %s1625
      %s1640 = sphi 0, %s1626
      %s1644 = sphi 0, %s1644
      %s1646 = sphi 0, %s1644
      %s1647 = sphi 0, %s1646
      %s1661 = sphi 0, %s1647
      %s1665 = sphi 0, %s1665
      %s1667 = sphi 0, %s1665
      %s1668 = sphi 0, %s1667
      %s1682 = sphi 0, %s1668
      %s1686 = sphi 0, %s1686
      %s1688 = sphi 0, %s1686
      %s1689 = sphi 0, %s1688
      %s1703 = sphi 0, %s1689
      %s1707 = sphi 0, %s1707
      %s1709 = sphi 0, %s1707
      %s1710 = sphi 0, %s1709
      %s1724 = sphi 0, %s1710
      %s1728 = sphi 0, %s1728
      %s1730 = sphi 0, %s1728
      %s1731 = sphi 0, %s1730
      %s1745 = sphi 0, %s1731
      %s1749 = sphi 0, %s1749
      %s1751 = sphi 0, %s1749
      %s1752 = sphi 0, %s1751
      %s1766 = sphi 0, %s1752
      %s1770 = sphi 0, %s1770
      %s1772 = sphi 0, %s1770
      %s1773 = sphi 0, %s1772
      %s1787 = sphi 0, %s1773
      %s1791 = sphi 0, %s1791
      %s1793 = sphi 0, %s1791
      %s1794 = sphi 0, %s1793
      %s1808 = sphi 0, %s1794
      %s1812 = sphi 0, %s1812
      %s1814 = sphi 0, %s1812
      %s1815 = sphi 0, %s1814
      %s1829 = sphi 0, %s1815
      %s1833 = sphi 0, %s1833
      %s1835 = sphi 0, %s1833
      %s1836 = sphi 0, %s1835
      %s1850 = sphi 0, %s1836
      %s1856 = sphi 0, %s1858
      %s1859 = sphi 0, %s1856
      %s1860 = sphi 0, %s1859
      %s1876 = sphi 0, %s1860
    $region4: #{forward_features.1} parent=1 // loop_header_branch
      %185 = sbr.rel (%p183) target = $region8
    $region5: #{forward_features.1} parent=1 // loop_body
      %s187 = ssub.s32 %s182, 1
      %s188 = ssub.s32 %s182, 2
      %s189 = sadd.s32 %s182, 1
      %s190 = ssub.s32 %s182, %s189
      %p191 = scmp.eq.s32.totalorder %s190, 0
      %s193 = sadd.s32 %s192, 1
      %s194 = scalar_select %p191, %s192, %s193
      %p197 = pneg %p191
      %p198 = scmp.eq.s32.totalorder %s182, 1
      %p199 = por %p197, %p198
      %p200 = scmp.ne.s32.totalorder %s192, %s195
      %p201 = scmp.eq.s32.totalorder %s182, 0
      %p202 = por %p200, %p201
      %p203 = scmp.ne.s32.totalorder %s192, %s195
      %p204 = scmp.eq.s32.totalorder %s187, 1
      %p205 = por %p203, %p204
      %p206 = scmp.ne.s32.totalorder %s195, %s196
      %p207 = scmp.eq.s32.totalorder %s187, 0
      %p208 = por %p206, %p207
      %p209 = scmp.ne.s32.totalorder %s195, %s196
      %p210 = scmp.eq.s32.totalorder %s188, 1
      %p211 = por %p209, %p210
      %p213 = scmp.ne.s32.totalorder %s196, %s212
      %p214 = scmp.eq.s32.totalorder %s188, 0
      %p215 = por %p213, %p214
      %s217 = sadd.s32 %s216, 1
      %p220 = scmp.eq.s32.totalorder %s182, 1
      %p221 = scmp.ne.s32.totalorder %s216, %s218
      %p222 = scmp.eq.s32.totalorder %s182, 0
      %p223 = por %p221, %p222
      %p224 = scmp.ne.s32.totalorder %s216, %s218
      %p225 = scmp.eq.s32.totalorder %s187, 1
      %p226 = por %p224, %p225
      %p227 = scmp.ne.s32.totalorder %s218, %s219
      %p228 = scmp.eq.s32.totalorder %s187, 0
      %p229 = por %p227, %p228
      %p230 = scmp.ne.s32.totalorder %s218, %s219
      %p231 = scmp.eq.s32.totalorder %s188, 1
      %p232 = por %p230, %p231
      %p234 = scmp.ne.s32.totalorder %s219, %s233
      %p235 = scmp.eq.s32.totalorder %s188, 0
      %p236 = por %p234, %p235
      %s238 = sadd.s32 %s237, 1
      %p241 = scmp.eq.s32.totalorder %s182, 1
      %p242 = scmp.ne.s32.totalorder %s237, %s239
      %p243 = scmp.eq.s32.totalorder %s182, 0
      %p244 = por %p242, %p243
      %p245 = scmp.ne.s32.totalorder %s237, %s239
      %p246 = scmp.eq.s32.totalorder %s187, 1
      %p247 = por %p245, %p246
      %p248 = scmp.ne.s32.totalorder %s239, %s240
      %p249 = scmp.eq.s32.totalorder %s187, 0
      %p250 = por %p248, %p249
      %p251 = scmp.ne.s32.totalorder %s239, %s240
      %p252 = scmp.eq.s32.totalorder %s188, 1
      %p253 = por %p251, %p252
      %p255 = scmp.ne.s32.totalorder %s240, %s254
      %p256 = scmp.eq.s32.totalorder %s188, 0
      %p257 = por %p255, %p256
      %s259 = sadd.s32 %s258, 1
      %p262 = scmp.eq.s32.totalorder %s182, 1
      %p263 = scmp.ne.s32.totalorder %s258, %s260
      %p264 = scmp.eq.s32.totalorder %s182, 0
      %p265 = por %p263, %p264
      %p266 = scmp.ne.s32.totalorder %s258, %s260
      %p267 = scmp.eq.s32.totalorder %s187, 1
      %p268 = por %p266, %p267
      %p269 = scmp.ne.s32.totalorder %s260, %s261
      %p270 = scmp.eq.s32.totalorder %s187, 0
      %p271 = por %p269, %p270
      %p272 = scmp.ne.s32.totalorder %s260, %s261
      %p273 = scmp.eq.s32.totalorder %s188, 1
      %p274 = por %p272, %p273
      %p276 = scmp.ne.s32.totalorder %s261, %s275
      %p277 = scmp.eq.s32.totalorder %s188, 0
      %p278 = por %p276, %p277
      %s280 = sadd.s32 %s279, 1
      %p283 = scmp.eq.s32.totalorder %s182, 1
      %p284 = scmp.ne.s32.totalorder %s279, %s281
      %p285 = scmp.eq.s32.totalorder %s182, 0
      %p286 = por %p284, %p285
      %p287 = scmp.ne.s32.totalorder %s279, %s281
      %p288 = scmp.eq.s32.totalorder %s187, 1
      %p289 = por %p287, %p288
      %p290 = scmp.ne.s32.totalorder %s281, %s282
      %p291 = scmp.eq.s32.totalorder %s187, 0
      %p292 = por %p290, %p291
      %p293 = scmp.ne.s32.totalorder %s281, %s282
      %p294 = scmp.eq.s32.totalorder %s188, 1
      %p295 = por %p293, %p294
      %p297 = scmp.ne.s32.totalorder %s282, %s296
      %p298 = scmp.eq.s32.totalorder %s188, 0
      %p299 = por %p297, %p298
      %s301 = sadd.s32 %s300, 1
      %p304 = scmp.eq.s32.totalorder %s182, 1
      %p305 = scmp.ne.s32.totalorder %s300, %s302
      %p306 = scmp.eq.s32.totalorder %s182, 0
      %p307 = por %p305, %p306
      %p308 = scmp.ne.s32.totalorder %s300, %s302
      %p309 = scmp.eq.s32.totalorder %s187, 1
      %p310 = por %p308, %p309
      %p311 = scmp.ne.s32.totalorder %s302, %s303
      %p312 = scmp.eq.s32.totalorder %s187, 0
      %p313 = por %p311, %p312
      %p314 = scmp.ne.s32.totalorder %s302, %s303
      %p315 = scmp.eq.s32.totalorder %s188, 1
      %p316 = por %p314, %p315
      %p318 = scmp.ne.s32.totalorder %s303, %s317
      %p319 = scmp.eq.s32.totalorder %s188, 0
      %p320 = por %p318, %p319
      %s322 = sadd.s32 %s321, 1
      %p325 = scmp.eq.s32.totalorder %s182, 1
      %p326 = scmp.ne.s32.totalorder %s321, %s323
      %p327 = scmp.eq.s32.totalorder %s182, 0
      %p328 = por %p326, %p327
      %p329 = scmp.ne.s32.totalorder %s321, %s323
      %p330 = scmp.eq.s32.totalorder %s187, 1
      %p331 = por %p329, %p330
      %p332 = scmp.ne.s32.totalorder %s323, %s324
      %p333 = scmp.eq.s32.totalorder %s187, 0
      %p334 = por %p332, %p333
      %p335 = scmp.ne.s32.totalorder %s323, %s324
      %p336 = scmp.eq.s32.totalorder %s188, 1
      %p337 = por %p335, %p336
      %p339 = scmp.ne.s32.totalorder %s324, %s338
      %p340 = scmp.eq.s32.totalorder %s188, 0
      %p341 = por %p339, %p340
      %s343 = sadd.s32 %s342, 1
      %p346 = scmp.eq.s32.totalorder %s182, 1
      %p347 = scmp.ne.s32.totalorder %s342, %s344
      %p348 = scmp.eq.s32.totalorder %s182, 0
      %p349 = por %p347, %p348
      %p350 = scmp.ne.s32.totalorder %s342, %s344
      %p351 = scmp.eq.s32.totalorder %s187, 1
      %p352 = por %p350, %p351
      %p353 = scmp.ne.s32.totalorder %s344, %s345
      %p354 = scmp.eq.s32.totalorder %s187, 0
      %p355 = por %p353, %p354
      %p356 = scmp.ne.s32.totalorder %s344, %s345
      %p357 = scmp.eq.s32.totalorder %s188, 1
      %p358 = por %p356, %p357
      %p360 = scmp.ne.s32.totalorder %s345, %s359
      %p361 = scmp.eq.s32.totalorder %s188, 0
      %p362 = por %p360, %p361
      %s364 = sadd.s32 %s363, 1
      %p367 = scmp.eq.s32.totalorder %s182, 1
      %p368 = scmp.ne.s32.totalorder %s363, %s365
      %p369 = scmp.eq.s32.totalorder %s182, 0
      %p370 = por %p368, %p369
      %p371 = scmp.ne.s32.totalorder %s363, %s365
      %p372 = scmp.eq.s32.totalorder %s187, 1
      %p373 = por %p371, %p372
      %p374 = scmp.ne.s32.totalorder %s365, %s366
      %p375 = scmp.eq.s32.totalorder %s187, 0
      %p376 = por %p374, %p375
      %p377 = scmp.ne.s32.totalorder %s365, %s366
      %p378 = scmp.eq.s32.totalorder %s188, 1
      %p379 = por %p377, %p378
      %p381 = scmp.ne.s32.totalorder %s366, %s380
      %p382 = scmp.eq.s32.totalorder %s188, 0
      %p383 = por %p381, %p382
      %s385 = sadd.s32 %s384, 1
      %p388 = scmp.eq.s32.totalorder %s182, 1
      %p389 = scmp.ne.s32.totalorder %s384, %s386
      %p390 = scmp.eq.s32.totalorder %s182, 0
      %p391 = por %p389, %p390
      %p392 = scmp.ne.s32.totalorder %s384, %s386
      %p393 = scmp.eq.s32.totalorder %s187, 1
      %p394 = por %p392, %p393
      %p395 = scmp.ne.s32.totalorder %s386, %s387
      %p396 = scmp.eq.s32.totalorder %s187, 0
      %p397 = por %p395, %p396
      %p398 = scmp.ne.s32.totalorder %s386, %s387
      %p399 = scmp.eq.s32.totalorder %s188, 1
      %p400 = por %p398, %p399
      %p402 = scmp.ne.s32.totalorder %s387, %s401
      %p403 = scmp.eq.s32.totalorder %s188, 0
      %p404 = por %p402, %p403
      %s406 = sadd.s32 %s405, 1
      %p409 = scmp.eq.s32.totalorder %s182, 1
      %p410 = scmp.ne.s32.totalorder %s405, %s407
      %p411 = scmp.eq.s32.totalorder %s182, 0
      %p412 = por %p410, %p411
      %p413 = scmp.ne.s32.totalorder %s405, %s407
      %p414 = scmp.eq.s32.totalorder %s187, 1
      %p415 = por %p413, %p414
      %p416 = scmp.ne.s32.totalorder %s407, %s408
      %p417 = scmp.eq.s32.totalorder %s187, 0
      %p418 = por %p416, %p417
      %p419 = scmp.ne.s32.totalorder %s407, %s408
      %p420 = scmp.eq.s32.totalorder %s188, 1
      %p421 = por %p419, %p420
      %p423 = scmp.ne.s32.totalorder %s408, %s422
      %p424 = scmp.eq.s32.totalorder %s188, 0
      %p425 = por %p423, %p424
      %s427 = sadd.s32 %s426, 1
      %p430 = scmp.eq.s32.totalorder %s182, 1
      %p431 = scmp.ne.s32.totalorder %s426, %s428
      %p432 = scmp.eq.s32.totalorder %s182, 0
      %p433 = por %p431, %p432
      %p434 = scmp.ne.s32.totalorder %s426, %s428
      %p435 = scmp.eq.s32.totalorder %s187, 1
      %p436 = por %p434, %p435
      %p437 = scmp.ne.s32.totalorder %s428, %s429
      %p438 = scmp.eq.s32.totalorder %s187, 0
      %p439 = por %p437, %p438
      %p440 = scmp.ne.s32.totalorder %s428, %s429
      %p441 = scmp.eq.s32.totalorder %s188, 1
      %p442 = por %p440, %p441
      %p444 = scmp.ne.s32.totalorder %s429, %s443
      %p445 = scmp.eq.s32.totalorder %s188, 0
      %p446 = por %p444, %p445
      %s448 = sadd.s32 %s447, 1
      %p451 = scmp.eq.s32.totalorder %s182, 1
      %p452 = scmp.ne.s32.totalorder %s447, %s449
      %p453 = scmp.eq.s32.totalorder %s182, 0
      %p454 = por %p452, %p453
      %p455 = scmp.ne.s32.totalorder %s447, %s449
      %p456 = scmp.eq.s32.totalorder %s187, 1
      %p457 = por %p455, %p456
      %p458 = scmp.ne.s32.totalorder %s449, %s450
      %p459 = scmp.eq.s32.totalorder %s187, 0
      %p460 = por %p458, %p459
      %p461 = scmp.ne.s32.totalorder %s449, %s450
      %p462 = scmp.eq.s32.totalorder %s188, 1
      %p463 = por %p461, %p462
      %p465 = scmp.ne.s32.totalorder %s450, %s464
      %p466 = scmp.eq.s32.totalorder %s188, 0
      %p467 = por %p465, %p466
      %s469 = sadd.s32 %s468, 1
      %p472 = scmp.eq.s32.totalorder %s182, 1
      %p473 = scmp.ne.s32.totalorder %s468, %s470
      %p474 = scmp.eq.s32.totalorder %s182, 0
      %p475 = por %p473, %p474
      %p476 = scmp.ne.s32.totalorder %s468, %s470
      %p477 = scmp.eq.s32.totalorder %s187, 1
      %p478 = por %p476, %p477
      %p479 = scmp.ne.s32.totalorder %s470, %s471
      %p480 = scmp.eq.s32.totalorder %s187, 0
      %p481 = por %p479, %p480
      %p482 = scmp.ne.s32.totalorder %s470, %s471
      %p483 = scmp.eq.s32.totalorder %s188, 1
      %p484 = por %p482, %p483
      %p486 = scmp.ne.s32.totalorder %s471, %s485
      %p487 = scmp.eq.s32.totalorder %s188, 0
      %p488 = por %p486, %p487
      %s490 = sadd.s32 %s489, 1
      %p493 = scmp.eq.s32.totalorder %s182, 1
      %p494 = scmp.ne.s32.totalorder %s489, %s491
      %p495 = scmp.eq.s32.totalorder %s182, 0
      %p496 = por %p494, %p495
      %p497 = scmp.ne.s32.totalorder %s489, %s491
      %p498 = scmp.eq.s32.totalorder %s187, 1
      %p499 = por %p497, %p498
      %p500 = scmp.ne.s32.totalorder %s491, %s492
      %p501 = scmp.eq.s32.totalorder %s187, 0
      %p502 = por %p500, %p501
      %p503 = scmp.ne.s32.totalorder %s491, %s492
      %p504 = scmp.eq.s32.totalorder %s188, 1
      %p505 = por %p503, %p504
      %p507 = scmp.ne.s32.totalorder %s492, %s506
      %p508 = scmp.eq.s32.totalorder %s188, 0
      %p509 = por %p507, %p508
      %s511 = sadd.s32 %s510, 1
      %p514 = scmp.eq.s32.totalorder %s182, 1
      %p515 = scmp.ne.s32.totalorder %s510, %s512
      %p516 = scmp.eq.s32.totalorder %s182, 0
      %p517 = por %p515, %p516
      %p518 = scmp.ne.s32.totalorder %s510, %s512
      %p519 = scmp.eq.s32.totalorder %s187, 1
      %p520 = por %p518, %p519
      %p521 = scmp.ne.s32.totalorder %s512, %s513
      %p522 = scmp.eq.s32.totalorder %s187, 0
      %p523 = por %p521, %p522
      %p524 = scmp.ne.s32.totalorder %s512, %s513
      %p525 = scmp.eq.s32.totalorder %s188, 1
      %p526 = por %p524, %p525
      %p528 = scmp.ne.s32.totalorder %s513, %s527
      %p529 = scmp.eq.s32.totalorder %s188, 0
      %p530 = por %p528, %p529
      %s532 = sadd.s32 %s531, 1
      %p535 = scmp.eq.s32.totalorder %s182, 1
      %p536 = scmp.ne.s32.totalorder %s531, %s533
      %p537 = scmp.eq.s32.totalorder %s182, 0
      %p538 = por %p536, %p537
      %p539 = scmp.ne.s32.totalorder %s531, %s533
      %p540 = scmp.eq.s32.totalorder %s187, 1
      %p541 = por %p539, %p540
      %p542 = scmp.ne.s32.totalorder %s533, %s534
      %p543 = scmp.eq.s32.totalorder %s187, 0
      %p544 = por %p542, %p543
      %p545 = scmp.ne.s32.totalorder %s533, %s534
      %p546 = scmp.eq.s32.totalorder %s188, 1
      %p547 = por %p545, %p546
      %p549 = scmp.ne.s32.totalorder %s534, %s548
      %p550 = scmp.eq.s32.totalorder %s188, 0
      %p551 = por %p549, %p550
      %s553 = sadd.s32 %s552, 1
      %p556 = scmp.eq.s32.totalorder %s182, 1
      %p557 = scmp.ne.s32.totalorder %s552, %s554
      %p558 = scmp.eq.s32.totalorder %s182, 0
      %p559 = por %p557, %p558
      %p560 = scmp.ne.s32.totalorder %s552, %s554
      %p561 = scmp.eq.s32.totalorder %s187, 1
      %p562 = por %p560, %p561
      %p563 = scmp.ne.s32.totalorder %s554, %s555
      %p564 = scmp.eq.s32.totalorder %s187, 0
      %p565 = por %p563, %p564
      %p566 = scmp.ne.s32.totalorder %s554, %s555
      %p567 = scmp.eq.s32.totalorder %s188, 1
      %p568 = por %p566, %p567
      %p570 = scmp.ne.s32.totalorder %s555, %s569
      %p571 = scmp.eq.s32.totalorder %s188, 0
      %p572 = por %p570, %p571
      %s574 = sadd.s32 %s573, 1
      %p577 = scmp.eq.s32.totalorder %s182, 1
      %p578 = scmp.ne.s32.totalorder %s573, %s575
      %p579 = scmp.eq.s32.totalorder %s182, 0
      %p580 = por %p578, %p579
      %p581 = scmp.ne.s32.totalorder %s573, %s575
      %p582 = scmp.eq.s32.totalorder %s187, 1
      %p583 = por %p581, %p582
      %p584 = scmp.ne.s32.totalorder %s575, %s576
      %p585 = scmp.eq.s32.totalorder %s187, 0
      %p586 = por %p584, %p585
      %p587 = scmp.ne.s32.totalorder %s575, %s576
      %p588 = scmp.eq.s32.totalorder %s188, 1
      %p589 = por %p587, %p588
      %p591 = scmp.ne.s32.totalorder %s576, %s590
      %p592 = scmp.eq.s32.totalorder %s188, 0
      %p593 = por %p591, %p592
      %s595 = sadd.s32 %s594, 1
      %p598 = scmp.eq.s32.totalorder %s182, 1
      %p599 = scmp.ne.s32.totalorder %s594, %s596
      %p600 = scmp.eq.s32.totalorder %s182, 0
      %p601 = por %p599, %p600
      %p602 = scmp.ne.s32.totalorder %s594, %s596
      %p603 = scmp.eq.s32.totalorder %s187, 1
      %p604 = por %p602, %p603
      %p605 = scmp.ne.s32.totalorder %s596, %s597
      %p606 = scmp.eq.s32.totalorder %s187, 0
      %p607 = por %p605, %p606
      %p608 = scmp.ne.s32.totalorder %s596, %s597
      %p609 = scmp.eq.s32.totalorder %s188, 1
      %p610 = por %p608, %p609
      %p612 = scmp.ne.s32.totalorder %s597, %s611
      %p613 = scmp.eq.s32.totalorder %s188, 0
      %p614 = por %p612, %p613
      %s616 = sadd.s32 %s615, 1
      %p619 = scmp.eq.s32.totalorder %s182, 1
      %p620 = scmp.ne.s32.totalorder %s615, %s617
      %p621 = scmp.eq.s32.totalorder %s182, 0
      %p622 = por %p620, %p621
      %p623 = scmp.ne.s32.totalorder %s615, %s617
      %p624 = scmp.eq.s32.totalorder %s187, 1
      %p625 = por %p623, %p624
      %p626 = scmp.ne.s32.totalorder %s617, %s618
      %p627 = scmp.eq.s32.totalorder %s187, 0
      %p628 = por %p626, %p627
      %p629 = scmp.ne.s32.totalorder %s617, %s618
      %p630 = scmp.eq.s32.totalorder %s188, 1
      %p631 = por %p629, %p630
      %p633 = scmp.ne.s32.totalorder %s618, %s632
      %p634 = scmp.eq.s32.totalorder %s188, 0
      %p635 = por %p633, %p634
      %s637 = sadd.s32 %s636, 1
      %p640 = scmp.eq.s32.totalorder %s182, 1
      %p641 = scmp.ne.s32.totalorder %s636, %s638
      %p642 = scmp.eq.s32.totalorder %s182, 0
      %p643 = por %p641, %p642
      %p644 = scmp.ne.s32.totalorder %s636, %s638
      %p645 = scmp.eq.s32.totalorder %s187, 1
      %p646 = por %p644, %p645
      %p647 = scmp.ne.s32.totalorder %s638, %s639
      %p648 = scmp.eq.s32.totalorder %s187, 0
      %p649 = por %p647, %p648
      %p650 = scmp.ne.s32.totalorder %s638, %s639
      %p651 = scmp.eq.s32.totalorder %s188, 1
      %p652 = por %p650, %p651
      %p654 = scmp.ne.s32.totalorder %s639, %s653
      %p655 = scmp.eq.s32.totalorder %s188, 0
      %p656 = por %p654, %p655
      %s658 = sadd.s32 %s657, 1
      %p661 = scmp.eq.s32.totalorder %s182, 1
      %p662 = scmp.ne.s32.totalorder %s657, %s659
      %p663 = scmp.eq.s32.totalorder %s182, 0
      %p664 = por %p662, %p663
      %p665 = scmp.ne.s32.totalorder %s657, %s659
      %p666 = scmp.eq.s32.totalorder %s187, 1
      %p667 = por %p665, %p666
      %p668 = scmp.ne.s32.totalorder %s659, %s660
      %p669 = scmp.eq.s32.totalorder %s187, 0
      %p670 = por %p668, %p669
      %p671 = scmp.ne.s32.totalorder %s659, %s660
      %p672 = scmp.eq.s32.totalorder %s188, 1
      %p673 = por %p671, %p672
      %p675 = scmp.ne.s32.totalorder %s660, %s674
      %p676 = scmp.eq.s32.totalorder %s188, 0
      %p677 = por %p675, %p676
      %s679 = sadd.s32 %s678, 1
      %p682 = scmp.eq.s32.totalorder %s182, 1
      %p683 = scmp.ne.s32.totalorder %s678, %s680
      %p684 = scmp.eq.s32.totalorder %s182, 0
      %p685 = por %p683, %p684
      %p686 = scmp.ne.s32.totalorder %s678, %s680
      %p687 = scmp.eq.s32.totalorder %s187, 1
      %p688 = por %p686, %p687
      %p689 = scmp.ne.s32.totalorder %s680, %s681
      %p690 = scmp.eq.s32.totalorder %s187, 0
      %p691 = por %p689, %p690
      %p692 = scmp.ne.s32.totalorder %s680, %s681
      %p693 = scmp.eq.s32.totalorder %s188, 1
      %p694 = por %p692, %p693
      %p696 = scmp.ne.s32.totalorder %s681, %s695
      %p697 = scmp.eq.s32.totalorder %s188, 0
      %p698 = por %p696, %p697
      %s700 = sadd.s32 %s699, 1
      %p703 = scmp.eq.s32.totalorder %s182, 1
      %p704 = scmp.ne.s32.totalorder %s699, %s701
      %p705 = scmp.eq.s32.totalorder %s182, 0
      %p706 = por %p704, %p705
      %p707 = scmp.ne.s32.totalorder %s699, %s701
      %p708 = scmp.eq.s32.totalorder %s187, 1
      %p709 = por %p707, %p708
      %p710 = scmp.ne.s32.totalorder %s701, %s702
      %p711 = scmp.eq.s32.totalorder %s187, 0
      %p712 = por %p710, %p711
      %p713 = scmp.ne.s32.totalorder %s701, %s702
      %p714 = scmp.eq.s32.totalorder %s188, 1
      %p715 = por %p713, %p714
      %p717 = scmp.ne.s32.totalorder %s702, %s716
      %p718 = scmp.eq.s32.totalorder %s188, 0
      %p719 = por %p717, %p718
      %s721 = sadd.s32 %s720, 1
      %p724 = scmp.eq.s32.totalorder %s182, 1
      %p725 = scmp.ne.s32.totalorder %s720, %s722
      %p726 = scmp.eq.s32.totalorder %s182, 0
      %p727 = por %p725, %p726
      %p728 = scmp.ne.s32.totalorder %s720, %s722
      %p729 = scmp.eq.s32.totalorder %s187, 1
      %p730 = por %p728, %p729
      %p731 = scmp.ne.s32.totalorder %s722, %s723
      %p732 = scmp.eq.s32.totalorder %s187, 0
      %p733 = por %p731, %p732
      %p734 = scmp.ne.s32.totalorder %s722, %s723
      %p735 = scmp.eq.s32.totalorder %s188, 1
      %p736 = por %p734, %p735
      %p738 = scmp.ne.s32.totalorder %s723, %s737
      %p739 = scmp.eq.s32.totalorder %s188, 0
      %p740 = por %p738, %p739
      %s742 = sadd.s32 %s741, 1
      %p745 = scmp.eq.s32.totalorder %s182, 1
      %p746 = scmp.ne.s32.totalorder %s741, %s743
      %p747 = scmp.eq.s32.totalorder %s182, 0
      %p748 = por %p746, %p747
      %p749 = scmp.ne.s32.totalorder %s741, %s743
      %p750 = scmp.eq.s32.totalorder %s187, 1
      %p751 = por %p749, %p750
      %p752 = scmp.ne.s32.totalorder %s743, %s744
      %p753 = scmp.eq.s32.totalorder %s187, 0
      %p754 = por %p752, %p753
      %p755 = scmp.ne.s32.totalorder %s743, %s744
      %p756 = scmp.eq.s32.totalorder %s188, 1
      %p757 = por %p755, %p756
      %p759 = scmp.ne.s32.totalorder %s744, %s758
      %p760 = scmp.eq.s32.totalorder %s188, 0
      %p761 = por %p759, %p760
      %s763 = sadd.s32 %s762, 1
      %p766 = scmp.eq.s32.totalorder %s182, 1
      %p767 = scmp.ne.s32.totalorder %s762, %s764
      %p768 = scmp.eq.s32.totalorder %s182, 0
      %p769 = por %p767, %p768
      %p770 = scmp.ne.s32.totalorder %s762, %s764
      %p771 = scmp.eq.s32.totalorder %s187, 1
      %p772 = por %p770, %p771
      %p773 = scmp.ne.s32.totalorder %s764, %s765
      %p774 = scmp.eq.s32.totalorder %s187, 0
      %p775 = por %p773, %p774
      %p776 = scmp.ne.s32.totalorder %s764, %s765
      %p777 = scmp.eq.s32.totalorder %s188, 1
      %p778 = por %p776, %p777
      %p780 = scmp.ne.s32.totalorder %s765, %s779
      %p781 = scmp.eq.s32.totalorder %s188, 0
      %p782 = por %p780, %p781
      %s784 = sadd.s32 %s783, 1
      %p787 = scmp.eq.s32.totalorder %s182, 1
      %p788 = scmp.ne.s32.totalorder %s783, %s785
      %p789 = scmp.eq.s32.totalorder %s182, 0
      %p790 = por %p788, %p789
      %p791 = scmp.ne.s32.totalorder %s783, %s785
      %p792 = scmp.eq.s32.totalorder %s187, 1
      %p793 = por %p791, %p792
      %p794 = scmp.ne.s32.totalorder %s785, %s786
      %p795 = scmp.eq.s32.totalorder %s187, 0
      %p796 = por %p794, %p795
      %p797 = scmp.ne.s32.totalorder %s785, %s786
      %p798 = scmp.eq.s32.totalorder %s188, 1
      %p799 = por %p797, %p798
      %p801 = scmp.ne.s32.totalorder %s786, %s800
      %p802 = scmp.eq.s32.totalorder %s188, 0
      %p803 = por %p801, %p802
      %s805 = sadd.s32 %s804, 1
      %p808 = scmp.eq.s32.totalorder %s182, 1
      %p809 = scmp.ne.s32.totalorder %s804, %s806
      %p810 = scmp.eq.s32.totalorder %s182, 0
      %p811 = por %p809, %p810
      %p812 = scmp.ne.s32.totalorder %s804, %s806
      %p813 = scmp.eq.s32.totalorder %s187, 1
      %p814 = por %p812, %p813
      %p815 = scmp.ne.s32.totalorder %s806, %s807
      %p816 = scmp.eq.s32.totalorder %s187, 0
      %p817 = por %p815, %p816
      %p818 = scmp.ne.s32.totalorder %s806, %s807
      %p819 = scmp.eq.s32.totalorder %s188, 1
      %p820 = por %p818, %p819
      %p822 = scmp.ne.s32.totalorder %s807, %s821
      %p823 = scmp.eq.s32.totalorder %s188, 0
      %p824 = por %p822, %p823
      %s826 = sadd.s32 %s825, 1
      %p829 = scmp.eq.s32.totalorder %s182, 1
      %p830 = scmp.ne.s32.totalorder %s825, %s827
      %p831 = scmp.eq.s32.totalorder %s182, 0
      %p832 = por %p830, %p831
      %p833 = scmp.ne.s32.totalorder %s825, %s827
      %p834 = scmp.eq.s32.totalorder %s187, 1
      %p835 = por %p833, %p834
      %p836 = scmp.ne.s32.totalorder %s827, %s828
      %p837 = scmp.eq.s32.totalorder %s187, 0
      %p838 = por %p836, %p837
      %p839 = scmp.ne.s32.totalorder %s827, %s828
      %p840 = scmp.eq.s32.totalorder %s188, 1
      %p841 = por %p839, %p840
      %p843 = scmp.ne.s32.totalorder %s828, %s842
      %p844 = scmp.eq.s32.totalorder %s188, 0
      %p845 = por %p843, %p844
      %s847 = sadd.s32 %s846, 1
      %p850 = scmp.eq.s32.totalorder %s182, 1
      %p851 = scmp.ne.s32.totalorder %s846, %s848
      %p852 = scmp.eq.s32.totalorder %s182, 0
      %p853 = por %p851, %p852
      %p854 = scmp.ne.s32.totalorder %s846, %s848
      %p855 = scmp.eq.s32.totalorder %s187, 1
      %p856 = por %p854, %p855
      %p857 = scmp.ne.s32.totalorder %s848, %s849
      %p858 = scmp.eq.s32.totalorder %s187, 0
      %p859 = por %p857, %p858
      %p860 = scmp.ne.s32.totalorder %s848, %s849
      %p861 = scmp.eq.s32.totalorder %s188, 1
      %p862 = por %p860, %p861
      %p864 = scmp.ne.s32.totalorder %s849, %s863
      %p865 = scmp.eq.s32.totalorder %s188, 0
      %p866 = por %p864, %p865
      %s868 = sadd.s32 %s867, 1
      %p871 = scmp.eq.s32.totalorder %s182, 1
      %p872 = scmp.ne.s32.totalorder %s867, %s869
      %p873 = scmp.eq.s32.totalorder %s182, 0
      %p874 = por %p872, %p873
      %p875 = scmp.ne.s32.totalorder %s867, %s869
      %p876 = scmp.eq.s32.totalorder %s187, 1
      %p877 = por %p875, %p876
      %p878 = scmp.ne.s32.totalorder %s869, %s870
      %p879 = scmp.eq.s32.totalorder %s187, 0
      %p880 = por %p878, %p879
      %p881 = scmp.ne.s32.totalorder %s869, %s870
      %p882 = scmp.eq.s32.totalorder %s188, 1
      %p883 = por %p881, %p882
      %p885 = scmp.ne.s32.totalorder %s870, %s884
      %p886 = scmp.eq.s32.totalorder %s188, 0
      %p887 = por %p885, %p886
      %s889 = sadd.s32 %s888, 1
      %p892 = scmp.eq.s32.totalorder %s182, 1
      %p893 = scmp.ne.s32.totalorder %s888, %s890
      %p894 = scmp.eq.s32.totalorder %s182, 0
      %p895 = por %p893, %p894
      %p896 = scmp.ne.s32.totalorder %s888, %s890
      %p897 = scmp.eq.s32.totalorder %s187, 1
      %p898 = por %p896, %p897
      %p899 = scmp.ne.s32.totalorder %s890, %s891
      %p900 = scmp.eq.s32.totalorder %s187, 0
      %p901 = por %p899, %p900
      %p902 = scmp.ne.s32.totalorder %s890, %s891
      %p903 = scmp.eq.s32.totalorder %s188, 1
      %p904 = por %p902, %p903
      %p906 = scmp.ne.s32.totalorder %s891, %s905
      %p907 = scmp.eq.s32.totalorder %s188, 0
      %p908 = por %p906, %p907
      %s910 = sadd.s32 %s909, 1
      %p913 = scmp.eq.s32.totalorder %s182, 1
      %p914 = scmp.ne.s32.totalorder %s909, %s911
      %p915 = scmp.eq.s32.totalorder %s182, 0
      %p916 = por %p914, %p915
      %p917 = scmp.ne.s32.totalorder %s909, %s911
      %p918 = scmp.eq.s32.totalorder %s187, 1
      %p919 = por %p917, %p918
      %p920 = scmp.ne.s32.totalorder %s911, %s912
      %p921 = scmp.eq.s32.totalorder %s187, 0
      %p922 = por %p920, %p921
      %p923 = scmp.ne.s32.totalorder %s911, %s912
      %p924 = scmp.eq.s32.totalorder %s188, 1
      %p925 = por %p923, %p924
      %p927 = scmp.ne.s32.totalorder %s912, %s926
      %p928 = scmp.eq.s32.totalorder %s188, 0
      %p929 = por %p927, %p928
      %s931 = sadd.s32 %s930, 1
      %p934 = scmp.eq.s32.totalorder %s182, 1
      %p935 = scmp.ne.s32.totalorder %s930, %s932
      %p936 = scmp.eq.s32.totalorder %s182, 0
      %p937 = por %p935, %p936
      %p938 = scmp.ne.s32.totalorder %s930, %s932
      %p939 = scmp.eq.s32.totalorder %s187, 1
      %p940 = por %p938, %p939
      %p941 = scmp.ne.s32.totalorder %s932, %s933
      %p942 = scmp.eq.s32.totalorder %s187, 0
      %p943 = por %p941, %p942
      %p944 = scmp.ne.s32.totalorder %s932, %s933
      %p945 = scmp.eq.s32.totalorder %s188, 1
      %p946 = por %p944, %p945
      %p948 = scmp.ne.s32.totalorder %s933, %s947
      %p949 = scmp.eq.s32.totalorder %s188, 0
      %p950 = por %p948, %p949
      %s952 = sadd.s32 %s951, 1
      %p955 = scmp.eq.s32.totalorder %s182, 1
      %p956 = scmp.ne.s32.totalorder %s951, %s953
      %p957 = scmp.eq.s32.totalorder %s182, 0
      %p958 = por %p956, %p957
      %p959 = scmp.ne.s32.totalorder %s951, %s953
      %p960 = scmp.eq.s32.totalorder %s187, 1
      %p961 = por %p959, %p960
      %p962 = scmp.ne.s32.totalorder %s953, %s954
      %p963 = scmp.eq.s32.totalorder %s187, 0
      %p964 = por %p962, %p963
      %p965 = scmp.ne.s32.totalorder %s953, %s954
      %p966 = scmp.eq.s32.totalorder %s188, 1
      %p967 = por %p965, %p966
      %p969 = scmp.ne.s32.totalorder %s954, %s968
      %p970 = scmp.eq.s32.totalorder %s188, 0
      %p971 = por %p969, %p970
      %s973 = sadd.s32 %s972, 1
      %p976 = scmp.eq.s32.totalorder %s182, 1
      %p977 = scmp.ne.s32.totalorder %s972, %s974
      %p978 = scmp.eq.s32.totalorder %s182, 0
      %p979 = por %p977, %p978
      %p980 = scmp.ne.s32.totalorder %s972, %s974
      %p981 = scmp.eq.s32.totalorder %s187, 1
      %p982 = por %p980, %p981
      %p983 = scmp.ne.s32.totalorder %s974, %s975
      %p984 = scmp.eq.s32.totalorder %s187, 0
      %p985 = por %p983, %p984
      %p986 = scmp.ne.s32.totalorder %s974, %s975
      %p987 = scmp.eq.s32.totalorder %s188, 1
      %p988 = por %p986, %p987
      %p990 = scmp.ne.s32.totalorder %s975, %s989
      %p991 = scmp.eq.s32.totalorder %s188, 0
      %p992 = por %p990, %p991
      %s994 = sadd.s32 %s993, 1
      %p997 = scmp.eq.s32.totalorder %s182, 1
      %p998 = scmp.ne.s32.totalorder %s993, %s995
      %p999 = scmp.eq.s32.totalorder %s182, 0
      %p1000 = por %p998, %p999
      %p1001 = scmp.ne.s32.totalorder %s993, %s995
      %p1002 = scmp.eq.s32.totalorder %s187, 1
      %p1003 = por %p1001, %p1002
      %p1004 = scmp.ne.s32.totalorder %s995, %s996
      %p1005 = scmp.eq.s32.totalorder %s187, 0
      %p1006 = por %p1004, %p1005
      %p1007 = scmp.ne.s32.totalorder %s995, %s996
      %p1008 = scmp.eq.s32.totalorder %s188, 1
      %p1009 = por %p1007, %p1008
      %p1011 = scmp.ne.s32.totalorder %s996, %s1010
      %p1012 = scmp.eq.s32.totalorder %s188, 0
      %p1013 = por %p1011, %p1012
      %s1015 = sadd.s32 %s1014, 1
      %p1018 = scmp.eq.s32.totalorder %s182, 1
      %p1019 = scmp.ne.s32.totalorder %s1014, %s1016
      %p1020 = scmp.eq.s32.totalorder %s182, 0
      %p1021 = por %p1019, %p1020
      %p1022 = scmp.ne.s32.totalorder %s1014, %s1016
      %p1023 = scmp.eq.s32.totalorder %s187, 1
      %p1024 = por %p1022, %p1023
      %p1025 = scmp.ne.s32.totalorder %s1016, %s1017
      %p1026 = scmp.eq.s32.totalorder %s187, 0
      %p1027 = por %p1025, %p1026
      %p1028 = scmp.ne.s32.totalorder %s1016, %s1017
      %p1029 = scmp.eq.s32.totalorder %s188, 1
      %p1030 = por %p1028, %p1029
      %p1032 = scmp.ne.s32.totalorder %s1017, %s1031
      %p1033 = scmp.eq.s32.totalorder %s188, 0
      %p1034 = por %p1032, %p1033
      %s1036 = sadd.s32 %s1035, 1
      %p1039 = scmp.eq.s32.totalorder %s182, 1
      %p1040 = scmp.ne.s32.totalorder %s1035, %s1037
      %p1041 = scmp.eq.s32.totalorder %s182, 0
      %p1042 = por %p1040, %p1041
      %p1043 = scmp.ne.s32.totalorder %s1035, %s1037
      %p1044 = scmp.eq.s32.totalorder %s187, 1
      %p1045 = por %p1043, %p1044
      %p1046 = scmp.ne.s32.totalorder %s1037, %s1038
      %p1047 = scmp.eq.s32.totalorder %s187, 0
      %p1048 = por %p1046, %p1047
      %p1049 = scmp.ne.s32.totalorder %s1037, %s1038
      %p1050 = scmp.eq.s32.totalorder %s188, 1
      %p1051 = por %p1049, %p1050
      %p1053 = scmp.ne.s32.totalorder %s1038, %s1052
      %p1054 = scmp.eq.s32.totalorder %s188, 0
      %p1055 = por %p1053, %p1054
      %s1057 = sadd.s32 %s1056, 1
      %p1060 = scmp.eq.s32.totalorder %s182, 1
      %p1061 = scmp.ne.s32.totalorder %s1056, %s1058
      %p1062 = scmp.eq.s32.totalorder %s182, 0
      %p1063 = por %p1061, %p1062
      %p1064 = scmp.ne.s32.totalorder %s1056, %s1058
      %p1065 = scmp.eq.s32.totalorder %s187, 1
      %p1066 = por %p1064, %p1065
      %p1067 = scmp.ne.s32.totalorder %s1058, %s1059
      %p1068 = scmp.eq.s32.totalorder %s187, 0
      %p1069 = por %p1067, %p1068
      %p1070 = scmp.ne.s32.totalorder %s1058, %s1059
      %p1071 = scmp.eq.s32.totalorder %s188, 1
      %p1072 = por %p1070, %p1071
      %p1074 = scmp.ne.s32.totalorder %s1059, %s1073
      %p1075 = scmp.eq.s32.totalorder %s188, 0
      %p1076 = por %p1074, %p1075
      %s1078 = sadd.s32 %s1077, 1
      %p1081 = scmp.eq.s32.totalorder %s182, 1
      %p1082 = scmp.ne.s32.totalorder %s1077, %s1079
      %p1083 = scmp.eq.s32.totalorder %s182, 0
      %p1084 = por %p1082, %p1083
      %p1085 = scmp.ne.s32.totalorder %s1077, %s1079
      %p1086 = scmp.eq.s32.totalorder %s187, 1
      %p1087 = por %p1085, %p1086
      %p1088 = scmp.ne.s32.totalorder %s1079, %s1080
      %p1089 = scmp.eq.s32.totalorder %s187, 0
      %p1090 = por %p1088, %p1089
      %p1091 = scmp.ne.s32.totalorder %s1079, %s1080
      %p1092 = scmp.eq.s32.totalorder %s188, 1
      %p1093 = por %p1091, %p1092
      %p1095 = scmp.ne.s32.totalorder %s1080, %s1094
      %p1096 = scmp.eq.s32.totalorder %s188, 0
      %p1097 = por %p1095, %p1096
      %s1099 = sadd.s32 %s1098, 1
      %p1102 = scmp.eq.s32.totalorder %s182, 1
      %p1103 = scmp.ne.s32.totalorder %s1098, %s1100
      %p1104 = scmp.eq.s32.totalorder %s182, 0
      %p1105 = por %p1103, %p1104
      %p1106 = scmp.ne.s32.totalorder %s1098, %s1100
      %p1107 = scmp.eq.s32.totalorder %s187, 1
      %p1108 = por %p1106, %p1107
      %p1109 = scmp.ne.s32.totalorder %s1100, %s1101
      %p1110 = scmp.eq.s32.totalorder %s187, 0
      %p1111 = por %p1109, %p1110
      %p1112 = scmp.ne.s32.totalorder %s1100, %s1101
      %p1113 = scmp.eq.s32.totalorder %s188, 1
      %p1114 = por %p1112, %p1113
      %p1116 = scmp.ne.s32.totalorder %s1101, %s1115
      %p1117 = scmp.eq.s32.totalorder %s188, 0
      %p1118 = por %p1116, %p1117
      %s1120 = sadd.s32 %s1119, 1
      %p1123 = scmp.eq.s32.totalorder %s182, 1
      %p1124 = scmp.ne.s32.totalorder %s1119, %s1121
      %p1125 = scmp.eq.s32.totalorder %s182, 0
      %p1126 = por %p1124, %p1125
      %p1127 = scmp.ne.s32.totalorder %s1119, %s1121
      %p1128 = scmp.eq.s32.totalorder %s187, 1
      %p1129 = por %p1127, %p1128
      %p1130 = scmp.ne.s32.totalorder %s1121, %s1122
      %p1131 = scmp.eq.s32.totalorder %s187, 0
      %p1132 = por %p1130, %p1131
      %p1133 = scmp.ne.s32.totalorder %s1121, %s1122
      %p1134 = scmp.eq.s32.totalorder %s188, 1
      %p1135 = por %p1133, %p1134
      %p1137 = scmp.ne.s32.totalorder %s1122, %s1136
      %p1138 = scmp.eq.s32.totalorder %s188, 0
      %p1139 = por %p1137, %p1138
      %s1141 = sadd.s32 %s1140, 1
      %p1144 = scmp.eq.s32.totalorder %s182, 1
      %p1145 = scmp.ne.s32.totalorder %s1140, %s1142
      %p1146 = scmp.eq.s32.totalorder %s182, 0
      %p1147 = por %p1145, %p1146
      %p1148 = scmp.ne.s32.totalorder %s1140, %s1142
      %p1149 = scmp.eq.s32.totalorder %s187, 1
      %p1150 = por %p1148, %p1149
      %p1151 = scmp.ne.s32.totalorder %s1142, %s1143
      %p1152 = scmp.eq.s32.totalorder %s187, 0
      %p1153 = por %p1151, %p1152
      %p1154 = scmp.ne.s32.totalorder %s1142, %s1143
      %p1155 = scmp.eq.s32.totalorder %s188, 1
      %p1156 = por %p1154, %p1155
      %p1158 = scmp.ne.s32.totalorder %s1143, %s1157
      %p1159 = scmp.eq.s32.totalorder %s188, 0
      %p1160 = por %p1158, %p1159
      %s1162 = sadd.s32 %s1161, 1
      %p1165 = scmp.eq.s32.totalorder %s182, 1
      %p1166 = scmp.ne.s32.totalorder %s1161, %s1163
      %p1167 = scmp.eq.s32.totalorder %s182, 0
      %p1168 = por %p1166, %p1167
      %p1169 = scmp.ne.s32.totalorder %s1161, %s1163
      %p1170 = scmp.eq.s32.totalorder %s187, 1
      %p1171 = por %p1169, %p1170
      %p1172 = scmp.ne.s32.totalorder %s1163, %s1164
      %p1173 = scmp.eq.s32.totalorder %s187, 0
      %p1174 = por %p1172, %p1173
      %p1175 = scmp.ne.s32.totalorder %s1163, %s1164
      %p1176 = scmp.eq.s32.totalorder %s188, 1
      %p1177 = por %p1175, %p1176
      %p1179 = scmp.ne.s32.totalorder %s1164, %s1178
      %p1180 = scmp.eq.s32.totalorder %s188, 0
      %p1181 = por %p1179, %p1180
      %s1183 = sadd.s32 %s1182, 1
      %p1186 = scmp.eq.s32.totalorder %s182, 1
      %p1187 = scmp.ne.s32.totalorder %s1182, %s1184
      %p1188 = scmp.eq.s32.totalorder %s182, 0
      %p1189 = por %p1187, %p1188
      %p1190 = scmp.ne.s32.totalorder %s1182, %s1184
      %p1191 = scmp.eq.s32.totalorder %s187, 1
      %p1192 = por %p1190, %p1191
      %p1193 = scmp.ne.s32.totalorder %s1184, %s1185
      %p1194 = scmp.eq.s32.totalorder %s187, 0
      %p1195 = por %p1193, %p1194
      %p1196 = scmp.ne.s32.totalorder %s1184, %s1185
      %p1197 = scmp.eq.s32.totalorder %s188, 1
      %p1198 = por %p1196, %p1197
      %p1200 = scmp.ne.s32.totalorder %s1185, %s1199
      %p1201 = scmp.eq.s32.totalorder %s188, 0
      %p1202 = por %p1200, %p1201
      %s1204 = sadd.s32 %s1203, 1
      %p1207 = scmp.eq.s32.totalorder %s182, 1
      %p1208 = scmp.ne.s32.totalorder %s1203, %s1205
      %p1209 = scmp.eq.s32.totalorder %s182, 0
      %p1210 = por %p1208, %p1209
      %p1211 = scmp.ne.s32.totalorder %s1203, %s1205
      %p1212 = scmp.eq.s32.totalorder %s187, 1
      %p1213 = por %p1211, %p1212
      %p1214 = scmp.ne.s32.totalorder %s1205, %s1206
      %p1215 = scmp.eq.s32.totalorder %s187, 0
      %p1216 = por %p1214, %p1215
      %p1217 = scmp.ne.s32.totalorder %s1205, %s1206
      %p1218 = scmp.eq.s32.totalorder %s188, 1
      %p1219 = por %p1217, %p1218
      %p1221 = scmp.ne.s32.totalorder %s1206, %s1220
      %p1222 = scmp.eq.s32.totalorder %s188, 0
      %p1223 = por %p1221, %p1222
      %s1225 = sadd.s32 %s1224, 1
      %p1228 = scmp.eq.s32.totalorder %s182, 1
      %p1229 = scmp.ne.s32.totalorder %s1224, %s1226
      %p1230 = scmp.eq.s32.totalorder %s182, 0
      %p1231 = por %p1229, %p1230
      %p1232 = scmp.ne.s32.totalorder %s1224, %s1226
      %p1233 = scmp.eq.s32.totalorder %s187, 1
      %p1234 = por %p1232, %p1233
      %p1235 = scmp.ne.s32.totalorder %s1226, %s1227
      %p1236 = scmp.eq.s32.totalorder %s187, 0
      %p1237 = por %p1235, %p1236
      %p1238 = scmp.ne.s32.totalorder %s1226, %s1227
      %p1239 = scmp.eq.s32.totalorder %s188, 1
      %p1240 = por %p1238, %p1239
      %p1242 = scmp.ne.s32.totalorder %s1227, %s1241
      %p1243 = scmp.eq.s32.totalorder %s188, 0
      %p1244 = por %p1242, %p1243
      %s1246 = sadd.s32 %s1245, 1
      %p1249 = scmp.eq.s32.totalorder %s182, 1
      %p1250 = scmp.ne.s32.totalorder %s1245, %s1247
      %p1251 = scmp.eq.s32.totalorder %s182, 0
      %p1252 = por %p1250, %p1251
      %p1253 = scmp.ne.s32.totalorder %s1245, %s1247
      %p1254 = scmp.eq.s32.totalorder %s187, 1
      %p1255 = por %p1253, %p1254
      %p1256 = scmp.ne.s32.totalorder %s1247, %s1248
      %p1257 = scmp.eq.s32.totalorder %s187, 0
      %p1258 = por %p1256, %p1257
      %p1259 = scmp.ne.s32.totalorder %s1247, %s1248
      %p1260 = scmp.eq.s32.totalorder %s188, 1
      %p1261 = por %p1259, %p1260
      %p1263 = scmp.ne.s32.totalorder %s1248, %s1262
      %p1264 = scmp.eq.s32.totalorder %s188, 0
      %p1265 = por %p1263, %p1264
      %s1267 = sadd.s32 %s1266, 1
      %p1270 = scmp.eq.s32.totalorder %s182, 1
      %p1271 = scmp.ne.s32.totalorder %s1266, %s1268
      %p1272 = scmp.eq.s32.totalorder %s182, 0
      %p1273 = por %p1271, %p1272
      %p1274 = scmp.ne.s32.totalorder %s1266, %s1268
      %p1275 = scmp.eq.s32.totalorder %s187, 1
      %p1276 = por %p1274, %p1275
      %p1277 = scmp.ne.s32.totalorder %s1268, %s1269
      %p1278 = scmp.eq.s32.totalorder %s187, 0
      %p1279 = por %p1277, %p1278
      %p1280 = scmp.ne.s32.totalorder %s1268, %s1269
      %p1281 = scmp.eq.s32.totalorder %s188, 1
      %p1282 = por %p1280, %p1281
      %p1284 = scmp.ne.s32.totalorder %s1269, %s1283
      %p1285 = scmp.eq.s32.totalorder %s188, 0
      %p1286 = por %p1284, %p1285
      %s1288 = sadd.s32 %s1287, 1
      %p1291 = scmp.eq.s32.totalorder %s182, 1
      %p1292 = scmp.ne.s32.totalorder %s1287, %s1289
      %p1293 = scmp.eq.s32.totalorder %s182, 0
      %p1294 = por %p1292, %p1293
      %p1295 = scmp.ne.s32.totalorder %s1287, %s1289
      %p1296 = scmp.eq.s32.totalorder %s187, 1
      %p1297 = por %p1295, %p1296
      %p1298 = scmp.ne.s32.totalorder %s1289, %s1290
      %p1299 = scmp.eq.s32.totalorder %s187, 0
      %p1300 = por %p1298, %p1299
      %p1301 = scmp.ne.s32.totalorder %s1289, %s1290
      %p1302 = scmp.eq.s32.totalorder %s188, 1
      %p1303 = por %p1301, %p1302
      %p1305 = scmp.ne.s32.totalorder %s1290, %s1304
      %p1306 = scmp.eq.s32.totalorder %s188, 0
      %p1307 = por %p1305, %p1306
      %s1309 = sadd.s32 %s1308, 1
      %p1312 = scmp.eq.s32.totalorder %s182, 1
      %p1313 = scmp.ne.s32.totalorder %s1308, %s1310
      %p1314 = scmp.eq.s32.totalorder %s182, 0
      %p1315 = por %p1313, %p1314
      %p1316 = scmp.ne.s32.totalorder %s1308, %s1310
      %p1317 = scmp.eq.s32.totalorder %s187, 1
      %p1318 = por %p1316, %p1317
      %p1319 = scmp.ne.s32.totalorder %s1310, %s1311
      %p1320 = scmp.eq.s32.totalorder %s187, 0
      %p1321 = por %p1319, %p1320
      %p1322 = scmp.ne.s32.totalorder %s1310, %s1311
      %p1323 = scmp.eq.s32.totalorder %s188, 1
      %p1324 = por %p1322, %p1323
      %p1326 = scmp.ne.s32.totalorder %s1311, %s1325
      %p1327 = scmp.eq.s32.totalorder %s188, 0
      %p1328 = por %p1326, %p1327
      %s1330 = sadd.s32 %s1329, 1
      %p1333 = scmp.eq.s32.totalorder %s182, 1
      %p1334 = scmp.ne.s32.totalorder %s1329, %s1331
      %p1335 = scmp.eq.s32.totalorder %s182, 0
      %p1336 = por %p1334, %p1335
      %p1337 = scmp.ne.s32.totalorder %s1329, %s1331
      %p1338 = scmp.eq.s32.totalorder %s187, 1
      %p1339 = por %p1337, %p1338
      %p1340 = scmp.ne.s32.totalorder %s1331, %s1332
      %p1341 = scmp.eq.s32.totalorder %s187, 0
      %p1342 = por %p1340, %p1341
      %p1343 = scmp.ne.s32.totalorder %s1331, %s1332
      %p1344 = scmp.eq.s32.totalorder %s188, 1
      %p1345 = por %p1343, %p1344
      %p1347 = scmp.ne.s32.totalorder %s1332, %s1346
      %p1348 = scmp.eq.s32.totalorder %s188, 0
      %p1349 = por %p1347, %p1348
      %s1351 = sadd.s32 %s1350, 1
      %p1354 = scmp.eq.s32.totalorder %s182, 1
      %p1355 = scmp.ne.s32.totalorder %s1350, %s1352
      %p1356 = scmp.eq.s32.totalorder %s182, 0
      %p1357 = por %p1355, %p1356
      %p1358 = scmp.ne.s32.totalorder %s1350, %s1352
      %p1359 = scmp.eq.s32.totalorder %s187, 1
      %p1360 = por %p1358, %p1359
      %p1361 = scmp.ne.s32.totalorder %s1352, %s1353
      %p1362 = scmp.eq.s32.totalorder %s187, 0
      %p1363 = por %p1361, %p1362
      %p1364 = scmp.ne.s32.totalorder %s1352, %s1353
      %p1365 = scmp.eq.s32.totalorder %s188, 1
      %p1366 = por %p1364, %p1365
      %p1368 = scmp.ne.s32.totalorder %s1353, %s1367
      %p1369 = scmp.eq.s32.totalorder %s188, 0
      %p1370 = por %p1368, %p1369
      %s1372 = sadd.s32 %s1371, 1
      %p1375 = scmp.eq.s32.totalorder %s182, 1
      %p1376 = scmp.ne.s32.totalorder %s1371, %s1373
      %p1377 = scmp.eq.s32.totalorder %s182, 0
      %p1378 = por %p1376, %p1377
      %p1379 = scmp.ne.s32.totalorder %s1371, %s1373
      %p1380 = scmp.eq.s32.totalorder %s187, 1
      %p1381 = por %p1379, %p1380
      %p1382 = scmp.ne.s32.totalorder %s1373, %s1374
      %p1383 = scmp.eq.s32.totalorder %s187, 0
      %p1384 = por %p1382, %p1383
      %p1385 = scmp.ne.s32.totalorder %s1373, %s1374
      %p1386 = scmp.eq.s32.totalorder %s188, 1
      %p1387 = por %p1385, %p1386
      %p1389 = scmp.ne.s32.totalorder %s1374, %s1388
      %p1390 = scmp.eq.s32.totalorder %s188, 0
      %p1391 = por %p1389, %p1390
      %s1393 = sadd.s32 %s1392, 1
      %p1396 = scmp.eq.s32.totalorder %s182, 1
      %p1397 = scmp.ne.s32.totalorder %s1392, %s1394
      %p1398 = scmp.eq.s32.totalorder %s182, 0
      %p1399 = por %p1397, %p1398
      %p1400 = scmp.ne.s32.totalorder %s1392, %s1394
      %p1401 = scmp.eq.s32.totalorder %s187, 1
      %p1402 = por %p1400, %p1401
      %p1403 = scmp.ne.s32.totalorder %s1394, %s1395
      %p1404 = scmp.eq.s32.totalorder %s187, 0
      %p1405 = por %p1403, %p1404
      %p1406 = scmp.ne.s32.totalorder %s1394, %s1395
      %p1407 = scmp.eq.s32.totalorder %s188, 1
      %p1408 = por %p1406, %p1407
      %p1410 = scmp.ne.s32.totalorder %s1395, %s1409
      %p1411 = scmp.eq.s32.totalorder %s188, 0
      %p1412 = por %p1410, %p1411
      %s1414 = sadd.s32 %s1413, 1
      %p1417 = scmp.eq.s32.totalorder %s182, 1
      %p1418 = scmp.ne.s32.totalorder %s1413, %s1415
      %p1419 = scmp.eq.s32.totalorder %s182, 0
      %p1420 = por %p1418, %p1419
      %p1421 = scmp.ne.s32.totalorder %s1413, %s1415
      %p1422 = scmp.eq.s32.totalorder %s187, 1
      %p1423 = por %p1421, %p1422
      %p1424 = scmp.ne.s32.totalorder %s1415, %s1416
      %p1425 = scmp.eq.s32.totalorder %s187, 0
      %p1426 = por %p1424, %p1425
      %p1427 = scmp.ne.s32.totalorder %s1415, %s1416
      %p1428 = scmp.eq.s32.totalorder %s188, 1
      %p1429 = por %p1427, %p1428
      %p1431 = scmp.ne.s32.totalorder %s1416, %s1430
      %p1432 = scmp.eq.s32.totalorder %s188, 0
      %p1433 = por %p1431, %p1432
      %s1435 = sadd.s32 %s1434, 1
      %p1438 = scmp.eq.s32.totalorder %s182, 1
      %p1439 = scmp.ne.s32.totalorder %s1434, %s1436
      %p1440 = scmp.eq.s32.totalorder %s182, 0
      %p1441 = por %p1439, %p1440
      %p1442 = scmp.ne.s32.totalorder %s1434, %s1436
      %p1443 = scmp.eq.s32.totalorder %s187, 1
      %p1444 = por %p1442, %p1443
      %p1445 = scmp.ne.s32.totalorder %s1436, %s1437
      %p1446 = scmp.eq.s32.totalorder %s187, 0
      %p1447 = por %p1445, %p1446
      %p1448 = scmp.ne.s32.totalorder %s1436, %s1437
      %p1449 = scmp.eq.s32.totalorder %s188, 1
      %p1450 = por %p1448, %p1449
      %p1452 = scmp.ne.s32.totalorder %s1437, %s1451
      %p1453 = scmp.eq.s32.totalorder %s188, 0
      %p1454 = por %p1452, %p1453
      %s1456 = sadd.s32 %s1455, 1
      %p1459 = scmp.eq.s32.totalorder %s182, 1
      %p1460 = scmp.ne.s32.totalorder %s1455, %s1457
      %p1461 = scmp.eq.s32.totalorder %s182, 0
      %p1462 = por %p1460, %p1461
      %p1463 = scmp.ne.s32.totalorder %s1455, %s1457
      %p1464 = scmp.eq.s32.totalorder %s187, 1
      %p1465 = por %p1463, %p1464
      %p1466 = scmp.ne.s32.totalorder %s1457, %s1458
      %p1467 = scmp.eq.s32.totalorder %s187, 0
      %p1468 = por %p1466, %p1467
      %p1469 = scmp.ne.s32.totalorder %s1457, %s1458
      %p1470 = scmp.eq.s32.totalorder %s188, 1
      %p1471 = por %p1469, %p1470
      %p1473 = scmp.ne.s32.totalorder %s1458, %s1472
      %p1474 = scmp.eq.s32.totalorder %s188, 0
      %p1475 = por %p1473, %p1474
      %s1477 = sadd.s32 %s1476, 1
      %p1480 = scmp.eq.s32.totalorder %s182, 1
      %p1481 = scmp.ne.s32.totalorder %s1476, %s1478
      %p1482 = scmp.eq.s32.totalorder %s182, 0
      %p1483 = por %p1481, %p1482
      %p1484 = scmp.ne.s32.totalorder %s1476, %s1478
      %p1485 = scmp.eq.s32.totalorder %s187, 1
      %p1486 = por %p1484, %p1485
      %p1487 = scmp.ne.s32.totalorder %s1478, %s1479
      %p1488 = scmp.eq.s32.totalorder %s187, 0
      %p1489 = por %p1487, %p1488
      %p1490 = scmp.ne.s32.totalorder %s1478, %s1479
      %p1491 = scmp.eq.s32.totalorder %s188, 1
      %p1492 = por %p1490, %p1491
      %p1494 = scmp.ne.s32.totalorder %s1479, %s1493
      %p1495 = scmp.eq.s32.totalorder %s188, 0
      %p1496 = por %p1494, %p1495
      %s1498 = sadd.s32 %s1497, 1
      %p1501 = scmp.eq.s32.totalorder %s182, 1
      %p1502 = scmp.ne.s32.totalorder %s1497, %s1499
      %p1503 = scmp.eq.s32.totalorder %s182, 0
      %p1504 = por %p1502, %p1503
      %p1505 = scmp.ne.s32.totalorder %s1497, %s1499
      %p1506 = scmp.eq.s32.totalorder %s187, 1
      %p1507 = por %p1505, %p1506
      %p1508 = scmp.ne.s32.totalorder %s1499, %s1500
      %p1509 = scmp.eq.s32.totalorder %s187, 0
      %p1510 = por %p1508, %p1509
      %p1511 = scmp.ne.s32.totalorder %s1499, %s1500
      %p1512 = scmp.eq.s32.totalorder %s188, 1
      %p1513 = por %p1511, %p1512
      %p1515 = scmp.ne.s32.totalorder %s1500, %s1514
      %p1516 = scmp.eq.s32.totalorder %s188, 0
      %p1517 = por %p1515, %p1516
      %s1519 = sadd.s32 %s1518, 1
      %p1522 = scmp.eq.s32.totalorder %s182, 1
      %p1523 = scmp.ne.s32.totalorder %s1518, %s1520
      %p1524 = scmp.eq.s32.totalorder %s182, 0
      %p1525 = por %p1523, %p1524
      %p1526 = scmp.ne.s32.totalorder %s1518, %s1520
      %p1527 = scmp.eq.s32.totalorder %s187, 1
      %p1528 = por %p1526, %p1527
      %p1529 = scmp.ne.s32.totalorder %s1520, %s1521
      %p1530 = scmp.eq.s32.totalorder %s187, 0
      %p1531 = por %p1529, %p1530
      %p1532 = scmp.ne.s32.totalorder %s1520, %s1521
      %p1533 = scmp.eq.s32.totalorder %s188, 1
      %p1534 = por %p1532, %p1533
      %p1536 = scmp.ne.s32.totalorder %s1521, %s1535
      %p1537 = scmp.eq.s32.totalorder %s188, 0
      %p1538 = por %p1536, %p1537
      %s1540 = sadd.s32 %s1539, 1
      %p1543 = scmp.eq.s32.totalorder %s182, 1
      %p1544 = scmp.ne.s32.totalorder %s1539, %s1541
      %p1545 = scmp.eq.s32.totalorder %s182, 0
      %p1546 = por %p1544, %p1545
      %p1547 = scmp.ne.s32.totalorder %s1539, %s1541
      %p1548 = scmp.eq.s32.totalorder %s187, 1
      %p1549 = por %p1547, %p1548
      %p1550 = scmp.ne.s32.totalorder %s1541, %s1542
      %p1551 = scmp.eq.s32.totalorder %s187, 0
      %p1552 = por %p1550, %p1551
      %p1553 = scmp.ne.s32.totalorder %s1541, %s1542
      %p1554 = scmp.eq.s32.totalorder %s188, 1
      %p1555 = por %p1553, %p1554
      %p1557 = scmp.ne.s32.totalorder %s1542, %s1556
      %p1558 = scmp.eq.s32.totalorder %s188, 0
      %p1559 = por %p1557, %p1558
      %s1561 = sadd.s32 %s1560, 1
      %p1564 = scmp.eq.s32.totalorder %s182, 1
      %p1565 = scmp.ne.s32.totalorder %s1560, %s1562
      %p1566 = scmp.eq.s32.totalorder %s182, 0
      %p1567 = por %p1565, %p1566
      %p1568 = scmp.ne.s32.totalorder %s1560, %s1562
      %p1569 = scmp.eq.s32.totalorder %s187, 1
      %p1570 = por %p1568, %p1569
      %p1571 = scmp.ne.s32.totalorder %s1562, %s1563
      %p1572 = scmp.eq.s32.totalorder %s187, 0
      %p1573 = por %p1571, %p1572
      %p1574 = scmp.ne.s32.totalorder %s1562, %s1563
      %p1575 = scmp.eq.s32.totalorder %s188, 1
      %p1576 = por %p1574, %p1575
      %p1578 = scmp.ne.s32.totalorder %s1563, %s1577
      %p1579 = scmp.eq.s32.totalorder %s188, 0
      %p1580 = por %p1578, %p1579
      %s1582 = sadd.s32 %s1581, 1
      %p1585 = scmp.eq.s32.totalorder %s182, 1
      %p1586 = scmp.ne.s32.totalorder %s1581, %s1583
      %p1587 = scmp.eq.s32.totalorder %s182, 0
      %p1588 = por %p1586, %p1587
      %p1589 = scmp.ne.s32.totalorder %s1581, %s1583
      %p1590 = scmp.eq.s32.totalorder %s187, 1
      %p1591 = por %p1589, %p1590
      %p1592 = scmp.ne.s32.totalorder %s1583, %s1584
      %p1593 = scmp.eq.s32.totalorder %s187, 0
      %p1594 = por %p1592, %p1593
      %p1595 = scmp.ne.s32.totalorder %s1583, %s1584
      %p1596 = scmp.eq.s32.totalorder %s188, 1
      %p1597 = por %p1595, %p1596
      %p1599 = scmp.ne.s32.totalorder %s1584, %s1598
      %p1600 = scmp.eq.s32.totalorder %s188, 0
      %p1601 = por %p1599, %p1600
      %s1603 = sadd.s32 %s1602, 1
      %p1606 = scmp.eq.s32.totalorder %s182, 1
      %p1607 = scmp.ne.s32.totalorder %s1602, %s1604
      %p1608 = scmp.eq.s32.totalorder %s182, 0
      %p1609 = por %p1607, %p1608
      %p1610 = scmp.ne.s32.totalorder %s1602, %s1604
      %p1611 = scmp.eq.s32.totalorder %s187, 1
      %p1612 = por %p1610, %p1611
      %p1613 = scmp.ne.s32.totalorder %s1604, %s1605
      %p1614 = scmp.eq.s32.totalorder %s187, 0
      %p1615 = por %p1613, %p1614
      %p1616 = scmp.ne.s32.totalorder %s1604, %s1605
      %p1617 = scmp.eq.s32.totalorder %s188, 1
      %p1618 = por %p1616, %p1617
      %p1620 = scmp.ne.s32.totalorder %s1605, %s1619
      %p1621 = scmp.eq.s32.totalorder %s188, 0
      %p1622 = por %p1620, %p1621
      %s1624 = sadd.s32 %s1623, 1
      %p1627 = scmp.eq.s32.totalorder %s182, 1
      %p1628 = scmp.ne.s32.totalorder %s1623, %s1625
      %p1629 = scmp.eq.s32.totalorder %s182, 0
      %p1630 = por %p1628, %p1629
      %p1631 = scmp.ne.s32.totalorder %s1623, %s1625
      %p1632 = scmp.eq.s32.totalorder %s187, 1
      %p1633 = por %p1631, %p1632
      %p1634 = scmp.ne.s32.totalorder %s1625, %s1626
      %p1635 = scmp.eq.s32.totalorder %s187, 0
      %p1636 = por %p1634, %p1635
      %p1637 = scmp.ne.s32.totalorder %s1625, %s1626
      %p1638 = scmp.eq.s32.totalorder %s188, 1
      %p1639 = por %p1637, %p1638
      %p1641 = scmp.ne.s32.totalorder %s1626, %s1640
      %p1642 = scmp.eq.s32.totalorder %s188, 0
      %p1643 = por %p1641, %p1642
      %s1645 = sadd.s32 %s1644, 1
      %p1648 = scmp.eq.s32.totalorder %s182, 1
      %p1649 = scmp.ne.s32.totalorder %s1644, %s1646
      %p1650 = scmp.eq.s32.totalorder %s182, 0
      %p1651 = por %p1649, %p1650
      %p1652 = scmp.ne.s32.totalorder %s1644, %s1646
      %p1653 = scmp.eq.s32.totalorder %s187, 1
      %p1654 = por %p1652, %p1653
      %p1655 = scmp.ne.s32.totalorder %s1646, %s1647
      %p1656 = scmp.eq.s32.totalorder %s187, 0
      %p1657 = por %p1655, %p1656
      %p1658 = scmp.ne.s32.totalorder %s1646, %s1647
      %p1659 = scmp.eq.s32.totalorder %s188, 1
      %p1660 = por %p1658, %p1659
      %p1662 = scmp.ne.s32.totalorder %s1647, %s1661
      %p1663 = scmp.eq.s32.totalorder %s188, 0
      %p1664 = por %p1662, %p1663
      %s1666 = sadd.s32 %s1665, 1
      %p1669 = scmp.eq.s32.totalorder %s182, 1
      %p1670 = scmp.ne.s32.totalorder %s1665, %s1667
      %p1671 = scmp.eq.s32.totalorder %s182, 0
      %p1672 = por %p1670, %p1671
      %p1673 = scmp.ne.s32.totalorder %s1665, %s1667
      %p1674 = scmp.eq.s32.totalorder %s187, 1
      %p1675 = por %p1673, %p1674
      %p1676 = scmp.ne.s32.totalorder %s1667, %s1668
      %p1677 = scmp.eq.s32.totalorder %s187, 0
      %p1678 = por %p1676, %p1677
      %p1679 = scmp.ne.s32.totalorder %s1667, %s1668
      %p1680 = scmp.eq.s32.totalorder %s188, 1
      %p1681 = por %p1679, %p1680
      %p1683 = scmp.ne.s32.totalorder %s1668, %s1682
      %p1684 = scmp.eq.s32.totalorder %s188, 0
      %p1685 = por %p1683, %p1684
      %s1687 = sadd.s32 %s1686, 1
      %p1690 = scmp.eq.s32.totalorder %s182, 1
      %p1691 = scmp.ne.s32.totalorder %s1686, %s1688
      %p1692 = scmp.eq.s32.totalorder %s182, 0
      %p1693 = por %p1691, %p1692
      %p1694 = scmp.ne.s32.totalorder %s1686, %s1688
      %p1695 = scmp.eq.s32.totalorder %s187, 1
      %p1696 = por %p1694, %p1695
      %p1697 = scmp.ne.s32.totalorder %s1688, %s1689
      %p1698 = scmp.eq.s32.totalorder %s187, 0
      %p1699 = por %p1697, %p1698
      %p1700 = scmp.ne.s32.totalorder %s1688, %s1689
      %p1701 = scmp.eq.s32.totalorder %s188, 1
      %p1702 = por %p1700, %p1701
      %p1704 = scmp.ne.s32.totalorder %s1689, %s1703
      %p1705 = scmp.eq.s32.totalorder %s188, 0
      %p1706 = por %p1704, %p1705
      %s1708 = sadd.s32 %s1707, 1
      %p1711 = scmp.eq.s32.totalorder %s182, 1
      %p1712 = scmp.ne.s32.totalorder %s1707, %s1709
      %p1713 = scmp.eq.s32.totalorder %s182, 0
      %p1714 = por %p1712, %p1713
      %p1715 = scmp.ne.s32.totalorder %s1707, %s1709
      %p1716 = scmp.eq.s32.totalorder %s187, 1
      %p1717 = por %p1715, %p1716
      %p1718 = scmp.ne.s32.totalorder %s1709, %s1710
      %p1719 = scmp.eq.s32.totalorder %s187, 0
      %p1720 = por %p1718, %p1719
      %p1721 = scmp.ne.s32.totalorder %s1709, %s1710
      %p1722 = scmp.eq.s32.totalorder %s188, 1
      %p1723 = por %p1721, %p1722
      %p1725 = scmp.ne.s32.totalorder %s1710, %s1724
      %p1726 = scmp.eq.s32.totalorder %s188, 0
      %p1727 = por %p1725, %p1726
      %s1729 = sadd.s32 %s1728, 1
      %p1732 = scmp.eq.s32.totalorder %s182, 1
      %p1733 = scmp.ne.s32.totalorder %s1728, %s1730
      %p1734 = scmp.eq.s32.totalorder %s182, 0
      %p1735 = por %p1733, %p1734
      %p1736 = scmp.ne.s32.totalorder %s1728, %s1730
      %p1737 = scmp.eq.s32.totalorder %s187, 1
      %p1738 = por %p1736, %p1737
      %p1739 = scmp.ne.s32.totalorder %s1730, %s1731
      %p1740 = scmp.eq.s32.totalorder %s187, 0
      %p1741 = por %p1739, %p1740
      %p1742 = scmp.ne.s32.totalorder %s1730, %s1731
      %p1743 = scmp.eq.s32.totalorder %s188, 1
      %p1744 = por %p1742, %p1743
      %p1746 = scmp.ne.s32.totalorder %s1731, %s1745
      %p1747 = scmp.eq.s32.totalorder %s188, 0
      %p1748 = por %p1746, %p1747
      %s1750 = sadd.s32 %s1749, 1
      %p1753 = scmp.eq.s32.totalorder %s182, 1
      %p1754 = scmp.ne.s32.totalorder %s1749, %s1751
      %p1755 = scmp.eq.s32.totalorder %s182, 0
      %p1756 = por %p1754, %p1755
      %p1757 = scmp.ne.s32.totalorder %s1749, %s1751
      %p1758 = scmp.eq.s32.totalorder %s187, 1
      %p1759 = por %p1757, %p1758
      %p1760 = scmp.ne.s32.totalorder %s1751, %s1752
      %p1761 = scmp.eq.s32.totalorder %s187, 0
      %p1762 = por %p1760, %p1761
      %p1763 = scmp.ne.s32.totalorder %s1751, %s1752
      %p1764 = scmp.eq.s32.totalorder %s188, 1
      %p1765 = por %p1763, %p1764
      %p1767 = scmp.ne.s32.totalorder %s1752, %s1766
      %p1768 = scmp.eq.s32.totalorder %s188, 0
      %p1769 = por %p1767, %p1768
      %s1771 = sadd.s32 %s1770, 1
      %p1774 = scmp.eq.s32.totalorder %s182, 1
      %p1775 = scmp.ne.s32.totalorder %s1770, %s1772
      %p1776 = scmp.eq.s32.totalorder %s182, 0
      %p1777 = por %p1775, %p1776
      %p1778 = scmp.ne.s32.totalorder %s1770, %s1772
      %p1779 = scmp.eq.s32.totalorder %s187, 1
      %p1780 = por %p1778, %p1779
      %p1781 = scmp.ne.s32.totalorder %s1772, %s1773
      %p1782 = scmp.eq.s32.totalorder %s187, 0
      %p1783 = por %p1781, %p1782
      %p1784 = scmp.ne.s32.totalorder %s1772, %s1773
      %p1785 = scmp.eq.s32.totalorder %s188, 1
      %p1786 = por %p1784, %p1785
      %p1788 = scmp.ne.s32.totalorder %s1773, %s1787
      %p1789 = scmp.eq.s32.totalorder %s188, 0
      %p1790 = por %p1788, %p1789
      %s1792 = sadd.s32 %s1791, 1
      %p1795 = scmp.eq.s32.totalorder %s182, 1
      %p1796 = scmp.ne.s32.totalorder %s1791, %s1793
      %p1797 = scmp.eq.s32.totalorder %s182, 0
      %p1798 = por %p1796, %p1797
      %p1799 = scmp.ne.s32.totalorder %s1791, %s1793
      %p1800 = scmp.eq.s32.totalorder %s187, 1
      %p1801 = por %p1799, %p1800
      %p1802 = scmp.ne.s32.totalorder %s1793, %s1794
      %p1803 = scmp.eq.s32.totalorder %s187, 0
      %p1804 = por %p1802, %p1803
      %p1805 = scmp.ne.s32.totalorder %s1793, %s1794
      %p1806 = scmp.eq.s32.totalorder %s188, 1
      %p1807 = por %p1805, %p1806
      %p1809 = scmp.ne.s32.totalorder %s1794, %s1808
      %p1810 = scmp.eq.s32.totalorder %s188, 0
      %p1811 = por %p1809, %p1810
      %s1813 = sadd.s32 %s1812, 1
      %p1816 = scmp.eq.s32.totalorder %s182, 1
      %p1817 = scmp.ne.s32.totalorder %s1812, %s1814
      %p1818 = scmp.eq.s32.totalorder %s182, 0
      %p1819 = por %p1817, %p1818
      %p1820 = scmp.ne.s32.totalorder %s1812, %s1814
      %p1821 = scmp.eq.s32.totalorder %s187, 1
      %p1822 = por %p1820, %p1821
      %p1823 = scmp.ne.s32.totalorder %s1814, %s1815
      %p1824 = scmp.eq.s32.totalorder %s187, 0
      %p1825 = por %p1823, %p1824
      %p1826 = scmp.ne.s32.totalorder %s1814, %s1815
      %p1827 = scmp.eq.s32.totalorder %s188, 1
      %p1828 = por %p1826, %p1827
      %p1830 = scmp.ne.s32.totalorder %s1815, %s1829
      %p1831 = scmp.eq.s32.totalorder %s188, 0
      %p1832 = por %p1830, %p1831
      %s1834 = sadd.s32 %s1833, 1
      %p1837 = scmp.eq.s32.totalorder %s182, 1
      %p1838 = scmp.ne.s32.totalorder %s1833, %s1835
      %p1839 = scmp.eq.s32.totalorder %s182, 0
      %p1840 = por %p1838, %p1839
      %p1841 = scmp.ne.s32.totalorder %s1833, %s1835
      %p1842 = scmp.eq.s32.totalorder %s187, 1
      %p1843 = por %p1841, %p1842
      %p1844 = scmp.ne.s32.totalorder %s1835, %s1836
      %p1845 = scmp.eq.s32.totalorder %s187, 0
      %p1846 = por %p1844, %p1845
      %p1847 = scmp.ne.s32.totalorder %s1835, %s1836
      %p1848 = scmp.eq.s32.totalorder %s188, 1
      %p1849 = por %p1847, %p1848
      %p1851 = scmp.ne.s32.totalorder %s1836, %s1850
      %p1852 = scmp.eq.s32.totalorder %s188, 0
      %p1853 = por %p1851, %p1852
      %s1854 = ssub.s32 %s182, %s189
      %p1855 = scmp.eq.s32.totalorder %s1854, 0
      %s1857 = sadd.s32 %s1856, 1
      %s1858 = scalar_select %p1855, %s1856, %s1857
      %p1861 = pneg %p1855
      %p1862 = scmp.eq.s32.totalorder %s182, 1
      %p1863 = por %p1861, %p1862
      %p1864 = scmp.ne.s32.totalorder %s1856, %s1859
      %p1865 = scmp.eq.s32.totalorder %s182, 0
      %p1866 = por %p1864, %p1865
      %p1867 = scmp.ne.s32.totalorder %s1856, %s1859
      %p1868 = scmp.eq.s32.totalorder %s187, 1
      %p1869 = por %p1867, %p1868
      %p1870 = scmp.ne.s32.totalorder %s1859, %s1860
      %p1871 = scmp.eq.s32.totalorder %s187, 0
      %p1872 = por %p1870, %p1871
      %p1873 = scmp.ne.s32.totalorder %s1859, %s1860
      %p1874 = scmp.eq.s32.totalorder %s188, 1
      %p1875 = por %p1873, %p1874
      %p1877 = scmp.ne.s32.totalorder %s1860, %s1876
      %p1878 = scmp.eq.s32.totalorder %s188, 0
      %p1879 = por %p1877, %p1878
      %p1880 = scmp.le.s32.totalorder 1, %s182
      %p1881 = scmp.lt.s32.totalorder %s182, 3
      %p1882 = pnand %p1880, %p1881
      %p1883 = pneg %p1882
      // Predicated region
      $region9: #{forward_features.1} parent=5 // pred_check
        _
      $region10: #{forward_features.1} parent=5 // pred_check_branch
        %1885 = sbr.rel (%p1882) target = $region12
      $region11: #{forward_features.1} parent=5 // pred_region
        %s1886 = ssub.s32 %s182, 1
        // Predicated region
        $region13: #{forward_features.1} parent=11 // pred_check
          %p1887 = pneg %p229
        $region14: #{forward_features.1} parent=11 // pred_check_branch
          %1889 = sbr.rel (%p1887) target = $region16
        $region15: #{forward_features.1} parent=11 // pred_region
          _
        $region16: #{forward_features.1} parent=11 // pred_fallthru
          _
        // Predicated region
        $region17: #{forward_features.1} parent=11 // pred_check
          %p1890 = pneg %p250
        $region18: #{forward_features.1} parent=11 // pred_check_branch
          %1892 = sbr.rel (%p1890) target = $region20
        $region19: #{forward_features.1} parent=11 // pred_region
          %1894 = vsyncadd [#allocation3], 0
          %s1896 = sshll.u32 %s5, 4
          %s1897 = int_to_ptr.hbm [resolvable:$true] %s1896
          %s1898 = sshll.u32 [#allocation2], 4
          %s1899 = int_to_ptr.vmem [resolvable:$true] %s1898
          %1901 = dma.hbm_to_vmem [thread:$0]  %s1897, 16, %s1899, [#allocation3]
        $region20: #{forward_features.1} parent=11 // pred_fallthru
          _
        // Predicated region
        $region21: #{forward_features.1} parent=11 // pred_check
          %p1902 = pneg %p271
        $region22: #{forward_features.1} parent=11 // pred_check_branch
          %1904 = sbr.rel (%p1902) target = $region24
        $region23: #{forward_features.1} parent=11 // pred_region
          %1906 = vsyncadd [#allocation5], 0
          %s1908 = sshll.u32 %s7, 4
          %s1909 = int_to_ptr.hbm [resolvable:$true] %s1908
          %s1910 = sshll.u32 [#allocation4], 4
          %s1911 = int_to_ptr.vmem [resolvable:$true] %s1910
          %1913 = dma.hbm_to_vmem [thread:$0]  %s1909, 16, %s1911, [#allocation5]
        $region24: #{forward_features.1} parent=11 // pred_fallthru
          _
        // Predicated region
        $region25: #{forward_features.1} parent=11 // pred_check
          %p1914 = pneg %p292
        $region26: #{forward_features.1} parent=11 // pred_check_branch
          %1916 = sbr.rel (%p1914) target = $region28
        $region27: #{forward_features.1} parent=11 // pred_region
          %1918 = vsyncadd [#allocation5], 0
          %s1920 = sshll.u32 %s9, 4
          %s1921 = int_to_ptr.hbm [resolvable:$true] %s1920
          %s1922 = sshll.u32 [#allocation6], 4
          %s1923 = int_to_ptr.vmem [resolvable:$true] %s1922
          %1925 = dma.hbm_to_vmem [thread:$0]  %s1921, 16, %s1923, [#allocation5]
        $region28: #{forward_features.1} parent=11 // pred_fallthru
          _
        // Predicated region
        $region29: #{forward_features.1} parent=11 // pred_check
          %p1926 = pneg %p313
        $region30: #{forward_features.1} parent=11 // pred_check_branch
          %1928 = sbr.rel (%p1926) target = $region32
        $region31: #{forward_features.1} parent=11 // pred_region
          %1930 = vsyncadd [#allocation8], 0
          %s1932 = sshll.u32 %s11, 4
          %s1933 = int_to_ptr.hbm [resolvable:$true] %s1932
          %s1934 = sshll.u32 [#allocation7], 4
          %s1935 = int_to_ptr.vmem [resolvable:$true] %s1934
          %1937 = dma.hbm_to_vmem [thread:$0]  %s1933, 16, %s1935, [#allocation8]
        $region32: #{forward_features.1} parent=11 // pred_fallthru
          _
        // Predicated region
        $region33: #{forward_features.1} parent=11 // pred_check
          %p1938 = pneg %p334
        $region34: #{forward_features.1} parent=11 // pred_check_branch
          %1940 = sbr.rel (%p1938) target = $region36
        $region35: #{forward_features.1} parent=11 // pred_region
          %1942 = vsyncadd [#allocation8], 0
          %s1944 = sshll.u32 %s13, 4
          %s1945 = int_to_ptr.hbm [resolvable:$true] %s1944
          %s1946 = sshll.u32 [#allocation9], 4
          %s1947 = int_to_ptr.vmem [resolvable:$true] %s1946
          %1949 = dma.hbm_to_vmem [thread:$0]  %s1945, 16, %s1947, [#allocation8]
        $region36: #{forward_features.1} parent=11 // pred_fallthru
          _
        // Predicated region
        $region37: #{forward_features.1} parent=11 // pred_check
          %p1950 = pneg %p355
        $region38: #{forward_features.1} parent=11 // pred_check_branch
          %1952 = sbr.rel (%p1950) target = $region40
        $region39: #{forward_features.1} parent=11 // pred_region
          _
        $region40: #{forward_features.1} parent=11 // pred_fallthru
          _
        // Predicated region
        $region41: #{forward_features.1} parent=11 // pred_check
          %p1953 = pneg %p376
        $region42: #{forward_features.1} parent=11 // pred_check_branch
          %1955 = sbr.rel (%p1953) target = $region44
        $region43: #{forward_features.1} parent=11 // pred_region
          _
        $region44: #{forward_features.1} parent=11 // pred_fallthru
          _
        // Predicated region
        $region45: #{forward_features.1} parent=11 // pred_check
          %p1956 = pneg %p397
        $region46: #{forward_features.1} parent=11 // pred_check_branch
          %1958 = sbr.rel (%p1956) target = $region48
        $region47: #{forward_features.1} parent=11 // pred_region
          _
        $region48: #{forward_features.1} parent=11 // pred_fallthru
          _
        // Predicated region
        $region49: #{forward_features.1} parent=11 // pred_check
          %p1959 = pneg %p418
        $region50: #{forward_features.1} parent=11 // pred_check_branch
          %1961 = sbr.rel (%p1959) target = $region52
        $region51: #{forward_features.1} parent=11 // pred_region
          _
        $region52: #{forward_features.1} parent=11 // pred_fallthru
          _
        // Predicated region
        $region53: #{forward_features.1} parent=11 // pred_check
          %p1962 = pneg %p439
        $region54: #{forward_features.1} parent=11 // pred_check_branch
          %1964 = sbr.rel (%p1962) target = $region56
        $region55: #{forward_features.1} parent=11 // pred_region
          _
        $region56: #{forward_features.1} parent=11 // pred_fallthru
          _
        // Predicated region
        $region57: #{forward_features.1} parent=11 // pred_check
          %p1965 = pneg %p460
        $region58: #{forward_features.1} parent=11 // pred_check_branch
          %1967 = sbr.rel (%p1965) target = $region60
        $region59: #{forward_features.1} parent=11 // pred_region
          _
        $region60: #{forward_features.1} parent=11 // pred_fallthru
          _
        // Predicated region
        $region61: #{forward_features.1} parent=11 // pred_check
          %p1968 = pneg %p481
        $region62: #{forward_features.1} parent=11 // pred_check_branch
          %1970 = sbr.rel (%p1968) target = $region64
        $region63: #{forward_features.1} parent=11 // pred_region
          _
        $region64: #{forward_features.1} parent=11 // pred_fallthru
          _
        // Predicated region
        $region65: #{forward_features.1} parent=11 // pred_check
          %p1971 = pneg %p502
        $region66: #{forward_features.1} parent=11 // pred_check_branch
          %1973 = sbr.rel (%p1971) target = $region68
        $region67: #{forward_features.1} parent=11 // pred_region
          _
        $region68: #{forward_features.1} parent=11 // pred_fallthru
          _
        // Predicated region
        $region69: #{forward_features.1} parent=11 // pred_check
          %p1974 = pneg %p523
        $region70: #{forward_features.1} parent=11 // pred_check_branch
          %1976 = sbr.rel (%p1974) target = $region72
        $region71: #{forward_features.1} parent=11 // pred_region
          %1978 = vsyncadd [#allocation11], 0
          %s1980 = sshll.u32 %s31, 4
          %s1981 = int_to_ptr.hbm [resolvable:$true] %s1980
          %s1982 = sshll.u32 [#allocation10], 4
          %s1983 = int_to_ptr.vmem [resolvable:$true] %s1982
          %1985 = dma.hbm_to_vmem [thread:$0]  %s1981, 16, %s1983, [#allocation11]
        $region72: #{forward_features.1} parent=11 // pred_fallthru
          _
        // Predicated region
        $region73: #{forward_features.1} parent=11 // pred_check
          %p1986 = pneg %p544
        $region74: #{forward_features.1} parent=11 // pred_check_branch
          %1988 = sbr.rel (%p1986) target = $region76
        $region75: #{forward_features.1} parent=11 // pred_region
          %1990 = vsyncadd [#allocation11], 0
          %s1992 = sshll.u32 %s33, 4
          %s1993 = int_to_ptr.hbm [resolvable:$true] %s1992
          %s1994 = sshll.u32 [#allocation12], 4
          %s1995 = int_to_ptr.vmem [resolvable:$true] %s1994
          %1997 = dma.hbm_to_vmem [thread:$0]  %s1993, 16, %s1995, [#allocation11]
        $region76: #{forward_features.1} parent=11 // pred_fallthru
          _
        // Predicated region
        $region77: #{forward_features.1} parent=11 // pred_check
          %p1998 = pneg %p565
        $region78: #{forward_features.1} parent=11 // pred_check_branch
          %2000 = sbr.rel (%p1998) target = $region80
        $region79: #{forward_features.1} parent=11 // pred_region
          %2002 = vsyncadd [#allocation14], 0
          %s2004 = sshll.u32 %s35, 4
          %s2005 = int_to_ptr.hbm [resolvable:$true] %s2004
          %s2006 = sshll.u32 [#allocation13], 4
          %s2007 = int_to_ptr.vmem [resolvable:$true] %s2006
          %2009 = dma.hbm_to_vmem [thread:$0]  %s2005, 16, %s2007, [#allocation14]
        $region80: #{forward_features.1} parent=11 // pred_fallthru
          _
        // Predicated region
        $region81: #{forward_features.1} parent=11 // pred_check
          %p2010 = pneg %p586
        $region82: #{forward_features.1} parent=11 // pred_check_branch
          %2012 = sbr.rel (%p2010) target = $region84
        $region83: #{forward_features.1} parent=11 // pred_region
          _
        $region84: #{forward_features.1} parent=11 // pred_fallthru
          _
        // Predicated region
        $region85: #{forward_features.1} parent=11 // pred_check
          %p2013 = pneg %p607
        $region86: #{forward_features.1} parent=11 // pred_check_branch
          %2015 = sbr.rel (%p2013) target = $region88
        $region87: #{forward_features.1} parent=11 // pred_region
          %2017 = vsyncadd [#allocation14], 0
          %s2019 = sshll.u32 %s39, 4
          %s2020 = int_to_ptr.hbm [resolvable:$true] %s2019
          %s2021 = sshll.u32 [#allocation15], 4
          %s2022 = int_to_ptr.vmem [resolvable:$true] %s2021
          %2024 = dma.hbm_to_vmem [thread:$0]  %s2020, 16, %s2022, [#allocation14]
        $region88: #{forward_features.1} parent=11 // pred_fallthru
          _
        // Predicated region
        $region89: #{forward_features.1} parent=11 // pred_check
          %p2025 = pneg %p628
        $region90: #{forward_features.1} parent=11 // pred_check_branch
          %2027 = sbr.rel (%p2025) target = $region92
        $region91: #{forward_features.1} parent=11 // pred_region
          _
        $region92: #{forward_features.1} parent=11 // pred_fallthru
          _
        // Predicated region
        $region93: #{forward_features.1} parent=11 // pred_check
          %p2028 = pneg %p649
        $region94: #{forward_features.1} parent=11 // pred_check_branch
          %2030 = sbr.rel (%p2028) target = $region96
        $region95: #{forward_features.1} parent=11 // pred_region
          %2032 = vsyncadd [#allocation17], 0
          %s2034 = sshll.u32 %s43, 4
          %s2035 = int_to_ptr.hbm [resolvable:$true] %s2034
          %s2036 = sshll.u32 [#allocation16], 4
          %s2037 = int_to_ptr.vmem [resolvable:$true] %s2036
          %2039 = dma.hbm_to_vmem [thread:$0]  %s2035, 16, %s2037, [#allocation17]
        $region96: #{forward_features.1} parent=11 // pred_fallthru
          _
        // Predicated region
        $region97: #{forward_features.1} parent=11 // pred_check
          %p2040 = pneg %p670
        $region98: #{forward_features.1} parent=11 // pred_check_branch
          %2042 = sbr.rel (%p2040) target = $region100
        $region99: #{forward_features.1} parent=11 // pred_region
          %2044 = vsyncadd [#allocation17], 0
          %s2046 = sshll.u32 %s45, 4
          %s2047 = int_to_ptr.hbm [resolvable:$true] %s2046
          %s2048 = sshll.u32 [#allocation18], 4
          %s2049 = int_to_ptr.vmem [resolvable:$true] %s2048
          %2051 = dma.hbm_to_vmem [thread:$0]  %s2047, 16, %s2049, [#allocation17]
        $region100: #{forward_features.1} parent=11 // pred_fallthru
          _
        // Predicated region
        $region101: #{forward_features.1} parent=11 // pred_check
          %p2052 = pneg %p691
        $region102: #{forward_features.1} parent=11 // pred_check_branch
          %2054 = sbr.rel (%p2052) target = $region104
        $region103: #{forward_features.1} parent=11 // pred_region
          %2056 = vsyncadd [#allocation20], 0
          %s2058 = sshll.u32 %s47, 4
          %s2059 = int_to_ptr.hbm [resolvable:$true] %s2058
          %s2060 = sshll.u32 [#allocation19], 4
          %s2061 = int_to_ptr.vmem [resolvable:$true] %s2060
          %2063 = dma.hbm_to_vmem [thread:$0]  %s2059, 16, %s2061, [#allocation20]
        $region104: #{forward_features.1} parent=11 // pred_fallthru
          _
        // Predicated region
        $region105: #{forward_features.1} parent=11 // pred_check
          %p2064 = pneg %p712
        $region106: #{forward_features.1} parent=11 // pred_check_branch
          %2066 = sbr.rel (%p2064) target = $region108
        $region107: #{forward_features.1} parent=11 // pred_region
          _
        $region108: #{forward_features.1} parent=11 // pred_fallthru
          _
        // Predicated region
        $region109: #{forward_features.1} parent=11 // pred_check
          %p2067 = pneg %p733
        $region110: #{forward_features.1} parent=11 // pred_check_branch
          %2069 = sbr.rel (%p2067) target = $region112
        $region111: #{forward_features.1} parent=11 // pred_region
          _
        $region112: #{forward_features.1} parent=11 // pred_fallthru
          _
        // Predicated region
        $region113: #{forward_features.1} parent=11 // pred_check
          %p2070 = pneg %p754
        $region114: #{forward_features.1} parent=11 // pred_check_branch
          %2072 = sbr.rel (%p2070) target = $region116
        $region115: #{forward_features.1} parent=11 // pred_region
          _
        $region116: #{forward_features.1} parent=11 // pred_fallthru
          _
        // Predicated region
        $region117: #{forward_features.1} parent=11 // pred_check
          %p2073 = pneg %p775
        $region118: #{forward_features.1} parent=11 // pred_check_branch
          %2075 = sbr.rel (%p2073) target = $region120
        $region119: #{forward_features.1} parent=11 // pred_region
          _
        $region120: #{forward_features.1} parent=11 // pred_fallthru
          _
        // Predicated region
        $region121: #{forward_features.1} parent=11 // pred_check
          %p2076 = pneg %p796
        $region122: #{forward_features.1} parent=11 // pred_check_branch
          %2078 = sbr.rel (%p2076) target = $region124
        $region123: #{forward_features.1} parent=11 // pred_region
          _
        $region124: #{forward_features.1} parent=11 // pred_fallthru
          _
        // Predicated region
        $region125: #{forward_features.1} parent=11 // pred_check
          %p2079 = pneg %p817
        $region126: #{forward_features.1} parent=11 // pred_check_branch
          %2081 = sbr.rel (%p2079) target = $region128
        $region127: #{forward_features.1} parent=11 // pred_region
          _
        $region128: #{forward_features.1} parent=11 // pred_fallthru
          _
        // Predicated region
        $region129: #{forward_features.1} parent=11 // pred_check
          %p2082 = pneg %p838
        $region130: #{forward_features.1} parent=11 // pred_check_branch
          %2084 = sbr.rel (%p2082) target = $region132
        $region131: #{forward_features.1} parent=11 // pred_region
          _
        $region132: #{forward_features.1} parent=11 // pred_fallthru
          _
        // Predicated region
        $region133: #{forward_features.1} parent=11 // pred_check
          %p2085 = pneg %p859
        $region134: #{forward_features.1} parent=11 // pred_check_branch
          %2087 = sbr.rel (%p2085) target = $region136
        $region135: #{forward_features.1} parent=11 // pred_region
          _
        $region136: #{forward_features.1} parent=11 // pred_fallthru
          _
        // Predicated region
        $region137: #{forward_features.1} parent=11 // pred_check
          %p2088 = pneg %p880
        $region138: #{forward_features.1} parent=11 // pred_check_branch
          %2090 = sbr.rel (%p2088) target = $region140
        $region139: #{forward_features.1} parent=11 // pred_region
          %2092 = vsyncadd [#allocation20], 0
          %s2094 = sshll.u32 %s65, 4
          %s2095 = int_to_ptr.hbm [resolvable:$true] %s2094
          %s2096 = sshll.u32 [#allocation21], 4
          %s2097 = int_to_ptr.vmem [resolvable:$true] %s2096
          %2099 = dma.hbm_to_vmem [thread:$0]  %s2095, 16, %s2097, [#allocation20]
        $region140: #{forward_features.1} parent=11 // pred_fallthru
          _
        // Predicated region
        $region141: #{forward_features.1} parent=11 // pred_check
          %p2100 = pneg %p901
        $region142: #{forward_features.1} parent=11 // pred_check_branch
          %2102 = sbr.rel (%p2100) target = $region144
        $region143: #{forward_features.1} parent=11 // pred_region
          %2104 = vsyncadd [#allocation23], 0
          %s2106 = sshll.u32 %s67, 4
          %s2107 = int_to_ptr.hbm [resolvable:$true] %s2106
          %s2108 = sshll.u32 [#allocation22], 4
          %s2109 = int_to_ptr.vmem [resolvable:$true] %s2108
          %2111 = dma.hbm_to_vmem [thread:$0]  %s2107, 16, %s2109, [#allocation23]
        $region144: #{forward_features.1} parent=11 // pred_fallthru
          _
        // Predicated region
        $region145: #{forward_features.1} parent=11 // pred_check
          %p2112 = pneg %p922
        $region146: #{forward_features.1} parent=11 // pred_check_branch
          %2114 = sbr.rel (%p2112) target = $region148
        $region147: #{forward_features.1} parent=11 // pred_region
          %2116 = vsyncadd [#allocation23], 0
          %s2118 = sshll.u32 %s69, 4
          %s2119 = int_to_ptr.hbm [resolvable:$true] %s2118
          %s2120 = sshll.u32 [#allocation24], 4
          %s2121 = int_to_ptr.vmem [resolvable:$true] %s2120
          %2123 = dma.hbm_to_vmem [thread:$0]  %s2119, 16, %s2121, [#allocation23]
        $region148: #{forward_features.1} parent=11 // pred_fallthru
          _
        // Predicated region
        $region149: #{forward_features.1} parent=11 // pred_check
          %p2124 = pneg %p943
        $region150: #{forward_features.1} parent=11 // pred_check_branch
          %2126 = sbr.rel (%p2124) target = $region152
        $region151: #{forward_features.1} parent=11 // pred_region
          _
        $region152: #{forward_features.1} parent=11 // pred_fallthru
          _
        // Predicated region
        $region153: #{forward_features.1} parent=11 // pred_check
          %p2127 = pneg %p964
        $region154: #{forward_features.1} parent=11 // pred_check_branch
          %2129 = sbr.rel (%p2127) target = $region156
        $region155: #{forward_features.1} parent=11 // pred_region
          %2131 = vsyncadd [#allocation26], 0
          %s2133 = sshll.u32 %s73, 4
          %s2134 = int_to_ptr.hbm [resolvable:$true] %s2133
          %s2135 = sshll.u32 [#allocation25], 4
          %s2136 = int_to_ptr.vmem [resolvable:$true] %s2135
          %2138 = dma.hbm_to_vmem [thread:$0]  %s2134, 16, %s2136, [#allocation26]
        $region156: #{forward_features.1} parent=11 // pred_fallthru
          _
        // Predicated region
        $region157: #{forward_features.1} parent=11 // pred_check
          %p2139 = pneg %p985
        $region158: #{forward_features.1} parent=11 // pred_check_branch
          %2141 = sbr.rel (%p2139) target = $region160
        $region159: #{forward_features.1} parent=11 // pred_region
          _
        $region160: #{forward_features.1} parent=11 // pred_fallthru
          _
        // Predicated region
        $region161: #{forward_features.1} parent=11 // pred_check
          %p2142 = pneg %p1006
        $region162: #{forward_features.1} parent=11 // pred_check_branch
          %2144 = sbr.rel (%p2142) target = $region164
        $region163: #{forward_features.1} parent=11 // pred_region
          %2146 = vsyncadd [#allocation26], 0
          %s2148 = sshll.u32 %s77, 4
          %s2149 = int_to_ptr.hbm [resolvable:$true] %s2148
          %s2150 = sshll.u32 [#allocation27], 4
          %s2151 = int_to_ptr.vmem [resolvable:$true] %s2150
          %2153 = dma.hbm_to_vmem [thread:$0]  %s2149, 16, %s2151, [#allocation26]
        $region164: #{forward_features.1} parent=11 // pred_fallthru
          _
        // Predicated region
        $region165: #{forward_features.1} parent=11 // pred_check
          %p2154 = pneg %p1027
        $region166: #{forward_features.1} parent=11 // pred_check_branch
          %2156 = sbr.rel (%p2154) target = $region168
        $region167: #{forward_features.1} parent=11 // pred_region
          _
        $region168: #{forward_features.1} parent=11 // pred_fallthru
          _
        // Predicated region
        $region169: #{forward_features.1} parent=11 // pred_check
          %p2157 = pneg %p1048
        $region170: #{forward_features.1} parent=11 // pred_check_branch
          %2159 = sbr.rel (%p2157) target = $region172
        $region171: #{forward_features.1} parent=11 // pred_region
          _
        $region172: #{forward_features.1} parent=11 // pred_fallthru
          _
        // Predicated region
        $region173: #{forward_features.1} parent=11 // pred_check
          %p2160 = pneg %p1069
        $region174: #{forward_features.1} parent=11 // pred_check_branch
          %2162 = sbr.rel (%p2160) target = $region176
        $region175: #{forward_features.1} parent=11 // pred_region
          _
        $region176: #{forward_features.1} parent=11 // pred_fallthru
          _
        // Predicated region
        $region177: #{forward_features.1} parent=11 // pred_check
          %p2163 = pneg %p1090
        $region178: #{forward_features.1} parent=11 // pred_check_branch
          %2165 = sbr.rel (%p2163) target = $region180
        $region179: #{forward_features.1} parent=11 // pred_region
          _
        $region180: #{forward_features.1} parent=11 // pred_fallthru
          _
        // Predicated region
        $region181: #{forward_features.1} parent=11 // pred_check
          %p2166 = pneg %p1111
        $region182: #{forward_features.1} parent=11 // pred_check_branch
          %2168 = sbr.rel (%p2166) target = $region184
        $region183: #{forward_features.1} parent=11 // pred_region
          %2170 = vsyncadd [#allocation29], 0
          %s2172 = sshll.u32 %s87, 4
          %s2173 = int_to_ptr.hbm [resolvable:$true] %s2172
          %s2174 = sshll.u32 [#allocation28], 4
          %s2175 = int_to_ptr.vmem [resolvable:$true] %s2174
          %2177 = dma.hbm_to_vmem [thread:$0]  %s2173, 16, %s2175, [#allocation29]
        $region184: #{forward_features.1} parent=11 // pred_fallthru
          _
        // Predicated region
        $region185: #{forward_features.1} parent=11 // pred_check
          %p2178 = pneg %p1132
        $region186: #{forward_features.1} parent=11 // pred_check_branch
          %2180 = sbr.rel (%p2178) target = $region188
        $region187: #{forward_features.1} parent=11 // pred_region
          %2182 = vsyncadd [#allocation29], 0
          %s2184 = sshll.u32 %s89, 4
          %s2185 = int_to_ptr.hbm [resolvable:$true] %s2184
          %s2186 = sshll.u32 [#allocation30], 4
          %s2187 = int_to_ptr.vmem [resolvable:$true] %s2186
          %2189 = dma.hbm_to_vmem [thread:$0]  %s2185, 16, %s2187, [#allocation29]
        $region188: #{forward_features.1} parent=11 // pred_fallthru
          _
        // Predicated region
        $region189: #{forward_features.1} parent=11 // pred_check
          %p2190 = pneg %p1153
        $region190: #{forward_features.1} parent=11 // pred_check_branch
          %2192 = sbr.rel (%p2190) target = $region192
        $region191: #{forward_features.1} parent=11 // pred_region
          _
        $region192: #{forward_features.1} parent=11 // pred_fallthru
          _
        // Predicated region
        $region193: #{forward_features.1} parent=11 // pred_check
          %p2193 = pneg %p1174
        $region194: #{forward_features.1} parent=11 // pred_check_branch
          %2195 = sbr.rel (%p2193) target = $region196
        $region195: #{forward_features.1} parent=11 // pred_region
          _
        $region196: #{forward_features.1} parent=11 // pred_fallthru
          _
        // Predicated region
        $region197: #{forward_features.1} parent=11 // pred_check
          %p2196 = pneg %p1195
        $region198: #{forward_features.1} parent=11 // pred_check_branch
          %2198 = sbr.rel (%p2196) target = $region200
        $region199: #{forward_features.1} parent=11 // pred_region
          _
        $region200: #{forward_features.1} parent=11 // pred_fallthru
          _
        // Predicated region
        $region201: #{forward_features.1} parent=11 // pred_check
          %p2199 = pneg %p1216
        $region202: #{forward_features.1} parent=11 // pred_check_branch
          %2201 = sbr.rel (%p2199) target = $region204
        $region203: #{forward_features.1} parent=11 // pred_region
          _
        $region204: #{forward_features.1} parent=11 // pred_fallthru
          _
        // Predicated region
        $region205: #{forward_features.1} parent=11 // pred_check
          %p2202 = pneg %p1237
        $region206: #{forward_features.1} parent=11 // pred_check_branch
          %2204 = sbr.rel (%p2202) target = $region208
        $region207: #{forward_features.1} parent=11 // pred_region
          _
        $region208: #{forward_features.1} parent=11 // pred_fallthru
          _
        // Predicated region
        $region209: #{forward_features.1} parent=11 // pred_check
          %p2205 = pneg %p1258
        $region210: #{forward_features.1} parent=11 // pred_check_branch
          %2207 = sbr.rel (%p2205) target = $region212
        $region211: #{forward_features.1} parent=11 // pred_region
          _
        $region212: #{forward_features.1} parent=11 // pred_fallthru
          _
        // Predicated region
        $region213: #{forward_features.1} parent=11 // pred_check
          %p2208 = pneg %p1279
        $region214: #{forward_features.1} parent=11 // pred_check_branch
          %2210 = sbr.rel (%p2208) target = $region216
        $region215: #{forward_features.1} parent=11 // pred_region
          _
        $region216: #{forward_features.1} parent=11 // pred_fallthru
          _
        // Predicated region
        $region217: #{forward_features.1} parent=11 // pred_check
          %p2211 = pneg %p1300
        $region218: #{forward_features.1} parent=11 // pred_check_branch
          %2213 = sbr.rel (%p2211) target = $region220
        $region219: #{forward_features.1} parent=11 // pred_region
          _
        $region220: #{forward_features.1} parent=11 // pred_fallthru
          _
        // Predicated region
        $region221: #{forward_features.1} parent=11 // pred_check
          %p2214 = pneg %p1321
        $region222: #{forward_features.1} parent=11 // pred_check_branch
          %2216 = sbr.rel (%p2214) target = $region224
        $region223: #{forward_features.1} parent=11 // pred_region
          %2218 = vsyncadd [#allocation32], 0
          %s2220 = sshll.u32 %s107, 4
          %s2221 = int_to_ptr.hbm [resolvable:$true] %s2220
          %s2222 = sshll.u32 [#allocation31], 4
          %s2223 = int_to_ptr.vmem [resolvable:$true] %s2222
          %2225 = dma.hbm_to_vmem [thread:$0]  %s2221, 16, %s2223, [#allocation32]
        $region224: #{forward_features.1} parent=11 // pred_fallthru
          _
        // Predicated region
        $region225: #{forward_features.1} parent=11 // pred_check
          %p2226 = pneg %p1342
        $region226: #{forward_features.1} parent=11 // pred_check_branch
          %2228 = sbr.rel (%p2226) target = $region228
        $region227: #{forward_features.1} parent=11 // pred_region
          %2230 = vsyncadd [#allocation32], 0
          %s2232 = sshll.u32 %s109, 4
          %s2233 = int_to_ptr.hbm [resolvable:$true] %s2232
          %s2234 = sshll.u32 [#allocation33], 4
          %s2235 = int_to_ptr.vmem [resolvable:$true] %s2234
          %2237 = dma.hbm_to_vmem [thread:$0]  %s2233, 16, %s2235, [#allocation32]
        $region228: #{forward_features.1} parent=11 // pred_fallthru
          _
        // Predicated region
        $region229: #{forward_features.1} parent=11 // pred_check
          %p2238 = pneg %p1363
        $region230: #{forward_features.1} parent=11 // pred_check_branch
          %2240 = sbr.rel (%p2238) target = $region232
        $region231: #{forward_features.1} parent=11 // pred_region
          %2242 = vsyncadd [#allocation35], 0
          %s2244 = sshll.u32 %s111, 4
          %s2245 = int_to_ptr.hbm [resolvable:$true] %s2244
          %s2246 = sshll.u32 [#allocation34], 4
          %s2247 = int_to_ptr.vmem [resolvable:$true] %s2246
          %2249 = dma.hbm_to_vmem [thread:$0]  %s2245, 16, %s2247, [#allocation35]
        $region232: #{forward_features.1} parent=11 // pred_fallthru
          _
        // Predicated region
        $region233: #{forward_features.1} parent=11 // pred_check
          %p2250 = pneg %p1384
        $region234: #{forward_features.1} parent=11 // pred_check_branch
          %2252 = sbr.rel (%p2250) target = $region236
        $region235: #{forward_features.1} parent=11 // pred_region
          _
        $region236: #{forward_features.1} parent=11 // pred_fallthru
          _
        // Predicated region
        $region237: #{forward_features.1} parent=11 // pred_check
          %p2253 = pneg %p1405
        $region238: #{forward_features.1} parent=11 // pred_check_branch
          %2255 = sbr.rel (%p2253) target = $region240
        $region239: #{forward_features.1} parent=11 // pred_region
          _
        $region240: #{forward_features.1} parent=11 // pred_fallthru
          _
        // Predicated region
        $region241: #{forward_features.1} parent=11 // pred_check
          %p2256 = pneg %p1426
        $region242: #{forward_features.1} parent=11 // pred_check_branch
          %2258 = sbr.rel (%p2256) target = $region244
        $region243: #{forward_features.1} parent=11 // pred_region
          _
        $region244: #{forward_features.1} parent=11 // pred_fallthru
          _
        // Predicated region
        $region245: #{forward_features.1} parent=11 // pred_check
          %p2259 = pneg %p1447
        $region246: #{forward_features.1} parent=11 // pred_check_branch
          %2261 = sbr.rel (%p2259) target = $region248
        $region247: #{forward_features.1} parent=11 // pred_region
          %2263 = vsyncadd [#allocation35], 0
          %s2265 = sshll.u32 %s119, 4
          %s2266 = int_to_ptr.hbm [resolvable:$true] %s2265
          %s2267 = sshll.u32 [#allocation36], 4
          %s2268 = int_to_ptr.vmem [resolvable:$true] %s2267
          %2270 = dma.hbm_to_vmem [thread:$0]  %s2266, 16, %s2268, [#allocation35]
        $region248: #{forward_features.1} parent=11 // pred_fallthru
          _
        // Predicated region
        $region249: #{forward_features.1} parent=11 // pred_check
          %p2271 = pneg %p1468
        $region250: #{forward_features.1} parent=11 // pred_check_branch
          %2273 = sbr.rel (%p2271) target = $region252
        $region251: #{forward_features.1} parent=11 // pred_region
          %2275 = vsyncadd [#allocation38], 0
          %s2277 = sshll.u32 %s121, 4
          %s2278 = int_to_ptr.hbm [resolvable:$true] %s2277
          %s2279 = sshll.u32 [#allocation37], 4
          %s2280 = int_to_ptr.vmem [resolvable:$true] %s2279
          %2282 = dma.hbm_to_vmem [thread:$0]  %s2278, 16, %s2280, [#allocation38]
        $region252: #{forward_features.1} parent=11 // pred_fallthru
          _
        // Predicated region
        $region253: #{forward_features.1} parent=11 // pred_check
          %p2283 = pneg %p1489
        $region254: #{forward_features.1} parent=11 // pred_check_branch
          %2285 = sbr.rel (%p2283) target = $region256
        $region255: #{forward_features.1} parent=11 // pred_region
          %2287 = vsyncadd [#allocation38], 0
          %s2289 = sshll.u32 %s123, 4
          %s2290 = int_to_ptr.hbm [resolvable:$true] %s2289
          %s2291 = sshll.u32 [#allocation39], 4
          %s2292 = int_to_ptr.vmem [resolvable:$true] %s2291
          %2294 = dma.hbm_to_vmem [thread:$0]  %s2290, 16, %s2292, [#allocation38]
        $region256: #{forward_features.1} parent=11 // pred_fallthru
          _
        // Predicated region
        $region257: #{forward_features.1} parent=11 // pred_check
          %p2295 = pneg %p1510
        $region258: #{forward_features.1} parent=11 // pred_check_branch
          %2297 = sbr.rel (%p2295) target = $region260
        $region259: #{forward_features.1} parent=11 // pred_region
          _
        $region260: #{forward_features.1} parent=11 // pred_fallthru
          _
        // Predicated region
        $region261: #{forward_features.1} parent=11 // pred_check
          %p2298 = pneg %p1531
        $region262: #{forward_features.1} parent=11 // pred_check_branch
          %2300 = sbr.rel (%p2298) target = $region264
        $region263: #{forward_features.1} parent=11 // pred_region
          _
        $region264: #{forward_features.1} parent=11 // pred_fallthru
          _
        // Predicated region
        $region265: #{forward_features.1} parent=11 // pred_check
          %p2301 = pneg %p1552
        $region266: #{forward_features.1} parent=11 // pred_check_branch
          %2303 = sbr.rel (%p2301) target = $region268
        $region267: #{forward_features.1} parent=11 // pred_region
          _
        $region268: #{forward_features.1} parent=11 // pred_fallthru
          _
        // Predicated region
        $region269: #{forward_features.1} parent=11 // pred_check
          %p2304 = pneg %p1573
        $region270: #{forward_features.1} parent=11 // pred_check_branch
          %2306 = sbr.rel (%p2304) target = $region272
        $region271: #{forward_features.1} parent=11 // pred_region
          _
        $region272: #{forward_features.1} parent=11 // pred_fallthru
          _
        // Predicated region
        $region273: #{forward_features.1} parent=11 // pred_check
          %p2307 = pneg %p1594
        $region274: #{forward_features.1} parent=11 // pred_check_branch
          %2309 = sbr.rel (%p2307) target = $region276
        $region275: #{forward_features.1} parent=11 // pred_region
          _
        $region276: #{forward_features.1} parent=11 // pred_fallthru
          _
        // Predicated region
        $region277: #{forward_features.1} parent=11 // pred_check
          %p2310 = pneg %p1615
        $region278: #{forward_features.1} parent=11 // pred_check_branch
          %2312 = sbr.rel (%p2310) target = $region280
        $region279: #{forward_features.1} parent=11 // pred_region
          _
        $region280: #{forward_features.1} parent=11 // pred_fallthru
          _
        // Predicated region
        $region281: #{forward_features.1} parent=11 // pred_check
          %p2313 = pneg %p1636
        $region282: #{forward_features.1} parent=11 // pred_check_branch
          %2315 = sbr.rel (%p2313) target = $region284
        $region283: #{forward_features.1} parent=11 // pred_region
          _
        $region284: #{forward_features.1} parent=11 // pred_fallthru
          _
        // Predicated region
        $region285: #{forward_features.1} parent=11 // pred_check
          %p2316 = pneg %p1657
        $region286: #{forward_features.1} parent=11 // pred_check_branch
          %2318 = sbr.rel (%p2316) target = $region288
        $region287: #{forward_features.1} parent=11 // pred_region
          _
        $region288: #{forward_features.1} parent=11 // pred_fallthru
          _
        // Predicated region
        $region289: #{forward_features.1} parent=11 // pred_check
          %p2319 = pneg %p1678
        $region290: #{forward_features.1} parent=11 // pred_check_branch
          %2321 = sbr.rel (%p2319) target = $region292
        $region291: #{forward_features.1} parent=11 // pred_region
          %2323 = vsyncadd [#allocation41], 0
          %s2325 = sshll.u32 %s141, 4
          %s2326 = int_to_ptr.hbm [resolvable:$true] %s2325
          %s2327 = sshll.u32 [#allocation40], 4
          %s2328 = int_to_ptr.vmem [resolvable:$true] %s2327
          %2330 = dma.hbm_to_vmem [thread:$0]  %s2326, 16, %s2328, [#allocation41]
        $region292: #{forward_features.1} parent=11 // pred_fallthru
          _
        // Predicated region
        $region293: #{forward_features.1} parent=11 // pred_check
          %p2331 = pneg %p1699
        $region294: #{forward_features.1} parent=11 // pred_check_branch
          %2333 = sbr.rel (%p2331) target = $region296
        $region295: #{forward_features.1} parent=11 // pred_region
          %2335 = vsyncadd [#allocation41], 0
          %s2337 = sshll.u32 %s143, 4
          %s2338 = int_to_ptr.hbm [resolvable:$true] %s2337
          %s2339 = sshll.u32 [#allocation42], 4
          %s2340 = int_to_ptr.vmem [resolvable:$true] %s2339
          %2342 = dma.hbm_to_vmem [thread:$0]  %s2338, 16, %s2340, [#allocation41]
        $region296: #{forward_features.1} parent=11 // pred_fallthru
          _
        // Predicated region
        $region297: #{forward_features.1} parent=11 // pred_check
          %p2343 = pneg %p1720
        $region298: #{forward_features.1} parent=11 // pred_check_branch
          %2345 = sbr.rel (%p2343) target = $region300
        $region299: #{forward_features.1} parent=11 // pred_region
          %2347 = vsyncadd [#allocation44], 0
          %s2349 = sshll.u32 %s145, 4
          %s2350 = int_to_ptr.hbm [resolvable:$true] %s2349
          %s2351 = sshll.u32 [#allocation43], 4
          %s2352 = int_to_ptr.vmem [resolvable:$true] %s2351
          %2354 = dma.hbm_to_vmem [thread:$0]  %s2350, 16, %s2352, [#allocation44]
        $region300: #{forward_features.1} parent=11 // pred_fallthru
          _
        // Predicated region
        $region301: #{forward_features.1} parent=11 // pred_check
          %p2355 = pneg %p1741
        $region302: #{forward_features.1} parent=11 // pred_check_branch
          %2357 = sbr.rel (%p2355) target = $region304
        $region303: #{forward_features.1} parent=11 // pred_region
          _
        $region304: #{forward_features.1} parent=11 // pred_fallthru
          _
        // Predicated region
        $region305: #{forward_features.1} parent=11 // pred_check
          %p2358 = pneg %p1762
        $region306: #{forward_features.1} parent=11 // pred_check_branch
          %2360 = sbr.rel (%p2358) target = $region308
        $region307: #{forward_features.1} parent=11 // pred_region
          %2362 = vsyncadd [#allocation44], 0
          %s2364 = sshll.u32 %s149, 4
          %s2365 = int_to_ptr.hbm [resolvable:$true] %s2364
          %s2366 = sshll.u32 [#allocation45], 4
          %s2367 = int_to_ptr.vmem [resolvable:$true] %s2366
          %2369 = dma.hbm_to_vmem [thread:$0]  %s2365, 32, %s2367, [#allocation44]
        $region308: #{forward_features.1} parent=11 // pred_fallthru
          _
        // Predicated region
        $region309: #{forward_features.1} parent=11 // pred_check
          %p2370 = pneg %p1783
        $region310: #{forward_features.1} parent=11 // pred_check_branch
          %2372 = sbr.rel (%p2370) target = $region312
        $region311: #{forward_features.1} parent=11 // pred_region
          _
        $region312: #{forward_features.1} parent=11 // pred_fallthru
          _
        // Predicated region
        $region313: #{forward_features.1} parent=11 // pred_check
          %p2373 = pneg %p1804
        $region314: #{forward_features.1} parent=11 // pred_check_branch
          %2375 = sbr.rel (%p2373) target = $region316
        $region315: #{forward_features.1} parent=11 // pred_region
          %2377 = vsyncadd [#allocation47], 0
          %s2379 = sshll.u32 %s153, 4
          %s2380 = int_to_ptr.hbm [resolvable:$true] %s2379
          %s2381 = sshll.u32 [#allocation46], 4
          %s2382 = int_to_ptr.vmem [resolvable:$true] %s2381
          %2384 = dma.hbm_to_vmem [thread:$0]  %s2380, 16, %s2382, [#allocation47]
        $region316: #{forward_features.1} parent=11 // pred_fallthru
          _
        // Predicated region
        $region317: #{forward_features.1} parent=11 // pred_check
          %p2385 = pneg %p1825
        $region318: #{forward_features.1} parent=11 // pred_check_branch
          %2387 = sbr.rel (%p2385) target = $region320
        $region319: #{forward_features.1} parent=11 // pred_region
          %2389 = vsyncadd [#allocation47], 0
          %s2391 = sshll.u32 %s155, 4
          %s2392 = int_to_ptr.hbm [resolvable:$true] %s2391
          %s2393 = sshll.u32 [#allocation48], 4
          %s2394 = int_to_ptr.vmem [resolvable:$true] %s2393
          %2396 = dma.hbm_to_vmem [thread:$0]  %s2392, 16, %s2394, [#allocation47]
        $region320: #{forward_features.1} parent=11 // pred_fallthru
          _
        // Predicated region
        $region321: #{forward_features.1} parent=11 // pred_check
          %p2397 = pneg %p1846
        $region322: #{forward_features.1} parent=11 // pred_check_branch
          %2399 = sbr.rel (%p2397) target = $region324
        $region323: #{forward_features.1} parent=11 // pred_region
          %2401 = vsyncadd [#allocation50], 0
          %s2403 = sshll.u32 %s157, 4
          %s2404 = int_to_ptr.hbm [resolvable:$true] %s2403
          %s2405 = sshll.u32 [#allocation49], 4
          %s2406 = int_to_ptr.vmem [resolvable:$true] %s2405
          %2408 = dma.hbm_to_vmem [thread:$0]  %s2404, 16, %s2406, [#allocation50]
        $region324: #{forward_features.1} parent=11 // pred_fallthru
          _
      $region12: #{forward_features.1} parent=5 // pred_fallthru
        _
      %p2409 = scmp.lt.s32.totalorder %s182, 2
      // Predicated region
      $region325: #{forward_features.1} parent=5 // pred_check
        %p2410 = pneg %p2409
      $region326: #{forward_features.1} parent=5 // pred_check_branch
        %2412 = sbr.rel (%p2410) target = $region328
      $region327: #{forward_features.1} parent=5 // pred_region
        // Predicated region
        $region329: #{forward_features.1} parent=327 // pred_check
          %p2413 = pneg %p202
        $region330: #{forward_features.1} parent=327 // pred_check_branch
          %2415 = sbr.rel (%p2413) target = $region332
        $region331: #{forward_features.1} parent=327 // pred_region
          %p2416 = scmp.lt.s32.totalorder %s182, 1
          %s2417 = scalar_select %p2416, %s182, 1
          %s2418 = smul.addr %s2417, 2
          %s2419 = smul.addr %s2418, 8
          %s2420 = scalar_lea.vmem %s1, %s2419
        $region332: #{forward_features.1} parent=327 // pred_fallthru
          _
      $region328: #{forward_features.1} parent=5 // pred_fallthru
        _
      %p2421 = scmp.le.s32.totalorder 1, %s182
      %p2422 = scmp.lt.s32.totalorder %s182, 3
      %p2423 = pnand %p2421, %p2422
      %p2424 = pneg %p2423
      // Predicated region
      $region333: #{forward_features.1} parent=5 // pred_check
        _
      $region334: #{forward_features.1} parent=5 // pred_check_branch
        %2426 = sbr.rel (%p2423) target = $region336
      $region335: #{forward_features.1} parent=5 // pred_region
        %s2427 = ssub.s32 %s182, 1
        // Predicated region
        $region337: #{forward_features.1} parent=335 // pred_check
          %p2428 = pneg %p250
        $region338: #{forward_features.1} parent=335 // pred_check_branch
          %2430 = sbr.rel (%p2428) target = $region340
        $region339: #{forward_features.1} parent=335 // pred_region
          %2432 = dma.done [#allocation3], 16
        $region340: #{forward_features.1} parent=335 // pred_fallthru
          _
        // Predicated region
        $region341: #{forward_features.1} parent=335 // pred_check
          %p2433 = pneg %p271
        $region342: #{forward_features.1} parent=335 // pred_check_branch
          %2435 = sbr.rel (%p2433) target = $region344
        $region343: #{forward_features.1} parent=335 // pred_region
          %2437 = dma.done [#allocation5], 16
        $region344: #{forward_features.1} parent=335 // pred_fallthru
          _
        // Predicated region
        $region345: #{forward_features.1} parent=335 // pred_check
          %p2438 = pneg %p292
        $region346: #{forward_features.1} parent=335 // pred_check_branch
          %2440 = sbr.rel (%p2438) target = $region348
        $region347: #{forward_features.1} parent=335 // pred_region
          %2442 = dma.done [#allocation5], 16
        $region348: #{forward_features.1} parent=335 // pred_fallthru
          _
        // Predicated region
        $region349: #{forward_features.1} parent=335 // pred_check
          %p2443 = pneg %p313
        $region350: #{forward_features.1} parent=335 // pred_check_branch
          %2445 = sbr.rel (%p2443) target = $region352
        $region351: #{forward_features.1} parent=335 // pred_region
          %2447 = dma.done [#allocation8], 16
        $region352: #{forward_features.1} parent=335 // pred_fallthru
          _
        // Predicated region
        $region353: #{forward_features.1} parent=335 // pred_check
          %p2448 = pneg %p334
        $region354: #{forward_features.1} parent=335 // pred_check_branch
          %2450 = sbr.rel (%p2448) target = $region356
        $region355: #{forward_features.1} parent=335 // pred_region
          %2452 = dma.done [#allocation8], 16
        $region356: #{forward_features.1} parent=335 // pred_fallthru
          _
        // Predicated region
        $region357: #{forward_features.1} parent=335 // pred_check
          %p2453 = pneg %p523
        $region358: #{forward_features.1} parent=335 // pred_check_branch
          %2455 = sbr.rel (%p2453) target = $region360
        $region359: #{forward_features.1} parent=335 // pred_region
          %2457 = dma.done [#allocation11], 16
        $region360: #{forward_features.1} parent=335 // pred_fallthru
          _
        // Predicated region
        $region361: #{forward_features.1} parent=335 // pred_check
          %p2458 = pneg %p544
        $region362: #{forward_features.1} parent=335 // pred_check_branch
          %2460 = sbr.rel (%p2458) target = $region364
        $region363: #{forward_features.1} parent=335 // pred_region
          %2462 = dma.done [#allocation11], 16
        $region364: #{forward_features.1} parent=335 // pred_fallthru
          _
        // Predicated region
        $region365: #{forward_features.1} parent=335 // pred_check
          %p2463 = pneg %p565
        $region366: #{forward_features.1} parent=335 // pred_check_branch
          %2465 = sbr.rel (%p2463) target = $region368
        $region367: #{forward_features.1} parent=335 // pred_region
          %2467 = dma.done [#allocation14], 16
        $region368: #{forward_features.1} parent=335 // pred_fallthru
          _
        // Predicated region
        $region369: #{forward_features.1} parent=335 // pred_check
          %p2468 = pneg %p607
        $region370: #{forward_features.1} parent=335 // pred_check_branch
          %2470 = sbr.rel (%p2468) target = $region372
        $region371: #{forward_features.1} parent=335 // pred_region
          %2472 = dma.done [#allocation14], 16
        $region372: #{forward_features.1} parent=335 // pred_fallthru
          _
        // Predicated region
        $region373: #{forward_features.1} parent=335 // pred_check
          %p2473 = pneg %p649
        $region374: #{forward_features.1} parent=335 // pred_check_branch
          %2475 = sbr.rel (%p2473) target = $region376
        $region375: #{forward_features.1} parent=335 // pred_region
          %2477 = dma.done [#allocation17], 16
        $region376: #{forward_features.1} parent=335 // pred_fallthru
          _
        // Predicated region
        $region377: #{forward_features.1} parent=335 // pred_check
          %p2478 = pneg %p670
        $region378: #{forward_features.1} parent=335 // pred_check_branch
          %2480 = sbr.rel (%p2478) target = $region380
        $region379: #{forward_features.1} parent=335 // pred_region
          %2482 = dma.done [#allocation17], 16
        $region380: #{forward_features.1} parent=335 // pred_fallthru
          _
        // Predicated region
        $region381: #{forward_features.1} parent=335 // pred_check
          %p2483 = pneg %p691
        $region382: #{forward_features.1} parent=335 // pred_check_branch
          %2485 = sbr.rel (%p2483) target = $region384
        $region383: #{forward_features.1} parent=335 // pred_region
          %2487 = dma.done [#allocation20], 16
        $region384: #{forward_features.1} parent=335 // pred_fallthru
          _
        // Predicated region
        $region385: #{forward_features.1} parent=335 // pred_check
          %p2488 = pneg %p880
        $region386: #{forward_features.1} parent=335 // pred_check_branch
          %2490 = sbr.rel (%p2488) target = $region388
        $region387: #{forward_features.1} parent=335 // pred_region
          %2492 = dma.done [#allocation20], 16
        $region388: #{forward_features.1} parent=335 // pred_fallthru
          _
        // Predicated region
        $region389: #{forward_features.1} parent=335 // pred_check
          %p2493 = pneg %p901
        $region390: #{forward_features.1} parent=335 // pred_check_branch
          %2495 = sbr.rel (%p2493) target = $region392
        $region391: #{forward_features.1} parent=335 // pred_region
          %2497 = dma.done [#allocation23], 16
        $region392: #{forward_features.1} parent=335 // pred_fallthru
          _
        // Predicated region
        $region393: #{forward_features.1} parent=335 // pred_check
          %p2498 = pneg %p922
        $region394: #{forward_features.1} parent=335 // pred_check_branch
          %2500 = sbr.rel (%p2498) target = $region396
        $region395: #{forward_features.1} parent=335 // pred_region
          %2502 = dma.done [#allocation23], 16
        $region396: #{forward_features.1} parent=335 // pred_fallthru
          _
        // Predicated region
        $region397: #{forward_features.1} parent=335 // pred_check
          %p2503 = pneg %p964
        $region398: #{forward_features.1} parent=335 // pred_check_branch
          %2505 = sbr.rel (%p2503) target = $region400
        $region399: #{forward_features.1} parent=335 // pred_region
          %2507 = dma.done [#allocation26], 16
        $region400: #{forward_features.1} parent=335 // pred_fallthru
          _
        // Predicated region
        $region401: #{forward_features.1} parent=335 // pred_check
          %p2508 = pneg %p1006
        $region402: #{forward_features.1} parent=335 // pred_check_branch
          %2510 = sbr.rel (%p2508) target = $region404
        $region403: #{forward_features.1} parent=335 // pred_region
          %2512 = dma.done [#allocation26], 16
        $region404: #{forward_features.1} parent=335 // pred_fallthru
          _
        // Predicated region
        $region405: #{forward_features.1} parent=335 // pred_check
          %p2513 = pneg %p1111
        $region406: #{forward_features.1} parent=335 // pred_check_branch
          %2515 = sbr.rel (%p2513) target = $region408
        $region407: #{forward_features.1} parent=335 // pred_region
          %2517 = dma.done [#allocation29], 16
        $region408: #{forward_features.1} parent=335 // pred_fallthru
          _
        // Predicated region
        $region409: #{forward_features.1} parent=335 // pred_check
          %p2518 = pneg %p1132
        $region410: #{forward_features.1} parent=335 // pred_check_branch
          %2520 = sbr.rel (%p2518) target = $region412
        $region411: #{forward_features.1} parent=335 // pred_region
          %2522 = dma.done [#allocation29], 16
        $region412: #{forward_features.1} parent=335 // pred_fallthru
          _
        // Predicated region
        $region413: #{forward_features.1} parent=335 // pred_check
          %p2523 = pneg %p1321
        $region414: #{forward_features.1} parent=335 // pred_check_branch
          %2525 = sbr.rel (%p2523) target = $region416
        $region415: #{forward_features.1} parent=335 // pred_region
          %2527 = dma.done [#allocation32], 16
        $region416: #{forward_features.1} parent=335 // pred_fallthru
          _
        // Predicated region
        $region417: #{forward_features.1} parent=335 // pred_check
          %p2528 = pneg %p1342
        $region418: #{forward_features.1} parent=335 // pred_check_branch
          %2530 = sbr.rel (%p2528) target = $region420
        $region419: #{forward_features.1} parent=335 // pred_region
          %2532 = dma.done [#allocation32], 16
        $region420: #{forward_features.1} parent=335 // pred_fallthru
          _
        // Predicated region
        $region421: #{forward_features.1} parent=335 // pred_check
          %p2533 = pneg %p1363
        $region422: #{forward_features.1} parent=335 // pred_check_branch
          %2535 = sbr.rel (%p2533) target = $region424
        $region423: #{forward_features.1} parent=335 // pred_region
          %2537 = dma.done [#allocation35], 16
        $region424: #{forward_features.1} parent=335 // pred_fallthru
          _
        // Predicated region
        $region425: #{forward_features.1} parent=335 // pred_check
          %p2538 = pneg %p1447
        $region426: #{forward_features.1} parent=335 // pred_check_branch
          %2540 = sbr.rel (%p2538) target = $region428
        $region427: #{forward_features.1} parent=335 // pred_region
          %2542 = dma.done [#allocation35], 16
        $region428: #{forward_features.1} parent=335 // pred_fallthru
          _
        // Predicated region
        $region429: #{forward_features.1} parent=335 // pred_check
          %p2543 = pneg %p1468
        $region430: #{forward_features.1} parent=335 // pred_check_branch
          %2545 = sbr.rel (%p2543) target = $region432
        $region431: #{forward_features.1} parent=335 // pred_region
          %2547 = dma.done [#allocation38], 16
        $region432: #{forward_features.1} parent=335 // pred_fallthru
          _
        // Predicated region
        $region433: #{forward_features.1} parent=335 // pred_check
          %p2548 = pneg %p1489
        $region434: #{forward_features.1} parent=335 // pred_check_branch
          %2550 = sbr.rel (%p2548) target = $region436
        $region435: #{forward_features.1} parent=335 // pred_region
          %2552 = dma.done [#allocation38], 16
        $region436: #{forward_features.1} parent=335 // pred_fallthru
          _
        // Predicated region
        $region437: #{forward_features.1} parent=335 // pred_check
          %p2553 = pneg %p1678
        $region438: #{forward_features.1} parent=335 // pred_check_branch
          %2555 = sbr.rel (%p2553) target = $region440
        $region439: #{forward_features.1} parent=335 // pred_region
          %2557 = dma.done [#allocation41], 16
        $region440: #{forward_features.1} parent=335 // pred_fallthru
          _
        // Predicated region
        $region441: #{forward_features.1} parent=335 // pred_check
          %p2558 = pneg %p1699
        $region442: #{forward_features.1} parent=335 // pred_check_branch
          %2560 = sbr.rel (%p2558) target = $region444
        $region443: #{forward_features.1} parent=335 // pred_region
          %2562 = dma.done [#allocation41], 16
        $region444: #{forward_features.1} parent=335 // pred_fallthru
          _
        // Predicated region
        $region445: #{forward_features.1} parent=335 // pred_check
          %p2563 = pneg %p1720
        $region446: #{forward_features.1} parent=335 // pred_check_branch
          %2565 = sbr.rel (%p2563) target = $region448
        $region447: #{forward_features.1} parent=335 // pred_region
          %2567 = dma.done [#allocation44], 16
        $region448: #{forward_features.1} parent=335 // pred_fallthru
          _
        // Predicated region
        $region449: #{forward_features.1} parent=335 // pred_check
          %p2568 = pneg %p1762
        $region450: #{forward_features.1} parent=335 // pred_check_branch
          %2570 = sbr.rel (%p2568) target = $region452
        $region451: #{forward_features.1} parent=335 // pred_region
          %2572 = dma.done [#allocation44], 32
        $region452: #{forward_features.1} parent=335 // pred_fallthru
          _
        // Predicated region
        $region453: #{forward_features.1} parent=335 // pred_check
          %p2573 = pneg %p1804
        $region454: #{forward_features.1} parent=335 // pred_check_branch
          %2575 = sbr.rel (%p2573) target = $region456
        $region455: #{forward_features.1} parent=335 // pred_region
          %2577 = dma.done [#allocation47], 16
        $region456: #{forward_features.1} parent=335 // pred_fallthru
          _
        // Predicated region
        $region457: #{forward_features.1} parent=335 // pred_check
          %p2578 = pneg %p1825
        $region458: #{forward_features.1} parent=335 // pred_check_branch
          %2580 = sbr.rel (%p2578) target = $region460
        $region459: #{forward_features.1} parent=335 // pred_region
          %2582 = dma.done [#allocation47], 16
        $region460: #{forward_features.1} parent=335 // pred_fallthru
          _
        // Predicated region
        $region461: #{forward_features.1} parent=335 // pred_check
          %p2583 = pneg %p1846
        $region462: #{forward_features.1} parent=335 // pred_check_branch
          %2585 = sbr.rel (%p2583) target = $region464
        $region463: #{forward_features.1} parent=335 // pred_region
          %2587 = dma.done [#allocation50], 16
        $region464: #{forward_features.1} parent=335 // pred_fallthru
          _
        %p2588 = scmp.lt.s32.totalorder %s187, 1
        %s2589 = scalar_select %p2588, %s187, 1
        %s2590 = smul.addr %s2589, 2
        %s2591 = smul.addr %s2590, 8
        %s2592 = scalar_lea.vmem %s1, %s2591
        %p2593 = pneg %p208
        %p2594 = pneg %p205
        %p2595 = pneg %p229
        %p2596 = pneg %p226
        %p2597 = pneg %p250
        %p2598 = pneg %p247
        %p2599 = pneg %p271
        %p2600 = pneg %p268
        %p2601 = pneg %p292
        %p2602 = pneg %p289
        %p2603 = pneg %p313
        %p2604 = pneg %p310
        %p2605 = pneg %p334
        %p2606 = pneg %p331
        %p2607 = pneg %p355
        %p2608 = pneg %p352
        %p2609 = pneg %p376
        %p2610 = pneg %p373
        %p2611 = pneg %p397
        %p2612 = pneg %p394
        %p2613 = pneg %p418
        %p2614 = pneg %p415
        %p2615 = pneg %p439
        %p2616 = pneg %p436
        %p2617 = pneg %p460
        %p2618 = pneg %p457
        %p2619 = pneg %p481
        %p2620 = pneg %p478
        %p2621 = pneg %p502
        %p2622 = pneg %p499
        %p2623 = pneg %p523
        %p2624 = pneg %p520
        %p2625 = pneg %p544
        %p2626 = pneg %p541
        %p2627 = pneg %p565
        %p2628 = pneg %p562
        %p2629 = pneg %p586
        %p2630 = pneg %p583
        %p2631 = pneg %p607
        %p2632 = pneg %p604
        %p2633 = pneg %p628
        %p2634 = pneg %p625
        %p2635 = pneg %p649
        %p2636 = pneg %p646
        %p2637 = pneg %p670
        %p2638 = pneg %p667
        %p2639 = pneg %p691
        %p2640 = pneg %p688
        %p2641 = pneg %p712
        %p2642 = pneg %p709
        %p2643 = pneg %p733
        %p2644 = pneg %p730
        %p2645 = pneg %p754
        %p2646 = pneg %p751
        %p2647 = pneg %p775
        %p2648 = pneg %p772
        %p2649 = pneg %p796
        %p2650 = pneg %p793
        %p2651 = pneg %p817
        %p2652 = pneg %p814
        %p2653 = pneg %p838
        %p2654 = pneg %p835
        %p2655 = pneg %p859
        %p2656 = pneg %p856
        %p2657 = pneg %p880
        %p2658 = pneg %p877
        %p2659 = pneg %p901
        %p2660 = pneg %p898
        %p2661 = pneg %p922
        %p2662 = pneg %p919
        %p2663 = pneg %p943
        %p2664 = pneg %p940
        %p2665 = pneg %p964
        %p2666 = pneg %p961
        %p2667 = pneg %p985
        %p2668 = pneg %p982
        %p2669 = pneg %p1006
        %p2670 = pneg %p1003
        %p2671 = pneg %p1027
        %p2672 = pneg %p1024
        %p2673 = pneg %p1048
        %p2674 = pneg %p1045
        %p2675 = pneg %p1069
        %p2676 = pneg %p1066
        %p2677 = pneg %p1090
        %p2678 = pneg %p1087
        %p2679 = pneg %p1111
        %p2680 = pneg %p1108
        %p2681 = pneg %p1132
        %p2682 = pneg %p1129
        %p2683 = pneg %p1153
        %p2684 = pneg %p1150
        %p2685 = pneg %p1174
        %p2686 = pneg %p1171
        %p2687 = pneg %p1195
        %p2688 = pneg %p1192
        %p2689 = pneg %p1216
        %p2690 = pneg %p1213
        %p2691 = pneg %p1237
        %p2692 = pneg %p1234
        %p2693 = pneg %p1258
        %p2694 = pneg %p1255
        %p2695 = pneg %p1279
        %p2696 = pneg %p1276
        %p2697 = pneg %p1300
        %p2698 = pneg %p1297
        %p2699 = pneg %p1321
        %p2700 = pneg %p1318
        %p2701 = pneg %p1342
        %p2702 = pneg %p1339
        %p2703 = pneg %p1363
        %p2704 = pneg %p1360
        %p2705 = pneg %p1384
        %p2706 = pneg %p1381
        %p2707 = pneg %p1405
        %p2708 = pneg %p1402
        %p2709 = pneg %p1426
        %p2710 = pneg %p1423
        %p2711 = pneg %p1447
        %p2712 = pneg %p1444
        %p2713 = pneg %p1468
        %p2714 = pneg %p1465
        %p2715 = pneg %p1489
        %p2716 = pneg %p1486
        %p2717 = pneg %p1510
        %p2718 = pneg %p1507
        %p2719 = pneg %p1531
        %p2720 = pneg %p1528
        %p2721 = pneg %p1552
        %p2722 = pneg %p1549
        %p2723 = pneg %p1573
        %p2724 = pneg %p1570
        %p2725 = pneg %p1594
        %p2726 = pneg %p1591
        %p2727 = pneg %p1615
        %p2728 = pneg %p1612
        %p2729 = pneg %p1636
        %p2730 = pneg %p1633
        %p2731 = pneg %p1657
        %p2732 = pneg %p1654
        %p2733 = pneg %p1678
        %p2734 = pneg %p1675
        %p2735 = pneg %p1699
        %p2736 = pneg %p1696
        %p2737 = pneg %p1720
        %p2738 = pneg %p1717
        %p2739 = pneg %p1741
        %p2740 = pneg %p1738
        %p2741 = pneg %p1762
        %p2742 = pneg %p1759
        %p2743 = pneg %p1783
        %p2744 = pneg %p1780
        %p2745 = pneg %p1804
        %p2746 = pneg %p1801
        %p2747 = pneg %p1825
        %p2748 = pneg %p1822
        %p2749 = pneg %p1846
        %p2750 = pneg %p1843
        %p2751 = pneg %p1872
        %p2752 = pneg %p1869
        %p2753 = scmp.lt.s32.totalorder %s187, 1
        %s2754 = scalar_select %p2753, %s187, 1
        %s2755 = smul.addr %s2754, 8
        %s2756 = scalar_lea.vmem %s159, %s2755
        %p2757 = scmp.lt.s32.totalorder %s187, 1
        %s2758 = scalar_select %p2757, %s187, 1
        %s2759 = smul.addr %s2758, 2
        %s2760 = smul.addr %s2759, 8
        %s2761 = scalar_lea.vmem %s1, %s2760
        %p2762 = scmp.lt.s32.totalorder %s187, 1
        %s2763 = scalar_select %p2762, %s187, 1
        %s2764 = smul.addr %s2763, 8
        %s2765 = scalar_lea.vmem %s159, %s2764
        %v2767 = vld [vmem:[%s2761] sm:$0xff]
        %v2768 = vld [vmem:[%s2761 + $0x8] sm:$0xff]
        %v2769 = vpack.c.bf16 %v2768, %v2767
        %v2770 = vld [vmem:[%s3] sm:$0xf]
        %v2771 = vld [vmem:[%s3 + $0x4] sm:$0xf]
        %v2772 = vld [vmem:[%s3 + $0x8] sm:$0xf]
        %v2773 = vld [vmem:[%s3 + $0xc] sm:$0xf]
        %v2774 = vld [vmem:[%s3 + $0x10] sm:$0xf]
        %v2775 = vld [vmem:[%s3 + $0x14] sm:$0xf]
        %v2776 = vld [vmem:[#allocation2] sm:$0x1]
        %v2778 = vperm.slane %v2776, 0
        %v2786 = vunpack.c.l.b16 %v2770
        %v2787 = vunpack.c.l.b16 %v2771
        %v2788 = vunpack.c.l.b16 %v2772
        %v2789 = vunpack.c.l.b16 %v2773
        %v2790 = vunpack.c.l.b16 %v2774
        %v2791 = vunpack.c.l.b16 %v2775
        %v2792 = vpack.c.b16 %v2787, %v2786
        %v2793 = vpack.c.b16 %v2789, %v2788
        %v2794 = vpack.c.b16 %v2791, %v2790
        %vm2798 = vcmask 392192
        %v2800 = vsel %vm2798, %v2769, 0
        %2802 = vmatpush.bf16.msra.mxu0 0
        %2803 = vmatpush.bf16.msra.mxu0 0
        %2804 = vmatpush.bf16.msra.mxu0 0
        %2805 = vmatpush.bf16.msra.mxu0 0
        %2806 = vmatpush.bf16.msra.mxu0 0
        %2807 = vmatpush.bf16.msra.mxu0 %v2794
        %2808 = vmatpush.bf16.msra.mxu0 %v2793
        %2809 = vmatpush.bf16.msra.mxu0 %v2792
        %2810 = vmatmul.bf16.gmra.mxu0 %v2800
        %v2811 = vpop.f32.mrf.mxu0
        %v2812 = vadd.f32 %v2778, %v2811
        %v2813 = vpop.f32.mrf.mxu0
        %v2814 = vadd.f32 %v2778, %v2813
        %2815 = vdwg.mxu0
        %v2816 = vld [vmem:[#allocation4] sm:$0x1]
        %v2817 = vld [vmem:[#allocation6] sm:$0x1]
        %vm2818 = vcmask 261120
        %v2819 = vsel %vm2818, %v2812, 0.0
        %2820 = vadd.xlane.f32.xlu0 %v2819
        %v2821 = vpop.xlane.xlu0 %2820
        %v2822 = vsel %vm2818, %v2814, 0.0
        %2823 = vadd.xlane.f32.xlu0 %v2822
        %v2824 = vpop.xlane.xlu0 %2823
        %v2825 = vrcp.pop 32.0
        %v2826 = vmul.f32 32.0, %v2825
        %v2827 = vsub.f32 1.0, %v2826
        %v2828 = vmul.f32 %v2825, %v2827
        %v2829 = vadd.f32 %v2825, %v2828
        %vm2830 = vweird.f32 %v2825
        %v2831 = vsel %vm2830, %v2825, %v2829
        %v2832 = vmul.f32 %v2821, %v2831
        %v2833 = vmul.f32 %v2824, %v2831
        %v2834 = vsub.f32 %v2812, %v2832
        %v2835 = vsub.f32 %v2814, %v2833
        %v2836 = vmul.f32 %v2834, %v2834
        %v2837 = vmul.f32 %v2835, %v2835
        %v2838 = vsel %vm2818, %v2836, 0.0
        %2839 = vadd.xlane.f32.xlu0 %v2838
        %v2840 = vpop.xlane.xlu0 %2839
        %v2841 = vsel %vm2818, %v2837, 0.0
        %2842 = vadd.xlane.f32.xlu0 %v2841
        %v2843 = vpop.xlane.xlu0 %2842
        %v2844 = vmul.f32 %v2840, %v2831
        %v2845 = vmul.f32 %v2843, %v2831
        %v2846 = vadd.f32 %v2844, 1e-05
        %v2847 = vadd.f32 %v2845, 1e-05
        %v2848 = vrsqrt.pop %v2846
        %v2849 = vmul.f32 %v2848, %v2846
        %v2850 = vmul.f32 %v2849, %v2848
        %v2851 = vmul.f32 0.5, %v2850
        %v2852 = vsub.f32 1.5, %v2851
        %v2853 = vmul.f32 %v2848, %v2852
        %vm2854 = vweird.f32 %v2846
        %vm2855 = vweird.f32 %v2848
        %vm2856 = vmor %vm2854, %vm2855
        %v2857 = vsel %vm2856, %v2848, %v2853
        %v2858 = vrsqrt.pop %v2847
        %v2859 = vmul.f32 %v2858, %v2847
        %v2860 = vmul.f32 %v2859, %v2858
        %v2861 = vmul.f32 0.5, %v2860
        %v2862 = vsub.f32 1.5, %v2861
        %v2863 = vmul.f32 %v2858, %v2862
        %vm2864 = vweird.f32 %v2847
        %vm2865 = vweird.f32 %v2858
        %vm2866 = vmor %vm2864, %vm2865
        %v2867 = vsel %vm2866, %v2858, %v2863
        %v2868 = vmul.f32 %v2834, %v2857
        %v2869 = vmul.f32 %v2835, %v2867
        %v2871 = vperm.slane %v2816, 0
        %v2873 = vmul.f32 %v2868, %v2871
        %v2874 = vmul.f32 %v2869, %v2871
        %v2876 = vperm.slane %v2817, 0
        %v2878 = vadd.f32 %v2873, %v2876
        %v2879 = vadd.f32 %v2874, %v2876
        %v2880 = vld [vmem:[#allocation7] sm:$0x1]
        %v2881 = vld [vmem:[#allocation9] sm:$0x1]
        %v2882 = vsel %vm2818, %v2878, 0.0
        %2883 = vadd.xlane.f32.xlu0 %v2882
        %v2884 = vpop.xlane.xlu0 %2883
        %v2885 = vsel %vm2818, %v2879, 0.0
        %2886 = vadd.xlane.f32.xlu0 %v2885
        %v2887 = vpop.xlane.xlu0 %2886
        %v2888 = vmul.f32 %v2884, %v2831
        %v2889 = vmul.f32 %v2887, %v2831
        %v2890 = vsub.f32 %v2878, %v2888
        %v2891 = vsub.f32 %v2879, %v2889
        %v2892 = vmul.f32 %v2890, %v2890
        %v2893 = vmul.f32 %v2891, %v2891
        %v2894 = vsel %vm2818, %v2892, 0.0
        %2895 = vadd.xlane.f32.xlu0 %v2894
        %v2896 = vpop.xlane.xlu0 %2895
        %v2897 = vsel %vm2818, %v2893, 0.0
        %2898 = vadd.xlane.f32.xlu0 %v2897
        %v2899 = vpop.xlane.xlu0 %2898
        %v2900 = vmul.f32 %v2896, %v2831
        %v2901 = vmul.f32 %v2899, %v2831
        %v2902 = vadd.f32 %v2900, 1e-05
        %v2903 = vadd.f32 %v2901, 1e-05
        %v2904 = vrsqrt.pop %v2902
        %v2905 = vmul.f32 %v2904, %v2902
        %v2906 = vmul.f32 %v2905, %v2904
        %v2907 = vmul.f32 0.5, %v2906
        %v2908 = vsub.f32 1.5, %v2907
        %v2909 = vmul.f32 %v2904, %v2908
        %vm2910 = vweird.f32 %v2902
        %vm2911 = vweird.f32 %v2904
        %vm2912 = vmor %vm2910, %vm2911
        %v2913 = vsel %vm2912, %v2904, %v2909
        %v2914 = vrsqrt.pop %v2903
        %v2915 = vmul.f32 %v2914, %v2903
        %v2916 = vmul.f32 %v2915, %v2914
        %v2917 = vmul.f32 0.5, %v2916
        %v2918 = vsub.f32 1.5, %v2917
        %v2919 = vmul.f32 %v2914, %v2918
        %vm2920 = vweird.f32 %v2903
        %vm2921 = vweird.f32 %v2914
        %vm2922 = vmor %vm2920, %vm2921
        %v2923 = vsel %vm2922, %v2914, %v2919
        %v2924 = vmul.f32 %v2890, %v2913
        %v2925 = vmul.f32 %v2891, %v2923
        %v2927 = vperm.slane %v2880, 0
        %v2929 = vmul.f32 %v2924, %v2927
        %v2930 = vmul.f32 %v2925, %v2927
        %v2932 = vperm.slane %v2881, 0
        %v2934 = vadd.f32 %v2929, %v2932
        %v2935 = vadd.f32 %v2930, %v2932
        %v2936 = vpack.c.bf16 %v2935, %v2934
        %v2937 = vld [vmem:[%s15] sm:$0xf]
        %v2938 = vld [vmem:[%s15 + $0x4] sm:$0xf]
        %v2939 = vld [vmem:[%s15 + $0x8] sm:$0xf]
        %v2940 = vld [vmem:[%s15 + $0xc] sm:$0xf]
        %v2941 = vld [vmem:[%s21] sm:$0x1]
        %v2943 = vperm.slane %v2941, 0
        %v2949 = vunpack.c.l.b16 %v2937
        %v2950 = vunpack.c.l.b16 %v2938
        %v2951 = vunpack.c.l.b16 %v2939
        %v2952 = vunpack.c.l.b16 %v2940
        %v2953 = vpack.c.b16 %v2950, %v2949
        %v2954 = vpack.c.b16 %v2952, %v2951
        %v2958 = vsel %vm2818, %v2936, 0
        %2960 = vmatpush.bf16.msra.mxu0 0
        %2961 = vmatpush.bf16.msra.mxu0 0
        %2962 = vmatpush.bf16.msra.mxu0 0
        %2963 = vmatpush.bf16.msra.mxu0 0
        %2964 = vmatpush.bf16.msra.mxu0 0
        %2965 = vmatpush.bf16.msra.mxu0 0
        %2966 = vmatpush.bf16.msra.mxu0 %v2954
        %2967 = vmatpush.bf16.msra.mxu0 %v2953
        %2968 = vmatmul.bf16.gmra.mxu0 %v2958
        %v2969 = vpop.f32.mrf.mxu0
        %v2970 = vadd.f32 %v2943, %v2969
        %v2971 = vpop.f32.mrf.mxu0
        %v2972 = vadd.f32 %v2943, %v2971
        %2973 = vdwg.mxu0
        %v2974 = vld [vmem:[%s17] sm:$0xf]
        %v2975 = vld [vmem:[%s17 + $0x4] sm:$0xf]
        %v2976 = vld [vmem:[%s17 + $0x8] sm:$0xf]
        %v2977 = vld [vmem:[%s17 + $0xc] sm:$0xf]
        %v2978 = vld [vmem:[%s23] sm:$0x1]
        %v2980 = vperm.slane %v2978, 0
        %v2986 = vunpack.c.l.b16 %v2974
        %v2987 = vunpack.c.l.b16 %v2975
        %v2988 = vunpack.c.l.b16 %v2976
        %v2989 = vunpack.c.l.b16 %v2977
        %v2990 = vpack.c.b16 %v2987, %v2986
        %v2991 = vpack.c.b16 %v2989, %v2988
        %2994 = vmatpush.bf16.msra.mxu0 0
        %2995 = vmatpush.bf16.msra.mxu0 0
        %2996 = vmatpush.bf16.msra.mxu0 0
        %2997 = vmatpush.bf16.msra.mxu0 0
        %2998 = vmatpush.bf16.msra.mxu0 0
        %2999 = vmatpush.bf16.msra.mxu0 0
        %3000 = vmatpush.bf16.msra.mxu0 %v2991
        %3001 = vmatpush.bf16.msra.mxu0 %v2990
        %3002 = vmatmul.bf16.gmra.mxu0 %v2958
        %v3003 = vpop.f32.mrf.mxu0
        %v3004 = vadd.f32 %v2980, %v3003
        %v3005 = vpop.f32.mrf.mxu0
        %v3006 = vadd.f32 %v2980, %v3005
        %3007 = vdwg.mxu0
        %v3008 = vld [vmem:[%s19] sm:$0xf]
        %v3009 = vld [vmem:[%s19 + $0x4] sm:$0xf]
        %v3010 = vld [vmem:[%s19 + $0x8] sm:$0xf]
        %v3011 = vld [vmem:[%s19 + $0xc] sm:$0xf]
        %v3012 = vld [vmem:[%s25] sm:$0x1]
        %v3014 = vperm.slane %v3012, 0
        %v3020 = vunpack.c.l.b16 %v3008
        %v3021 = vunpack.c.l.b16 %v3009
        %v3022 = vunpack.c.l.b16 %v3010
        %v3023 = vunpack.c.l.b16 %v3011
        %v3024 = vpack.c.b16 %v3021, %v3020
        %v3025 = vpack.c.b16 %v3023, %v3022
        %3028 = vmatpush.bf16.msra.mxu0 0
        %3029 = vmatpush.bf16.msra.mxu0 0
        %3030 = vmatpush.bf16.msra.mxu0 0
        %3031 = vmatpush.bf16.msra.mxu0 0
        %3032 = vmatpush.bf16.msra.mxu0 0
        %3033 = vmatpush.bf16.msra.mxu0 0
        %3034 = vmatpush.bf16.msra.mxu0 %v3025
        %3035 = vmatpush.bf16.msra.mxu0 %v3024
        %3036 = vmatmul.bf16.gmra.mxu0 %v2958
        %v3037 = vpop.f32.mrf.mxu0
        %v3038 = vadd.f32 %v3014, %v3037
        %v3039 = vpop.f32.mrf.mxu0
        %v3040 = vadd.f32 %v3014, %v3039
        %3041 = vdwg.mxu0
        %v3042 = vpack.c.bf16 %v2972, %v2970
        %v3043 = vpack.c.bf16 %v3006, %v3004
        %vm3044 = vcmask 130048
        %v3046 = vsel %vm3044, %v3042, 0
        %v3049 = vsel %vm3044, %v3043, 0
        %3051 = vmatpush.bf16.xpose.msra.mxu0 0
        %3052 = vmatpush.bf16.xpose.msra.mxu0 0
        %3053 = vmatpush.bf16.xpose.msra.mxu0 0
        %3054 = vmatpush.bf16.xpose.msra.mxu0 0
        %3055 = vmatpush.bf16.xpose.msra.mxu0 0
        %3056 = vmatpush.bf16.xpose.msra.mxu0 0
        %3057 = vmatpush.bf16.xpose.msra.mxu0 0
        %3058 = vmatpush.bf16.xpose.msra.mxu0 %v3049
        %3059 = vmatmul.bf16.gmra.mxu0 %v3046
        %v3060 = vpop.f32.mrf.mxu0
        %v3061 = vadd.f32 0.0, %v3060
        %v3062 = vpop.f32.mrf.mxu0
        %v3063 = vadd.f32 0.0, %v3062
        %3064 = vdwg.mxu0
        %v3065 = vmul.f32 %v3061, 0.25
        %v3066 = vmul.f32 %v3063, 0.25
        %v3067 = vld [vmem:[%s27] sm:$0xff]
        %v3068 = vld [vmem:[%s27 + $0x8] sm:$0xff]
        %v3069 = vadd.f32 %v3065, %v3067
        %v3070 = vadd.f32 %v3066, %v3068
        %v3071 = vsel %vm3044, %v3069, -inf
        %3072 = vmax.xlane.f32.xlu0 %v3071
        %v3073 = vpop.xlane.xlu0 %3072
        %v3074 = vsel %vm3044, %v3070, -inf
        %3075 = vmax.xlane.f32.xlu0 %v3074
        %v3076 = vpop.xlane.xlu0 %3075
        %v3077 = vsub.f32 %v3069, %v3073
        %v3078 = vsub.f32 %v3070, %v3076
        %v3079 = vmul.f32 %v3077, 1.442695
        %v3080 = vpow.pop %v3079
        %v3081 = vmul.f32 %v3078, 1.442695
        %v3082 = vpow.pop %v3081
        %v3083 = vsel %vm3044, %v3080, 0.0
        %3084 = vadd.xlane.f32.xlu0 %v3083
        %v3085 = vpop.xlane.xlu0 %3084
        %v3086 = vsel %vm3044, %v3082, 0.0
        %3087 = vadd.xlane.f32.xlu0 %v3086
        %v3088 = vpop.xlane.xlu0 %3087
        %v3089 = vrcp.pop %v3085
        %v3090 = vmul.f32 %v3085, %v3089
        %v3091 = vsub.f32 1.0, %v3090
        %v3092 = vmul.f32 %v3089, %v3091
        %v3093 = vadd.f32 %v3089, %v3092
        %vm3094 = vweird.f32 %v3085
        %vm3095 = vweird.f32 %v3089
        %vm3096 = vmor %vm3094, %vm3095
        %v3097 = vsel %vm3096, %v3089, %v3093
        %v3098 = vand.u32 2147483647, %v3085
        %vm3099 = vcmp.eq.f32.partialorder %v3098, 8.507059e+37
        %v3100 = vand.u32 %v3085, 2147483648
        %v3101 = vor.u32 1.1754944e-38, %v3100
        %v3102 = vsel %vm3099, %v3101, %v3097
        %v3103 = vmul.f32 %v3080, %v3102
        %v3104 = vrcp.pop %v3088
        %v3105 = vmul.f32 %v3088, %v3104
        %v3106 = vsub.f32 1.0, %v3105
        %v3107 = vmul.f32 %v3104, %v3106
        %v3108 = vadd.f32 %v3104, %v3107
        %vm3109 = vweird.f32 %v3088
        %vm3110 = vweird.f32 %v3104
        %vm3111 = vmor %vm3109, %vm3110
        %v3112 = vsel %vm3111, %v3104, %v3108
        %v3113 = vand.u32 2147483647, %v3088
        %vm3114 = vcmp.eq.f32.partialorder %v3113, 8.507059e+37
        %v3115 = vand.u32 %v3088, 2147483648
        %v3116 = vor.u32 1.1754944e-38, %v3115
        %v3117 = vsel %vm3114, %v3116, %v3112
        %v3118 = vmul.f32 %v3082, %v3117
        %v3119 = vpack.c.bf16 %v3118, %v3103
        %v3120 = vpack.c.bf16 %v3040, %v3038
        %v3122 = vsel %vm3044, %v3119, 0
        %3124 = vmatpush.bf16.msra.mxu0 0
        %3125 = vmatpush.bf16.msra.mxu0 0
        %3126 = vmatpush.bf16.msra.mxu0 0
        %3127 = vmatpush.bf16.msra.mxu0 0
        %3128 = vmatpush.bf16.msra.mxu0 0
        %3129 = vmatpush.bf16.msra.mxu0 0
        %3130 = vmatpush.bf16.msra.mxu0 0
        %3131 = vmatpush.bf16.msra.mxu0 %v3120
        %3132 = vmatmul.bf16.gmra.mxu0 %v3122
        %v3133 = vpop.f32.mrf.mxu0
        %v3134 = vadd.f32 0.0, %v3133
        %v3135 = vpop.f32.mrf.mxu0
        %v3136 = vadd.f32 0.0, %v3135
        %3137 = vdwg.mxu0
        %v3138 = vpack.c.bf16 %v3136, %v3134
        %v3139 = vld [vmem:[%s29] sm:$0xf]
        %v3140 = vld [vmem:[%s29 + $0x4] sm:$0xf]
        %s3141 = scalar_lea.vmem %s15, 16
        %v3142 = vld [vmem:[%s3141] sm:$0xf]
        %v3143 = vld [vmem:[%s3141 + $0x4] sm:$0xf]
        %v3144 = vld [vmem:[%s3141 + $0x8] sm:$0xf]
        %v3145 = vld [vmem:[%s3141 + $0xc] sm:$0xf]
        %s3146 = scalar_lea.vmem %s21, 1
        %v3147 = vld [vmem:[%s3146] sm:$0x1]
        %v3149 = vperm.slane %v3147, 0
        %v3155 = vunpack.c.l.b16 %v3142
        %v3156 = vunpack.c.l.b16 %v3143
        %v3157 = vunpack.c.l.b16 %v3144
        %v3158 = vunpack.c.l.b16 %v3145
        %v3159 = vpack.c.b16 %v3156, %v3155
        %v3160 = vpack.c.b16 %v3158, %v3157
        %3163 = vmatpush.bf16.msra.mxu0 0
        %3164 = vmatpush.bf16.msra.mxu0 0
        %3165 = vmatpush.bf16.msra.mxu0 0
        %3166 = vmatpush.bf16.msra.mxu0 0
        %3167 = vmatpush.bf16.msra.mxu0 0
        %3168 = vmatpush.bf16.msra.mxu0 0
        %3169 = vmatpush.bf16.msra.mxu0 %v3160
        %3170 = vmatpush.bf16.msra.mxu0 %v3159
        %3171 = vmatmul.bf16.gmra.mxu0 %v2958
        %v3172 = vpop.f32.mrf.mxu0
        %v3173 = vadd.f32 %v3149, %v3172
        %v3174 = vpop.f32.mrf.mxu0
        %v3175 = vadd.f32 %v3149, %v3174
        %3176 = vdwg.mxu0
        %s3177 = scalar_lea.vmem %s17, 16
        %v3178 = vld [vmem:[%s3177] sm:$0xf]
        %v3179 = vld [vmem:[%s3177 + $0x4] sm:$0xf]
        %v3180 = vld [vmem:[%s3177 + $0x8] sm:$0xf]
        %v3181 = vld [vmem:[%s3177 + $0xc] sm:$0xf]
        %s3182 = scalar_lea.vmem %s23, 1
        %v3183 = vld [vmem:[%s3182] sm:$0x1]
        %v3185 = vperm.slane %v3183, 0
        %v3191 = vunpack.c.l.b16 %v3178
        %v3192 = vunpack.c.l.b16 %v3179
        %v3193 = vunpack.c.l.b16 %v3180
        %v3194 = vunpack.c.l.b16 %v3181
        %v3195 = vpack.c.b16 %v3192, %v3191
        %v3196 = vpack.c.b16 %v3194, %v3193
        %3199 = vmatpush.bf16.msra.mxu0 0
        %3200 = vmatpush.bf16.msra.mxu0 0
        %3201 = vmatpush.bf16.msra.mxu0 0
        %3202 = vmatpush.bf16.msra.mxu0 0
        %3203 = vmatpush.bf16.msra.mxu0 0
        %3204 = vmatpush.bf16.msra.mxu0 0
        %3205 = vmatpush.bf16.msra.mxu0 %v3196
        %3206 = vmatpush.bf16.msra.mxu0 %v3195
        %3207 = vmatmul.bf16.gmra.mxu0 %v2958
        %v3208 = vpop.f32.mrf.mxu0
        %v3209 = vadd.f32 %v3185, %v3208
        %v3210 = vpop.f32.mrf.mxu0
        %v3211 = vadd.f32 %v3185, %v3210
        %3212 = vdwg.mxu0
        %s3213 = scalar_lea.vmem %s19, 16
        %v3214 = vld [vmem:[%s3213] sm:$0xf]
        %v3215 = vld [vmem:[%s3213 + $0x4] sm:$0xf]
        %v3216 = vld [vmem:[%s3213 + $0x8] sm:$0xf]
        %v3217 = vld [vmem:[%s3213 + $0xc] sm:$0xf]
        %s3218 = scalar_lea.vmem %s25, 1
        %v3219 = vld [vmem:[%s3218] sm:$0x1]
        %v3221 = vperm.slane %v3219, 0
        %v3227 = vunpack.c.l.b16 %v3214
        %v3228 = vunpack.c.l.b16 %v3215
        %v3229 = vunpack.c.l.b16 %v3216
        %v3230 = vunpack.c.l.b16 %v3217
        %v3231 = vpack.c.b16 %v3228, %v3227
        %v3232 = vpack.c.b16 %v3230, %v3229
        %3235 = vmatpush.bf16.msra.mxu0 0
        %3236 = vmatpush.bf16.msra.mxu0 0
        %3237 = vmatpush.bf16.msra.mxu0 0
        %3238 = vmatpush.bf16.msra.mxu0 0
        %3239 = vmatpush.bf16.msra.mxu0 0
        %3240 = vmatpush.bf16.msra.mxu0 0
        %3241 = vmatpush.bf16.msra.mxu0 %v3232
        %3242 = vmatpush.bf16.msra.mxu0 %v3231
        %3243 = vmatmul.bf16.gmra.mxu0 %v2958
        %v3244 = vpop.f32.mrf.mxu0
        %v3245 = vadd.f32 %v3221, %v3244
        %v3246 = vpop.f32.mrf.mxu0
        %v3247 = vadd.f32 %v3221, %v3246
        %3248 = vdwg.mxu0
        %v3249 = vpack.c.bf16 %v3175, %v3173
        %v3250 = vpack.c.bf16 %v3211, %v3209
        %v3252 = vsel %vm3044, %v3249, 0
        %v3255 = vsel %vm3044, %v3250, 0
        %3257 = vmatpush.bf16.xpose.msra.mxu0 0
        %3258 = vmatpush.bf16.xpose.msra.mxu0 0
        %3259 = vmatpush.bf16.xpose.msra.mxu0 0
        %3260 = vmatpush.bf16.xpose.msra.mxu0 0
        %3261 = vmatpush.bf16.xpose.msra.mxu0 0
        %3262 = vmatpush.bf16.xpose.msra.mxu0 0
        %3263 = vmatpush.bf16.xpose.msra.mxu0 0
        %3264 = vmatpush.bf16.xpose.msra.mxu0 %v3255
        %3265 = vmatmul.bf16.gmra.mxu0 %v3252
        %v3266 = vpop.f32.mrf.mxu0
        %v3267 = vadd.f32 0.0, %v3266
        %v3268 = vpop.f32.mrf.mxu0
        %v3269 = vadd.f32 0.0, %v3268
        %3270 = vdwg.mxu0
        %v3271 = vmul.f32 %v3267, 0.25
        %v3272 = vmul.f32 %v3269, 0.25
        %s3273 = scalar_lea.vmem %s27, 16
        %v3274 = vld [vmem:[%s3273] sm:$0xff]
        %v3275 = vld [vmem:[%s3273 + $0x8] sm:$0xff]
        %v3276 = vadd.f32 %v3271, %v3274
        %v3277 = vadd.f32 %v3272, %v3275
        %v3278 = vsel %vm3044, %v3276, -inf
        %3279 = vmax.xlane.f32.xlu0 %v3278
        %v3280 = vpop.xlane.xlu0 %3279
        %v3281 = vsel %vm3044, %v3277, -inf
        %3282 = vmax.xlane.f32.xlu0 %v3281
        %v3283 = vpop.xlane.xlu0 %3282
        %v3284 = vsub.f32 %v3276, %v3280
        %v3285 = vsub.f32 %v3277, %v3283
        %v3286 = vmul.f32 %v3284, 1.442695
        %v3287 = vpow.pop %v3286
        %v3288 = vmul.f32 %v3285, 1.442695
        %v3289 = vpow.pop %v3288
        %v3290 = vsel %vm3044, %v3287, 0.0
        %3291 = vadd.xlane.f32.xlu0 %v3290
        %v3292 = vpop.xlane.xlu0 %3291
        %v3293 = vsel %vm3044, %v3289, 0.0
        %3294 = vadd.xlane.f32.xlu0 %v3293
        %v3295 = vpop.xlane.xlu0 %3294
        %v3296 = vrcp.pop %v3292
        %v3297 = vmul.f32 %v3292, %v3296
        %v3298 = vsub.f32 1.0, %v3297
        %v3299 = vmul.f32 %v3296, %v3298
        %v3300 = vadd.f32 %v3296, %v3299
        %vm3301 = vweird.f32 %v3292
        %vm3302 = vweird.f32 %v3296
        %vm3303 = vmor %vm3301, %vm3302
        %v3304 = vsel %vm3303, %v3296, %v3300
        %v3305 = vand.u32 2147483647, %v3292
        %vm3306 = vcmp.eq.f32.partialorder %v3305, 8.507059e+37
        %v3307 = vand.u32 %v3292, 2147483648
        %v3308 = vor.u32 1.1754944e-38, %v3307
        %v3309 = vsel %vm3306, %v3308, %v3304
        %v3310 = vmul.f32 %v3287, %v3309
        %v3311 = vrcp.pop %v3295
        %v3312 = vmul.f32 %v3295, %v3311
        %v3313 = vsub.f32 1.0, %v3312
        %v3314 = vmul.f32 %v3311, %v3313
        %v3315 = vadd.f32 %v3311, %v3314
        %vm3316 = vweird.f32 %v3295
        %vm3317 = vweird.f32 %v3311
        %vm3318 = vmor %vm3316, %vm3317
        %v3319 = vsel %vm3318, %v3311, %v3315
        %v3320 = vand.u32 2147483647, %v3295
        %vm3321 = vcmp.eq.f32.partialorder %v3320, 8.507059e+37
        %v3322 = vand.u32 %v3295, 2147483648
        %v3323 = vor.u32 1.1754944e-38, %v3322
        %v3324 = vsel %vm3321, %v3323, %v3319
        %v3325 = vmul.f32 %v3289, %v3324
        %v3326 = vpack.c.bf16 %v3325, %v3310
        %v3327 = vpack.c.bf16 %v3247, %v3245
        %v3329 = vsel %vm3044, %v3326, 0
        %3331 = vmatpush.bf16.msra.mxu0 0
        %3332 = vmatpush.bf16.msra.mxu0 0
        %3333 = vmatpush.bf16.msra.mxu0 0
        %3334 = vmatpush.bf16.msra.mxu0 0
        %3335 = vmatpush.bf16.msra.mxu0 0
        %3336 = vmatpush.bf16.msra.mxu0 0
        %3337 = vmatpush.bf16.msra.mxu0 0
        %3338 = vmatpush.bf16.msra.mxu0 %v3327
        %3339 = vmatmul.bf16.gmra.mxu0 %v3329
        %v3340 = vpop.f32.mrf.mxu0
        %v3341 = vadd.f32 0.0, %v3340
        %v3342 = vpop.f32.mrf.mxu0
        %v3343 = vadd.f32 0.0, %v3342
        %3344 = vdwg.mxu0
        %v3345 = vpack.c.bf16 %v3343, %v3341
        %s3346 = scalar_lea.vmem %s29, 8
        %v3347 = vld [vmem:[%s3346] sm:$0xf]
        %v3348 = vld [vmem:[%s3346 + $0x4] sm:$0xf]
        %v3351 = vunpack.c.l.b16 %v3347
        %v3352 = vunpack.c.l.b16 %v3348
        %v3353 = vpack.c.b16 %v3352, %v3351
        %v3356 = vsel %vm3044, %v3345, 0
        %3358 = vmatpush.bf16.msra.mxu0 0
        %3359 = vmatpush.bf16.msra.mxu0 0
        %3360 = vmatpush.bf16.msra.mxu0 0
        %3361 = vmatpush.bf16.msra.mxu0 0
        %3362 = vmatpush.bf16.msra.mxu0 0
        %3363 = vmatpush.bf16.msra.mxu0 0
        %3364 = vmatpush.bf16.msra.mxu0 0
        %3365 = vmatpush.bf16.msra.mxu0 %v3353
        %3366 = vmatmul.bf16.gmra.mxu0 %v3356
        %v3367 = vpop.f32.mrf.mxu0
        %v3368 = vadd.f32 0.0, %v3367
        %v3369 = vpop.f32.mrf.mxu0
        %v3370 = vadd.f32 0.0, %v3369
        %3371 = vdwg.mxu0
        %v3374 = vunpack.c.l.b16 %v3139
        %v3375 = vunpack.c.l.b16 %v3140
        %v3376 = vpack.c.b16 %v3375, %v3374
        %v3379 = vsel %vm3044, %v3138, 0
        %3381 = vmatpush.bf16.msra.mxu0 0
        %3382 = vmatpush.bf16.msra.mxu0 0
        %3383 = vmatpush.bf16.msra.mxu0 0
        %3384 = vmatpush.bf16.msra.mxu0 0
        %3385 = vmatpush.bf16.msra.mxu0 0
        %3386 = vmatpush.bf16.msra.mxu0 0
        %3387 = vmatpush.bf16.msra.mxu0 0
        %3388 = vmatpush.bf16.msra.mxu0 %v3376
        %3389 = vmatmul.bf16.gmra.mxu0 %v3379
        %v3390 = vpop.f32.mrf.mxu0
        %v3391 = vadd.f32 %v3368, %v3390
        %v3392 = vpop.f32.mrf.mxu0
        %v3393 = vadd.f32 %v3370, %v3392
        %3394 = vdwg.mxu0
        %v3395 = vadd.f32 %v2878, %v3391
        %v3396 = vadd.f32 %v2879, %v3393
        %v3397 = vld [vmem:[#allocation10] sm:$0x1]
        %v3399 = vperm.slane %v3397, 0
        %v3401 = vadd.f32 %v3395, %v3399
        %v3402 = vadd.f32 %v3396, %v3399
        %v3403 = vld [vmem:[#allocation12] sm:$0x1]
        %v3404 = vld [vmem:[#allocation13] sm:$0x1]
        %v3405 = vsel %vm2818, %v3401, 0.0
        %3406 = vadd.xlane.f32.xlu0 %v3405
        %v3407 = vpop.xlane.xlu0 %3406
        %v3408 = vsel %vm2818, %v3402, 0.0
        %3409 = vadd.xlane.f32.xlu0 %v3408
        %v3410 = vpop.xlane.xlu0 %3409
        %v3411 = vmul.f32 %v3407, %v2831
        %v3412 = vmul.f32 %v3410, %v2831
        %v3413 = vsub.f32 %v3401, %v3411
        %v3414 = vsub.f32 %v3402, %v3412
        %v3415 = vmul.f32 %v3413, %v3413
        %v3416 = vmul.f32 %v3414, %v3414
        %v3417 = vsel %vm2818, %v3415, 0.0
        %3418 = vadd.xlane.f32.xlu0 %v3417
        %v3419 = vpop.xlane.xlu0 %3418
        %v3420 = vsel %vm2818, %v3416, 0.0
        %3421 = vadd.xlane.f32.xlu0 %v3420
        %v3422 = vpop.xlane.xlu0 %3421
        %v3423 = vmul.f32 %v3419, %v2831
        %v3424 = vmul.f32 %v3422, %v2831
        %v3425 = vadd.f32 %v3423, 1e-05
        %v3426 = vadd.f32 %v3424, 1e-05
        %v3427 = vrsqrt.pop %v3425
        %v3428 = vmul.f32 %v3427, %v3425
        %v3429 = vmul.f32 %v3428, %v3427
        %v3430 = vmul.f32 0.5, %v3429
        %v3431 = vsub.f32 1.5, %v3430
        %v3432 = vmul.f32 %v3427, %v3431
        %vm3433 = vweird.f32 %v3425
        %vm3434 = vweird.f32 %v3427
        %vm3435 = vmor %vm3433, %vm3434
        %v3436 = vsel %vm3435, %v3427, %v3432
        %v3437 = vrsqrt.pop %v3426
        %v3438 = vmul.f32 %v3437, %v3426
        %v3439 = vmul.f32 %v3438, %v3437
        %v3440 = vmul.f32 0.5, %v3439
        %v3441 = vsub.f32 1.5, %v3440
        %v3442 = vmul.f32 %v3437, %v3441
        %vm3443 = vweird.f32 %v3426
        %vm3444 = vweird.f32 %v3437
        %vm3445 = vmor %vm3443, %vm3444
        %v3446 = vsel %vm3445, %v3437, %v3442
        %v3447 = vmul.f32 %v3413, %v3436
        %v3448 = vmul.f32 %v3414, %v3446
        %v3450 = vperm.slane %v3403, 0
        %v3452 = vmul.f32 %v3447, %v3450
        %v3453 = vmul.f32 %v3448, %v3450
        %v3455 = vperm.slane %v3404, 0
        %v3457 = vadd.f32 %v3452, %v3455
        %v3458 = vadd.f32 %v3453, %v3455
        %v3459 = vpack.c.bf16 %v3458, %v3457
        %v3460 = vld [vmem:[%s37] sm:$0xf]
        %v3461 = vld [vmem:[%s37 + $0x4] sm:$0xf]
        %v3462 = vld [vmem:[%s37 + $0x8] sm:$0xf]
        %v3463 = vld [vmem:[%s37 + $0xc] sm:$0xf]
        %v3464 = vld [vmem:[#allocation15] sm:$0x1]
        %v3466 = vperm.slane %v3464, 0
        %v3472 = vunpack.c.l.b16 %v3460
        %v3473 = vunpack.c.l.b16 %v3461
        %v3474 = vunpack.c.l.b16 %v3462
        %v3475 = vunpack.c.l.b16 %v3463
        %v3476 = vpack.c.b16 %v3473, %v3472
        %v3477 = vpack.c.b16 %v3475, %v3474
        %v3481 = vsel %vm2818, %v3459, 0
        %3483 = vmatpush.bf16.msra.mxu0 0
        %3484 = vmatpush.bf16.msra.mxu0 0
        %3485 = vmatpush.bf16.msra.mxu0 0
        %3486 = vmatpush.bf16.msra.mxu0 0
        %3487 = vmatpush.bf16.msra.mxu0 0
        %3488 = vmatpush.bf16.msra.mxu0 0
        %3489 = vmatpush.bf16.msra.mxu0 %v3477
        %3490 = vmatpush.bf16.msra.mxu0 %v3476
        %3491 = vmatmul.bf16.gmra.mxu0 %v3481
        %v3492 = vpop.f32.mrf.mxu0
        %v3493 = vadd.f32 %v3466, %v3492
        %v3494 = vpop.f32.mrf.mxu0
        %v3495 = vadd.f32 %v3466, %v3494
        %3496 = vdwg.mxu0
        %v3497 = vmul.f32 %v3493, %v3493
        %v3498 = vmul.f32 %v3495, %v3495
        %v3499 = vmul.f32 %v3493, %v3497
        %v3500 = vmul.f32 %v3495, %v3498
        %v3501 = vmul.f32 %v3499, 0.044715
        %v3502 = vmul.f32 %v3500, 0.044715
        %v3503 = vadd.f32 %v3493, %v3501
        %v3504 = vadd.f32 %v3495, %v3502
        %v3505 = vmul.f32 %v3503, 0.7978846
        %v3506 = vmul.f32 %v3504, 0.7978846
        %v3507 = vtanh.pop %v3505
        %v3508 = vtanh.pop %v3506
        %v3509 = vadd.f32 %v3507, 1.0
        %v3510 = vadd.f32 %v3508, 1.0
        %v3511 = vmul.f32 %v3509, 0.5
        %v3512 = vmul.f32 %v3510, 0.5
        %v3513 = vmul.f32 %v3493, %v3511
        %v3514 = vmul.f32 %v3495, %v3512
        %v3515 = vpack.c.bf16 %v3514, %v3513
        %v3516 = vld [vmem:[%s41] sm:$0xf]
        %v3517 = vld [vmem:[%s41 + $0x4] sm:$0xf]
        %v3518 = vld [vmem:[%s41 + $0x8] sm:$0xf]
        %v3519 = vld [vmem:[%s41 + $0xc] sm:$0xf]
        %v3520 = vld [vmem:[%s41 + $0x10] sm:$0xf]
        %v3521 = vld [vmem:[%s41 + $0x14] sm:$0xf]
        %v3522 = vld [vmem:[%s41 + $0x18] sm:$0xf]
        %v3523 = vld [vmem:[%s41 + $0x1c] sm:$0xf]
        %v3524 = vld [vmem:[%s41 + $0x20] sm:$0xf]
        %v3525 = vld [vmem:[%s41 + $0x24] sm:$0xf]
        %v3526 = vld [vmem:[%s41 + $0x28] sm:$0xf]
        %v3527 = vld [vmem:[%s41 + $0x2c] sm:$0xf]
        %v3528 = vld [vmem:[%s41 + $0x30] sm:$0xf]
        %v3529 = vld [vmem:[%s41 + $0x34] sm:$0xf]
        %v3530 = vld [vmem:[%s41 + $0x38] sm:$0xf]
        %v3531 = vld [vmem:[%s41 + $0x3c] sm:$0xf]
        %v3532 = vld [vmem:[#allocation16] sm:$0x1]
        %v3534 = vperm.slane %v3532, 0
        %v3552 = vunpack.c.l.b16 %v3516
        %v3553 = vunpack.c.l.b16 %v3517
        %v3554 = vunpack.c.l.b16 %v3518
        %v3555 = vunpack.c.l.b16 %v3519
        %v3556 = vunpack.c.l.b16 %v3520
        %v3557 = vunpack.c.l.b16 %v3521
        %v3558 = vunpack.c.l.b16 %v3522
        %v3559 = vunpack.c.l.b16 %v3523
        %v3560 = vunpack.c.l.b16 %v3524
        %v3561 = vunpack.c.l.b16 %v3525
        %v3562 = vunpack.c.l.b16 %v3526
        %v3563 = vunpack.c.l.b16 %v3527
        %v3564 = vunpack.c.l.b16 %v3528
        %v3565 = vunpack.c.l.b16 %v3529
        %v3566 = vunpack.c.l.b16 %v3530
        %v3567 = vunpack.c.l.b16 %v3531
        %v3568 = vpack.c.b16 %v3553, %v3552
        %v3569 = vpack.c.b16 %v3555, %v3554
        %v3570 = vpack.c.b16 %v3557, %v3556
        %v3571 = vpack.c.b16 %v3559, %v3558
        %v3572 = vpack.c.b16 %v3561, %v3560
        %v3573 = vpack.c.b16 %v3563, %v3562
        %v3574 = vpack.c.b16 %v3565, %v3564
        %v3575 = vpack.c.b16 %v3567, %v3566
        %3584 = vmatpush.bf16.msra.mxu0 %v3575
        %3585 = vmatpush.bf16.msra.mxu0 %v3574
        %3586 = vmatpush.bf16.msra.mxu0 %v3573
        %3587 = vmatpush.bf16.msra.mxu0 %v3572
        %3588 = vmatpush.bf16.msra.mxu0 %v3571
        %3589 = vmatpush.bf16.msra.mxu0 %v3570
        %3590 = vmatpush.bf16.msra.mxu0 %v3569
        %3591 = vmatpush.bf16.msra.mxu0 %v3568
        %3592 = vmatmul.bf16.gmra.mxu0 %v3515
        %v3593 = vpop.f32.mrf.mxu0
        %v3594 = vadd.f32 %v3534, %v3593
        %v3595 = vpop.f32.mrf.mxu0
        %v3596 = vadd.f32 %v3534, %v3595
        %3597 = vdwg.mxu0
        %v3598 = vadd.f32 %v3401, %v3594
        %v3599 = vadd.f32 %v3402, %v3596
        %v3600 = vld [vmem:[#allocation18] sm:$0x1]
        %v3601 = vld [vmem:[#allocation19] sm:$0x1]
        %v3602 = vsel %vm2818, %v3598, 0.0
        %3603 = vadd.xlane.f32.xlu0 %v3602
        %v3604 = vpop.xlane.xlu0 %3603
        %v3605 = vsel %vm2818, %v3599, 0.0
        %3606 = vadd.xlane.f32.xlu0 %v3605
        %v3607 = vpop.xlane.xlu0 %3606
        %v3608 = vmul.f32 %v3604, %v2831
        %v3609 = vmul.f32 %v3607, %v2831
        %v3610 = vsub.f32 %v3598, %v3608
        %v3611 = vsub.f32 %v3599, %v3609
        %v3612 = vmul.f32 %v3610, %v3610
        %v3613 = vmul.f32 %v3611, %v3611
        %v3614 = vsel %vm2818, %v3612, 0.0
        %3615 = vadd.xlane.f32.xlu0 %v3614
        %v3616 = vpop.xlane.xlu0 %3615
        %v3617 = vsel %vm2818, %v3613, 0.0
        %3618 = vadd.xlane.f32.xlu0 %v3617
        %v3619 = vpop.xlane.xlu0 %3618
        %v3620 = vmul.f32 %v3616, %v2831
        %v3621 = vmul.f32 %v3619, %v2831
        %v3622 = vadd.f32 %v3620, 1e-05
        %v3623 = vadd.f32 %v3621, 1e-05
        %v3624 = vrsqrt.pop %v3622
        %v3625 = vmul.f32 %v3624, %v3622
        %v3626 = vmul.f32 %v3625, %v3624
        %v3627 = vmul.f32 0.5, %v3626
        %v3628 = vsub.f32 1.5, %v3627
        %v3629 = vmul.f32 %v3624, %v3628
        %vm3630 = vweird.f32 %v3622
        %vm3631 = vweird.f32 %v3624
        %vm3632 = vmor %vm3630, %vm3631
        %v3633 = vsel %vm3632, %v3624, %v3629
        %v3634 = vrsqrt.pop %v3623
        %v3635 = vmul.f32 %v3634, %v3623
        %v3636 = vmul.f32 %v3635, %v3634
        %v3637 = vmul.f32 0.5, %v3636
        %v3638 = vsub.f32 1.5, %v3637
        %v3639 = vmul.f32 %v3634, %v3638
        %vm3640 = vweird.f32 %v3623
        %vm3641 = vweird.f32 %v3634
        %vm3642 = vmor %vm3640, %vm3641
        %v3643 = vsel %vm3642, %v3634, %v3639
        %v3644 = vmul.f32 %v3610, %v3633
        %v3645 = vmul.f32 %v3611, %v3643
        %v3647 = vperm.slane %v3600, 0
        %v3649 = vmul.f32 %v3644, %v3647
        %v3650 = vmul.f32 %v3645, %v3647
        %v3652 = vperm.slane %v3601, 0
        %v3654 = vadd.f32 %v3649, %v3652
        %v3655 = vadd.f32 %v3650, %v3652
        %v3656 = vpack.c.bf16 %v3655, %v3654
        %v3657 = vld [vmem:[%s49] sm:$0xf]
        %v3658 = vld [vmem:[%s49 + $0x4] sm:$0xf]
        %v3659 = vld [vmem:[%s49 + $0x8] sm:$0xf]
        %v3660 = vld [vmem:[%s49 + $0xc] sm:$0xf]
        %v3661 = vld [vmem:[%s55] sm:$0x1]
        %v3663 = vperm.slane %v3661, 0
        %v3669 = vunpack.c.l.b16 %v3657
        %v3670 = vunpack.c.l.b16 %v3658
        %v3671 = vunpack.c.l.b16 %v3659
        %v3672 = vunpack.c.l.b16 %v3660
        %v3673 = vpack.c.b16 %v3670, %v3669
        %v3674 = vpack.c.b16 %v3672, %v3671
        %v3678 = vsel %vm2818, %v3656, 0
        %3680 = vmatpush.bf16.msra.mxu0 0
        %3681 = vmatpush.bf16.msra.mxu0 0
        %3682 = vmatpush.bf16.msra.mxu0 0
        %3683 = vmatpush.bf16.msra.mxu0 0
        %3684 = vmatpush.bf16.msra.mxu0 0
        %3685 = vmatpush.bf16.msra.mxu0 0
        %3686 = vmatpush.bf16.msra.mxu0 %v3674
        %3687 = vmatpush.bf16.msra.mxu0 %v3673
        %3688 = vmatmul.bf16.gmra.mxu0 %v3678
        %v3689 = vpop.f32.mrf.mxu0
        %v3690 = vadd.f32 %v3663, %v3689
        %v3691 = vpop.f32.mrf.mxu0
        %v3692 = vadd.f32 %v3663, %v3691
        %3693 = vdwg.mxu0
        %v3694 = vld [vmem:[%s51] sm:$0xf]
        %v3695 = vld [vmem:[%s51 + $0x4] sm:$0xf]
        %v3696 = vld [vmem:[%s51 + $0x8] sm:$0xf]
        %v3697 = vld [vmem:[%s51 + $0xc] sm:$0xf]
        %v3698 = vld [vmem:[%s57] sm:$0x1]
        %v3700 = vperm.slane %v3698, 0
        %v3706 = vunpack.c.l.b16 %v3694
        %v3707 = vunpack.c.l.b16 %v3695
        %v3708 = vunpack.c.l.b16 %v3696
        %v3709 = vunpack.c.l.b16 %v3697
        %v3710 = vpack.c.b16 %v3707, %v3706
        %v3711 = vpack.c.b16 %v3709, %v3708
        %3714 = vmatpush.bf16.msra.mxu0 0
        %3715 = vmatpush.bf16.msra.mxu0 0
        %3716 = vmatpush.bf16.msra.mxu0 0
        %3717 = vmatpush.bf16.msra.mxu0 0
        %3718 = vmatpush.bf16.msra.mxu0 0
        %3719 = vmatpush.bf16.msra.mxu0 0
        %3720 = vmatpush.bf16.msra.mxu0 %v3711
        %3721 = vmatpush.bf16.msra.mxu0 %v3710
        %3722 = vmatmul.bf16.gmra.mxu0 %v3678
        %v3723 = vpop.f32.mrf.mxu0
        %v3724 = vadd.f32 %v3700, %v3723
        %v3725 = vpop.f32.mrf.mxu0
        %v3726 = vadd.f32 %v3700, %v3725
        %3727 = vdwg.mxu0
        %v3728 = vld [vmem:[%s53] sm:$0xf]
        %v3729 = vld [vmem:[%s53 + $0x4] sm:$0xf]
        %v3730 = vld [vmem:[%s53 + $0x8] sm:$0xf]
        %v3731 = vld [vmem:[%s53 + $0xc] sm:$0xf]
        %v3732 = vld [vmem:[%s59] sm:$0x1]
        %v3734 = vperm.slane %v3732, 0
        %v3740 = vunpack.c.l.b16 %v3728
        %v3741 = vunpack.c.l.b16 %v3729
        %v3742 = vunpack.c.l.b16 %v3730
        %v3743 = vunpack.c.l.b16 %v3731
        %v3744 = vpack.c.b16 %v3741, %v3740
        %v3745 = vpack.c.b16 %v3743, %v3742
        %3748 = vmatpush.bf16.msra.mxu0 0
        %3749 = vmatpush.bf16.msra.mxu0 0
        %3750 = vmatpush.bf16.msra.mxu0 0
        %3751 = vmatpush.bf16.msra.mxu0 0
        %3752 = vmatpush.bf16.msra.mxu0 0
        %3753 = vmatpush.bf16.msra.mxu0 0
        %3754 = vmatpush.bf16.msra.mxu0 %v3745
        %3755 = vmatpush.bf16.msra.mxu0 %v3744
        %3756 = vmatmul.bf16.gmra.mxu0 %v3678
        %v3757 = vpop.f32.mrf.mxu0
        %v3758 = vadd.f32 %v3734, %v3757
        %v3759 = vpop.f32.mrf.mxu0
        %v3760 = vadd.f32 %v3734, %v3759
        %3761 = vdwg.mxu0
        %v3762 = vpack.c.bf16 %v3692, %v3690
        %v3763 = vpack.c.bf16 %v3726, %v3724
        %v3765 = vsel %vm3044, %v3762, 0
        %v3768 = vsel %vm3044, %v3763, 0
        %3770 = vmatpush.bf16.xpose.msra.mxu0 0
        %3771 = vmatpush.bf16.xpose.msra.mxu0 0
        %3772 = vmatpush.bf16.xpose.msra.mxu0 0
        %3773 = vmatpush.bf16.xpose.msra.mxu0 0
        %3774 = vmatpush.bf16.xpose.msra.mxu0 0
        %3775 = vmatpush.bf16.xpose.msra.mxu0 0
        %3776 = vmatpush.bf16.xpose.msra.mxu0 0
        %3777 = vmatpush.bf16.xpose.msra.mxu0 %v3768
        %3778 = vmatmul.bf16.gmra.mxu0 %v3765
        %v3779 = vpop.f32.mrf.mxu0
        %v3780 = vadd.f32 0.0, %v3779
        %v3781 = vpop.f32.mrf.mxu0
        %v3782 = vadd.f32 0.0, %v3781
        %3783 = vdwg.mxu0
        %v3784 = vmul.f32 %v3780, 0.25
        %v3785 = vmul.f32 %v3782, 0.25
        %v3786 = vld [vmem:[%s61] sm:$0xff]
        %v3787 = vld [vmem:[%s61 + $0x8] sm:$0xff]
        %v3788 = vadd.f32 %v3784, %v3786
        %v3789 = vadd.f32 %v3785, %v3787
        %v3790 = vsel %vm3044, %v3788, -inf
        %3791 = vmax.xlane.f32.xlu0 %v3790
        %v3792 = vpop.xlane.xlu0 %3791
        %v3793 = vsel %vm3044, %v3789, -inf
        %3794 = vmax.xlane.f32.xlu0 %v3793
        %v3795 = vpop.xlane.xlu0 %3794
        %v3796 = vsub.f32 %v3788, %v3792
        %v3797 = vsub.f32 %v3789, %v3795
        %v3798 = vmul.f32 %v3796, 1.442695
        %v3799 = vpow.pop %v3798
        %v3800 = vmul.f32 %v3797, 1.442695
        %v3801 = vpow.pop %v3800
        %v3802 = vsel %vm3044, %v3799, 0.0
        %3803 = vadd.xlane.f32.xlu0 %v3802
        %v3804 = vpop.xlane.xlu0 %3803
        %v3805 = vsel %vm3044, %v3801, 0.0
        %3806 = vadd.xlane.f32.xlu0 %v3805
        %v3807 = vpop.xlane.xlu0 %3806
        %v3808 = vrcp.pop %v3804
        %v3809 = vmul.f32 %v3804, %v3808
        %v3810 = vsub.f32 1.0, %v3809
        %v3811 = vmul.f32 %v3808, %v3810
        %v3812 = vadd.f32 %v3808, %v3811
        %vm3813 = vweird.f32 %v3804
        %vm3814 = vweird.f32 %v3808
        %vm3815 = vmor %vm3813, %vm3814
        %v3816 = vsel %vm3815, %v3808, %v3812
        %v3817 = vand.u32 2147483647, %v3804
        %vm3818 = vcmp.eq.f32.partialorder %v3817, 8.507059e+37
        %v3819 = vand.u32 %v3804, 2147483648
        %v3820 = vor.u32 1.1754944e-38, %v3819
        %v3821 = vsel %vm3818, %v3820, %v3816
        %v3822 = vmul.f32 %v3799, %v3821
        %v3823 = vrcp.pop %v3807
        %v3824 = vmul.f32 %v3807, %v3823
        %v3825 = vsub.f32 1.0, %v3824
        %v3826 = vmul.f32 %v3823, %v3825
        %v3827 = vadd.f32 %v3823, %v3826
        %vm3828 = vweird.f32 %v3807
        %vm3829 = vweird.f32 %v3823
        %vm3830 = vmor %vm3828, %vm3829
        %v3831 = vsel %vm3830, %v3823, %v3827
        %v3832 = vand.u32 2147483647, %v3807
        %vm3833 = vcmp.eq.f32.partialorder %v3832, 8.507059e+37
        %v3834 = vand.u32 %v3807, 2147483648
        %v3835 = vor.u32 1.1754944e-38, %v3834
        %v3836 = vsel %vm3833, %v3835, %v3831
        %v3837 = vmul.f32 %v3801, %v3836
        %v3838 = vpack.c.bf16 %v3837, %v3822
        %v3839 = vpack.c.bf16 %v3760, %v3758
        %v3841 = vsel %vm3044, %v3838, 0
        %3843 = vmatpush.bf16.msra.mxu0 0
        %3844 = vmatpush.bf16.msra.mxu0 0
        %3845 = vmatpush.bf16.msra.mxu0 0
        %3846 = vmatpush.bf16.msra.mxu0 0
        %3847 = vmatpush.bf16.msra.mxu0 0
        %3848 = vmatpush.bf16.msra.mxu0 0
        %3849 = vmatpush.bf16.msra.mxu0 0
        %3850 = vmatpush.bf16.msra.mxu0 %v3839
        %3851 = vmatmul.bf16.gmra.mxu0 %v3841
        %v3852 = vpop.f32.mrf.mxu0
        %v3853 = vadd.f32 0.0, %v3852
        %v3854 = vpop.f32.mrf.mxu0
        %v3855 = vadd.f32 0.0, %v3854
        %3856 = vdwg.mxu0
        %v3857 = vpack.c.bf16 %v3855, %v3853
        %v3858 = vld [vmem:[%s63] sm:$0xf]
        %v3859 = vld [vmem:[%s63 + $0x4] sm:$0xf]
        %s3860 = scalar_lea.vmem %s49, 16
        %v3861 = vld [vmem:[%s3860] sm:$0xf]
        %v3862 = vld [vmem:[%s3860 + $0x4] sm:$0xf]
        %v3863 = vld [vmem:[%s3860 + $0x8] sm:$0xf]
        %v3864 = vld [vmem:[%s3860 + $0xc] sm:$0xf]
        %s3865 = scalar_lea.vmem %s55, 1
        %v3866 = vld [vmem:[%s3865] sm:$0x1]
        %v3868 = vperm.slane %v3866, 0
        %v3874 = vunpack.c.l.b16 %v3861
        %v3875 = vunpack.c.l.b16 %v3862
        %v3876 = vunpack.c.l.b16 %v3863
        %v3877 = vunpack.c.l.b16 %v3864
        %v3878 = vpack.c.b16 %v3875, %v3874
        %v3879 = vpack.c.b16 %v3877, %v3876
        %3882 = vmatpush.bf16.msra.mxu0 0
        %3883 = vmatpush.bf16.msra.mxu0 0
        %3884 = vmatpush.bf16.msra.mxu0 0
        %3885 = vmatpush.bf16.msra.mxu0 0
        %3886 = vmatpush.bf16.msra.mxu0 0
        %3887 = vmatpush.bf16.msra.mxu0 0
        %3888 = vmatpush.bf16.msra.mxu0 %v3879
        %3889 = vmatpush.bf16.msra.mxu0 %v3878
        %3890 = vmatmul.bf16.gmra.mxu0 %v3678
        %v3891 = vpop.f32.mrf.mxu0
        %v3892 = vadd.f32 %v3868, %v3891
        %v3893 = vpop.f32.mrf.mxu0
        %v3894 = vadd.f32 %v3868, %v3893
        %3895 = vdwg.mxu0
        %s3896 = scalar_lea.vmem %s51, 16
        %v3897 = vld [vmem:[%s3896] sm:$0xf]
        %v3898 = vld [vmem:[%s3896 + $0x4] sm:$0xf]
        %v3899 = vld [vmem:[%s3896 + $0x8] sm:$0xf]
        %v3900 = vld [vmem:[%s3896 + $0xc] sm:$0xf]
        %s3901 = scalar_lea.vmem %s57, 1
        %v3902 = vld [vmem:[%s3901] sm:$0x1]
        %v3904 = vperm.slane %v3902, 0
        %v3910 = vunpack.c.l.b16 %v3897
        %v3911 = vunpack.c.l.b16 %v3898
        %v3912 = vunpack.c.l.b16 %v3899
        %v3913 = vunpack.c.l.b16 %v3900
        %v3914 = vpack.c.b16 %v3911, %v3910
        %v3915 = vpack.c.b16 %v3913, %v3912
        %3918 = vmatpush.bf16.msra.mxu0 0
        %3919 = vmatpush.bf16.msra.mxu0 0
        %3920 = vmatpush.bf16.msra.mxu0 0
        %3921 = vmatpush.bf16.msra.mxu0 0
        %3922 = vmatpush.bf16.msra.mxu0 0
        %3923 = vmatpush.bf16.msra.mxu0 0
        %3924 = vmatpush.bf16.msra.mxu0 %v3915
        %3925 = vmatpush.bf16.msra.mxu0 %v3914
        %3926 = vmatmul.bf16.gmra.mxu0 %v3678
        %v3927 = vpop.f32.mrf.mxu0
        %v3928 = vadd.f32 %v3904, %v3927
        %v3929 = vpop.f32.mrf.mxu0
        %v3930 = vadd.f32 %v3904, %v3929
        %3931 = vdwg.mxu0
        %s3932 = scalar_lea.vmem %s53, 16
        %v3933 = vld [vmem:[%s3932] sm:$0xf]
        %v3934 = vld [vmem:[%s3932 + $0x4] sm:$0xf]
        %v3935 = vld [vmem:[%s3932 + $0x8] sm:$0xf]
        %v3936 = vld [vmem:[%s3932 + $0xc] sm:$0xf]
        %s3937 = scalar_lea.vmem %s59, 1
        %v3938 = vld [vmem:[%s3937] sm:$0x1]
        %v3940 = vperm.slane %v3938, 0
        %v3946 = vunpack.c.l.b16 %v3933
        %v3947 = vunpack.c.l.b16 %v3934
        %v3948 = vunpack.c.l.b16 %v3935
        %v3949 = vunpack.c.l.b16 %v3936
        %v3950 = vpack.c.b16 %v3947, %v3946
        %v3951 = vpack.c.b16 %v3949, %v3948
        %3954 = vmatpush.bf16.msra.mxu0 0
        %3955 = vmatpush.bf16.msra.mxu0 0
        %3956 = vmatpush.bf16.msra.mxu0 0
        %3957 = vmatpush.bf16.msra.mxu0 0
        %3958 = vmatpush.bf16.msra.mxu0 0
        %3959 = vmatpush.bf16.msra.mxu0 0
        %3960 = vmatpush.bf16.msra.mxu0 %v3951
        %3961 = vmatpush.bf16.msra.mxu0 %v3950
        %3962 = vmatmul.bf16.gmra.mxu0 %v3678
        %v3963 = vpop.f32.mrf.mxu0
        %v3964 = vadd.f32 %v3940, %v3963
        %v3965 = vpop.f32.mrf.mxu0
        %v3966 = vadd.f32 %v3940, %v3965
        %3967 = vdwg.mxu0
        %v3968 = vpack.c.bf16 %v3894, %v3892
        %v3969 = vpack.c.bf16 %v3930, %v3928
        %v3971 = vsel %vm3044, %v3968, 0
        %v3974 = vsel %vm3044, %v3969, 0
        %3976 = vmatpush.bf16.xpose.msra.mxu0 0
        %3977 = vmatpush.bf16.xpose.msra.mxu0 0
        %3978 = vmatpush.bf16.xpose.msra.mxu0 0
        %3979 = vmatpush.bf16.xpose.msra.mxu0 0
        %3980 = vmatpush.bf16.xpose.msra.mxu0 0
        %3981 = vmatpush.bf16.xpose.msra.mxu0 0
        %3982 = vmatpush.bf16.xpose.msra.mxu0 0
        %3983 = vmatpush.bf16.xpose.msra.mxu0 %v3974
        %3984 = vmatmul.bf16.gmra.mxu0 %v3971
        %v3985 = vpop.f32.mrf.mxu0
        %v3986 = vadd.f32 0.0, %v3985
        %v3987 = vpop.f32.mrf.mxu0
        %v3988 = vadd.f32 0.0, %v3987
        %3989 = vdwg.mxu0
        %v3990 = vmul.f32 %v3986, 0.25
        %v3991 = vmul.f32 %v3988, 0.25
        %s3992 = scalar_lea.vmem %s61, 16
        %v3993 = vld [vmem:[%s3992] sm:$0xff]
        %v3994 = vld [vmem:[%s3992 + $0x8] sm:$0xff]
        %v3995 = vadd.f32 %v3990, %v3993
        %v3996 = vadd.f32 %v3991, %v3994
        %v3997 = vsel %vm3044, %v3995, -inf
        %3998 = vmax.xlane.f32.xlu0 %v3997
        %v3999 = vpop.xlane.xlu0 %3998
        %v4000 = vsel %vm3044, %v3996, -inf
        %4001 = vmax.xlane.f32.xlu0 %v4000
        %v4002 = vpop.xlane.xlu0 %4001
        %v4003 = vsub.f32 %v3995, %v3999
        %v4004 = vsub.f32 %v3996, %v4002
        %v4005 = vmul.f32 %v4003, 1.442695
        %v4006 = vpow.pop %v4005
        %v4007 = vmul.f32 %v4004, 1.442695
        %v4008 = vpow.pop %v4007
        %v4009 = vsel %vm3044, %v4006, 0.0
        %4010 = vadd.xlane.f32.xlu0 %v4009
        %v4011 = vpop.xlane.xlu0 %4010
        %v4012 = vsel %vm3044, %v4008, 0.0
        %4013 = vadd.xlane.f32.xlu0 %v4012
        %v4014 = vpop.xlane.xlu0 %4013
        %v4015 = vrcp.pop %v4011
        %v4016 = vmul.f32 %v4011, %v4015
        %v4017 = vsub.f32 1.0, %v4016
        %v4018 = vmul.f32 %v4015, %v4017
        %v4019 = vadd.f32 %v4015, %v4018
        %vm4020 = vweird.f32 %v4011
        %vm4021 = vweird.f32 %v4015
        %vm4022 = vmor %vm4020, %vm4021
        %v4023 = vsel %vm4022, %v4015, %v4019
        %v4024 = vand.u32 2147483647, %v4011
        %vm4025 = vcmp.eq.f32.partialorder %v4024, 8.507059e+37
        %v4026 = vand.u32 %v4011, 2147483648
        %v4027 = vor.u32 1.1754944e-38, %v4026
        %v4028 = vsel %vm4025, %v4027, %v4023
        %v4029 = vmul.f32 %v4006, %v4028
        %v4030 = vrcp.pop %v4014
        %v4031 = vmul.f32 %v4014, %v4030
        %v4032 = vsub.f32 1.0, %v4031
        %v4033 = vmul.f32 %v4030, %v4032
        %v4034 = vadd.f32 %v4030, %v4033
        %vm4035 = vweird.f32 %v4014
        %vm4036 = vweird.f32 %v4030
        %vm4037 = vmor %vm4035, %vm4036
        %v4038 = vsel %vm4037, %v4030, %v4034
        %v4039 = vand.u32 2147483647, %v4014
        %vm4040 = vcmp.eq.f32.partialorder %v4039, 8.507059e+37
        %v4041 = vand.u32 %v4014, 2147483648
        %v4042 = vor.u32 1.1754944e-38, %v4041
        %v4043 = vsel %vm4040, %v4042, %v4038
        %v4044 = vmul.f32 %v4008, %v4043
        %v4045 = vpack.c.bf16 %v4044, %v4029
        %v4046 = vpack.c.bf16 %v3966, %v3964
        %v4048 = vsel %vm3044, %v4045, 0
        %4050 = vmatpush.bf16.msra.mxu0 0
        %4051 = vmatpush.bf16.msra.mxu0 0
        %4052 = vmatpush.bf16.msra.mxu0 0
        %4053 = vmatpush.bf16.msra.mxu0 0
        %4054 = vmatpush.bf16.msra.mxu0 0
        %4055 = vmatpush.bf16.msra.mxu0 0
        %4056 = vmatpush.bf16.msra.mxu0 0
        %4057 = vmatpush.bf16.msra.mxu0 %v4046
        %4058 = vmatmul.bf16.gmra.mxu0 %v4048
        %v4059 = vpop.f32.mrf.mxu0
        %v4060 = vadd.f32 0.0, %v4059
        %v4061 = vpop.f32.mrf.mxu0
        %v4062 = vadd.f32 0.0, %v4061
        %4063 = vdwg.mxu0
        %v4064 = vpack.c.bf16 %v4062, %v4060
        %s4065 = scalar_lea.vmem %s63, 8
        %v4066 = vld [vmem:[%s4065] sm:$0xf]
        %v4067 = vld [vmem:[%s4065 + $0x4] sm:$0xf]
        %v4070 = vunpack.c.l.b16 %v4066
        %v4071 = vunpack.c.l.b16 %v4067
        %v4072 = vpack.c.b16 %v4071, %v4070
        %v4075 = vsel %vm3044, %v4064, 0
        %4077 = vmatpush.bf16.msra.mxu0 0
        %4078 = vmatpush.bf16.msra.mxu0 0
        %4079 = vmatpush.bf16.msra.mxu0 0
        %4080 = vmatpush.bf16.msra.mxu0 0
        %4081 = vmatpush.bf16.msra.mxu0 0
        %4082 = vmatpush.bf16.msra.mxu0 0
        %4083 = vmatpush.bf16.msra.mxu0 0
        %4084 = vmatpush.bf16.msra.mxu0 %v4072
        %4085 = vmatmul.bf16.gmra.mxu0 %v4075
        %v4086 = vpop.f32.mrf.mxu0
        %v4087 = vadd.f32 0.0, %v4086
        %v4088 = vpop.f32.mrf.mxu0
        %v4089 = vadd.f32 0.0, %v4088
        %4090 = vdwg.mxu0
        %v4093 = vunpack.c.l.b16 %v3858
        %v4094 = vunpack.c.l.b16 %v3859
        %v4095 = vpack.c.b16 %v4094, %v4093
        %v4098 = vsel %vm3044, %v3857, 0
        %4100 = vmatpush.bf16.msra.mxu0 0
        %4101 = vmatpush.bf16.msra.mxu0 0
        %4102 = vmatpush.bf16.msra.mxu0 0
        %4103 = vmatpush.bf16.msra.mxu0 0
        %4104 = vmatpush.bf16.msra.mxu0 0
        %4105 = vmatpush.bf16.msra.mxu0 0
        %4106 = vmatpush.bf16.msra.mxu0 0
        %4107 = vmatpush.bf16.msra.mxu0 %v4095
        %4108 = vmatmul.bf16.gmra.mxu0 %v4098
        %v4109 = vpop.f32.mrf.mxu0
        %v4110 = vadd.f32 %v4087, %v4109
        %v4111 = vpop.f32.mrf.mxu0
        %v4112 = vadd.f32 %v4089, %v4111
        %4113 = vdwg.mxu0
        %v4114 = vadd.f32 %v3598, %v4110
        %v4115 = vadd.f32 %v3599, %v4112
        %v4116 = vld [vmem:[#allocation21] sm:$0x1]
        %v4118 = vperm.slane %v4116, 0
        %v4120 = vadd.f32 %v4114, %v4118
        %v4121 = vadd.f32 %v4115, %v4118
        %v4122 = vld [vmem:[#allocation22] sm:$0x1]
        %v4123 = vld [vmem:[#allocation24] sm:$0x1]
        %v4124 = vsel %vm2818, %v4120, 0.0
        %4125 = vadd.xlane.f32.xlu0 %v4124
        %v4126 = vpop.xlane.xlu0 %4125
        %v4127 = vsel %vm2818, %v4121, 0.0
        %4128 = vadd.xlane.f32.xlu0 %v4127
        %v4129 = vpop.xlane.xlu0 %4128
        %v4130 = vmul.f32 %v4126, %v2831
        %v4131 = vmul.f32 %v4129, %v2831
        %v4132 = vsub.f32 %v4120, %v4130
        %v4133 = vsub.f32 %v4121, %v4131
        %v4134 = vmul.f32 %v4132, %v4132
        %v4135 = vmul.f32 %v4133, %v4133
        %v4136 = vsel %vm2818, %v4134, 0.0
        %4137 = vadd.xlane.f32.xlu0 %v4136
        %v4138 = vpop.xlane.xlu0 %4137
        %v4139 = vsel %vm2818, %v4135, 0.0
        %4140 = vadd.xlane.f32.xlu0 %v4139
        %v4141 = vpop.xlane.xlu0 %4140
        %v4142 = vmul.f32 %v4138, %v2831
        %v4143 = vmul.f32 %v4141, %v2831
        %v4144 = vadd.f32 %v4142, 1e-05
        %v4145 = vadd.f32 %v4143, 1e-05
        %v4146 = vrsqrt.pop %v4144
        %v4147 = vmul.f32 %v4146, %v4144
        %v4148 = vmul.f32 %v4147, %v4146
        %v4149 = vmul.f32 0.5, %v4148
        %v4150 = vsub.f32 1.5, %v4149
        %v4151 = vmul.f32 %v4146, %v4150
        %vm4152 = vweird.f32 %v4144
        %vm4153 = vweird.f32 %v4146
        %vm4154 = vmor %vm4152, %vm4153
        %v4155 = vsel %vm4154, %v4146, %v4151
        %v4156 = vrsqrt.pop %v4145
        %v4157 = vmul.f32 %v4156, %v4145
        %v4158 = vmul.f32 %v4157, %v4156
        %v4159 = vmul.f32 0.5, %v4158
        %v4160 = vsub.f32 1.5, %v4159
        %v4161 = vmul.f32 %v4156, %v4160
        %vm4162 = vweird.f32 %v4145
        %vm4163 = vweird.f32 %v4156
        %vm4164 = vmor %vm4162, %vm4163
        %v4165 = vsel %vm4164, %v4156, %v4161
        %v4166 = vmul.f32 %v4132, %v4155
        %v4167 = vmul.f32 %v4133, %v4165
        %v4169 = vperm.slane %v4122, 0
        %v4171 = vmul.f32 %v4166, %v4169
        %v4172 = vmul.f32 %v4167, %v4169
        %v4174 = vperm.slane %v4123, 0
        %v4176 = vadd.f32 %v4171, %v4174
        %v4177 = vadd.f32 %v4172, %v4174
        %v4178 = vpack.c.bf16 %v4177, %v4176
        %v4179 = vld [vmem:[%s71] sm:$0xf]
        %v4180 = vld [vmem:[%s71 + $0x4] sm:$0xf]
        %v4181 = vld [vmem:[%s71 + $0x8] sm:$0xf]
        %v4182 = vld [vmem:[%s71 + $0xc] sm:$0xf]
        %v4183 = vld [vmem:[#allocation25] sm:$0x1]
        %v4185 = vperm.slane %v4183, 0
        %v4191 = vunpack.c.l.b16 %v4179
        %v4192 = vunpack.c.l.b16 %v4180
        %v4193 = vunpack.c.l.b16 %v4181
        %v4194 = vunpack.c.l.b16 %v4182
        %v4195 = vpack.c.b16 %v4192, %v4191
        %v4196 = vpack.c.b16 %v4194, %v4193
        %v4200 = vsel %vm2818, %v4178, 0
        %4202 = vmatpush.bf16.msra.mxu0 0
        %4203 = vmatpush.bf16.msra.mxu0 0
        %4204 = vmatpush.bf16.msra.mxu0 0
        %4205 = vmatpush.bf16.msra.mxu0 0
        %4206 = vmatpush.bf16.msra.mxu0 0
        %4207 = vmatpush.bf16.msra.mxu0 0
        %4208 = vmatpush.bf16.msra.mxu0 %v4196
        %4209 = vmatpush.bf16.msra.mxu0 %v4195
        %4210 = vmatmul.bf16.gmra.mxu0 %v4200
        %v4211 = vpop.f32.mrf.mxu0
        %v4212 = vadd.f32 %v4185, %v4211
        %v4213 = vpop.f32.mrf.mxu0
        %v4214 = vadd.f32 %v4185, %v4213
        %4215 = vdwg.mxu0
        %v4216 = vmul.f32 %v4212, %v4212
        %v4217 = vmul.f32 %v4214, %v4214
        %v4218 = vmul.f32 %v4212, %v4216
        %v4219 = vmul.f32 %v4214, %v4217
        %v4220 = vmul.f32 %v4218, 0.044715
        %v4221 = vmul.f32 %v4219, 0.044715
        %v4222 = vadd.f32 %v4212, %v4220
        %v4223 = vadd.f32 %v4214, %v4221
        %v4224 = vmul.f32 %v4222, 0.7978846
        %v4225 = vmul.f32 %v4223, 0.7978846
        %v4226 = vtanh.pop %v4224
        %v4227 = vtanh.pop %v4225
        %v4228 = vadd.f32 %v4226, 1.0
        %v4229 = vadd.f32 %v4227, 1.0
        %v4230 = vmul.f32 %v4228, 0.5
        %v4231 = vmul.f32 %v4229, 0.5
        %v4232 = vmul.f32 %v4212, %v4230
        %v4233 = vmul.f32 %v4214, %v4231
        %v4234 = vpack.c.bf16 %v4233, %v4232
        %v4235 = vld [vmem:[%s75] sm:$0xf]
        %v4236 = vld [vmem:[%s75 + $0x4] sm:$0xf]
        %v4237 = vld [vmem:[%s75 + $0x8] sm:$0xf]
        %v4238 = vld [vmem:[%s75 + $0xc] sm:$0xf]
        %v4239 = vld [vmem:[%s75 + $0x10] sm:$0xf]
        %v4240 = vld [vmem:[%s75 + $0x14] sm:$0xf]
        %v4241 = vld [vmem:[%s75 + $0x18] sm:$0xf]
        %v4242 = vld [vmem:[%s75 + $0x1c] sm:$0xf]
        %v4243 = vld [vmem:[%s75 + $0x20] sm:$0xf]
        %v4244 = vld [vmem:[%s75 + $0x24] sm:$0xf]
        %v4245 = vld [vmem:[%s75 + $0x28] sm:$0xf]
        %v4246 = vld [vmem:[%s75 + $0x2c] sm:$0xf]
        %v4247 = vld [vmem:[%s75 + $0x30] sm:$0xf]
        %v4248 = vld [vmem:[%s75 + $0x34] sm:$0xf]
        %v4249 = vld [vmem:[%s75 + $0x38] sm:$0xf]
        %v4250 = vld [vmem:[%s75 + $0x3c] sm:$0xf]
        %v4251 = vld [vmem:[#allocation27] sm:$0x1]
        %v4253 = vperm.slane %v4251, 0
        %v4271 = vunpack.c.l.b16 %v4235
        %v4272 = vunpack.c.l.b16 %v4236
        %v4273 = vunpack.c.l.b16 %v4237
        %v4274 = vunpack.c.l.b16 %v4238
        %v4275 = vunpack.c.l.b16 %v4239
        %v4276 = vunpack.c.l.b16 %v4240
        %v4277 = vunpack.c.l.b16 %v4241
        %v4278 = vunpack.c.l.b16 %v4242
        %v4279 = vunpack.c.l.b16 %v4243
        %v4280 = vunpack.c.l.b16 %v4244
        %v4281 = vunpack.c.l.b16 %v4245
        %v4282 = vunpack.c.l.b16 %v4246
        %v4283 = vunpack.c.l.b16 %v4247
        %v4284 = vunpack.c.l.b16 %v4248
        %v4285 = vunpack.c.l.b16 %v4249
        %v4286 = vunpack.c.l.b16 %v4250
        %v4287 = vpack.c.b16 %v4272, %v4271
        %v4288 = vpack.c.b16 %v4274, %v4273
        %v4289 = vpack.c.b16 %v4276, %v4275
        %v4290 = vpack.c.b16 %v4278, %v4277
        %v4291 = vpack.c.b16 %v4280, %v4279
        %v4292 = vpack.c.b16 %v4282, %v4281
        %v4293 = vpack.c.b16 %v4284, %v4283
        %v4294 = vpack.c.b16 %v4286, %v4285
        %4303 = vmatpush.bf16.msra.mxu0 %v4294
        %4304 = vmatpush.bf16.msra.mxu0 %v4293
        %4305 = vmatpush.bf16.msra.mxu0 %v4292
        %4306 = vmatpush.bf16.msra.mxu0 %v4291
        %4307 = vmatpush.bf16.msra.mxu0 %v4290
        %4308 = vmatpush.bf16.msra.mxu0 %v4289
        %4309 = vmatpush.bf16.msra.mxu0 %v4288
        %4310 = vmatpush.bf16.msra.mxu0 %v4287
        %4311 = vmatmul.bf16.gmra.mxu0 %v4234
        %v4312 = vpop.f32.mrf.mxu0
        %v4313 = vadd.f32 %v4253, %v4312
        %v4314 = vpop.f32.mrf.mxu0
        %v4315 = vadd.f32 %v4253, %v4314
        %4316 = vdwg.mxu0
        %v4317 = vadd.f32 %v4120, %v4313
        %v4318 = vadd.f32 %v4121, %v4315
        %v4319 = vld [vmem:[%s79] sm:$0xf]
        %v4321 = vsel %vm3044, %v4319, 0
        %4323 = vmatpush.msra.mxu0 0.0
        %4324 = vmatpush.msra.mxu0 0.0
        %4325 = vmatpush.msra.mxu0 0.0
        %4326 = vmatpush.msra.mxu0 0.0
        %4327 = vmatpush.msra.mxu0 0.0
        %4328 = vmatpush.msra.mxu0 0.0
        %4329 = vmatpush.msra.mxu0 0.0
        %4330 = vmatpush.msra.mxu0 0.0
        %4331 = vmatpush.msra.mxu0 0.0
        %4332 = vmatpush.msra.mxu0 0.0
        %4333 = vmatpush.msra.mxu0 0.0
        %4334 = vmatpush.msra.mxu0 0.0
        %4335 = vmatpush.msra.mxu0 0.0
        %4336 = vmatpush.msra.mxu0 0.0
        %4337 = vmatpush.msra.mxu0 %v4318
        %4338 = vmatpush.msra.mxu0 %v4317
        %4339 = vmatmul.f32.gmra.mxu0 %v4321
        %v4340 = vpop.f32.mrf.mxu0
        %v4341 = vadd.f32 0.0, %v4340
        %4342 = vdwg.mxu0
        %s4343 = scalar_lea.vmem %s79, 4
        %v4344 = vld [vmem:[%s4343] sm:$0xf]
        %v4346 = vsel %vm3044, %v4344, 0
        %4348 = vmatpush.msra.mxu0 0.0
        %4349 = vmatpush.msra.mxu0 0.0
        %4350 = vmatpush.msra.mxu0 0.0
        %4351 = vmatpush.msra.mxu0 0.0
        %4352 = vmatpush.msra.mxu0 0.0
        %4353 = vmatpush.msra.mxu0 0.0
        %4354 = vmatpush.msra.mxu0 0.0
        %4355 = vmatpush.msra.mxu0 0.0
        %4356 = vmatpush.msra.mxu0 0.0
        %4357 = vmatpush.msra.mxu0 0.0
        %4358 = vmatpush.msra.mxu0 0.0
        %4359 = vmatpush.msra.mxu0 0.0
        %4360 = vmatpush.msra.mxu0 0.0
        %4361 = vmatpush.msra.mxu0 0.0
        %4362 = vmatpush.msra.mxu0 %v4318
        %4363 = vmatpush.msra.mxu0 %v4317
        %4364 = vmatmul.f32.gmra.mxu0 %v4346
        %v4365 = vpop.f32.mrf.mxu0
        %v4366 = vadd.f32 0.0, %v4365
        %4367 = vdwg.mxu0
        %s4368 = scalar_lea.vmem %s79, 8
        %v4369 = vld [vmem:[%s4368] sm:$0xf]
        %v4371 = vsel %vm3044, %v4369, 0
        %4373 = vmatpush.msra.mxu0 0.0
        %4374 = vmatpush.msra.mxu0 0.0
        %4375 = vmatpush.msra.mxu0 0.0
        %4376 = vmatpush.msra.mxu0 0.0
        %4377 = vmatpush.msra.mxu0 0.0
        %4378 = vmatpush.msra.mxu0 0.0
        %4379 = vmatpush.msra.mxu0 0.0
        %4380 = vmatpush.msra.mxu0 0.0
        %4381 = vmatpush.msra.mxu0 0.0
        %4382 = vmatpush.msra.mxu0 0.0
        %4383 = vmatpush.msra.mxu0 0.0
        %4384 = vmatpush.msra.mxu0 0.0
        %4385 = vmatpush.msra.mxu0 0.0
        %4386 = vmatpush.msra.mxu0 0.0
        %4387 = vmatpush.msra.mxu0 %v4318
        %4388 = vmatpush.msra.mxu0 %v4317
        %4389 = vmatmul.f32.gmra.mxu0 %v4371
        %v4390 = vpop.f32.mrf.mxu0
        %v4391 = vadd.f32 0.0, %v4390
        %4392 = vdwg.mxu0
        %s4393 = scalar_lea.vmem %s79, 12
        %v4394 = vld [vmem:[%s4393] sm:$0xf]
        %v4396 = vsel %vm3044, %v4394, 0
        %4398 = vmatpush.msra.mxu0 0.0
        %4399 = vmatpush.msra.mxu0 0.0
        %4400 = vmatpush.msra.mxu0 0.0
        %4401 = vmatpush.msra.mxu0 0.0
        %4402 = vmatpush.msra.mxu0 0.0
        %4403 = vmatpush.msra.mxu0 0.0
        %4404 = vmatpush.msra.mxu0 0.0
        %4405 = vmatpush.msra.mxu0 0.0
        %4406 = vmatpush.msra.mxu0 0.0
        %4407 = vmatpush.msra.mxu0 0.0
        %4408 = vmatpush.msra.mxu0 0.0
        %4409 = vmatpush.msra.mxu0 0.0
        %4410 = vmatpush.msra.mxu0 0.0
        %4411 = vmatpush.msra.mxu0 0.0
        %4412 = vmatpush.msra.mxu0 %v4318
        %4413 = vmatpush.msra.mxu0 %v4317
        %4414 = vmatmul.f32.gmra.mxu0 %v4396
        %v4415 = vpop.f32.mrf.mxu0
        %v4416 = vadd.f32 0.0, %v4415
        %4417 = vdwg.mxu0
        %vm4418 = vcmask 257024
        %v4419 = vsel %vm4418, %v4341, 0.0
        %4420 = vadd.xlane.f32.xlu0 %v4419
        %v4421 = vpop.xlane.xlu0 %4420
        %v4422 = vadd.f32 %v4421, 0.0
        %v4423 = vsel %vm4418, %v4366, 0.0
        %4424 = vadd.xlane.f32.xlu0 %v4423
        %v4425 = vpop.xlane.xlu0 %4424
        %v4426 = vadd.f32 %v4422, %v4425
        %v4427 = vsel %vm4418, %v4391, 0.0
        %4428 = vadd.xlane.f32.xlu0 %v4427
        %v4429 = vpop.xlane.xlu0 %4428
        %v4430 = vadd.f32 %v4426, %v4429
        %v4431 = vsel %vm4418, %v4416, 0.0
        %4432 = vadd.xlane.f32.xlu0 %v4431
        %v4433 = vpop.xlane.xlu0 %4432
        %v4434 = vadd.f32 %v4430, %v4433
        %v4435 = vmul.f32 %v4341, %v4341
        %v4436 = vsel %vm4418, %v4435, 0.0
        %4437 = vadd.xlane.f32.xlu0 %v4436
        %v4438 = vpop.xlane.xlu0 %4437
        %v4439 = vadd.f32 %v4438, 0.0
        %v4440 = vmul.f32 %v4366, %v4366
        %v4441 = vsel %vm4418, %v4440, 0.0
        %4442 = vadd.xlane.f32.xlu0 %v4441
        %v4443 = vpop.xlane.xlu0 %4442
        %v4444 = vadd.f32 %v4439, %v4443
        %v4445 = vmul.f32 %v4391, %v4391
        %v4446 = vsel %vm4418, %v4445, 0.0
        %4447 = vadd.xlane.f32.xlu0 %v4446
        %v4448 = vpop.xlane.xlu0 %4447
        %v4449 = vadd.f32 %v4444, %v4448
        %v4450 = vmul.f32 %v4416, %v4416
        %v4451 = vsel %vm4418, %v4450, 0.0
        %4452 = vadd.xlane.f32.xlu0 %v4451
        %v4453 = vpop.xlane.xlu0 %4452
        %v4454 = vadd.f32 %v4449, %v4453
        %v4455 = vmul.f32 %v4434, 0.0078125
        %v4456 = vmul.f32 %v4454, 0.0078125
        %v4457 = vmul.f32 %v4455, %v4455
        %v4458 = vsub.f32 %v4456, %v4457
        %v4459 = vadd.f32 %v4458, 1e-05
        %v4460 = vrsqrt.pop %v4459
        %v4461 = vmul.f32 %v4460, %v4459
        %v4462 = vmul.f32 %v4461, %v4460
        %v4463 = vmul.f32 0.5, %v4462
        %v4464 = vsub.f32 1.5, %v4463
        %v4465 = vmul.f32 %v4460, %v4464
        %vm4466 = vweird.f32 %v4459
        %vm4467 = vweird.f32 %v4460
        %vm4468 = vmor %vm4466, %vm4467
        %v4469 = vsel %vm4468, %v4460, %v4465
        %v4470 = vsub.f32 %v4341, %v4455
        %v4471 = vmul.f32 %v4470, %v4469
        %v4472 = vld [vmem:[%s81] sm:$0x1]
        %v4474 = vperm.slane %v4472, 0
        %v4476 = vmul.f32 %v4471, %v4474
        %v4477 = vld [vmem:[%s83] sm:$0x1]
        %v4479 = vperm.slane %v4477, 0
        %v4481 = vadd.f32 %v4476, %v4479
        %v4482 = vpack.c.bf16 %v4481, %v4481
        %v4483 = vld [vmem:[%s85] sm:$0xf]
        %v4484 = vld [vmem:[%s85 + $0x4] sm:$0xf]
        %v4485 = vld [vmem:[%s85 + $0x8] sm:$0xf]
        %v4486 = vld [vmem:[%s85 + $0xc] sm:$0xf]
        %v4487 = vsub.f32 %v4366, %v4455
        %v4488 = vmul.f32 %v4487, %v4469
        %s4489 = scalar_lea.vmem %s81, 1
        %v4490 = vld [vmem:[%s4489] sm:$0x1]
        %v4492 = vperm.slane %v4490, 0
        %v4494 = vmul.f32 %v4488, %v4492
        %s4495 = scalar_lea.vmem %s83, 1
        %v4496 = vld [vmem:[%s4495] sm:$0x1]
        %v4498 = vperm.slane %v4496, 0
        %v4500 = vadd.f32 %v4494, %v4498
        %v4501 = vpack.c.bf16 %v4500, %v4500
        %s4502 = scalar_lea.vmem %s85, 16
        %v4503 = vld [vmem:[%s4502] sm:$0xf]
        %v4504 = vld [vmem:[%s4502 + $0x4] sm:$0xf]
        %v4505 = vld [vmem:[%s4502 + $0x8] sm:$0xf]
        %v4506 = vld [vmem:[%s4502 + $0xc] sm:$0xf]
        %v4511 = vunpack.c.l.b16 %v4503
        %v4512 = vunpack.c.l.b16 %v4504
        %v4513 = vunpack.c.l.b16 %v4505
        %v4514 = vunpack.c.l.b16 %v4506
        %v4515 = vpack.c.b16 %v4512, %v4511
        %v4516 = vpack.c.b16 %v4514, %v4513
        %v4520 = vsel %vm2818, %v4501, 0
        %4522 = vmatpush.bf16.msra.mxu0 0
        %4523 = vmatpush.bf16.msra.mxu0 0
        %4524 = vmatpush.bf16.msra.mxu0 0
        %4525 = vmatpush.bf16.msra.mxu0 0
        %4526 = vmatpush.bf16.msra.mxu0 0
        %4527 = vmatpush.bf16.msra.mxu0 0
        %4528 = vmatpush.bf16.msra.mxu0 %v4516
        %4529 = vmatpush.bf16.msra.mxu0 %v4515
        %4530 = vmatmul.bf16.gmra.mxu0 %v4520
        %v4531 = vpop.f32.mrf.mxu0
        %v4532 = vadd.f32 0.0, %v4531
        %v4533 = vpop.f32.mrf.mxu0
        %4534 = vdwg.mxu0
        %v4539 = vunpack.c.l.b16 %v4483
        %v4540 = vunpack.c.l.b16 %v4484
        %v4541 = vunpack.c.l.b16 %v4485
        %v4542 = vunpack.c.l.b16 %v4486
        %v4543 = vpack.c.b16 %v4540, %v4539
        %v4544 = vpack.c.b16 %v4542, %v4541
        %v4548 = vsel %vm2818, %v4482, 0
        %4550 = vmatpush.bf16.msra.mxu0 0
        %4551 = vmatpush.bf16.msra.mxu0 0
        %4552 = vmatpush.bf16.msra.mxu0 0
        %4553 = vmatpush.bf16.msra.mxu0 0
        %4554 = vmatpush.bf16.msra.mxu0 0
        %4555 = vmatpush.bf16.msra.mxu0 0
        %4556 = vmatpush.bf16.msra.mxu0 %v4544
        %4557 = vmatpush.bf16.msra.mxu0 %v4543
        %4558 = vmatmul.bf16.gmra.mxu0 %v4548
        %v4559 = vpop.f32.mrf.mxu0
        %v4560 = vadd.f32 %v4532, %v4559
        %v4561 = vpop.f32.mrf.mxu0
        %4562 = vdwg.mxu0
        %v4563 = vsub.f32 %v4391, %v4455
        %v4564 = vmul.f32 %v4563, %v4469
        %s4565 = scalar_lea.vmem %s81, 2
        %v4566 = vld [vmem:[%s4565] sm:$0x1]
        %v4568 = vperm.slane %v4566, 0
        %v4570 = vmul.f32 %v4564, %v4568
        %s4571 = scalar_lea.vmem %s83, 2
        %v4572 = vld [vmem:[%s4571] sm:$0x1]
        %v4574 = vperm.slane %v4572, 0
        %v4576 = vadd.f32 %v4570, %v4574
        %v4577 = vpack.c.bf16 %v4576, %v4576
        %s4578 = scalar_lea.vmem %s85, 32
        %v4579 = vld [vmem:[%s4578] sm:$0xf]
        %v4580 = vld [vmem:[%s4578 + $0x4] sm:$0xf]
        %v4581 = vld [vmem:[%s4578 + $0x8] sm:$0xf]
        %v4582 = vld [vmem:[%s4578 + $0xc] sm:$0xf]
        %v4587 = vunpack.c.l.b16 %v4579
        %v4588 = vunpack.c.l.b16 %v4580
        %v4589 = vunpack.c.l.b16 %v4581
        %v4590 = vunpack.c.l.b16 %v4582
        %v4591 = vpack.c.b16 %v4588, %v4587
        %v4592 = vpack.c.b16 %v4590, %v4589
        %v4596 = vsel %vm2818, %v4577, 0
        %4598 = vmatpush.bf16.msra.mxu0 0
        %4599 = vmatpush.bf16.msra.mxu0 0
        %4600 = vmatpush.bf16.msra.mxu0 0
        %4601 = vmatpush.bf16.msra.mxu0 0
        %4602 = vmatpush.bf16.msra.mxu0 0
        %4603 = vmatpush.bf16.msra.mxu0 0
        %4604 = vmatpush.bf16.msra.mxu0 %v4592
        %4605 = vmatpush.bf16.msra.mxu0 %v4591
        %4606 = vmatmul.bf16.gmra.mxu0 %v4596
        %v4607 = vpop.f32.mrf.mxu0
        %v4608 = vadd.f32 0.0, %v4607
        %v4609 = vpop.f32.mrf.mxu0
        %4610 = vdwg.mxu0
        %v4611 = vadd.f32 %v4560, %v4608
        %v4612 = vsub.f32 %v4416, %v4455
        %v4613 = vmul.f32 %v4612, %v4469
        %s4614 = scalar_lea.vmem %s81, 3
        %v4615 = vld [vmem:[%s4614] sm:$0x1]
        %v4617 = vperm.slane %v4615, 0
        %v4619 = vmul.f32 %v4613, %v4617
        %s4620 = scalar_lea.vmem %s83, 3
        %v4621 = vld [vmem:[%s4620] sm:$0x1]
        %v4623 = vperm.slane %v4621, 0
        %v4625 = vadd.f32 %v4619, %v4623
        %v4626 = vpack.c.bf16 %v4625, %v4625
        %s4627 = scalar_lea.vmem %s85, 48
        %v4628 = vld [vmem:[%s4627] sm:$0xf]
        %v4629 = vld [vmem:[%s4627 + $0x4] sm:$0xf]
        %v4630 = vld [vmem:[%s4627 + $0x8] sm:$0xf]
        %v4631 = vld [vmem:[%s4627 + $0xc] sm:$0xf]
        %v4636 = vunpack.c.l.b16 %v4628
        %v4637 = vunpack.c.l.b16 %v4629
        %v4638 = vunpack.c.l.b16 %v4630
        %v4639 = vunpack.c.l.b16 %v4631
        %v4640 = vpack.c.b16 %v4637, %v4636
        %v4641 = vpack.c.b16 %v4639, %v4638
        %v4645 = vsel %vm2818, %v4626, 0
        %4647 = vmatpush.bf16.msra.mxu0 0
        %4648 = vmatpush.bf16.msra.mxu0 0
        %4649 = vmatpush.bf16.msra.mxu0 0
        %4650 = vmatpush.bf16.msra.mxu0 0
        %4651 = vmatpush.bf16.msra.mxu0 0
        %4652 = vmatpush.bf16.msra.mxu0 0
        %4653 = vmatpush.bf16.msra.mxu0 %v4641
        %4654 = vmatpush.bf16.msra.mxu0 %v4640
        %4655 = vmatmul.bf16.gmra.mxu0 %v4645
        %v4656 = vpop.f32.mrf.mxu0
        %v4657 = vadd.f32 0.0, %v4656
        %v4658 = vpop.f32.mrf.mxu0
        %4659 = vdwg.mxu0
        %v4660 = vadd.f32 %v4611, %v4657
        %v4661 = vld [vmem:[#allocation28] sm:$0x1]
        %v4662 = vld [vmem:[#allocation30] sm:$0x1]
        %vm4663 = vcmask 519168
        %v4664 = vsel %vm4663, %v4660, 0.0
        %4665 = vadd.xlane.f32.xlu0 %v4664
        %v4666 = vpop.xlane.xlu0 %4665
        %v4667 = vrcp.pop 64.0
        %v4668 = vmul.f32 64.0, %v4667
        %v4669 = vsub.f32 1.0, %v4668
        %v4670 = vmul.f32 %v4667, %v4669
        %v4671 = vadd.f32 %v4667, %v4670
        %vm4672 = vweird.f32 %v4667
        %v4673 = vsel %vm4672, %v4667, %v4671
        %v4674 = vmul.f32 %v4666, %v4673
        %v4675 = vsub.f32 %v4660, %v4674
        %v4676 = vmul.f32 %v4675, %v4675
        %v4677 = vsel %vm4663, %v4676, 0.0
        %4678 = vadd.xlane.f32.xlu0 %v4677
        %v4679 = vpop.xlane.xlu0 %4678
        %v4680 = vmul.f32 %v4679, %v4673
        %v4681 = vadd.f32 %v4680, 1e-05
        %v4682 = vrsqrt.pop %v4681
        %v4683 = vmul.f32 %v4682, %v4681
        %v4684 = vmul.f32 %v4683, %v4682
        %v4685 = vmul.f32 0.5, %v4684
        %v4686 = vsub.f32 1.5, %v4685
        %v4687 = vmul.f32 %v4682, %v4686
        %vm4688 = vweird.f32 %v4681
        %vm4689 = vweird.f32 %v4682
        %vm4690 = vmor %vm4688, %vm4689
        %v4691 = vsel %vm4690, %v4682, %v4687
        %v4692 = vmul.f32 %v4675, %v4691
        %v4694 = vperm.slane %v4661, 0
        %v4696 = vmul.f32 %v4692, %v4694
        %v4698 = vperm.slane %v4662, 0
        %v4700 = vadd.f32 %v4696, %v4698
        %v4701 = vpack.c.bf16 %v4700, %v4700
        %v4702 = vld [vmem:[%s91] sm:$0xf]
        %v4703 = vld [vmem:[%s91 + $0x4] sm:$0xf]
        %v4704 = vld [vmem:[%s91 + $0x8] sm:$0xf]
        %v4705 = vld [vmem:[%s91 + $0xc] sm:$0xf]
        %v4706 = vld [vmem:[%s91 + $0x10] sm:$0xf]
        %v4707 = vld [vmem:[%s91 + $0x14] sm:$0xf]
        %v4708 = vld [vmem:[%s91 + $0x18] sm:$0xf]
        %v4709 = vld [vmem:[%s91 + $0x1c] sm:$0xf]
        %v4710 = vld [vmem:[%s97] sm:$0x1]
        %v4712 = vperm.slane %v4710, 0
        %v4722 = vunpack.c.l.b16 %v4702
        %v4723 = vunpack.c.l.b16 %v4703
        %v4724 = vunpack.c.l.b16 %v4704
        %v4725 = vunpack.c.l.b16 %v4705
        %v4726 = vunpack.c.l.b16 %v4706
        %v4727 = vunpack.c.l.b16 %v4707
        %v4728 = vunpack.c.l.b16 %v4708
        %v4729 = vunpack.c.l.b16 %v4709
        %v4730 = vpack.c.b16 %v4723, %v4722
        %v4731 = vpack.c.b16 %v4725, %v4724
        %v4732 = vpack.c.b16 %v4727, %v4726
        %v4733 = vpack.c.b16 %v4729, %v4728
        %vm4738 = vcmask 523264
        %v4740 = vsel %vm4738, %v4701, 0
        %4742 = vmatpush.bf16.msra.mxu0 0
        %4743 = vmatpush.bf16.msra.mxu0 0
        %4744 = vmatpush.bf16.msra.mxu0 0
        %4745 = vmatpush.bf16.msra.mxu0 0
        %4746 = vmatpush.bf16.msra.mxu0 %v4733
        %4747 = vmatpush.bf16.msra.mxu0 %v4732
        %4748 = vmatpush.bf16.msra.mxu0 %v4731
        %4749 = vmatpush.bf16.msra.mxu0 %v4730
        %4750 = vmatmul.bf16.gmra.mxu0 %v4740
        %v4751 = vpop.f32.mrf.mxu0
        %v4752 = vadd.f32 %v4712, %v4751
        %v4753 = vpop.f32.mrf.mxu0
        %4754 = vdwg.mxu0
        %v4755 = vld [vmem:[%s93] sm:$0xf]
        %v4756 = vld [vmem:[%s93 + $0x4] sm:$0xf]
        %v4757 = vld [vmem:[%s93 + $0x8] sm:$0xf]
        %v4758 = vld [vmem:[%s93 + $0xc] sm:$0xf]
        %v4759 = vld [vmem:[%s93 + $0x10] sm:$0xf]
        %v4760 = vld [vmem:[%s93 + $0x14] sm:$0xf]
        %v4761 = vld [vmem:[%s93 + $0x18] sm:$0xf]
        %v4762 = vld [vmem:[%s93 + $0x1c] sm:$0xf]
        %v4763 = vld [vmem:[%s99] sm:$0x1]
        %v4765 = vperm.slane %v4763, 0
        %v4775 = vunpack.c.l.b16 %v4755
        %v4776 = vunpack.c.l.b16 %v4756
        %v4777 = vunpack.c.l.b16 %v4757
        %v4778 = vunpack.c.l.b16 %v4758
        %v4779 = vunpack.c.l.b16 %v4759
        %v4780 = vunpack.c.l.b16 %v4760
        %v4781 = vunpack.c.l.b16 %v4761
        %v4782 = vunpack.c.l.b16 %v4762
        %v4783 = vpack.c.b16 %v4776, %v4775
        %v4784 = vpack.c.b16 %v4778, %v4777
        %v4785 = vpack.c.b16 %v4780, %v4779
        %v4786 = vpack.c.b16 %v4782, %v4781
        %4791 = vmatpush.bf16.msra.mxu0 0
        %4792 = vmatpush.bf16.msra.mxu0 0
        %4793 = vmatpush.bf16.msra.mxu0 0
        %4794 = vmatpush.bf16.msra.mxu0 0
        %4795 = vmatpush.bf16.msra.mxu0 %v4786
        %4796 = vmatpush.bf16.msra.mxu0 %v4785
        %4797 = vmatpush.bf16.msra.mxu0 %v4784
        %4798 = vmatpush.bf16.msra.mxu0 %v4783
        %4799 = vmatmul.bf16.gmra.mxu0 %v4740
        %v4800 = vpop.f32.mrf.mxu0
        %v4801 = vadd.f32 %v4765, %v4800
        %v4802 = vpop.f32.mrf.mxu0
        %4803 = vdwg.mxu0
        %v4804 = vld [vmem:[%s95] sm:$0xf]
        %v4805 = vld [vmem:[%s95 + $0x4] sm:$0xf]
        %v4806 = vld [vmem:[%s95 + $0x8] sm:$0xf]
        %v4807 = vld [vmem:[%s95 + $0xc] sm:$0xf]
        %v4808 = vld [vmem:[%s95 + $0x10] sm:$0xf]
        %v4809 = vld [vmem:[%s95 + $0x14] sm:$0xf]
        %v4810 = vld [vmem:[%s95 + $0x18] sm:$0xf]
        %v4811 = vld [vmem:[%s95 + $0x1c] sm:$0xf]
        %v4812 = vld [vmem:[%s101] sm:$0x1]
        %v4814 = vperm.slane %v4812, 0
        %v4824 = vunpack.c.l.b16 %v4804
        %v4825 = vunpack.c.l.b16 %v4805
        %v4826 = vunpack.c.l.b16 %v4806
        %v4827 = vunpack.c.l.b16 %v4807
        %v4828 = vunpack.c.l.b16 %v4808
        %v4829 = vunpack.c.l.b16 %v4809
        %v4830 = vunpack.c.l.b16 %v4810
        %v4831 = vunpack.c.l.b16 %v4811
        %v4832 = vpack.c.b16 %v4825, %v4824
        %v4833 = vpack.c.b16 %v4827, %v4826
        %v4834 = vpack.c.b16 %v4829, %v4828
        %v4835 = vpack.c.b16 %v4831, %v4830
        %4840 = vmatpush.bf16.msra.mxu0 0
        %4841 = vmatpush.bf16.msra.mxu0 0
        %4842 = vmatpush.bf16.msra.mxu0 0
        %4843 = vmatpush.bf16.msra.mxu0 0
        %4844 = vmatpush.bf16.msra.mxu0 %v4835
        %4845 = vmatpush.bf16.msra.mxu0 %v4834
        %4846 = vmatpush.bf16.msra.mxu0 %v4833
        %4847 = vmatpush.bf16.msra.mxu0 %v4832
        %4848 = vmatmul.bf16.gmra.mxu0 %v4740
        %v4849 = vpop.f32.mrf.mxu0
        %v4850 = vadd.f32 %v4814, %v4849
        %v4851 = vpop.f32.mrf.mxu0
        %4852 = vdwg.mxu0
        %v4853 = vpack.c.bf16 %v4752, %v4752
        %v4854 = vpack.c.bf16 %v4801, %v4801
        %v4856 = vsel %vm3044, %v4853, 0
        %v4859 = vsel %vm3044, %v4854, 0
        %4861 = vmatpush.bf16.xpose.msra.mxu0 0
        %4862 = vmatpush.bf16.xpose.msra.mxu0 0
        %4863 = vmatpush.bf16.xpose.msra.mxu0 0
        %4864 = vmatpush.bf16.xpose.msra.mxu0 0
        %4865 = vmatpush.bf16.xpose.msra.mxu0 0
        %4866 = vmatpush.bf16.xpose.msra.mxu0 0
        %4867 = vmatpush.bf16.xpose.msra.mxu0 0
        %4868 = vmatpush.bf16.xpose.msra.mxu0 %v4859
        %4869 = vmatmul.bf16.gmra.mxu0 %v4856
        %v4870 = vpop.f32.mrf.mxu0
        %v4871 = vadd.f32 0.0, %v4870
        %v4872 = vpop.f32.mrf.mxu0
        %4873 = vdwg.mxu0
        %v4874 = vmul.f32 %v4871, 0.25
        %v4875 = vld [vmem:[%s103] sm:$0xf]
        %v4876 = vadd.f32 %v4874, %v4875
        %vm4877 = vcmask 27648
        %v4878 = vsel %vm4877, %v4876, -inf
        %4879 = vmax.xlane.f32.xlu0 %v4878
        %v4880 = vpop.xlane.xlu0 %4879
        %v4881 = vsub.f32 %v4876, %v4880
        %v4882 = vmul.f32 %v4881, 1.442695
        %v4883 = vpow.pop %v4882
        %v4884 = vsel %vm4877, %v4883, 0.0
        %4885 = vadd.xlane.f32.xlu0 %v4884
        %v4886 = vpop.xlane.xlu0 %4885
        %v4887 = vrcp.pop %v4886
        %v4888 = vmul.f32 %v4886, %v4887
        %v4889 = vsub.f32 1.0, %v4888
        %v4890 = vmul.f32 %v4887, %v4889
        %v4891 = vadd.f32 %v4887, %v4890
        %vm4892 = vweird.f32 %v4886
        %vm4893 = vweird.f32 %v4887
        %vm4894 = vmor %vm4892, %vm4893
        %v4895 = vsel %vm4894, %v4887, %v4891
        %v4896 = vand.u32 2147483647, %v4886
        %vm4897 = vcmp.eq.f32.partialorder %v4896, 8.507059e+37
        %v4898 = vand.u32 %v4886, 2147483648
        %v4899 = vor.u32 1.1754944e-38, %v4898
        %v4900 = vsel %vm4897, %v4899, %v4895
        %v4901 = vmul.f32 %v4883, %v4900
        %v4902 = vpack.c.bf16 %v4901, %v4901
        %v4903 = vpack.c.bf16 %v4850, %v4850
        %vm4904 = vcmask 31744
        %v4906 = vsel %vm4904, %v4902, 0
        %vm4908 = vcmask 1041408
        %v4910 = vsel %vm4908, %v4903, 0
        %4912 = vmatpush.bf16.msra.mxu0 0
        %4913 = vmatpush.bf16.msra.mxu0 0
        %4914 = vmatpush.bf16.msra.mxu0 0
        %4915 = vmatpush.bf16.msra.mxu0 0
        %4916 = vmatpush.bf16.msra.mxu0 0
        %4917 = vmatpush.bf16.msra.mxu0 0
        %4918 = vmatpush.bf16.msra.mxu0 0
        %4919 = vmatpush.bf16.msra.mxu0 %v4910
        %4920 = vmatmul.bf16.gmra.mxu0 %v4906
        %v4921 = vpop.f32.mrf.mxu0
        %v4922 = vadd.f32 0.0, %v4921
        %v4923 = vpop.f32.mrf.mxu0
        %4924 = vdwg.mxu0
        %v4925 = vpack.c.bf16 %v4922, %v4922
        %v4926 = vld [vmem:[%s105] sm:$0xf]
        %v4927 = vld [vmem:[%s105 + $0x4] sm:$0xf]
        %s4928 = scalar_lea.vmem %s91, 32
        %v4929 = vld [vmem:[%s4928] sm:$0xf]
        %v4930 = vld [vmem:[%s4928 + $0x4] sm:$0xf]
        %v4931 = vld [vmem:[%s4928 + $0x8] sm:$0xf]
        %v4932 = vld [vmem:[%s4928 + $0xc] sm:$0xf]
        %v4933 = vld [vmem:[%s4928 + $0x10] sm:$0xf]
        %v4934 = vld [vmem:[%s4928 + $0x14] sm:$0xf]
        %v4935 = vld [vmem:[%s4928 + $0x18] sm:$0xf]
        %v4936 = vld [vmem:[%s4928 + $0x1c] sm:$0xf]
        %s4937 = scalar_lea.vmem %s97, 1
        %v4938 = vld [vmem:[%s4937] sm:$0x1]
        %v4940 = vperm.slane %v4938, 0
        %v4950 = vunpack.c.l.b16 %v4929
        %v4951 = vunpack.c.l.b16 %v4930
        %v4952 = vunpack.c.l.b16 %v4931
        %v4953 = vunpack.c.l.b16 %v4932
        %v4954 = vunpack.c.l.b16 %v4933
        %v4955 = vunpack.c.l.b16 %v4934
        %v4956 = vunpack.c.l.b16 %v4935
        %v4957 = vunpack.c.l.b16 %v4936
        %v4958 = vpack.c.b16 %v4951, %v4950
        %v4959 = vpack.c.b16 %v4953, %v4952
        %v4960 = vpack.c.b16 %v4955, %v4954
        %v4961 = vpack.c.b16 %v4957, %v4956
        %4966 = vmatpush.bf16.msra.mxu0 0
        %4967 = vmatpush.bf16.msra.mxu0 0
        %4968 = vmatpush.bf16.msra.mxu0 0
        %4969 = vmatpush.bf16.msra.mxu0 0
        %4970 = vmatpush.bf16.msra.mxu0 %v4961
        %4971 = vmatpush.bf16.msra.mxu0 %v4960
        %4972 = vmatpush.bf16.msra.mxu0 %v4959
        %4973 = vmatpush.bf16.msra.mxu0 %v4958
        %4974 = vmatmul.bf16.gmra.mxu0 %v4740
        %v4975 = vpop.f32.mrf.mxu0
        %v4976 = vadd.f32 %v4940, %v4975
        %v4977 = vpop.f32.mrf.mxu0
        %4978 = vdwg.mxu0
        %s4979 = scalar_lea.vmem %s93, 32
        %v4980 = vld [vmem:[%s4979] sm:$0xf]
        %v4981 = vld [vmem:[%s4979 + $0x4] sm:$0xf]
        %v4982 = vld [vmem:[%s4979 + $0x8] sm:$0xf]
        %v4983 = vld [vmem:[%s4979 + $0xc] sm:$0xf]
        %v4984 = vld [vmem:[%s4979 + $0x10] sm:$0xf]
        %v4985 = vld [vmem:[%s4979 + $0x14] sm:$0xf]
        %v4986 = vld [vmem:[%s4979 + $0x18] sm:$0xf]
        %v4987 = vld [vmem:[%s4979 + $0x1c] sm:$0xf]
        %s4988 = scalar_lea.vmem %s99, 1
        %v4989 = vld [vmem:[%s4988] sm:$0x1]
        %v4991 = vperm.slane %v4989, 0
        %v5001 = vunpack.c.l.b16 %v4980
        %v5002 = vunpack.c.l.b16 %v4981
        %v5003 = vunpack.c.l.b16 %v4982
        %v5004 = vunpack.c.l.b16 %v4983
        %v5005 = vunpack.c.l.b16 %v4984
        %v5006 = vunpack.c.l.b16 %v4985
        %v5007 = vunpack.c.l.b16 %v4986
        %v5008 = vunpack.c.l.b16 %v4987
        %v5009 = vpack.c.b16 %v5002, %v5001
        %v5010 = vpack.c.b16 %v5004, %v5003
        %v5011 = vpack.c.b16 %v5006, %v5005
        %v5012 = vpack.c.b16 %v5008, %v5007
        %5017 = vmatpush.bf16.msra.mxu0 0
        %5018 = vmatpush.bf16.msra.mxu0 0
        %5019 = vmatpush.bf16.msra.mxu0 0
        %5020 = vmatpush.bf16.msra.mxu0 0
        %5021 = vmatpush.bf16.msra.mxu0 %v5012
        %5022 = vmatpush.bf16.msra.mxu0 %v5011
        %5023 = vmatpush.bf16.msra.mxu0 %v5010
        %5024 = vmatpush.bf16.msra.mxu0 %v5009
        %5025 = vmatmul.bf16.gmra.mxu0 %v4740
        %v5026 = vpop.f32.mrf.mxu0
        %v5027 = vadd.f32 %v4991, %v5026
        %v5028 = vpop.f32.mrf.mxu0
        %5029 = vdwg.mxu0
        %s5030 = scalar_lea.vmem %s95, 32
        %v5031 = vld [vmem:[%s5030] sm:$0xf]
        %v5032 = vld [vmem:[%s5030 + $0x4] sm:$0xf]
        %v5033 = vld [vmem:[%s5030 + $0x8] sm:$0xf]
        %v5034 = vld [vmem:[%s5030 + $0xc] sm:$0xf]
        %v5035 = vld [vmem:[%s5030 + $0x10] sm:$0xf]
        %v5036 = vld [vmem:[%s5030 + $0x14] sm:$0xf]
        %v5037 = vld [vmem:[%s5030 + $0x18] sm:$0xf]
        %v5038 = vld [vmem:[%s5030 + $0x1c] sm:$0xf]
        %s5039 = scalar_lea.vmem %s101, 1
        %v5040 = vld [vmem:[%s5039] sm:$0x1]
        %v5042 = vperm.slane %v5040, 0
        %v5052 = vunpack.c.l.b16 %v5031
        %v5053 = vunpack.c.l.b16 %v5032
        %v5054 = vunpack.c.l.b16 %v5033
        %v5055 = vunpack.c.l.b16 %v5034
        %v5056 = vunpack.c.l.b16 %v5035
        %v5057 = vunpack.c.l.b16 %v5036
        %v5058 = vunpack.c.l.b16 %v5037
        %v5059 = vunpack.c.l.b16 %v5038
        %v5060 = vpack.c.b16 %v5053, %v5052
        %v5061 = vpack.c.b16 %v5055, %v5054
        %v5062 = vpack.c.b16 %v5057, %v5056
        %v5063 = vpack.c.b16 %v5059, %v5058
        %5068 = vmatpush.bf16.msra.mxu0 0
        %5069 = vmatpush.bf16.msra.mxu0 0
        %5070 = vmatpush.bf16.msra.mxu0 0
        %5071 = vmatpush.bf16.msra.mxu0 0
        %5072 = vmatpush.bf16.msra.mxu0 %v5063
        %5073 = vmatpush.bf16.msra.mxu0 %v5062
        %5074 = vmatpush.bf16.msra.mxu0 %v5061
        %5075 = vmatpush.bf16.msra.mxu0 %v5060
        %5076 = vmatmul.bf16.gmra.mxu0 %v4740
        %v5077 = vpop.f32.mrf.mxu0
        %v5078 = vadd.f32 %v5042, %v5077
        %v5079 = vpop.f32.mrf.mxu0
        %5080 = vdwg.mxu0
        %v5081 = vpack.c.bf16 %v4976, %v4976
        %v5082 = vpack.c.bf16 %v5027, %v5027
        %v5084 = vsel %vm3044, %v5081, 0
        %v5087 = vsel %vm3044, %v5082, 0
        %5089 = vmatpush.bf16.xpose.msra.mxu0 0
        %5090 = vmatpush.bf16.xpose.msra.mxu0 0
        %5091 = vmatpush.bf16.xpose.msra.mxu0 0
        %5092 = vmatpush.bf16.xpose.msra.mxu0 0
        %5093 = vmatpush.bf16.xpose.msra.mxu0 0
        %5094 = vmatpush.bf16.xpose.msra.mxu0 0
        %5095 = vmatpush.bf16.xpose.msra.mxu0 0
        %5096 = vmatpush.bf16.xpose.msra.mxu0 %v5087
        %5097 = vmatmul.bf16.gmra.mxu0 %v5084
        %v5098 = vpop.f32.mrf.mxu0
        %v5099 = vadd.f32 0.0, %v5098
        %v5100 = vpop.f32.mrf.mxu0
        %5101 = vdwg.mxu0
        %v5102 = vmul.f32 %v5099, 0.25
        %s5103 = scalar_lea.vmem %s103, 4
        %v5104 = vld [vmem:[%s5103] sm:$0xf]
        %v5105 = vadd.f32 %v5102, %v5104
        %v5106 = vsel %vm4877, %v5105, -inf
        %5107 = vmax.xlane.f32.xlu0 %v5106
        %v5108 = vpop.xlane.xlu0 %5107
        %v5109 = vsub.f32 %v5105, %v5108
        %v5110 = vmul.f32 %v5109, 1.442695
        %v5111 = vpow.pop %v5110
        %v5112 = vsel %vm4877, %v5111, 0.0
        %5113 = vadd.xlane.f32.xlu0 %v5112
        %v5114 = vpop.xlane.xlu0 %5113
        %v5115 = vrcp.pop %v5114
        %v5116 = vmul.f32 %v5114, %v5115
        %v5117 = vsub.f32 1.0, %v5116
        %v5118 = vmul.f32 %v5115, %v5117
        %v5119 = vadd.f32 %v5115, %v5118
        %vm5120 = vweird.f32 %v5114
        %vm5121 = vweird.f32 %v5115
        %vm5122 = vmor %vm5120, %vm5121
        %v5123 = vsel %vm5122, %v5115, %v5119
        %v5124 = vand.u32 2147483647, %v5114
        %vm5125 = vcmp.eq.f32.partialorder %v5124, 8.507059e+37
        %v5126 = vand.u32 %v5114, 2147483648
        %v5127 = vor.u32 1.1754944e-38, %v5126
        %v5128 = vsel %vm5125, %v5127, %v5123
        %v5129 = vmul.f32 %v5111, %v5128
        %v5130 = vpack.c.bf16 %v5129, %v5129
        %v5131 = vpack.c.bf16 %v5078, %v5078
        %v5133 = vsel %vm4904, %v5130, 0
        %v5136 = vsel %vm4908, %v5131, 0
        %5138 = vmatpush.bf16.msra.mxu0 0
        %5139 = vmatpush.bf16.msra.mxu0 0
        %5140 = vmatpush.bf16.msra.mxu0 0
        %5141 = vmatpush.bf16.msra.mxu0 0
        %5142 = vmatpush.bf16.msra.mxu0 0
        %5143 = vmatpush.bf16.msra.mxu0 0
        %5144 = vmatpush.bf16.msra.mxu0 0
        %5145 = vmatpush.bf16.msra.mxu0 %v5136
        %5146 = vmatmul.bf16.gmra.mxu0 %v5133
        %v5147 = vpop.f32.mrf.mxu0
        %v5148 = vadd.f32 0.0, %v5147
        %v5149 = vpop.f32.mrf.mxu0
        %5150 = vdwg.mxu0
        %v5151 = vpack.c.bf16 %v5148, %v5148
        %s5152 = scalar_lea.vmem %s105, 8
        %v5153 = vld [vmem:[%s5152] sm:$0xf]
        %v5154 = vld [vmem:[%s5152 + $0x4] sm:$0xf]
        %v5157 = vunpack.c.l.b16 %v5153
        %v5158 = vunpack.c.l.b16 %v5154
        %v5159 = vpack.c.b16 %v5158, %v5157
        %v5162 = vsel %vm3044, %v5151, 0
        %5164 = vmatpush.bf16.msra.mxu0 0
        %5165 = vmatpush.bf16.msra.mxu0 0
        %5166 = vmatpush.bf16.msra.mxu0 0
        %5167 = vmatpush.bf16.msra.mxu0 0
        %5168 = vmatpush.bf16.msra.mxu0 0
        %5169 = vmatpush.bf16.msra.mxu0 0
        %5170 = vmatpush.bf16.msra.mxu0 0
        %5171 = vmatpush.bf16.msra.mxu0 %v5159
        %5172 = vmatmul.bf16.gmra.mxu0 %v5162
        %v5173 = vpop.f32.mrf.mxu0
        %v5174 = vadd.f32 0.0, %v5173
        %v5175 = vpop.f32.mrf.mxu0
        %5176 = vdwg.mxu0
        %v5179 = vunpack.c.l.b16 %v4926
        %v5180 = vunpack.c.l.b16 %v4927
        %v5181 = vpack.c.b16 %v5180, %v5179
        %v5184 = vsel %vm3044, %v4925, 0
        %5186 = vmatpush.bf16.msra.mxu0 0
        %5187 = vmatpush.bf16.msra.mxu0 0
        %5188 = vmatpush.bf16.msra.mxu0 0
        %5189 = vmatpush.bf16.msra.mxu0 0
        %5190 = vmatpush.bf16.msra.mxu0 0
        %5191 = vmatpush.bf16.msra.mxu0 0
        %5192 = vmatpush.bf16.msra.mxu0 0
        %5193 = vmatpush.bf16.msra.mxu0 %v5181
        %5194 = vmatmul.bf16.gmra.mxu0 %v5184
        %v5195 = vpop.f32.mrf.mxu0
        %v5196 = vadd.f32 %v5174, %v5195
        %v5197 = vpop.f32.mrf.mxu0
        %5198 = vdwg.mxu0
        %s5199 = scalar_lea.vmem %s91, 64
        %v5200 = vld [vmem:[%s5199] sm:$0xf]
        %v5201 = vld [vmem:[%s5199 + $0x4] sm:$0xf]
        %v5202 = vld [vmem:[%s5199 + $0x8] sm:$0xf]
        %v5203 = vld [vmem:[%s5199 + $0xc] sm:$0xf]
        %v5204 = vld [vmem:[%s5199 + $0x10] sm:$0xf]
        %v5205 = vld [vmem:[%s5199 + $0x14] sm:$0xf]
        %v5206 = vld [vmem:[%s5199 + $0x18] sm:$0xf]
        %v5207 = vld [vmem:[%s5199 + $0x1c] sm:$0xf]
        %s5208 = scalar_lea.vmem %s97, 2
        %v5209 = vld [vmem:[%s5208] sm:$0x1]
        %v5211 = vperm.slane %v5209, 0
        %v5221 = vunpack.c.l.b16 %v5200
        %v5222 = vunpack.c.l.b16 %v5201
        %v5223 = vunpack.c.l.b16 %v5202
        %v5224 = vunpack.c.l.b16 %v5203
        %v5225 = vunpack.c.l.b16 %v5204
        %v5226 = vunpack.c.l.b16 %v5205
        %v5227 = vunpack.c.l.b16 %v5206
        %v5228 = vunpack.c.l.b16 %v5207
        %v5229 = vpack.c.b16 %v5222, %v5221
        %v5230 = vpack.c.b16 %v5224, %v5223
        %v5231 = vpack.c.b16 %v5226, %v5225
        %v5232 = vpack.c.b16 %v5228, %v5227
        %5237 = vmatpush.bf16.msra.mxu0 0
        %5238 = vmatpush.bf16.msra.mxu0 0
        %5239 = vmatpush.bf16.msra.mxu0 0
        %5240 = vmatpush.bf16.msra.mxu0 0
        %5241 = vmatpush.bf16.msra.mxu0 %v5232
        %5242 = vmatpush.bf16.msra.mxu0 %v5231
        %5243 = vmatpush.bf16.msra.mxu0 %v5230
        %5244 = vmatpush.bf16.msra.mxu0 %v5229
        %5245 = vmatmul.bf16.gmra.mxu0 %v4740
        %v5246 = vpop.f32.mrf.mxu0
        %v5247 = vadd.f32 %v5211, %v5246
        %v5248 = vpop.f32.mrf.mxu0
        %5249 = vdwg.mxu0
        %s5250 = scalar_lea.vmem %s93, 64
        %v5251 = vld [vmem:[%s5250] sm:$0xf]
        %v5252 = vld [vmem:[%s5250 + $0x4] sm:$0xf]
        %v5253 = vld [vmem:[%s5250 + $0x8] sm:$0xf]
        %v5254 = vld [vmem:[%s5250 + $0xc] sm:$0xf]
        %v5255 = vld [vmem:[%s5250 + $0x10] sm:$0xf]
        %v5256 = vld [vmem:[%s5250 + $0x14] sm:$0xf]
        %v5257 = vld [vmem:[%s5250 + $0x18] sm:$0xf]
        %v5258 = vld [vmem:[%s5250 + $0x1c] sm:$0xf]
        %s5259 = scalar_lea.vmem %s99, 2
        %v5260 = vld [vmem:[%s5259] sm:$0x1]
        %v5262 = vperm.slane %v5260, 0
        %v5272 = vunpack.c.l.b16 %v5251
        %v5273 = vunpack.c.l.b16 %v5252
        %v5274 = vunpack.c.l.b16 %v5253
        %v5275 = vunpack.c.l.b16 %v5254
        %v5276 = vunpack.c.l.b16 %v5255
        %v5277 = vunpack.c.l.b16 %v5256
        %v5278 = vunpack.c.l.b16 %v5257
        %v5279 = vunpack.c.l.b16 %v5258
        %v5280 = vpack.c.b16 %v5273, %v5272
        %v5281 = vpack.c.b16 %v5275, %v5274
        %v5282 = vpack.c.b16 %v5277, %v5276
        %v5283 = vpack.c.b16 %v5279, %v5278
        %5288 = vmatpush.bf16.msra.mxu0 0
        %5289 = vmatpush.bf16.msra.mxu0 0
        %5290 = vmatpush.bf16.msra.mxu0 0
        %5291 = vmatpush.bf16.msra.mxu0 0
        %5292 = vmatpush.bf16.msra.mxu0 %v5283
        %5293 = vmatpush.bf16.msra.mxu0 %v5282
        %5294 = vmatpush.bf16.msra.mxu0 %v5281
        %5295 = vmatpush.bf16.msra.mxu0 %v5280
        %5296 = vmatmul.bf16.gmra.mxu0 %v4740
        %v5297 = vpop.f32.mrf.mxu0
        %v5298 = vadd.f32 %v5262, %v5297
        %v5299 = vpop.f32.mrf.mxu0
        %5300 = vdwg.mxu0
        %s5301 = scalar_lea.vmem %s95, 64
        %v5302 = vld [vmem:[%s5301] sm:$0xf]
        %v5303 = vld [vmem:[%s5301 + $0x4] sm:$0xf]
        %v5304 = vld [vmem:[%s5301 + $0x8] sm:$0xf]
        %v5305 = vld [vmem:[%s5301 + $0xc] sm:$0xf]
        %v5306 = vld [vmem:[%s5301 + $0x10] sm:$0xf]
        %v5307 = vld [vmem:[%s5301 + $0x14] sm:$0xf]
        %v5308 = vld [vmem:[%s5301 + $0x18] sm:$0xf]
        %v5309 = vld [vmem:[%s5301 + $0x1c] sm:$0xf]
        %s5310 = scalar_lea.vmem %s101, 2
        %v5311 = vld [vmem:[%s5310] sm:$0x1]
        %v5313 = vperm.slane %v5311, 0
        %v5323 = vunpack.c.l.b16 %v5302
        %v5324 = vunpack.c.l.b16 %v5303
        %v5325 = vunpack.c.l.b16 %v5304
        %v5326 = vunpack.c.l.b16 %v5305
        %v5327 = vunpack.c.l.b16 %v5306
        %v5328 = vunpack.c.l.b16 %v5307
        %v5329 = vunpack.c.l.b16 %v5308
        %v5330 = vunpack.c.l.b16 %v5309
        %v5331 = vpack.c.b16 %v5324, %v5323
        %v5332 = vpack.c.b16 %v5326, %v5325
        %v5333 = vpack.c.b16 %v5328, %v5327
        %v5334 = vpack.c.b16 %v5330, %v5329
        %5339 = vmatpush.bf16.msra.mxu0 0
        %5340 = vmatpush.bf16.msra.mxu0 0
        %5341 = vmatpush.bf16.msra.mxu0 0
        %5342 = vmatpush.bf16.msra.mxu0 0
        %5343 = vmatpush.bf16.msra.mxu0 %v5334
        %5344 = vmatpush.bf16.msra.mxu0 %v5333
        %5345 = vmatpush.bf16.msra.mxu0 %v5332
        %5346 = vmatpush.bf16.msra.mxu0 %v5331
        %5347 = vmatmul.bf16.gmra.mxu0 %v4740
        %v5348 = vpop.f32.mrf.mxu0
        %v5349 = vadd.f32 %v5313, %v5348
        %v5350 = vpop.f32.mrf.mxu0
        %5351 = vdwg.mxu0
        %v5352 = vpack.c.bf16 %v5247, %v5247
        %v5353 = vpack.c.bf16 %v5298, %v5298
        %v5355 = vsel %vm3044, %v5352, 0
        %v5358 = vsel %vm3044, %v5353, 0
        %5360 = vmatpush.bf16.xpose.msra.mxu0 0
        %5361 = vmatpush.bf16.xpose.msra.mxu0 0
        %5362 = vmatpush.bf16.xpose.msra.mxu0 0
        %5363 = vmatpush.bf16.xpose.msra.mxu0 0
        %5364 = vmatpush.bf16.xpose.msra.mxu0 0
        %5365 = vmatpush.bf16.xpose.msra.mxu0 0
        %5366 = vmatpush.bf16.xpose.msra.mxu0 0
        %5367 = vmatpush.bf16.xpose.msra.mxu0 %v5358
        %5368 = vmatmul.bf16.gmra.mxu0 %v5355
        %v5369 = vpop.f32.mrf.mxu0
        %v5370 = vadd.f32 0.0, %v5369
        %v5371 = vpop.f32.mrf.mxu0
        %5372 = vdwg.mxu0
        %v5373 = vmul.f32 %v5370, 0.25
        %s5374 = scalar_lea.vmem %s103, 8
        %v5375 = vld [vmem:[%s5374] sm:$0xf]
        %v5376 = vadd.f32 %v5373, %v5375
        %v5377 = vsel %vm4877, %v5376, -inf
        %5378 = vmax.xlane.f32.xlu0 %v5377
        %v5379 = vpop.xlane.xlu0 %5378
        %v5380 = vsub.f32 %v5376, %v5379
        %v5381 = vmul.f32 %v5380, 1.442695
        %v5382 = vpow.pop %v5381
        %v5383 = vsel %vm4877, %v5382, 0.0
        %5384 = vadd.xlane.f32.xlu0 %v5383
        %v5385 = vpop.xlane.xlu0 %5384
        %v5386 = vrcp.pop %v5385
        %v5387 = vmul.f32 %v5385, %v5386
        %v5388 = vsub.f32 1.0, %v5387
        %v5389 = vmul.f32 %v5386, %v5388
        %v5390 = vadd.f32 %v5386, %v5389
        %vm5391 = vweird.f32 %v5385
        %vm5392 = vweird.f32 %v5386
        %vm5393 = vmor %vm5391, %vm5392
        %v5394 = vsel %vm5393, %v5386, %v5390
        %v5395 = vand.u32 2147483647, %v5385
        %vm5396 = vcmp.eq.f32.partialorder %v5395, 8.507059e+37
        %v5397 = vand.u32 %v5385, 2147483648
        %v5398 = vor.u32 1.1754944e-38, %v5397
        %v5399 = vsel %vm5396, %v5398, %v5394
        %v5400 = vmul.f32 %v5382, %v5399
        %v5401 = vpack.c.bf16 %v5400, %v5400
        %v5402 = vpack.c.bf16 %v5349, %v5349
        %v5404 = vsel %vm4904, %v5401, 0
        %v5407 = vsel %vm4908, %v5402, 0
        %5409 = vmatpush.bf16.msra.mxu0 0
        %5410 = vmatpush.bf16.msra.mxu0 0
        %5411 = vmatpush.bf16.msra.mxu0 0
        %5412 = vmatpush.bf16.msra.mxu0 0
        %5413 = vmatpush.bf16.msra.mxu0 0
        %5414 = vmatpush.bf16.msra.mxu0 0
        %5415 = vmatpush.bf16.msra.mxu0 0
        %5416 = vmatpush.bf16.msra.mxu0 %v5407
        %5417 = vmatmul.bf16.gmra.mxu0 %v5404
        %v5418 = vpop.f32.mrf.mxu0
        %v5419 = vadd.f32 0.0, %v5418
        %v5420 = vpop.f32.mrf.mxu0
        %5421 = vdwg.mxu0
        %v5422 = vpack.c.bf16 %v5419, %v5419
        %s5423 = scalar_lea.vmem %s105, 16
        %v5424 = vld [vmem:[%s5423] sm:$0xf]
        %v5425 = vld [vmem:[%s5423 + $0x4] sm:$0xf]
        %v5428 = vunpack.c.l.b16 %v5424
        %v5429 = vunpack.c.l.b16 %v5425
        %v5430 = vpack.c.b16 %v5429, %v5428
        %v5433 = vsel %vm3044, %v5422, 0
        %5435 = vmatpush.bf16.msra.mxu0 0
        %5436 = vmatpush.bf16.msra.mxu0 0
        %5437 = vmatpush.bf16.msra.mxu0 0
        %5438 = vmatpush.bf16.msra.mxu0 0
        %5439 = vmatpush.bf16.msra.mxu0 0
        %5440 = vmatpush.bf16.msra.mxu0 0
        %5441 = vmatpush.bf16.msra.mxu0 0
        %5442 = vmatpush.bf16.msra.mxu0 %v5430
        %5443 = vmatmul.bf16.gmra.mxu0 %v5433
        %v5444 = vpop.f32.mrf.mxu0
        %v5445 = vadd.f32 0.0, %v5444
        %v5446 = vpop.f32.mrf.mxu0
        %5447 = vdwg.mxu0
        %v5448 = vadd.f32 %v5196, %v5445
        %s5449 = scalar_lea.vmem %s91, 96
        %v5450 = vld [vmem:[%s5449] sm:$0xf]
        %v5451 = vld [vmem:[%s5449 + $0x4] sm:$0xf]
        %v5452 = vld [vmem:[%s5449 + $0x8] sm:$0xf]
        %v5453 = vld [vmem:[%s5449 + $0xc] sm:$0xf]
        %v5454 = vld [vmem:[%s5449 + $0x10] sm:$0xf]
        %v5455 = vld [vmem:[%s5449 + $0x14] sm:$0xf]
        %v5456 = vld [vmem:[%s5449 + $0x18] sm:$0xf]
        %v5457 = vld [vmem:[%s5449 + $0x1c] sm:$0xf]
        %s5458 = scalar_lea.vmem %s97, 3
        %v5459 = vld [vmem:[%s5458] sm:$0x1]
        %v5461 = vperm.slane %v5459, 0
        %v5471 = vunpack.c.l.b16 %v5450
        %v5472 = vunpack.c.l.b16 %v5451
        %v5473 = vunpack.c.l.b16 %v5452
        %v5474 = vunpack.c.l.b16 %v5453
        %v5475 = vunpack.c.l.b16 %v5454
        %v5476 = vunpack.c.l.b16 %v5455
        %v5477 = vunpack.c.l.b16 %v5456
        %v5478 = vunpack.c.l.b16 %v5457
        %v5479 = vpack.c.b16 %v5472, %v5471
        %v5480 = vpack.c.b16 %v5474, %v5473
        %v5481 = vpack.c.b16 %v5476, %v5475
        %v5482 = vpack.c.b16 %v5478, %v5477
        %5487 = vmatpush.bf16.msra.mxu0 0
        %5488 = vmatpush.bf16.msra.mxu0 0
        %5489 = vmatpush.bf16.msra.mxu0 0
        %5490 = vmatpush.bf16.msra.mxu0 0
        %5491 = vmatpush.bf16.msra.mxu0 %v5482
        %5492 = vmatpush.bf16.msra.mxu0 %v5481
        %5493 = vmatpush.bf16.msra.mxu0 %v5480
        %5494 = vmatpush.bf16.msra.mxu0 %v5479
        %5495 = vmatmul.bf16.gmra.mxu0 %v4740
        %v5496 = vpop.f32.mrf.mxu0
        %v5497 = vadd.f32 %v5461, %v5496
        %v5498 = vpop.f32.mrf.mxu0
        %5499 = vdwg.mxu0
        %s5500 = scalar_lea.vmem %s93, 96
        %v5501 = vld [vmem:[%s5500] sm:$0xf]
        %v5502 = vld [vmem:[%s5500 + $0x4] sm:$0xf]
        %v5503 = vld [vmem:[%s5500 + $0x8] sm:$0xf]
        %v5504 = vld [vmem:[%s5500 + $0xc] sm:$0xf]
        %v5505 = vld [vmem:[%s5500 + $0x10] sm:$0xf]
        %v5506 = vld [vmem:[%s5500 + $0x14] sm:$0xf]
        %v5507 = vld [vmem:[%s5500 + $0x18] sm:$0xf]
        %v5508 = vld [vmem:[%s5500 + $0x1c] sm:$0xf]
        %s5509 = scalar_lea.vmem %s99, 3
        %v5510 = vld [vmem:[%s5509] sm:$0x1]
        %v5512 = vperm.slane %v5510, 0
        %v5522 = vunpack.c.l.b16 %v5501
        %v5523 = vunpack.c.l.b16 %v5502
        %v5524 = vunpack.c.l.b16 %v5503
        %v5525 = vunpack.c.l.b16 %v5504
        %v5526 = vunpack.c.l.b16 %v5505
        %v5527 = vunpack.c.l.b16 %v5506
        %v5528 = vunpack.c.l.b16 %v5507
        %v5529 = vunpack.c.l.b16 %v5508
        %v5530 = vpack.c.b16 %v5523, %v5522
        %v5531 = vpack.c.b16 %v5525, %v5524
        %v5532 = vpack.c.b16 %v5527, %v5526
        %v5533 = vpack.c.b16 %v5529, %v5528
        %5538 = vmatpush.bf16.msra.mxu0 0
        %5539 = vmatpush.bf16.msra.mxu0 0
        %5540 = vmatpush.bf16.msra.mxu0 0
        %5541 = vmatpush.bf16.msra.mxu0 0
        %5542 = vmatpush.bf16.msra.mxu0 %v5533
        %5543 = vmatpush.bf16.msra.mxu0 %v5532
        %5544 = vmatpush.bf16.msra.mxu0 %v5531
        %5545 = vmatpush.bf16.msra.mxu0 %v5530
        %5546 = vmatmul.bf16.gmra.mxu0 %v4740
        %v5547 = vpop.f32.mrf.mxu0
        %v5548 = vadd.f32 %v5512, %v5547
        %v5549 = vpop.f32.mrf.mxu0
        %5550 = vdwg.mxu0
        %s5551 = scalar_lea.vmem %s95, 96
        %v5552 = vld [vmem:[%s5551] sm:$0xf]
        %v5553 = vld [vmem:[%s5551 + $0x4] sm:$0xf]
        %v5554 = vld [vmem:[%s5551 + $0x8] sm:$0xf]
        %v5555 = vld [vmem:[%s5551 + $0xc] sm:$0xf]
        %v5556 = vld [vmem:[%s5551 + $0x10] sm:$0xf]
        %v5557 = vld [vmem:[%s5551 + $0x14] sm:$0xf]
        %v5558 = vld [vmem:[%s5551 + $0x18] sm:$0xf]
        %v5559 = vld [vmem:[%s5551 + $0x1c] sm:$0xf]
        %s5560 = scalar_lea.vmem %s101, 3
        %v5561 = vld [vmem:[%s5560] sm:$0x1]
        %v5563 = vperm.slane %v5561, 0
        %v5573 = vunpack.c.l.b16 %v5552
        %v5574 = vunpack.c.l.b16 %v5553
        %v5575 = vunpack.c.l.b16 %v5554
        %v5576 = vunpack.c.l.b16 %v5555
        %v5577 = vunpack.c.l.b16 %v5556
        %v5578 = vunpack.c.l.b16 %v5557
        %v5579 = vunpack.c.l.b16 %v5558
        %v5580 = vunpack.c.l.b16 %v5559
        %v5581 = vpack.c.b16 %v5574, %v5573
        %v5582 = vpack.c.b16 %v5576, %v5575
        %v5583 = vpack.c.b16 %v5578, %v5577
        %v5584 = vpack.c.b16 %v5580, %v5579
        %5589 = vmatpush.bf16.msra.mxu0 0
        %5590 = vmatpush.bf16.msra.mxu0 0
        %5591 = vmatpush.bf16.msra.mxu0 0
        %5592 = vmatpush.bf16.msra.mxu0 0
        %5593 = vmatpush.bf16.msra.mxu0 %v5584
        %5594 = vmatpush.bf16.msra.mxu0 %v5583
        %5595 = vmatpush.bf16.msra.mxu0 %v5582
        %5596 = vmatpush.bf16.msra.mxu0 %v5581
        %5597 = vmatmul.bf16.gmra.mxu0 %v4740
        %v5598 = vpop.f32.mrf.mxu0
        %v5599 = vadd.f32 %v5563, %v5598
        %v5600 = vpop.f32.mrf.mxu0
        %5601 = vdwg.mxu0
        %v5602 = vpack.c.bf16 %v5497, %v5497
        %v5603 = vpack.c.bf16 %v5548, %v5548
        %v5605 = vsel %vm3044, %v5602, 0
        %v5608 = vsel %vm3044, %v5603, 0
        %5610 = vmatpush.bf16.xpose.msra.mxu0 0
        %5611 = vmatpush.bf16.xpose.msra.mxu0 0
        %5612 = vmatpush.bf16.xpose.msra.mxu0 0
        %5613 = vmatpush.bf16.xpose.msra.mxu0 0
        %5614 = vmatpush.bf16.xpose.msra.mxu0 0
        %5615 = vmatpush.bf16.xpose.msra.mxu0 0
        %5616 = vmatpush.bf16.xpose.msra.mxu0 0
        %5617 = vmatpush.bf16.xpose.msra.mxu0 %v5608
        %5618 = vmatmul.bf16.gmra.mxu0 %v5605
        %v5619 = vpop.f32.mrf.mxu0
        %v5620 = vadd.f32 0.0, %v5619
        %v5621 = vpop.f32.mrf.mxu0
        %5622 = vdwg.mxu0
        %v5623 = vmul.f32 %v5620, 0.25
        %s5624 = scalar_lea.vmem %s103, 12
        %v5625 = vld [vmem:[%s5624] sm:$0xf]
        %v5626 = vadd.f32 %v5623, %v5625
        %v5627 = vsel %vm4877, %v5626, -inf
        %5628 = vmax.xlane.f32.xlu0 %v5627
        %v5629 = vpop.xlane.xlu0 %5628
        %v5630 = vsub.f32 %v5626, %v5629
        %v5631 = vmul.f32 %v5630, 1.442695
        %v5632 = vpow.pop %v5631
        %v5633 = vsel %vm4877, %v5632, 0.0
        %5634 = vadd.xlane.f32.xlu0 %v5633
        %v5635 = vpop.xlane.xlu0 %5634
        %v5636 = vrcp.pop %v5635
        %v5637 = vmul.f32 %v5635, %v5636
        %v5638 = vsub.f32 1.0, %v5637
        %v5639 = vmul.f32 %v5636, %v5638
        %v5640 = vadd.f32 %v5636, %v5639
        %vm5641 = vweird.f32 %v5635
        %vm5642 = vweird.f32 %v5636
        %vm5643 = vmor %vm5641, %vm5642
        %v5644 = vsel %vm5643, %v5636, %v5640
        %v5645 = vand.u32 2147483647, %v5635
        %vm5646 = vcmp.eq.f32.partialorder %v5645, 8.507059e+37
        %v5647 = vand.u32 %v5635, 2147483648
        %v5648 = vor.u32 1.1754944e-38, %v5647
        %v5649 = vsel %vm5646, %v5648, %v5644
        %v5650 = vmul.f32 %v5632, %v5649
        %v5651 = vpack.c.bf16 %v5650, %v5650
        %v5652 = vpack.c.bf16 %v5599, %v5599
        %v5654 = vsel %vm4904, %v5651, 0
        %v5657 = vsel %vm4908, %v5652, 0
        %5659 = vmatpush.bf16.msra.mxu0 0
        %5660 = vmatpush.bf16.msra.mxu0 0
        %5661 = vmatpush.bf16.msra.mxu0 0
        %5662 = vmatpush.bf16.msra.mxu0 0
        %5663 = vmatpush.bf16.msra.mxu0 0
        %5664 = vmatpush.bf16.msra.mxu0 0
        %5665 = vmatpush.bf16.msra.mxu0 0
        %5666 = vmatpush.bf16.msra.mxu0 %v5657
        %5667 = vmatmul.bf16.gmra.mxu0 %v5654
        %v5668 = vpop.f32.mrf.mxu0
        %v5669 = vadd.f32 0.0, %v5668
        %v5670 = vpop.f32.mrf.mxu0
        %5671 = vdwg.mxu0
        %v5672 = vpack.c.bf16 %v5669, %v5669
        %s5673 = scalar_lea.vmem %s105, 24
        %v5674 = vld [vmem:[%s5673] sm:$0xf]
        %v5675 = vld [vmem:[%s5673 + $0x4] sm:$0xf]
        %v5678 = vunpack.c.l.b16 %v5674
        %v5679 = vunpack.c.l.b16 %v5675
        %v5680 = vpack.c.b16 %v5679, %v5678
        %v5683 = vsel %vm3044, %v5672, 0
        %5685 = vmatpush.bf16.msra.mxu0 0
        %5686 = vmatpush.bf16.msra.mxu0 0
        %5687 = vmatpush.bf16.msra.mxu0 0
        %5688 = vmatpush.bf16.msra.mxu0 0
        %5689 = vmatpush.bf16.msra.mxu0 0
        %5690 = vmatpush.bf16.msra.mxu0 0
        %5691 = vmatpush.bf16.msra.mxu0 0
        %5692 = vmatpush.bf16.msra.mxu0 %v5680
        %5693 = vmatmul.bf16.gmra.mxu0 %v5683
        %v5694 = vpop.f32.mrf.mxu0
        %v5695 = vadd.f32 0.0, %v5694
        %v5696 = vpop.f32.mrf.mxu0
        %5697 = vdwg.mxu0
        %v5698 = vadd.f32 %v5448, %v5695
        %v5699 = vadd.f32 %v4660, %v5698
        %v5700 = vld [vmem:[#allocation31] sm:$0x1]
        %v5702 = vperm.slane %v5700, 0
        %v5704 = vadd.f32 %v5699, %v5702
        %v5705 = vld [vmem:[#allocation33] sm:$0x1]
        %v5706 = vld [vmem:[#allocation34] sm:$0x1]
        %v5707 = vsel %vm4663, %v5704, 0.0
        %5708 = vadd.xlane.f32.xlu0 %v5707
        %v5709 = vpop.xlane.xlu0 %5708
        %v5710 = vmul.f32 %v5709, %v4673
        %v5711 = vsub.f32 %v5704, %v5710
        %v5712 = vmul.f32 %v5711, %v5711
        %v5713 = vsel %vm4663, %v5712, 0.0
        %5714 = vadd.xlane.f32.xlu0 %v5713
        %v5715 = vpop.xlane.xlu0 %5714
        %v5716 = vmul.f32 %v5715, %v4673
        %v5717 = vadd.f32 %v5716, 1e-05
        %v5718 = vrsqrt.pop %v5717
        %v5719 = vmul.f32 %v5718, %v5717
        %v5720 = vmul.f32 %v5719, %v5718
        %v5721 = vmul.f32 0.5, %v5720
        %v5722 = vsub.f32 1.5, %v5721
        %v5723 = vmul.f32 %v5718, %v5722
        %vm5724 = vweird.f32 %v5717
        %vm5725 = vweird.f32 %v5718
        %vm5726 = vmor %vm5724, %vm5725
        %v5727 = vsel %vm5726, %v5718, %v5723
        %v5728 = vmul.f32 %v5711, %v5727
        %v5730 = vperm.slane %v5705, 0
        %v5732 = vmul.f32 %v5728, %v5730
        %v5734 = vperm.slane %v5706, 0
        %v5736 = vadd.f32 %v5732, %v5734
        %v5737 = vpack.c.bf16 %v5736, %v5736
        %v5738 = vld [vmem:[%s113] sm:$0xff]
        %v5739 = vld [vmem:[%s113 + $0x8] sm:$0xff]
        %v5740 = vld [vmem:[%s113 + $0x10] sm:$0xff]
        %v5741 = vld [vmem:[%s113 + $0x18] sm:$0xff]
        %v5742 = vld [vmem:[%s113 + $0x20] sm:$0xff]
        %v5743 = vld [vmem:[%s113 + $0x28] sm:$0xff]
        %v5744 = vld [vmem:[%s113 + $0x30] sm:$0xff]
        %v5745 = vld [vmem:[%s113 + $0x38] sm:$0xff]
        %v5746 = vld [vmem:[%s115] sm:$0x3]
        %v5748 = vperm.slane %v5746, 0
        %v5749 = vperm.slane %v5746, 1
        %v5760 = vunpack.c.l.b16 %v5738
        %v5761 = vunpack.c.h.b16 %v5738
        %v5762 = vunpack.c.l.b16 %v5739
        %v5763 = vunpack.c.h.b16 %v5739
        %v5764 = vunpack.c.l.b16 %v5740
        %v5765 = vunpack.c.h.b16 %v5740
        %v5766 = vunpack.c.l.b16 %v5741
        %v5767 = vunpack.c.h.b16 %v5741
        %v5768 = vunpack.c.l.b16 %v5742
        %v5769 = vunpack.c.h.b16 %v5742
        %v5770 = vunpack.c.l.b16 %v5743
        %v5771 = vunpack.c.h.b16 %v5743
        %v5772 = vunpack.c.l.b16 %v5744
        %v5773 = vunpack.c.h.b16 %v5744
        %v5774 = vunpack.c.l.b16 %v5745
        %v5775 = vunpack.c.h.b16 %v5745
        %v5776 = vpack.c.b16 %v5762, %v5760
        %v5777 = vpack.c.b16 %v5763, %v5761
        %v5778 = vpack.c.b16 %v5766, %v5764
        %v5779 = vpack.c.b16 %v5767, %v5765
        %v5780 = vpack.c.b16 %v5770, %v5768
        %v5781 = vpack.c.b16 %v5771, %v5769
        %v5782 = vpack.c.b16 %v5774, %v5772
        %v5783 = vpack.c.b16 %v5775, %v5773
        %v5793 = vsel %vm4738, %v5737, 0
        %5795 = vmatpush.bf16.msra.mxu0 0
        %5796 = vmatpush.bf16.msra.mxu0 0
        %5797 = vmatpush.bf16.msra.mxu0 0
        %5798 = vmatpush.bf16.msra.mxu0 0
        %5799 = vmatpush.bf16.msra.mxu0 %v5782
        %5800 = vmatpush.bf16.msra.mxu0 %v5780
        %5801 = vmatpush.bf16.msra.mxu0 %v5778
        %5802 = vmatpush.bf16.msra.mxu0 %v5776
        %5803 = vmatmul.bf16.gmra.mxu0 %v5793
        %v5804 = vpop.f32.mrf.mxu0
        %v5805 = vadd.f32 %v5748, %v5804
        %v5806 = vpop.f32.mrf.mxu0
        %5807 = vdwg.mxu0
        %5808 = vmatpush.bf16.msra.mxu0 0
        %5809 = vmatpush.bf16.msra.mxu0 0
        %5810 = vmatpush.bf16.msra.mxu0 0
        %5811 = vmatpush.bf16.msra.mxu0 0
        %5812 = vmatpush.bf16.msra.mxu0 %v5783
        %5813 = vmatpush.bf16.msra.mxu0 %v5781
        %5814 = vmatpush.bf16.msra.mxu0 %v5779
        %5815 = vmatpush.bf16.msra.mxu0 %v5777
        %5816 = vmatmul.bf16.gmra.mxu0 %v5793
        %v5817 = vpop.f32.mrf.mxu0
        %v5818 = vadd.f32 %v5749, %v5817
        %v5819 = vpop.f32.mrf.mxu0
        %5820 = vdwg.mxu0
        %v5821 = vmul.f32 %v5805, %v5805
        %v5822 = vmul.f32 %v5818, %v5818
        %v5823 = vmul.f32 %v5805, %v5821
        %v5824 = vmul.f32 %v5818, %v5822
        %v5825 = vmul.f32 %v5823, 0.044715
        %v5826 = vmul.f32 %v5824, 0.044715
        %v5827 = vadd.f32 %v5805, %v5825
        %v5828 = vadd.f32 %v5818, %v5826
        %v5829 = vmul.f32 %v5827, 0.7978846
        %v5830 = vmul.f32 %v5828, 0.7978846
        %v5831 = vtanh.pop %v5829
        %v5832 = vtanh.pop %v5830
        %v5833 = vadd.f32 %v5831, 1.0
        %v5834 = vadd.f32 %v5832, 1.0
        %v5835 = vmul.f32 %v5833, 0.5
        %v5836 = vmul.f32 %v5834, 0.5
        %v5837 = vmul.f32 %v5805, %v5835
        %v5838 = vmul.f32 %v5818, %v5836
        %v5839 = vpack.c.bf16 %v5837, %v5837
        %v5840 = vpack.c.bf16 %v5838, %v5838
        %v5841 = vld [vmem:[%s117] sm:$0xf]
        %v5842 = vld [vmem:[%s117 + $0x4] sm:$0xf]
        %v5843 = vld [vmem:[%s117 + $0x8] sm:$0xf]
        %v5844 = vld [vmem:[%s117 + $0xc] sm:$0xf]
        %v5845 = vld [vmem:[%s117 + $0x10] sm:$0xf]
        %v5846 = vld [vmem:[%s117 + $0x14] sm:$0xf]
        %v5847 = vld [vmem:[%s117 + $0x18] sm:$0xf]
        %v5848 = vld [vmem:[%s117 + $0x1c] sm:$0xf]
        %v5849 = vld [vmem:[%s117 + $0x20] sm:$0xf]
        %v5850 = vld [vmem:[%s117 + $0x24] sm:$0xf]
        %v5851 = vld [vmem:[%s117 + $0x28] sm:$0xf]
        %v5852 = vld [vmem:[%s117 + $0x2c] sm:$0xf]
        %v5853 = vld [vmem:[%s117 + $0x30] sm:$0xf]
        %v5854 = vld [vmem:[%s117 + $0x34] sm:$0xf]
        %v5855 = vld [vmem:[%s117 + $0x38] sm:$0xf]
        %v5856 = vld [vmem:[%s117 + $0x3c] sm:$0xf]
        %v5857 = vld [vmem:[%s117 + $0x40] sm:$0xf]
        %v5858 = vld [vmem:[%s117 + $0x44] sm:$0xf]
        %v5859 = vld [vmem:[%s117 + $0x48] sm:$0xf]
        %v5860 = vld [vmem:[%s117 + $0x4c] sm:$0xf]
        %v5861 = vld [vmem:[%s117 + $0x50] sm:$0xf]
        %v5862 = vld [vmem:[%s117 + $0x54] sm:$0xf]
        %v5863 = vld [vmem:[%s117 + $0x58] sm:$0xf]
        %v5864 = vld [vmem:[%s117 + $0x5c] sm:$0xf]
        %v5865 = vld [vmem:[%s117 + $0x60] sm:$0xf]
        %v5866 = vld [vmem:[%s117 + $0x64] sm:$0xf]
        %v5867 = vld [vmem:[%s117 + $0x68] sm:$0xf]
        %v5868 = vld [vmem:[%s117 + $0x6c] sm:$0xf]
        %v5869 = vld [vmem:[%s117 + $0x70] sm:$0xf]
        %v5870 = vld [vmem:[%s117 + $0x74] sm:$0xf]
        %v5871 = vld [vmem:[%s117 + $0x78] sm:$0xf]
        %v5872 = vld [vmem:[%s117 + $0x7c] sm:$0xf]
        %v5873 = vld [vmem:[#allocation36] sm:$0x1]
        %v5875 = vperm.slane %v5873, 0
        %v5909 = vunpack.c.l.b16 %v5841
        %v5910 = vunpack.c.l.b16 %v5842
        %v5911 = vunpack.c.l.b16 %v5843
        %v5912 = vunpack.c.l.b16 %v5844
        %v5913 = vunpack.c.l.b16 %v5845
        %v5914 = vunpack.c.l.b16 %v5846
        %v5915 = vunpack.c.l.b16 %v5847
        %v5916 = vunpack.c.l.b16 %v5848
        %v5917 = vunpack.c.l.b16 %v5849
        %v5918 = vunpack.c.l.b16 %v5850
        %v5919 = vunpack.c.l.b16 %v5851
        %v5920 = vunpack.c.l.b16 %v5852
        %v5921 = vunpack.c.l.b16 %v5853
        %v5922 = vunpack.c.l.b16 %v5854
        %v5923 = vunpack.c.l.b16 %v5855
        %v5924 = vunpack.c.l.b16 %v5856
        %v5925 = vunpack.c.l.b16 %v5857
        %v5926 = vunpack.c.l.b16 %v5858
        %v5927 = vunpack.c.l.b16 %v5859
        %v5928 = vunpack.c.l.b16 %v5860
        %v5929 = vunpack.c.l.b16 %v5861
        %v5930 = vunpack.c.l.b16 %v5862
        %v5931 = vunpack.c.l.b16 %v5863
        %v5932 = vunpack.c.l.b16 %v5864
        %v5933 = vunpack.c.l.b16 %v5865
        %v5934 = vunpack.c.l.b16 %v5866
        %v5935 = vunpack.c.l.b16 %v5867
        %v5936 = vunpack.c.l.b16 %v5868
        %v5937 = vunpack.c.l.b16 %v5869
        %v5938 = vunpack.c.l.b16 %v5870
        %v5939 = vunpack.c.l.b16 %v5871
        %v5940 = vunpack.c.l.b16 %v5872
        %v5941 = vpack.c.b16 %v5910, %v5909
        %v5942 = vpack.c.b16 %v5912, %v5911
        %v5943 = vpack.c.b16 %v5914, %v5913
        %v5944 = vpack.c.b16 %v5916, %v5915
        %v5945 = vpack.c.b16 %v5918, %v5917
        %v5946 = vpack.c.b16 %v5920, %v5919
        %v5947 = vpack.c.b16 %v5922, %v5921
        %v5948 = vpack.c.b16 %v5924, %v5923
        %v5949 = vpack.c.b16 %v5926, %v5925
        %v5950 = vpack.c.b16 %v5928, %v5927
        %v5951 = vpack.c.b16 %v5930, %v5929
        %v5952 = vpack.c.b16 %v5932, %v5931
        %v5953 = vpack.c.b16 %v5934, %v5933
        %v5954 = vpack.c.b16 %v5936, %v5935
        %v5955 = vpack.c.b16 %v5938, %v5937
        %v5956 = vpack.c.b16 %v5940, %v5939
        %5973 = vmatpush.bf16.msra.mxu0 %v5948
        %5974 = vmatpush.bf16.msra.mxu0 %v5947
        %5975 = vmatpush.bf16.msra.mxu0 %v5946
        %5976 = vmatpush.bf16.msra.mxu0 %v5945
        %5977 = vmatpush.bf16.msra.mxu0 %v5944
        %5978 = vmatpush.bf16.msra.mxu0 %v5943
        %5979 = vmatpush.bf16.msra.mxu0 %v5942
        %5980 = vmatpush.bf16.msra.mxu0 %v5941
        %5981 = vmatmul.bf16.gmra.mxu0 %v5839
        %v5982 = vpop.f32.mrf.mxu0
        %v5983 = vadd.f32 %v5875, %v5982
        %v5984 = vpop.f32.mrf.mxu0
        %5985 = vdwg.mxu0
        %5986 = vmatpush.bf16.msra.mxu0 %v5956
        %5987 = vmatpush.bf16.msra.mxu0 %v5955
        %5988 = vmatpush.bf16.msra.mxu0 %v5954
        %5989 = vmatpush.bf16.msra.mxu0 %v5953
        %5990 = vmatpush.bf16.msra.mxu0 %v5952
        %5991 = vmatpush.bf16.msra.mxu0 %v5951
        %5992 = vmatpush.bf16.msra.mxu0 %v5950
        %5993 = vmatpush.bf16.msra.mxu0 %v5949
        %5994 = vmatmul.bf16.gmra.mxu0 %v5840
        %v5995 = vpop.f32.mrf.mxu0
        %v5996 = vadd.f32 %v5983, %v5995
        %v5997 = vpop.f32.mrf.mxu0
        %5998 = vdwg.mxu0
        %v5999 = vadd.f32 %v5704, %v5996
        %v6000 = vld [vmem:[#allocation37] sm:$0x1]
        %v6001 = vld [vmem:[#allocation39] sm:$0x1]
        %v6002 = vsel %vm4663, %v5999, 0.0
        %6003 = vadd.xlane.f32.xlu0 %v6002
        %v6004 = vpop.xlane.xlu0 %6003
        %v6005 = vmul.f32 %v6004, %v4673
        %v6006 = vsub.f32 %v5999, %v6005
        %v6007 = vmul.f32 %v6006, %v6006
        %v6008 = vsel %vm4663, %v6007, 0.0
        %6009 = vadd.xlane.f32.xlu0 %v6008
        %v6010 = vpop.xlane.xlu0 %6009
        %v6011 = vmul.f32 %v6010, %v4673
        %v6012 = vadd.f32 %v6011, 1e-05
        %v6013 = vrsqrt.pop %v6012
        %v6014 = vmul.f32 %v6013, %v6012
        %v6015 = vmul.f32 %v6014, %v6013
        %v6016 = vmul.f32 0.5, %v6015
        %v6017 = vsub.f32 1.5, %v6016
        %v6018 = vmul.f32 %v6013, %v6017
        %vm6019 = vweird.f32 %v6012
        %vm6020 = vweird.f32 %v6013
        %vm6021 = vmor %vm6019, %vm6020
        %v6022 = vsel %vm6021, %v6013, %v6018
        %v6023 = vmul.f32 %v6006, %v6022
        %v6025 = vperm.slane %v6000, 0
        %v6027 = vmul.f32 %v6023, %v6025
        %v6029 = vperm.slane %v6001, 0
        %v6031 = vadd.f32 %v6027, %v6029
        %v6032 = vpack.c.bf16 %v6031, %v6031
        %v6033 = vld [vmem:[%s125] sm:$0xf]
        %v6034 = vld [vmem:[%s125 + $0x4] sm:$0xf]
        %v6035 = vld [vmem:[%s125 + $0x8] sm:$0xf]
        %v6036 = vld [vmem:[%s125 + $0xc] sm:$0xf]
        %v6037 = vld [vmem:[%s125 + $0x10] sm:$0xf]
        %v6038 = vld [vmem:[%s125 + $0x14] sm:$0xf]
        %v6039 = vld [vmem:[%s125 + $0x18] sm:$0xf]
        %v6040 = vld [vmem:[%s125 + $0x1c] sm:$0xf]
        %v6041 = vld [vmem:[%s131] sm:$0x1]
        %v6043 = vperm.slane %v6041, 0
        %v6053 = vunpack.c.l.b16 %v6033
        %v6054 = vunpack.c.l.b16 %v6034
        %v6055 = vunpack.c.l.b16 %v6035
        %v6056 = vunpack.c.l.b16 %v6036
        %v6057 = vunpack.c.l.b16 %v6037
        %v6058 = vunpack.c.l.b16 %v6038
        %v6059 = vunpack.c.l.b16 %v6039
        %v6060 = vunpack.c.l.b16 %v6040
        %v6061 = vpack.c.b16 %v6054, %v6053
        %v6062 = vpack.c.b16 %v6056, %v6055
        %v6063 = vpack.c.b16 %v6058, %v6057
        %v6064 = vpack.c.b16 %v6060, %v6059
        %v6070 = vsel %vm4738, %v6032, 0
        %6072 = vmatpush.bf16.msra.mxu0 0
        %6073 = vmatpush.bf16.msra.mxu0 0
        %6074 = vmatpush.bf16.msra.mxu0 0
        %6075 = vmatpush.bf16.msra.mxu0 0
        %6076 = vmatpush.bf16.msra.mxu0 %v6064
        %6077 = vmatpush.bf16.msra.mxu0 %v6063
        %6078 = vmatpush.bf16.msra.mxu0 %v6062
        %6079 = vmatpush.bf16.msra.mxu0 %v6061
        %6080 = vmatmul.bf16.gmra.mxu0 %v6070
        %v6081 = vpop.f32.mrf.mxu0
        %v6082 = vadd.f32 %v6043, %v6081
        %v6083 = vpop.f32.mrf.mxu0
        %6084 = vdwg.mxu0
        %v6085 = vld [vmem:[%s127] sm:$0xf]
        %v6086 = vld [vmem:[%s127 + $0x4] sm:$0xf]
        %v6087 = vld [vmem:[%s127 + $0x8] sm:$0xf]
        %v6088 = vld [vmem:[%s127 + $0xc] sm:$0xf]
        %v6089 = vld [vmem:[%s127 + $0x10] sm:$0xf]
        %v6090 = vld [vmem:[%s127 + $0x14] sm:$0xf]
        %v6091 = vld [vmem:[%s127 + $0x18] sm:$0xf]
        %v6092 = vld [vmem:[%s127 + $0x1c] sm:$0xf]
        %v6093 = vld [vmem:[%s133] sm:$0x1]
        %v6095 = vperm.slane %v6093, 0
        %v6105 = vunpack.c.l.b16 %v6085
        %v6106 = vunpack.c.l.b16 %v6086
        %v6107 = vunpack.c.l.b16 %v6087
        %v6108 = vunpack.c.l.b16 %v6088
        %v6109 = vunpack.c.l.b16 %v6089
        %v6110 = vunpack.c.l.b16 %v6090
        %v6111 = vunpack.c.l.b16 %v6091
        %v6112 = vunpack.c.l.b16 %v6092
        %v6113 = vpack.c.b16 %v6106, %v6105
        %v6114 = vpack.c.b16 %v6108, %v6107
        %v6115 = vpack.c.b16 %v6110, %v6109
        %v6116 = vpack.c.b16 %v6112, %v6111
        %6121 = vmatpush.bf16.msra.mxu0 0
        %6122 = vmatpush.bf16.msra.mxu0 0
        %6123 = vmatpush.bf16.msra.mxu0 0
        %6124 = vmatpush.bf16.msra.mxu0 0
        %6125 = vmatpush.bf16.msra.mxu0 %v6116
        %6126 = vmatpush.bf16.msra.mxu0 %v6115
        %6127 = vmatpush.bf16.msra.mxu0 %v6114
        %6128 = vmatpush.bf16.msra.mxu0 %v6113
        %6129 = vmatmul.bf16.gmra.mxu0 %v6070
        %v6130 = vpop.f32.mrf.mxu0
        %v6131 = vadd.f32 %v6095, %v6130
        %v6132 = vpop.f32.mrf.mxu0
        %6133 = vdwg.mxu0
        %v6134 = vld [vmem:[%s129] sm:$0xf]
        %v6135 = vld [vmem:[%s129 + $0x4] sm:$0xf]
        %v6136 = vld [vmem:[%s129 + $0x8] sm:$0xf]
        %v6137 = vld [vmem:[%s129 + $0xc] sm:$0xf]
        %v6138 = vld [vmem:[%s129 + $0x10] sm:$0xf]
        %v6139 = vld [vmem:[%s129 + $0x14] sm:$0xf]
        %v6140 = vld [vmem:[%s129 + $0x18] sm:$0xf]
        %v6141 = vld [vmem:[%s129 + $0x1c] sm:$0xf]
        %v6142 = vld [vmem:[%s135] sm:$0x1]
        %v6144 = vperm.slane %v6142, 0
        %v6154 = vunpack.c.l.b16 %v6134
        %v6155 = vunpack.c.l.b16 %v6135
        %v6156 = vunpack.c.l.b16 %v6136
        %v6157 = vunpack.c.l.b16 %v6137
        %v6158 = vunpack.c.l.b16 %v6138
        %v6159 = vunpack.c.l.b16 %v6139
        %v6160 = vunpack.c.l.b16 %v6140
        %v6161 = vunpack.c.l.b16 %v6141
        %v6162 = vpack.c.b16 %v6155, %v6154
        %v6163 = vpack.c.b16 %v6157, %v6156
        %v6164 = vpack.c.b16 %v6159, %v6158
        %v6165 = vpack.c.b16 %v6161, %v6160
        %6170 = vmatpush.bf16.msra.mxu0 0
        %6171 = vmatpush.bf16.msra.mxu0 0
        %6172 = vmatpush.bf16.msra.mxu0 0
        %6173 = vmatpush.bf16.msra.mxu0 0
        %6174 = vmatpush.bf16.msra.mxu0 %v6165
        %6175 = vmatpush.bf16.msra.mxu0 %v6164
        %6176 = vmatpush.bf16.msra.mxu0 %v6163
        %6177 = vmatpush.bf16.msra.mxu0 %v6162
        %6178 = vmatmul.bf16.gmra.mxu0 %v6070
        %v6179 = vpop.f32.mrf.mxu0
        %v6180 = vadd.f32 %v6144, %v6179
        %v6181 = vpop.f32.mrf.mxu0
        %6182 = vdwg.mxu0
        %v6183 = vpack.c.bf16 %v6082, %v6082
        %v6184 = vpack.c.bf16 %v6131, %v6131
        %v6186 = vsel %vm3044, %v6183, 0
        %v6189 = vsel %vm3044, %v6184, 0
        %6191 = vmatpush.bf16.xpose.msra.mxu0 0
        %6192 = vmatpush.bf16.xpose.msra.mxu0 0
        %6193 = vmatpush.bf16.xpose.msra.mxu0 0
        %6194 = vmatpush.bf16.xpose.msra.mxu0 0
        %6195 = vmatpush.bf16.xpose.msra.mxu0 0
        %6196 = vmatpush.bf16.xpose.msra.mxu0 0
        %6197 = vmatpush.bf16.xpose.msra.mxu0 0
        %6198 = vmatpush.bf16.xpose.msra.mxu0 %v6189
        %6199 = vmatmul.bf16.gmra.mxu0 %v6186
        %v6200 = vpop.f32.mrf.mxu0
        %v6201 = vadd.f32 0.0, %v6200
        %v6202 = vpop.f32.mrf.mxu0
        %6203 = vdwg.mxu0
        %v6204 = vmul.f32 %v6201, 0.25
        %v6205 = vld [vmem:[%s137] sm:$0xf]
        %v6206 = vadd.f32 %v6204, %v6205
        %v6207 = vsel %vm4877, %v6206, -inf
        %6208 = vmax.xlane.f32.xlu0 %v6207
        %v6209 = vpop.xlane.xlu0 %6208
        %v6210 = vsub.f32 %v6206, %v6209
        %v6211 = vmul.f32 %v6210, 1.442695
        %v6212 = vpow.pop %v6211
        %v6213 = vsel %vm4877, %v6212, 0.0
        %6214 = vadd.xlane.f32.xlu0 %v6213
        %v6215 = vpop.xlane.xlu0 %6214
        %v6216 = vrcp.pop %v6215
        %v6217 = vmul.f32 %v6215, %v6216
        %v6218 = vsub.f32 1.0, %v6217
        %v6219 = vmul.f32 %v6216, %v6218
        %v6220 = vadd.f32 %v6216, %v6219
        %vm6221 = vweird.f32 %v6215
        %vm6222 = vweird.f32 %v6216
        %vm6223 = vmor %vm6221, %vm6222
        %v6224 = vsel %vm6223, %v6216, %v6220
        %v6225 = vand.u32 2147483647, %v6215
        %vm6226 = vcmp.eq.f32.partialorder %v6225, 8.507059e+37
        %v6227 = vand.u32 %v6215, 2147483648
        %v6228 = vor.u32 1.1754944e-38, %v6227
        %v6229 = vsel %vm6226, %v6228, %v6224
        %v6230 = vmul.f32 %v6212, %v6229
        %v6231 = vpack.c.bf16 %v6230, %v6230
        %v6232 = vpack.c.bf16 %v6180, %v6180
        %v6234 = vsel %vm4904, %v6231, 0
        %v6237 = vsel %vm4908, %v6232, 0
        %6239 = vmatpush.bf16.msra.mxu0 0
        %6240 = vmatpush.bf16.msra.mxu0 0
        %6241 = vmatpush.bf16.msra.mxu0 0
        %6242 = vmatpush.bf16.msra.mxu0 0
        %6243 = vmatpush.bf16.msra.mxu0 0
        %6244 = vmatpush.bf16.msra.mxu0 0
        %6245 = vmatpush.bf16.msra.mxu0 0
        %6246 = vmatpush.bf16.msra.mxu0 %v6237
        %6247 = vmatmul.bf16.gmra.mxu0 %v6234
        %v6248 = vpop.f32.mrf.mxu0
        %v6249 = vadd.f32 0.0, %v6248
        %v6250 = vpop.f32.mrf.mxu0
        %6251 = vdwg.mxu0
        %v6252 = vpack.c.bf16 %v6249, %v6249
        %v6253 = vld [vmem:[%s139] sm:$0xf]
        %v6254 = vld [vmem:[%s139 + $0x4] sm:$0xf]
        %s6255 = scalar_lea.vmem %s125, 32
        %v6256 = vld [vmem:[%s6255] sm:$0xf]
        %v6257 = vld [vmem:[%s6255 + $0x4] sm:$0xf]
        %v6258 = vld [vmem:[%s6255 + $0x8] sm:$0xf]
        %v6259 = vld [vmem:[%s6255 + $0xc] sm:$0xf]
        %v6260 = vld [vmem:[%s6255 + $0x10] sm:$0xf]
        %v6261 = vld [vmem:[%s6255 + $0x14] sm:$0xf]
        %v6262 = vld [vmem:[%s6255 + $0x18] sm:$0xf]
        %v6263 = vld [vmem:[%s6255 + $0x1c] sm:$0xf]
        %s6264 = scalar_lea.vmem %s131, 1
        %v6265 = vld [vmem:[%s6264] sm:$0x1]
        %v6267 = vperm.slane %v6265, 0
        %v6277 = vunpack.c.l.b16 %v6256
        %v6278 = vunpack.c.l.b16 %v6257
        %v6279 = vunpack.c.l.b16 %v6258
        %v6280 = vunpack.c.l.b16 %v6259
        %v6281 = vunpack.c.l.b16 %v6260
        %v6282 = vunpack.c.l.b16 %v6261
        %v6283 = vunpack.c.l.b16 %v6262
        %v6284 = vunpack.c.l.b16 %v6263
        %v6285 = vpack.c.b16 %v6278, %v6277
        %v6286 = vpack.c.b16 %v6280, %v6279
        %v6287 = vpack.c.b16 %v6282, %v6281
        %v6288 = vpack.c.b16 %v6284, %v6283
        %6293 = vmatpush.bf16.msra.mxu0 0
        %6294 = vmatpush.bf16.msra.mxu0 0
        %6295 = vmatpush.bf16.msra.mxu0 0
        %6296 = vmatpush.bf16.msra.mxu0 0
        %6297 = vmatpush.bf16.msra.mxu0 %v6288
        %6298 = vmatpush.bf16.msra.mxu0 %v6287
        %6299 = vmatpush.bf16.msra.mxu0 %v6286
        %6300 = vmatpush.bf16.msra.mxu0 %v6285
        %6301 = vmatmul.bf16.gmra.mxu0 %v6070
        %v6302 = vpop.f32.mrf.mxu0
        %v6303 = vadd.f32 %v6267, %v6302
        %v6304 = vpop.f32.mrf.mxu0
        %6305 = vdwg.mxu0
        %s6306 = scalar_lea.vmem %s127, 32
        %v6307 = vld [vmem:[%s6306] sm:$0xf]
        %v6308 = vld [vmem:[%s6306 + $0x4] sm:$0xf]
        %v6309 = vld [vmem:[%s6306 + $0x8] sm:$0xf]
        %v6310 = vld [vmem:[%s6306 + $0xc] sm:$0xf]
        %v6311 = vld [vmem:[%s6306 + $0x10] sm:$0xf]
        %v6312 = vld [vmem:[%s6306 + $0x14] sm:$0xf]
        %v6313 = vld [vmem:[%s6306 + $0x18] sm:$0xf]
        %v6314 = vld [vmem:[%s6306 + $0x1c] sm:$0xf]
        %s6315 = scalar_lea.vmem %s133, 1
        %v6316 = vld [vmem:[%s6315] sm:$0x1]
        %v6318 = vperm.slane %v6316, 0
        %v6328 = vunpack.c.l.b16 %v6307
        %v6329 = vunpack.c.l.b16 %v6308
        %v6330 = vunpack.c.l.b16 %v6309
        %v6331 = vunpack.c.l.b16 %v6310
        %v6332 = vunpack.c.l.b16 %v6311
        %v6333 = vunpack.c.l.b16 %v6312
        %v6334 = vunpack.c.l.b16 %v6313
        %v6335 = vunpack.c.l.b16 %v6314
        %v6336 = vpack.c.b16 %v6329, %v6328
        %v6337 = vpack.c.b16 %v6331, %v6330
        %v6338 = vpack.c.b16 %v6333, %v6332
        %v6339 = vpack.c.b16 %v6335, %v6334
        %6344 = vmatpush.bf16.msra.mxu0 0
        %6345 = vmatpush.bf16.msra.mxu0 0
        %6346 = vmatpush.bf16.msra.mxu0 0
        %6347 = vmatpush.bf16.msra.mxu0 0
        %6348 = vmatpush.bf16.msra.mxu0 %v6339
        %6349 = vmatpush.bf16.msra.mxu0 %v6338
        %6350 = vmatpush.bf16.msra.mxu0 %v6337
        %6351 = vmatpush.bf16.msra.mxu0 %v6336
        %6352 = vmatmul.bf16.gmra.mxu0 %v6070
        %v6353 = vpop.f32.mrf.mxu0
        %v6354 = vadd.f32 %v6318, %v6353
        %v6355 = vpop.f32.mrf.mxu0
        %6356 = vdwg.mxu0
        %s6357 = scalar_lea.vmem %s129, 32
        %v6358 = vld [vmem:[%s6357] sm:$0xf]
        %v6359 = vld [vmem:[%s6357 + $0x4] sm:$0xf]
        %v6360 = vld [vmem:[%s6357 + $0x8] sm:$0xf]
        %v6361 = vld [vmem:[%s6357 + $0xc] sm:$0xf]
        %v6362 = vld [vmem:[%s6357 + $0x10] sm:$0xf]
        %v6363 = vld [vmem:[%s6357 + $0x14] sm:$0xf]
        %v6364 = vld [vmem:[%s6357 + $0x18] sm:$0xf]
        %v6365 = vld [vmem:[%s6357 + $0x1c] sm:$0xf]
        %s6366 = scalar_lea.vmem %s135, 1
        %v6367 = vld [vmem:[%s6366] sm:$0x1]
        %v6369 = vperm.slane %v6367, 0
        %v6379 = vunpack.c.l.b16 %v6358
        %v6380 = vunpack.c.l.b16 %v6359
        %v6381 = vunpack.c.l.b16 %v6360
        %v6382 = vunpack.c.l.b16 %v6361
        %v6383 = vunpack.c.l.b16 %v6362
        %v6384 = vunpack.c.l.b16 %v6363
        %v6385 = vunpack.c.l.b16 %v6364
        %v6386 = vunpack.c.l.b16 %v6365
        %v6387 = vpack.c.b16 %v6380, %v6379
        %v6388 = vpack.c.b16 %v6382, %v6381
        %v6389 = vpack.c.b16 %v6384, %v6383
        %v6390 = vpack.c.b16 %v6386, %v6385
        %6395 = vmatpush.bf16.msra.mxu0 0
        %6396 = vmatpush.bf16.msra.mxu0 0
        %6397 = vmatpush.bf16.msra.mxu0 0
        %6398 = vmatpush.bf16.msra.mxu0 0
        %6399 = vmatpush.bf16.msra.mxu0 %v6390
        %6400 = vmatpush.bf16.msra.mxu0 %v6389
        %6401 = vmatpush.bf16.msra.mxu0 %v6388
        %6402 = vmatpush.bf16.msra.mxu0 %v6387
        %6403 = vmatmul.bf16.gmra.mxu0 %v6070
        %v6404 = vpop.f32.mrf.mxu0
        %v6405 = vadd.f32 %v6369, %v6404
        %v6406 = vpop.f32.mrf.mxu0
        %6407 = vdwg.mxu0
        %v6408 = vpack.c.bf16 %v6303, %v6303
        %v6409 = vpack.c.bf16 %v6354, %v6354
        %v6411 = vsel %vm3044, %v6408, 0
        %v6414 = vsel %vm3044, %v6409, 0
        %6416 = vmatpush.bf16.xpose.msra.mxu0 0
        %6417 = vmatpush.bf16.xpose.msra.mxu0 0
        %6418 = vmatpush.bf16.xpose.msra.mxu0 0
        %6419 = vmatpush.bf16.xpose.msra.mxu0 0
        %6420 = vmatpush.bf16.xpose.msra.mxu0 0
        %6421 = vmatpush.bf16.xpose.msra.mxu0 0
        %6422 = vmatpush.bf16.xpose.msra.mxu0 0
        %6423 = vmatpush.bf16.xpose.msra.mxu0 %v6414
        %6424 = vmatmul.bf16.gmra.mxu0 %v6411
        %v6425 = vpop.f32.mrf.mxu0
        %v6426 = vadd.f32 0.0, %v6425
        %v6427 = vpop.f32.mrf.mxu0
        %6428 = vdwg.mxu0
        %v6429 = vmul.f32 %v6426, 0.25
        %s6430 = scalar_lea.vmem %s137, 4
        %v6431 = vld [vmem:[%s6430] sm:$0xf]
        %v6432 = vadd.f32 %v6429, %v6431
        %v6433 = vsel %vm4877, %v6432, -inf
        %6434 = vmax.xlane.f32.xlu0 %v6433
        %v6435 = vpop.xlane.xlu0 %6434
        %v6436 = vsub.f32 %v6432, %v6435
        %v6437 = vmul.f32 %v6436, 1.442695
        %v6438 = vpow.pop %v6437
        %v6439 = vsel %vm4877, %v6438, 0.0
        %6440 = vadd.xlane.f32.xlu0 %v6439
        %v6441 = vpop.xlane.xlu0 %6440
        %v6442 = vrcp.pop %v6441
        %v6443 = vmul.f32 %v6441, %v6442
        %v6444 = vsub.f32 1.0, %v6443
        %v6445 = vmul.f32 %v6442, %v6444
        %v6446 = vadd.f32 %v6442, %v6445
        %vm6447 = vweird.f32 %v6441
        %vm6448 = vweird.f32 %v6442
        %vm6449 = vmor %vm6447, %vm6448
        %v6450 = vsel %vm6449, %v6442, %v6446
        %v6451 = vand.u32 2147483647, %v6441
        %vm6452 = vcmp.eq.f32.partialorder %v6451, 8.507059e+37
        %v6453 = vand.u32 %v6441, 2147483648
        %v6454 = vor.u32 1.1754944e-38, %v6453
        %v6455 = vsel %vm6452, %v6454, %v6450
        %v6456 = vmul.f32 %v6438, %v6455
        %v6457 = vpack.c.bf16 %v6456, %v6456
        %v6458 = vpack.c.bf16 %v6405, %v6405
        %v6460 = vsel %vm4904, %v6457, 0
        %v6463 = vsel %vm4908, %v6458, 0
        %6465 = vmatpush.bf16.msra.mxu0 0
        %6466 = vmatpush.bf16.msra.mxu0 0
        %6467 = vmatpush.bf16.msra.mxu0 0
        %6468 = vmatpush.bf16.msra.mxu0 0
        %6469 = vmatpush.bf16.msra.mxu0 0
        %6470 = vmatpush.bf16.msra.mxu0 0
        %6471 = vmatpush.bf16.msra.mxu0 0
        %6472 = vmatpush.bf16.msra.mxu0 %v6463
        %6473 = vmatmul.bf16.gmra.mxu0 %v6460
        %v6474 = vpop.f32.mrf.mxu0
        %v6475 = vadd.f32 0.0, %v6474
        %v6476 = vpop.f32.mrf.mxu0
        %6477 = vdwg.mxu0
        %v6478 = vpack.c.bf16 %v6475, %v6475
        %s6479 = scalar_lea.vmem %s139, 8
        %v6480 = vld [vmem:[%s6479] sm:$0xf]
        %v6481 = vld [vmem:[%s6479 + $0x4] sm:$0xf]
        %v6484 = vunpack.c.l.b16 %v6480
        %v6485 = vunpack.c.l.b16 %v6481
        %v6486 = vpack.c.b16 %v6485, %v6484
        %v6489 = vsel %vm3044, %v6478, 0
        %6491 = vmatpush.bf16.msra.mxu0 0
        %6492 = vmatpush.bf16.msra.mxu0 0
        %6493 = vmatpush.bf16.msra.mxu0 0
        %6494 = vmatpush.bf16.msra.mxu0 0
        %6495 = vmatpush.bf16.msra.mxu0 0
        %6496 = vmatpush.bf16.msra.mxu0 0
        %6497 = vmatpush.bf16.msra.mxu0 0
        %6498 = vmatpush.bf16.msra.mxu0 %v6486
        %6499 = vmatmul.bf16.gmra.mxu0 %v6489
        %v6500 = vpop.f32.mrf.mxu0
        %v6501 = vadd.f32 0.0, %v6500
        %v6502 = vpop.f32.mrf.mxu0
        %6503 = vdwg.mxu0
        %v6506 = vunpack.c.l.b16 %v6253
        %v6507 = vunpack.c.l.b16 %v6254
        %v6508 = vpack.c.b16 %v6507, %v6506
        %v6511 = vsel %vm3044, %v6252, 0
        %6513 = vmatpush.bf16.msra.mxu0 0
        %6514 = vmatpush.bf16.msra.mxu0 0
        %6515 = vmatpush.bf16.msra.mxu0 0
        %6516 = vmatpush.bf16.msra.mxu0 0
        %6517 = vmatpush.bf16.msra.mxu0 0
        %6518 = vmatpush.bf16.msra.mxu0 0
        %6519 = vmatpush.bf16.msra.mxu0 0
        %6520 = vmatpush.bf16.msra.mxu0 %v6508
        %6521 = vmatmul.bf16.gmra.mxu0 %v6511
        %v6522 = vpop.f32.mrf.mxu0
        %v6523 = vadd.f32 %v6501, %v6522
        %v6524 = vpop.f32.mrf.mxu0
        %6525 = vdwg.mxu0
        %s6526 = scalar_lea.vmem %s125, 64
        %v6527 = vld [vmem:[%s6526] sm:$0xf]
        %v6528 = vld [vmem:[%s6526 + $0x4] sm:$0xf]
        %v6529 = vld [vmem:[%s6526 + $0x8] sm:$0xf]
        %v6530 = vld [vmem:[%s6526 + $0xc] sm:$0xf]
        %v6531 = vld [vmem:[%s6526 + $0x10] sm:$0xf]
        %v6532 = vld [vmem:[%s6526 + $0x14] sm:$0xf]
        %v6533 = vld [vmem:[%s6526 + $0x18] sm:$0xf]
        %v6534 = vld [vmem:[%s6526 + $0x1c] sm:$0xf]
        %s6535 = scalar_lea.vmem %s131, 2
        %v6536 = vld [vmem:[%s6535] sm:$0x1]
        %v6538 = vperm.slane %v6536, 0
        %v6548 = vunpack.c.l.b16 %v6527
        %v6549 = vunpack.c.l.b16 %v6528
        %v6550 = vunpack.c.l.b16 %v6529
        %v6551 = vunpack.c.l.b16 %v6530
        %v6552 = vunpack.c.l.b16 %v6531
        %v6553 = vunpack.c.l.b16 %v6532
        %v6554 = vunpack.c.l.b16 %v6533
        %v6555 = vunpack.c.l.b16 %v6534
        %v6556 = vpack.c.b16 %v6549, %v6548
        %v6557 = vpack.c.b16 %v6551, %v6550
        %v6558 = vpack.c.b16 %v6553, %v6552
        %v6559 = vpack.c.b16 %v6555, %v6554
        %6564 = vmatpush.bf16.msra.mxu0 0
        %6565 = vmatpush.bf16.msra.mxu0 0
        %6566 = vmatpush.bf16.msra.mxu0 0
        %6567 = vmatpush.bf16.msra.mxu0 0
        %6568 = vmatpush.bf16.msra.mxu0 %v6559
        %6569 = vmatpush.bf16.msra.mxu0 %v6558
        %6570 = vmatpush.bf16.msra.mxu0 %v6557
        %6571 = vmatpush.bf16.msra.mxu0 %v6556
        %6572 = vmatmul.bf16.gmra.mxu0 %v6070
        %v6573 = vpop.f32.mrf.mxu0
        %v6574 = vadd.f32 %v6538, %v6573
        %v6575 = vpop.f32.mrf.mxu0
        %6576 = vdwg.mxu0
        %s6577 = scalar_lea.vmem %s127, 64
        %v6578 = vld [vmem:[%s6577] sm:$0xf]
        %v6579 = vld [vmem:[%s6577 + $0x4] sm:$0xf]
        %v6580 = vld [vmem:[%s6577 + $0x8] sm:$0xf]
        %v6581 = vld [vmem:[%s6577 + $0xc] sm:$0xf]
        %v6582 = vld [vmem:[%s6577 + $0x10] sm:$0xf]
        %v6583 = vld [vmem:[%s6577 + $0x14] sm:$0xf]
        %v6584 = vld [vmem:[%s6577 + $0x18] sm:$0xf]
        %v6585 = vld [vmem:[%s6577 + $0x1c] sm:$0xf]
        %s6586 = scalar_lea.vmem %s133, 2
        %v6587 = vld [vmem:[%s6586] sm:$0x1]
        %v6589 = vperm.slane %v6587, 0
        %v6599 = vunpack.c.l.b16 %v6578
        %v6600 = vunpack.c.l.b16 %v6579
        %v6601 = vunpack.c.l.b16 %v6580
        %v6602 = vunpack.c.l.b16 %v6581
        %v6603 = vunpack.c.l.b16 %v6582
        %v6604 = vunpack.c.l.b16 %v6583
        %v6605 = vunpack.c.l.b16 %v6584
        %v6606 = vunpack.c.l.b16 %v6585
        %v6607 = vpack.c.b16 %v6600, %v6599
        %v6608 = vpack.c.b16 %v6602, %v6601
        %v6609 = vpack.c.b16 %v6604, %v6603
        %v6610 = vpack.c.b16 %v6606, %v6605
        %6615 = vmatpush.bf16.msra.mxu0 0
        %6616 = vmatpush.bf16.msra.mxu0 0
        %6617 = vmatpush.bf16.msra.mxu0 0
        %6618 = vmatpush.bf16.msra.mxu0 0
        %6619 = vmatpush.bf16.msra.mxu0 %v6610
        %6620 = vmatpush.bf16.msra.mxu0 %v6609
        %6621 = vmatpush.bf16.msra.mxu0 %v6608
        %6622 = vmatpush.bf16.msra.mxu0 %v6607
        %6623 = vmatmul.bf16.gmra.mxu0 %v6070
        %v6624 = vpop.f32.mrf.mxu0
        %v6625 = vadd.f32 %v6589, %v6624
        %v6626 = vpop.f32.mrf.mxu0
        %6627 = vdwg.mxu0
        %s6628 = scalar_lea.vmem %s129, 64
        %v6629 = vld [vmem:[%s6628] sm:$0xf]
        %v6630 = vld [vmem:[%s6628 + $0x4] sm:$0xf]
        %v6631 = vld [vmem:[%s6628 + $0x8] sm:$0xf]
        %v6632 = vld [vmem:[%s6628 + $0xc] sm:$0xf]
        %v6633 = vld [vmem:[%s6628 + $0x10] sm:$0xf]
        %v6634 = vld [vmem:[%s6628 + $0x14] sm:$0xf]
        %v6635 = vld [vmem:[%s6628 + $0x18] sm:$0xf]
        %v6636 = vld [vmem:[%s6628 + $0x1c] sm:$0xf]
        %s6637 = scalar_lea.vmem %s135, 2
        %v6638 = vld [vmem:[%s6637] sm:$0x1]
        %v6640 = vperm.slane %v6638, 0
        %v6650 = vunpack.c.l.b16 %v6629
        %v6651 = vunpack.c.l.b16 %v6630
        %v6652 = vunpack.c.l.b16 %v6631
        %v6653 = vunpack.c.l.b16 %v6632
        %v6654 = vunpack.c.l.b16 %v6633
        %v6655 = vunpack.c.l.b16 %v6634
        %v6656 = vunpack.c.l.b16 %v6635
        %v6657 = vunpack.c.l.b16 %v6636
        %v6658 = vpack.c.b16 %v6651, %v6650
        %v6659 = vpack.c.b16 %v6653, %v6652
        %v6660 = vpack.c.b16 %v6655, %v6654
        %v6661 = vpack.c.b16 %v6657, %v6656
        %6666 = vmatpush.bf16.msra.mxu0 0
        %6667 = vmatpush.bf16.msra.mxu0 0
        %6668 = vmatpush.bf16.msra.mxu0 0
        %6669 = vmatpush.bf16.msra.mxu0 0
        %6670 = vmatpush.bf16.msra.mxu0 %v6661
        %6671 = vmatpush.bf16.msra.mxu0 %v6660
        %6672 = vmatpush.bf16.msra.mxu0 %v6659
        %6673 = vmatpush.bf16.msra.mxu0 %v6658
        %6674 = vmatmul.bf16.gmra.mxu0 %v6070
        %v6675 = vpop.f32.mrf.mxu0
        %v6676 = vadd.f32 %v6640, %v6675
        %v6677 = vpop.f32.mrf.mxu0
        %6678 = vdwg.mxu0
        %v6679 = vpack.c.bf16 %v6574, %v6574
        %v6680 = vpack.c.bf16 %v6625, %v6625
        %v6682 = vsel %vm3044, %v6679, 0
        %v6685 = vsel %vm3044, %v6680, 0
        %6687 = vmatpush.bf16.xpose.msra.mxu0 0
        %6688 = vmatpush.bf16.xpose.msra.mxu0 0
        %6689 = vmatpush.bf16.xpose.msra.mxu0 0
        %6690 = vmatpush.bf16.xpose.msra.mxu0 0
        %6691 = vmatpush.bf16.xpose.msra.mxu0 0
        %6692 = vmatpush.bf16.xpose.msra.mxu0 0
        %6693 = vmatpush.bf16.xpose.msra.mxu0 0
        %6694 = vmatpush.bf16.xpose.msra.mxu0 %v6685
        %6695 = vmatmul.bf16.gmra.mxu0 %v6682
        %v6696 = vpop.f32.mrf.mxu0
        %v6697 = vadd.f32 0.0, %v6696
        %v6698 = vpop.f32.mrf.mxu0
        %6699 = vdwg.mxu0
        %v6700 = vmul.f32 %v6697, 0.25
        %s6701 = scalar_lea.vmem %s137, 8
        %v6702 = vld [vmem:[%s6701] sm:$0xf]
        %v6703 = vadd.f32 %v6700, %v6702
        %v6704 = vsel %vm4877, %v6703, -inf
        %6705 = vmax.xlane.f32.xlu0 %v6704
        %v6706 = vpop.xlane.xlu0 %6705
        %v6707 = vsub.f32 %v6703, %v6706
        %v6708 = vmul.f32 %v6707, 1.442695
        %v6709 = vpow.pop %v6708
        %v6710 = vsel %vm4877, %v6709, 0.0
        %6711 = vadd.xlane.f32.xlu0 %v6710
        %v6712 = vpop.xlane.xlu0 %6711
        %v6713 = vrcp.pop %v6712
        %v6714 = vmul.f32 %v6712, %v6713
        %v6715 = vsub.f32 1.0, %v6714
        %v6716 = vmul.f32 %v6713, %v6715
        %v6717 = vadd.f32 %v6713, %v6716
        %vm6718 = vweird.f32 %v6712
        %vm6719 = vweird.f32 %v6713
        %vm6720 = vmor %vm6718, %vm6719
        %v6721 = vsel %vm6720, %v6713, %v6717
        %v6722 = vand.u32 2147483647, %v6712
        %vm6723 = vcmp.eq.f32.partialorder %v6722, 8.507059e+37
        %v6724 = vand.u32 %v6712, 2147483648
        %v6725 = vor.u32 1.1754944e-38, %v6724
        %v6726 = vsel %vm6723, %v6725, %v6721
        %v6727 = vmul.f32 %v6709, %v6726
        %v6728 = vpack.c.bf16 %v6727, %v6727
        %v6729 = vpack.c.bf16 %v6676, %v6676
        %v6731 = vsel %vm4904, %v6728, 0
        %v6734 = vsel %vm4908, %v6729, 0
        %6736 = vmatpush.bf16.msra.mxu0 0
        %6737 = vmatpush.bf16.msra.mxu0 0
        %6738 = vmatpush.bf16.msra.mxu0 0
        %6739 = vmatpush.bf16.msra.mxu0 0
        %6740 = vmatpush.bf16.msra.mxu0 0
        %6741 = vmatpush.bf16.msra.mxu0 0
        %6742 = vmatpush.bf16.msra.mxu0 0
        %6743 = vmatpush.bf16.msra.mxu0 %v6734
        %6744 = vmatmul.bf16.gmra.mxu0 %v6731
        %v6745 = vpop.f32.mrf.mxu0
        %v6746 = vadd.f32 0.0, %v6745
        %v6747 = vpop.f32.mrf.mxu0
        %6748 = vdwg.mxu0
        %v6749 = vpack.c.bf16 %v6746, %v6746
        %s6750 = scalar_lea.vmem %s139, 16
        %v6751 = vld [vmem:[%s6750] sm:$0xf]
        %v6752 = vld [vmem:[%s6750 + $0x4] sm:$0xf]
        %v6755 = vunpack.c.l.b16 %v6751
        %v6756 = vunpack.c.l.b16 %v6752
        %v6757 = vpack.c.b16 %v6756, %v6755
        %v6760 = vsel %vm3044, %v6749, 0
        %6762 = vmatpush.bf16.msra.mxu0 0
        %6763 = vmatpush.bf16.msra.mxu0 0
        %6764 = vmatpush.bf16.msra.mxu0 0
        %6765 = vmatpush.bf16.msra.mxu0 0
        %6766 = vmatpush.bf16.msra.mxu0 0
        %6767 = vmatpush.bf16.msra.mxu0 0
        %6768 = vmatpush.bf16.msra.mxu0 0
        %6769 = vmatpush.bf16.msra.mxu0 %v6757
        %6770 = vmatmul.bf16.gmra.mxu0 %v6760
        %v6771 = vpop.f32.mrf.mxu0
        %v6772 = vadd.f32 0.0, %v6771
        %v6773 = vpop.f32.mrf.mxu0
        %6774 = vdwg.mxu0
        %v6775 = vadd.f32 %v6523, %v6772
        %s6776 = scalar_lea.vmem %s125, 96
        %v6777 = vld [vmem:[%s6776] sm:$0xf]
        %v6778 = vld [vmem:[%s6776 + $0x4] sm:$0xf]
        %v6779 = vld [vmem:[%s6776 + $0x8] sm:$0xf]
        %v6780 = vld [vmem:[%s6776 + $0xc] sm:$0xf]
        %v6781 = vld [vmem:[%s6776 + $0x10] sm:$0xf]
        %v6782 = vld [vmem:[%s6776 + $0x14] sm:$0xf]
        %v6783 = vld [vmem:[%s6776 + $0x18] sm:$0xf]
        %v6784 = vld [vmem:[%s6776 + $0x1c] sm:$0xf]
        %s6785 = scalar_lea.vmem %s131, 3
        %v6786 = vld [vmem:[%s6785] sm:$0x1]
        %v6788 = vperm.slane %v6786, 0
        %v6798 = vunpack.c.l.b16 %v6777
        %v6799 = vunpack.c.l.b16 %v6778
        %v6800 = vunpack.c.l.b16 %v6779
        %v6801 = vunpack.c.l.b16 %v6780
        %v6802 = vunpack.c.l.b16 %v6781
        %v6803 = vunpack.c.l.b16 %v6782
        %v6804 = vunpack.c.l.b16 %v6783
        %v6805 = vunpack.c.l.b16 %v6784
        %v6806 = vpack.c.b16 %v6799, %v6798
        %v6807 = vpack.c.b16 %v6801, %v6800
        %v6808 = vpack.c.b16 %v6803, %v6802
        %v6809 = vpack.c.b16 %v6805, %v6804
        %6814 = vmatpush.bf16.msra.mxu0 0
        %6815 = vmatpush.bf16.msra.mxu0 0
        %6816 = vmatpush.bf16.msra.mxu0 0
        %6817 = vmatpush.bf16.msra.mxu0 0
        %6818 = vmatpush.bf16.msra.mxu0 %v6809
        %6819 = vmatpush.bf16.msra.mxu0 %v6808
        %6820 = vmatpush.bf16.msra.mxu0 %v6807
        %6821 = vmatpush.bf16.msra.mxu0 %v6806
        %6822 = vmatmul.bf16.gmra.mxu0 %v6070
        %v6823 = vpop.f32.mrf.mxu0
        %v6824 = vadd.f32 %v6788, %v6823
        %v6825 = vpop.f32.mrf.mxu0
        %6826 = vdwg.mxu0
        %s6827 = scalar_lea.vmem %s127, 96
        %v6828 = vld [vmem:[%s6827] sm:$0xf]
        %v6829 = vld [vmem:[%s6827 + $0x4] sm:$0xf]
        %v6830 = vld [vmem:[%s6827 + $0x8] sm:$0xf]
        %v6831 = vld [vmem:[%s6827 + $0xc] sm:$0xf]
        %v6832 = vld [vmem:[%s6827 + $0x10] sm:$0xf]
        %v6833 = vld [vmem:[%s6827 + $0x14] sm:$0xf]
        %v6834 = vld [vmem:[%s6827 + $0x18] sm:$0xf]
        %v6835 = vld [vmem:[%s6827 + $0x1c] sm:$0xf]
        %s6836 = scalar_lea.vmem %s133, 3
        %v6837 = vld [vmem:[%s6836] sm:$0x1]
        %v6839 = vperm.slane %v6837, 0
        %v6849 = vunpack.c.l.b16 %v6828
        %v6850 = vunpack.c.l.b16 %v6829
        %v6851 = vunpack.c.l.b16 %v6830
        %v6852 = vunpack.c.l.b16 %v6831
        %v6853 = vunpack.c.l.b16 %v6832
        %v6854 = vunpack.c.l.b16 %v6833
        %v6855 = vunpack.c.l.b16 %v6834
        %v6856 = vunpack.c.l.b16 %v6835
        %v6857 = vpack.c.b16 %v6850, %v6849
        %v6858 = vpack.c.b16 %v6852, %v6851
        %v6859 = vpack.c.b16 %v6854, %v6853
        %v6860 = vpack.c.b16 %v6856, %v6855
        %6865 = vmatpush.bf16.msra.mxu0 0
        %6866 = vmatpush.bf16.msra.mxu0 0
        %6867 = vmatpush.bf16.msra.mxu0 0
        %6868 = vmatpush.bf16.msra.mxu0 0
        %6869 = vmatpush.bf16.msra.mxu0 %v6860
        %6870 = vmatpush.bf16.msra.mxu0 %v6859
        %6871 = vmatpush.bf16.msra.mxu0 %v6858
        %6872 = vmatpush.bf16.msra.mxu0 %v6857
        %6873 = vmatmul.bf16.gmra.mxu0 %v6070
        %v6874 = vpop.f32.mrf.mxu0
        %v6875 = vadd.f32 %v6839, %v6874
        %v6876 = vpop.f32.mrf.mxu0
        %6877 = vdwg.mxu0
        %s6878 = scalar_lea.vmem %s129, 96
        %v6879 = vld [vmem:[%s6878] sm:$0xf]
        %v6880 = vld [vmem:[%s6878 + $0x4] sm:$0xf]
        %v6881 = vld [vmem:[%s6878 + $0x8] sm:$0xf]
        %v6882 = vld [vmem:[%s6878 + $0xc] sm:$0xf]
        %v6883 = vld [vmem:[%s6878 + $0x10] sm:$0xf]
        %v6884 = vld [vmem:[%s6878 + $0x14] sm:$0xf]
        %v6885 = vld [vmem:[%s6878 + $0x18] sm:$0xf]
        %v6886 = vld [vmem:[%s6878 + $0x1c] sm:$0xf]
        %s6887 = scalar_lea.vmem %s135, 3
        %v6888 = vld [vmem:[%s6887] sm:$0x1]
        %v6890 = vperm.slane %v6888, 0
        %v6900 = vunpack.c.l.b16 %v6879
        %v6901 = vunpack.c.l.b16 %v6880
        %v6902 = vunpack.c.l.b16 %v6881
        %v6903 = vunpack.c.l.b16 %v6882
        %v6904 = vunpack.c.l.b16 %v6883
        %v6905 = vunpack.c.l.b16 %v6884
        %v6906 = vunpack.c.l.b16 %v6885
        %v6907 = vunpack.c.l.b16 %v6886
        %v6908 = vpack.c.b16 %v6901, %v6900
        %v6909 = vpack.c.b16 %v6903, %v6902
        %v6910 = vpack.c.b16 %v6905, %v6904
        %v6911 = vpack.c.b16 %v6907, %v6906
        %6916 = vmatpush.bf16.msra.mxu0 0
        %6917 = vmatpush.bf16.msra.mxu0 0
        %6918 = vmatpush.bf16.msra.mxu0 0
        %6919 = vmatpush.bf16.msra.mxu0 0
        %6920 = vmatpush.bf16.msra.mxu0 %v6911
        %6921 = vmatpush.bf16.msra.mxu0 %v6910
        %6922 = vmatpush.bf16.msra.mxu0 %v6909
        %6923 = vmatpush.bf16.msra.mxu0 %v6908
        %6924 = vmatmul.bf16.gmra.mxu0 %v6070
        %v6925 = vpop.f32.mrf.mxu0
        %v6926 = vadd.f32 %v6890, %v6925
        %v6927 = vpop.f32.mrf.mxu0
        %6928 = vdwg.mxu0
        %v6929 = vpack.c.bf16 %v6824, %v6824
        %v6930 = vpack.c.bf16 %v6875, %v6875
        %v6932 = vsel %vm3044, %v6929, 0
        %v6935 = vsel %vm3044, %v6930, 0
        %6937 = vmatpush.bf16.xpose.msra.mxu0 0
        %6938 = vmatpush.bf16.xpose.msra.mxu0 0
        %6939 = vmatpush.bf16.xpose.msra.mxu0 0
        %6940 = vmatpush.bf16.xpose.msra.mxu0 0
        %6941 = vmatpush.bf16.xpose.msra.mxu0 0
        %6942 = vmatpush.bf16.xpose.msra.mxu0 0
        %6943 = vmatpush.bf16.xpose.msra.mxu0 0
        %6944 = vmatpush.bf16.xpose.msra.mxu0 %v6935
        %6945 = vmatmul.bf16.gmra.mxu0 %v6932
        %v6946 = vpop.f32.mrf.mxu0
        %v6947 = vadd.f32 0.0, %v6946
        %v6948 = vpop.f32.mrf.mxu0
        %6949 = vdwg.mxu0
        %v6950 = vmul.f32 %v6947, 0.25
        %s6951 = scalar_lea.vmem %s137, 12
        %v6952 = vld [vmem:[%s6951] sm:$0xf]
        %v6953 = vadd.f32 %v6950, %v6952
        %v6954 = vsel %vm4877, %v6953, -inf
        %6955 = vmax.xlane.f32.xlu0 %v6954
        %v6956 = vpop.xlane.xlu0 %6955
        %v6957 = vsub.f32 %v6953, %v6956
        %v6958 = vmul.f32 %v6957, 1.442695
        %v6959 = vpow.pop %v6958
        %v6960 = vsel %vm4877, %v6959, 0.0
        %6961 = vadd.xlane.f32.xlu0 %v6960
        %v6962 = vpop.xlane.xlu0 %6961
        %v6963 = vrcp.pop %v6962
        %v6964 = vmul.f32 %v6962, %v6963
        %v6965 = vsub.f32 1.0, %v6964
        %v6966 = vmul.f32 %v6963, %v6965
        %v6967 = vadd.f32 %v6963, %v6966
        %vm6968 = vweird.f32 %v6962
        %vm6969 = vweird.f32 %v6963
        %vm6970 = vmor %vm6968, %vm6969
        %v6971 = vsel %vm6970, %v6963, %v6967
        %v6972 = vand.u32 2147483647, %v6962
        %vm6973 = vcmp.eq.f32.partialorder %v6972, 8.507059e+37
        %v6974 = vand.u32 %v6962, 2147483648
        %v6975 = vor.u32 1.1754944e-38, %v6974
        %v6976 = vsel %vm6973, %v6975, %v6971
        %v6977 = vmul.f32 %v6959, %v6976
        %v6978 = vpack.c.bf16 %v6977, %v6977
        %v6979 = vpack.c.bf16 %v6926, %v6926
        %v6981 = vsel %vm4904, %v6978, 0
        %v6984 = vsel %vm4908, %v6979, 0
        %6986 = vmatpush.bf16.msra.mxu0 0
        %6987 = vmatpush.bf16.msra.mxu0 0
        %6988 = vmatpush.bf16.msra.mxu0 0
        %6989 = vmatpush.bf16.msra.mxu0 0
        %6990 = vmatpush.bf16.msra.mxu0 0
        %6991 = vmatpush.bf16.msra.mxu0 0
        %6992 = vmatpush.bf16.msra.mxu0 0
        %6993 = vmatpush.bf16.msra.mxu0 %v6984
        %6994 = vmatmul.bf16.gmra.mxu0 %v6981
        %v6995 = vpop.f32.mrf.mxu0
        %v6996 = vadd.f32 0.0, %v6995
        %v6997 = vpop.f32.mrf.mxu0
        %6998 = vdwg.mxu0
        %v6999 = vpack.c.bf16 %v6996, %v6996
        %s7000 = scalar_lea.vmem %s139, 24
        %v7001 = vld [vmem:[%s7000] sm:$0xf]
        %v7002 = vld [vmem:[%s7000 + $0x4] sm:$0xf]
        %v7005 = vunpack.c.l.b16 %v7001
        %v7006 = vunpack.c.l.b16 %v7002
        %v7007 = vpack.c.b16 %v7006, %v7005
        %v7010 = vsel %vm3044, %v6999, 0
        %7012 = vmatpush.bf16.msra.mxu0 0
        %7013 = vmatpush.bf16.msra.mxu0 0
        %7014 = vmatpush.bf16.msra.mxu0 0
        %7015 = vmatpush.bf16.msra.mxu0 0
        %7016 = vmatpush.bf16.msra.mxu0 0
        %7017 = vmatpush.bf16.msra.mxu0 0
        %7018 = vmatpush.bf16.msra.mxu0 0
        %7019 = vmatpush.bf16.msra.mxu0 %v7007
        %7020 = vmatmul.bf16.gmra.mxu0 %v7010
        %v7021 = vpop.f32.mrf.mxu0
        %v7022 = vadd.f32 0.0, %v7021
        %v7023 = vpop.f32.mrf.mxu0
        %7024 = vdwg.mxu0
        %v7025 = vadd.f32 %v6775, %v7022
        %v7026 = vadd.f32 %v5999, %v7025
        %v7027 = vld [vmem:[#allocation40] sm:$0x1]
        %v7029 = vperm.slane %v7027, 0
        %v7031 = vadd.f32 %v7026, %v7029
        %v7032 = vld [vmem:[#allocation42] sm:$0x1]
        %v7033 = vld [vmem:[#allocation43] sm:$0x1]
        %v7034 = vsel %vm4663, %v7031, 0.0
        %7035 = vadd.xlane.f32.xlu0 %v7034
        %v7036 = vpop.xlane.xlu0 %7035
        %v7037 = vmul.f32 %v7036, %v4673
        %v7038 = vsub.f32 %v7031, %v7037
        %v7039 = vmul.f32 %v7038, %v7038
        %v7040 = vsel %vm4663, %v7039, 0.0
        %7041 = vadd.xlane.f32.xlu0 %v7040
        %v7042 = vpop.xlane.xlu0 %7041
        %v7043 = vmul.f32 %v7042, %v4673
        %v7044 = vadd.f32 %v7043, 1e-05
        %v7045 = vrsqrt.pop %v7044
        %v7046 = vmul.f32 %v7045, %v7044
        %v7047 = vmul.f32 %v7046, %v7045
        %v7048 = vmul.f32 0.5, %v7047
        %v7049 = vsub.f32 1.5, %v7048
        %v7050 = vmul.f32 %v7045, %v7049
        %vm7051 = vweird.f32 %v7044
        %vm7052 = vweird.f32 %v7045
        %vm7053 = vmor %vm7051, %vm7052
        %v7054 = vsel %vm7053, %v7045, %v7050
        %v7055 = vmul.f32 %v7038, %v7054
        %v7057 = vperm.slane %v7032, 0
        %v7059 = vmul.f32 %v7055, %v7057
        %v7061 = vperm.slane %v7033, 0
        %v7063 = vadd.f32 %v7059, %v7061
        %v7064 = vpack.c.bf16 %v7063, %v7063
        %v7065 = vld [vmem:[%s147] sm:$0xff]
        %v7066 = vld [vmem:[%s147 + $0x8] sm:$0xff]
        %v7067 = vld [vmem:[%s147 + $0x10] sm:$0xff]
        %v7068 = vld [vmem:[%s147 + $0x18] sm:$0xff]
        %v7069 = vld [vmem:[%s147 + $0x20] sm:$0xff]
        %v7070 = vld [vmem:[%s147 + $0x28] sm:$0xff]
        %v7071 = vld [vmem:[%s147 + $0x30] sm:$0xff]
        %v7072 = vld [vmem:[%s147 + $0x38] sm:$0xff]
        %v7073 = vld [vmem:[#allocation45] sm:$0x3]
        %v7075 = vperm.slane %v7073, 0
        %v7076 = vperm.slane %v7073, 1
        %v7087 = vunpack.c.l.b16 %v7065
        %v7088 = vunpack.c.h.b16 %v7065
        %v7089 = vunpack.c.l.b16 %v7066
        %v7090 = vunpack.c.h.b16 %v7066
        %v7091 = vunpack.c.l.b16 %v7067
        %v7092 = vunpack.c.h.b16 %v7067
        %v7093 = vunpack.c.l.b16 %v7068
        %v7094 = vunpack.c.h.b16 %v7068
        %v7095 = vunpack.c.l.b16 %v7069
        %v7096 = vunpack.c.h.b16 %v7069
        %v7097 = vunpack.c.l.b16 %v7070
        %v7098 = vunpack.c.h.b16 %v7070
        %v7099 = vunpack.c.l.b16 %v7071
        %v7100 = vunpack.c.h.b16 %v7071
        %v7101 = vunpack.c.l.b16 %v7072
        %v7102 = vunpack.c.h.b16 %v7072
        %v7103 = vpack.c.b16 %v7089, %v7087
        %v7104 = vpack.c.b16 %v7090, %v7088
        %v7105 = vpack.c.b16 %v7093, %v7091
        %v7106 = vpack.c.b16 %v7094, %v7092
        %v7107 = vpack.c.b16 %v7097, %v7095
        %v7108 = vpack.c.b16 %v7098, %v7096
        %v7109 = vpack.c.b16 %v7101, %v7099
        %v7110 = vpack.c.b16 %v7102, %v7100
        %v7120 = vsel %vm4738, %v7064, 0
        %7122 = vmatpush.bf16.msra.mxu0 0
        %7123 = vmatpush.bf16.msra.mxu0 0
        %7124 = vmatpush.bf16.msra.mxu0 0
        %7125 = vmatpush.bf16.msra.mxu0 0
        %7126 = vmatpush.bf16.msra.mxu0 %v7109
        %7127 = vmatpush.bf16.msra.mxu0 %v7107
        %7128 = vmatpush.bf16.msra.mxu0 %v7105
        %7129 = vmatpush.bf16.msra.mxu0 %v7103
        %7130 = vmatmul.bf16.gmra.mxu0 %v7120
        %v7131 = vpop.f32.mrf.mxu0
        %v7132 = vadd.f32 %v7075, %v7131
        %v7133 = vpop.f32.mrf.mxu0
        %7134 = vdwg.mxu0
        %7135 = vmatpush.bf16.msra.mxu0 0
        %7136 = vmatpush.bf16.msra.mxu0 0
        %7137 = vmatpush.bf16.msra.mxu0 0
        %7138 = vmatpush.bf16.msra.mxu0 0
        %7139 = vmatpush.bf16.msra.mxu0 %v7110
        %7140 = vmatpush.bf16.msra.mxu0 %v7108
        %7141 = vmatpush.bf16.msra.mxu0 %v7106
        %7142 = vmatpush.bf16.msra.mxu0 %v7104
        %7143 = vmatmul.bf16.gmra.mxu0 %v7120
        %v7144 = vpop.f32.mrf.mxu0
        %v7145 = vadd.f32 %v7076, %v7144
        %v7146 = vpop.f32.mrf.mxu0
        %7147 = vdwg.mxu0
        %v7148 = vmul.f32 %v7132, %v7132
        %v7149 = vmul.f32 %v7145, %v7145
        %v7150 = vmul.f32 %v7132, %v7148
        %v7151 = vmul.f32 %v7145, %v7149
        %v7152 = vmul.f32 %v7150, 0.044715
        %v7153 = vmul.f32 %v7151, 0.044715
        %v7154 = vadd.f32 %v7132, %v7152
        %v7155 = vadd.f32 %v7145, %v7153
        %v7156 = vmul.f32 %v7154, 0.7978846
        %v7157 = vmul.f32 %v7155, 0.7978846
        %v7158 = vtanh.pop %v7156
        %v7159 = vtanh.pop %v7157
        %v7160 = vadd.f32 %v7158, 1.0
        %v7161 = vadd.f32 %v7159, 1.0
        %v7162 = vmul.f32 %v7160, 0.5
        %v7163 = vmul.f32 %v7161, 0.5
        %v7164 = vmul.f32 %v7132, %v7162
        %v7165 = vmul.f32 %v7145, %v7163
        %v7166 = vpack.c.bf16 %v7164, %v7164
        %v7167 = vpack.c.bf16 %v7165, %v7165
        %v7168 = vld [vmem:[%s151] sm:$0xf]
        %v7169 = vld [vmem:[%s151 + $0x4] sm:$0xf]
        %v7170 = vld [vmem:[%s151 + $0x8] sm:$0xf]
        %v7171 = vld [vmem:[%s151 + $0xc] sm:$0xf]
        %v7172 = vld [vmem:[%s151 + $0x10] sm:$0xf]
        %v7173 = vld [vmem:[%s151 + $0x14] sm:$0xf]
        %v7174 = vld [vmem:[%s151 + $0x18] sm:$0xf]
        %v7175 = vld [vmem:[%s151 + $0x1c] sm:$0xf]
        %v7176 = vld [vmem:[%s151 + $0x20] sm:$0xf]
        %v7177 = vld [vmem:[%s151 + $0x24] sm:$0xf]
        %v7178 = vld [vmem:[%s151 + $0x28] sm:$0xf]
        %v7179 = vld [vmem:[%s151 + $0x2c] sm:$0xf]
        %v7180 = vld [vmem:[%s151 + $0x30] sm:$0xf]
        %v7181 = vld [vmem:[%s151 + $0x34] sm:$0xf]
        %v7182 = vld [vmem:[%s151 + $0x38] sm:$0xf]
        %v7183 = vld [vmem:[%s151 + $0x3c] sm:$0xf]
        %v7184 = vld [vmem:[%s151 + $0x40] sm:$0xf]
        %v7185 = vld [vmem:[%s151 + $0x44] sm:$0xf]
        %v7186 = vld [vmem:[%s151 + $0x48] sm:$0xf]
        %v7187 = vld [vmem:[%s151 + $0x4c] sm:$0xf]
        %v7188 = vld [vmem:[%s151 + $0x50] sm:$0xf]
        %v7189 = vld [vmem:[%s151 + $0x54] sm:$0xf]
        %v7190 = vld [vmem:[%s151 + $0x58] sm:$0xf]
        %v7191 = vld [vmem:[%s151 + $0x5c] sm:$0xf]
        %v7192 = vld [vmem:[%s151 + $0x60] sm:$0xf]
        %v7193 = vld [vmem:[%s151 + $0x64] sm:$0xf]
        %v7194 = vld [vmem:[%s151 + $0x68] sm:$0xf]
        %v7195 = vld [vmem:[%s151 + $0x6c] sm:$0xf]
        %v7196 = vld [vmem:[%s151 + $0x70] sm:$0xf]
        %v7197 = vld [vmem:[%s151 + $0x74] sm:$0xf]
        %v7198 = vld [vmem:[%s151 + $0x78] sm:$0xf]
        %v7199 = vld [vmem:[%s151 + $0x7c] sm:$0xf]
        %v7200 = vld [vmem:[#allocation46] sm:$0x1]
        %v7202 = vperm.slane %v7200, 0
        %v7236 = vunpack.c.l.b16 %v7168
        %v7237 = vunpack.c.l.b16 %v7169
        %v7238 = vunpack.c.l.b16 %v7170
        %v7239 = vunpack.c.l.b16 %v7171
        %v7240 = vunpack.c.l.b16 %v7172
        %v7241 = vunpack.c.l.b16 %v7173
        %v7242 = vunpack.c.l.b16 %v7174
        %v7243 = vunpack.c.l.b16 %v7175
        %v7244 = vunpack.c.l.b16 %v7176
        %v7245 = vunpack.c.l.b16 %v7177
        %v7246 = vunpack.c.l.b16 %v7178
        %v7247 = vunpack.c.l.b16 %v7179
        %v7248 = vunpack.c.l.b16 %v7180
        %v7249 = vunpack.c.l.b16 %v7181
        %v7250 = vunpack.c.l.b16 %v7182
        %v7251 = vunpack.c.l.b16 %v7183
        %v7252 = vunpack.c.l.b16 %v7184
        %v7253 = vunpack.c.l.b16 %v7185
        %v7254 = vunpack.c.l.b16 %v7186
        %v7255 = vunpack.c.l.b16 %v7187
        %v7256 = vunpack.c.l.b16 %v7188
        %v7257 = vunpack.c.l.b16 %v7189
        %v7258 = vunpack.c.l.b16 %v7190
        %v7259 = vunpack.c.l.b16 %v7191
        %v7260 = vunpack.c.l.b16 %v7192
        %v7261 = vunpack.c.l.b16 %v7193
        %v7262 = vunpack.c.l.b16 %v7194
        %v7263 = vunpack.c.l.b16 %v7195
        %v7264 = vunpack.c.l.b16 %v7196
        %v7265 = vunpack.c.l.b16 %v7197
        %v7266 = vunpack.c.l.b16 %v7198
        %v7267 = vunpack.c.l.b16 %v7199
        %v7268 = vpack.c.b16 %v7237, %v7236
        %v7269 = vpack.c.b16 %v7239, %v7238
        %v7270 = vpack.c.b16 %v7241, %v7240
        %v7271 = vpack.c.b16 %v7243, %v7242
        %v7272 = vpack.c.b16 %v7245, %v7244
        %v7273 = vpack.c.b16 %v7247, %v7246
        %v7274 = vpack.c.b16 %v7249, %v7248
        %v7275 = vpack.c.b16 %v7251, %v7250
        %v7276 = vpack.c.b16 %v7253, %v7252
        %v7277 = vpack.c.b16 %v7255, %v7254
        %v7278 = vpack.c.b16 %v7257, %v7256
        %v7279 = vpack.c.b16 %v7259, %v7258
        %v7280 = vpack.c.b16 %v7261, %v7260
        %v7281 = vpack.c.b16 %v7263, %v7262
        %v7282 = vpack.c.b16 %v7265, %v7264
        %v7283 = vpack.c.b16 %v7267, %v7266
        %7300 = vmatpush.bf16.msra.mxu0 %v7275
        %7301 = vmatpush.bf16.msra.mxu0 %v7274
        %7302 = vmatpush.bf16.msra.mxu0 %v7273
        %7303 = vmatpush.bf16.msra.mxu0 %v7272
        %7304 = vmatpush.bf16.msra.mxu0 %v7271
        %7305 = vmatpush.bf16.msra.mxu0 %v7270
        %7306 = vmatpush.bf16.msra.mxu0 %v7269
        %7307 = vmatpush.bf16.msra.mxu0 %v7268
        %7308 = vmatmul.bf16.gmra.mxu0 %v7166
        %v7309 = vpop.f32.mrf.mxu0
        %v7310 = vadd.f32 %v7202, %v7309
        %v7311 = vpop.f32.mrf.mxu0
        %7312 = vdwg.mxu0
        %7313 = vmatpush.bf16.msra.mxu0 %v7283
        %7314 = vmatpush.bf16.msra.mxu0 %v7282
        %7315 = vmatpush.bf16.msra.mxu0 %v7281
        %7316 = vmatpush.bf16.msra.mxu0 %v7280
        %7317 = vmatpush.bf16.msra.mxu0 %v7279
        %7318 = vmatpush.bf16.msra.mxu0 %v7278
        %7319 = vmatpush.bf16.msra.mxu0 %v7277
        %7320 = vmatpush.bf16.msra.mxu0 %v7276
        %7321 = vmatmul.bf16.gmra.mxu0 %v7167
        %v7322 = vpop.f32.mrf.mxu0
        %v7323 = vadd.f32 %v7310, %v7322
        %v7324 = vpop.f32.mrf.mxu0
        %7325 = vdwg.mxu0
        %v7326 = vadd.f32 %v7031, %v7323
        %v7327 = vld [vmem:[#allocation48] sm:$0x1]
        %v7328 = vld [vmem:[#allocation49] sm:$0x1]
        %v7329 = vsel %vm4663, %v7326, 0.0
        %7330 = vadd.xlane.f32.xlu0 %v7329
        %v7331 = vpop.xlane.xlu0 %7330
        %v7332 = vmul.f32 %v7331, %v4673
        %v7333 = vsub.f32 %v7326, %v7332
        %v7334 = vmul.f32 %v7333, %v7333
        %v7335 = vsel %vm4663, %v7334, 0.0
        %7336 = vadd.xlane.f32.xlu0 %v7335
        %v7337 = vpop.xlane.xlu0 %7336
        %v7338 = vmul.f32 %v7337, %v4673
        %v7339 = vadd.f32 %v7338, 1e-05
        %v7340 = vrsqrt.pop %v7339
        %v7341 = vmul.f32 %v7340, %v7339
        %v7342 = vmul.f32 %v7341, %v7340
        %v7343 = vmul.f32 0.5, %v7342
        %v7344 = vsub.f32 1.5, %v7343
        %v7345 = vmul.f32 %v7340, %v7344
        %vm7346 = vweird.f32 %v7339
        %vm7347 = vweird.f32 %v7340
        %vm7348 = vmor %vm7346, %vm7347
        %v7349 = vsel %vm7348, %v7340, %v7345
        %v7350 = vmul.f32 %v7333, %v7349
        %v7352 = vperm.slane %v7327, 0
        %v7354 = vmul.f32 %v7350, %v7352
        %v7356 = vperm.slane %v7328, 0
        %v7358 = vadd.f32 %v7354, %v7356
        %v7359 = vsel %vm4663, %v7358, 0.0
        %v7360 = vrot.slane %v7359, 4
        %v7361 = vadd.f32 %v7359, %v7360
        %v7362 = vrot.slane %v7361, 2
        %v7363 = vadd.f32 %v7361, %v7362
        %v7364 = vrot.slane %v7363, 1
        %v7365 = vadd.f32 %v7363, %v7364
        %v7366 = vrcp.pop 4.0
        %v7367 = vmul.f32 4.0, %v7366
        %v7368 = vsub.f32 1.0, %v7367
        %v7369 = vmul.f32 %v7366, %v7368
        %v7370 = vadd.f32 %v7366, %v7369
        %vm7371 = vweird.f32 %v7366
        %v7372 = vsel %vm7371, %v7366, %v7370
        %v7373 = vmul.f32 %v7365, %v7372
        %7374 = vst.msk [vmem:[%s2765] sm:$0xff] %vm4738, %v7373
        %p7375 = scmp.lt.s32.totalorder %s187, 1
        %s7376 = scalar_select %p7375, %s187, 1
        %s7377 = smul.addr %s7376, 8
        %s7378 = scalar_lea.vmem %s159, %s7377
        // Predicated region
        $region465: #{forward_features.1} parent=335 // pred_check
          %p7379 = pneg %p1869
        $region466: #{forward_features.1} parent=335 // pred_check_branch
          %7381 = sbr.rel (%p7379) target = $region468
        $region467: #{forward_features.1} parent=335 // pred_region
          _
        $region468: #{forward_features.1} parent=335 // pred_fallthru
          _
      $region336: #{forward_features.1} parent=5 // pred_fallthru
        _
      %p7382 = scmp.le.s32.totalorder 2, %s182
      // Predicated region
      $region469: #{forward_features.1} parent=5 // pred_check
        %p7383 = pneg %p7382
      $region470: #{forward_features.1} parent=5 // pred_check_branch
        %7385 = sbr.rel (%p7383) target = $region472
      $region471: #{forward_features.1} parent=5 // pred_region
        %s7386 = ssub.s32 %s182, 2
        // Predicated region
        $region473: #{forward_features.1} parent=471 // pred_check
          %p7387 = pneg %p1875
        $region474: #{forward_features.1} parent=471 // pred_check_branch
          %7389 = sbr.rel (%p7387) target = $region476
        $region475: #{forward_features.1} parent=471 // pred_region
          %p7390 = scmp.lt.s32.totalorder %s188, 1
          %s7391 = scalar_select %p7390, %s188, 1
          %s7392 = smul.addr %s7391, 8
          %s7393 = scalar_lea.vmem %s159, %s7392
        $region476: #{forward_features.1} parent=471 // pred_fallthru
          _
      $region472: #{forward_features.1} parent=5 // pred_fallthru
        _
    $region6: #{forward_features.1} parent=1 // loop_footer
      %s186 = sadd.s32 1, %s182
    $region7: #{forward_features.1} parent=1 // loop_footer_branch
      %181 = sbr.rel target = $region3
    $region8: #{forward_features.1} parent=1 // loop_exit
      _
    %7394 = vsyncpa [#allocation3], 1
    %s7395 = scalar_lea.sflag [#allocation3], 1
    %7396 = vsyncpa %s7395, 1
    %7397 = vsyncpa [#allocation5], 1
    %7398 = vsyncpa [#allocation8], 1
    %7399 = vsyncpa [#allocation11], 1
    %7400 = vsyncpa [#allocation14], 1
    %7401 = vsyncpa [#allocation17], 1
    %7402 = vsyncpa [#allocation20], 1
    %7403 = vsyncpa [#allocation23], 1
    %7404 = vsyncpa [#allocation26], 1
    %7405 = vsyncpa [#allocation29], 1
    %7406 = vsyncpa [#allocation32], 1
    %7407 = vsyncpa [#allocation35], 1
    %7408 = vsyncpa [#allocation38], 1
    %7409 = vsyncpa [#allocation41], 1
    %7410 = vsyncpa [#allocation44], 1
    %7411 = vsyncpa [#allocation47], 1
    %7412 = vsyncpa [#allocation50], 1

</llo_original>
